<compile_context>
chip_gen: v5e
topology: v5e:2x2
jax: 0.10.0
libtpu: 0.0.40
codegen_flags: <defaults>
</compile_context>

<pallas_src>
import jax
import jax.numpy as jnp
from jax import lax
from jax.experimental import pallas as pl
from jax.experimental.pallas import tpu as pltpu


# Matmul operand dtype.  Keep f32 for exact validation; set to jnp.bfloat16 on
# v6e / v7x for full MXU throughput (accumulation stays f32 either way).
MATMUL_DTYPE = jnp.float32


# ----------------------------- Pallas kernels ------------------------------


def _bottleneck_body(x_ref, m_ref, w1_ref, b1_ref, w2_ref, b2_ref, w3_ref,
                     b3_ref, ew_ref, eb_ref, o_ref, xm_scr, m_scr, col_scr):
    # x_ref : (1, H, W, cin)      m_ref : (1, H, W, 1)
    # w1    : (cin, width)        b1    : (1, width)
    # w2    : (9*width, width)    b2    : (1, width)       (3x3 conv, im2col layout)
    # w3    : (width, cout)       b3    : (1, cout)
    # ew/eb : (cin, cout)/(1, cout) or None (identity passthrough when cin == cout)
    # o_ref : (1, H, W, cout)
    # xm_scr: (H+2, W+2, width)   m_scr : (H+2, W+2, 1)    col_scr: (H*W, 9*width)
    H, W, cout = o_ref.shape[1], o_ref.shape[2], o_ref.shape[3]
    cin = x_ref.shape[3]
    width = w1_ref.shape[1]
    mm = col_scr.dtype

    x2 = x_ref[0].reshape(H * W, cin)                      # rows for the 1x1 convs
    msk = m_ref[0]                                         # (H, W, 1)

    # ---- conv1 (1x1) + bias + ReLU -----------------------------------------
    h = jnp.dot(x2.astype(mm), w1_ref[...].astype(mm),
                preferred_element_type=jnp.float32)
    h = jnp.maximum(h + b1_ref[...], 0.0)                  # (H*W, width)

    # ---- MASConv 3x3 (stride 1, pad 1), halo handled in VMEM ----------------
    xm_scr[...] = jnp.zeros_like(xm_scr)
    m_scr[...] = jnp.zeros_like(m_scr)
    xm_scr[1:H + 1, 1:W + 1, :] = (h.reshape(H, W, width) * msk).astype(xm_scr.dtype)
    m_scr[1:H + 1, 1:W + 1, :] = msk

    counts = jnp.zeros((H, W, 1), jnp.float32)
    k = 0
    for dy in range(3):
        for dx in range(3):
            # im2col: patch (dy, dx) fills channel slot k of the (H*W, 9*width) matrix
            col_scr[:, k * width:(k + 1) * width] = (
                xm_scr[dy:dy + H, dx:dx + W, :].reshape(H * W, width))
            counts = counts + m_scr[dy:dy + H, dx:dx + W, :]
            k += 1

    acc2 = jnp.dot(col_scr[...], w2_ref[...].astype(mm),
                   preferred_element_type=jnp.float32)     # single K = 9*width matmul
    inv = pl.reciprocal(jnp.maximum(counts, 1e-5), approx=True)
    h2 = acc2.reshape(H, W, width) * inv + b2_ref[...]
    h2 = jnp.maximum(h2, 0.0).reshape(H * W, width)        # MASConv + bias + ReLU

    # ---- conv3 (1x1) + fused expand identity + residual + ReLU --------------
    out = jnp.dot(h2.astype(mm), w3_ref[...].astype(mm),
                  preferred_element_type=jnp.float32) + b3_ref[...]
    if ew_ref is not None:
        ident = jnp.dot(x2.astype(mm), ew_ref[...].astype(mm),
                        preferred_element_type=jnp.float32) + eb_ref[...]
    else:
        ident = x2.astype(jnp.float32)
    out = jnp.maximum(out + ident, 0.0)
    o_ref[0] = out.reshape(H, W, cout).astype(o_ref.dtype)


def _bottleneck_expand_kernel(x_ref, m_ref, w1_ref, b1_ref, w2_ref, b2_ref,
                              w3_ref, b3_ref, ew_ref, eb_ref, o_ref,
                              xm_scr, m_scr, col_scr):
    _bottleneck_body(x_ref, m_ref, w1_ref, b1_ref, w2_ref, b2_ref, w3_ref,
                     b3_ref, ew_ref, eb_ref, o_ref, xm_scr, m_scr, col_scr)


def _bottleneck_plain_kernel(x_ref, m_ref, w1_ref, b1_ref, w2_ref, b2_ref,
                             w3_ref, b3_ref, o_ref, xm_scr, m_scr, col_scr):
    _bottleneck_body(x_ref, m_ref, w1_ref, b1_ref, w2_ref, b2_ref, w3_ref,
                     b3_ref, None, None, o_ref, xm_scr, m_scr, col_scr)


def _maspool_kernel(x00_ref, x01_ref, x10_ref, x11_ref,
                    m00_ref, m01_ref, m10_ref, m11_ref,
                    w_ref, b_ref, xo_ref, mo_ref, col_scr):
    # Phase (a, b) of the zero-padded input: phase[i, j] = padded[2*i + a, 2*j + b].
    # Stride-2 3x3 conv patch (dy, dx) is a *contiguous* slice of phase (dy%2, dx%2).
    Ho, Wo, cout = xo_ref.shape[1], xo_ref.shape[2], xo_ref.shape[3]
    C = x00_ref.shape[3]
    mm = col_scr.dtype

    xph = ((x00_ref[0], x01_ref[0]), (x10_ref[0], x11_ref[0]))
    mph = ((m00_ref[0], m01_ref[0]), (m10_ref[0], m11_ref[0]))

    counts = jnp.zeros((Ho, Wo, 1), jnp.float32)
    k = 0
    for dy in range(3):
        for dx in range(3):
            pa, pb = dy % 2, dx % 2
            r0, c0 = dy // 2, dx // 2
            xp = xph[pa][pb][r0:r0 + Ho, c0:c0 + Wo, :]
            mp = mph[pa][pb][r0:r0 + Ho, c0:c0 + Wo, :]
            col_scr[:, k * C:(k + 1) * C] = (xp * mp).reshape(Ho * Wo, C).astype(mm)
            counts = counts + mp
            k += 1

    acc = jnp.dot(col_scr[...], w_ref[...].astype(mm),
                  preferred_element_type=jnp.float32)      # (Ho*Wo, cout), K = 9*C
    inv = pl.reciprocal(jnp.maximum(counts, 1e-5), approx=True)
    out = acc.reshape(Ho, Wo, cout) * inv + b_ref[...]
    xo_ref[0] = out.astype(xo_ref.dtype)

    # Fused MaxPool2d(2, 2) of the mask, from the same padded phases:
    #   m[2y, 2x]     = phase(1,1)[y,   x  ]   m[2y, 2x+1]   = phase(1,0)[y,   x+1]
    #   m[2y+1, 2x]   = phase(0,1)[y+1, x  ]   m[2y+1, 2x+1] = phase(0,0)[y+1, x+1]
    p00, p01, p10, p11 = mph[0][0], mph[0][1], mph[1][0], mph[1][1]
    mo = jnp.maximum(jnp.maximum(p11[0:Ho, 0:Wo, :], p10[0:Ho, 1:Wo + 1, :]),
                     jnp.maximum(p01[1:Ho + 1, 0:Wo, :], p00[1:Ho + 1, 1:Wo + 1, :]))
    mo_ref[0] = mo.astype(mo_ref.dtype)


# --------------------------- module wrappers (glue) --------------------------


def bottleneck_forward(p, x, m):
    """BottleneckSparse (use_norm=False => bias=True everywhere, no BN). One kernel."""
    N, H, W, cin = x.shape
    width = p["conv1_w"].shape[1]
    cout = p["conv3_w"].shape[1]
    has_expand = "expand_w" in p
    w2 = p["conv2_w"].reshape(9 * width, width)            # (dy, dx, cin) major; matches im2col

    args = [x, m,
            p["conv1_w"], p["conv1_b"].reshape(1, width),
            w2, p["conv2_b"].reshape(1, width),
            p["conv3_w"], p["conv3_b"].reshape(1, cout)]
    in_specs = [
        pl.BlockSpec((1, H, W, cin), lambda n: (n, 0, 0, 0)),
        pl.BlockSpec((1, H, W, 1), lambda n: (n, 0, 0, 0)),
        pl.BlockSpec((cin, width), lambda n: (0, 0)),
        pl.BlockSpec((1, width), lambda n: (0, 0)),
        pl.BlockSpec((9 * width, width), lambda n: (0, 0)),
        pl.BlockSpec((1, width), lambda n: (0, 0)),
        pl.BlockSpec((width, cout), lambda n: (0, 0)),
        pl.BlockSpec((1, cout), lambda n: (0, 0)),
    ]
    if has_expand:
        args += [p["expand_w"], p["expand_b"].reshape(1, cout)]
        in_specs += [pl.BlockSpec((cin, cout), lambda n: (0, 0)),
                     pl.BlockSpec((1, cout), lambda n: (0, 0))]
        kern = _bottleneck_expand_kernel
    else:
        kern = _bottleneck_plain_kernel

    out = pl.pallas_call(
        kern,
        out_shape=jax.ShapeDtypeStruct((N, H, W, cout), x.dtype),
        grid=(N,),
        in_specs=in_specs,
        out_specs=pl.BlockSpec((1, H, W, cout), lambda n: (n, 0, 0, 0)),
        scratch_shapes=[
            pltpu.VMEM((H + 2, W + 2, width), MATMUL_DTYPE),   # zero-padded x*m
            pltpu.VMEM((H + 2, W + 2, 1), jnp.float32),        # zero-padded mask
            pltpu.VMEM((H * W, 9 * width), MATMUL_DTYPE),      # im2col matrix
        ],
        compiler_params=pltpu.CompilerParams(dimension_semantics=("parallel",)),
    )(*args)
    return out, m


def pool_forward(p, x, m):
    """MASPool: stride-2 MASConv (bias) on x + MaxPool2d(2,2) on m, one kernel."""
    N, H, W, C = x.shape
    Ho, Wo = H // 2, W // 2
    Hp, Wp = Ho + 1, Wo + 1
    xp = jnp.pad(x, ((0, 0), (1, 1), (1, 1), (0, 0)))
    mp = jnp.pad(m, ((0, 0), (1, 1), (1, 1), (0, 0)))
    xph = [xp[:, a::2, b::2, :] for a in (0, 1) for b in (0, 1)]   # phases (0,0)..(1,1)
    mph = [mp[:, a::2, b::2, :] for a in (0, 1) for b in (0, 1)]
    w2 = p["down_w"].reshape(9 * C, C)

    in_specs = ([pl.BlockSpec((1, Hp, Wp, C), lambda n: (n, 0, 0, 0))] * 4 +
                [pl.BlockSpec((1, Hp, Wp, 1), lambda n: (n, 0, 0, 0))] * 4 +
                [pl.BlockSpec((9 * C, C), lambda n: (0, 0)),
                 pl.BlockSpec((1, C), lambda n: (0, 0))])

    xo, mo = pl.pallas_call(
        _maspool_kernel,
        out_shape=(jax.ShapeDtypeStruct((N, Ho, Wo, C), x.dtype),
                   jax.ShapeDtypeStruct((N, Ho, Wo, 1), m.dtype)),
        grid=(N,),
        in_specs=in_specs,
        out_specs=(pl.BlockSpec((1, Ho, Wo, C), lambda n: (n, 0, 0, 0)),
                   pl.BlockSpec((1, Ho, Wo, 1), lambda n: (n, 0, 0, 0))),
        scratch_shapes=[pltpu.VMEM((Ho * Wo, 9 * C), MATMUL_DTYPE)],
        compiler_params=pltpu.CompilerParams(dimension_semantics=("parallel",)),
    )(*xph, *mph, w2, p["down_b"].reshape(1, C))
    return xo, mo


def resmod_forward(params, x, m):
    x, m = bottleneck_forward(params["expand"], x, m)
    x, m = pool_forward(params["pool"], x, m)
    for lp in params["layers"]:
        x, m = bottleneck_forward(lp, x, m)
    return x, m


# --------------------------- parameter construction -------------------------


def init_bottleneck(key, cin, cout, scale=0.1):
    width = int(cout * 0.5)
    ks = jax.random.split(key, 8)
    p = {
        "conv1_w": jax.random.normal(ks[0], (cin, width), jnp.float32) * scale,
        "conv1_b": jax.random.normal(ks[1], (width,), jnp.float32) * 0.01,
        "conv2_w": jax.random.normal(ks[2], (3, 3, width, width), jnp.float32) * scale,
        "conv2_b": jax.random.normal(ks[3], (width,), jnp.float32) * 0.01,
        "conv3_w": jax.random.normal(ks[4], (width, cout), jnp.float32) * scale,
        "conv3_b": jax.random.normal(ks[5], (cout,), jnp.float32) * 0.01,
    }
    if cin != cout:
        p["expand_w"] = jax.random.normal(ks[6], (cin, cout), jnp.float32) * scale
        p["expand_b"] = jax.random.normal(ks[7], (cout,), jnp.float32) * 0.01
    return p


def init_resmod(key, cin, cout, reps):
    keys = jax.random.split(key, reps + 2)
    return {
        "expand": init_bottleneck(keys[0], cin, cout),
        "pool": {
            "down_w": jax.random.normal(keys[1], (3, 3, cout, cout), jnp.float32) * 0.1,
            "down_b": jnp.zeros((cout,), jnp.float32),  # MASConv bias init is zeros
        },
        "layers": [init_bottleneck(keys[2 + i], cout, cout) for i in range(reps)],
    }


# ------------------------------ pure-JAX reference ---------------------------


def _conv_ref(x, w, stride, pad):
    return lax.conv_general_dilated(x, w, (stride, stride),
                                    [(pad, pad), (pad, pad)],
                                    dimension_numbers=("NHWC", "HWIO", "NHWC"))


def _masconv_ref(x, m, w, b, stride=1):
    y = _conv_ref(x * m, w, stride, 1)
    mc = _conv_ref(m, jnp.ones((3, 3, 1, 1), x.dtype), stride, 1)
    mc = jnp.maximum(mc, 1e-5)
    return y / mc + b.reshape(1, 1, 1, -1)


def _pw_ref(x, w, b):
    return jnp.einsum("nhwc,co->nhwo", x, w) + b.reshape(1, 1, 1, -1)


def _bottleneck_ref(p, x, m):
    out = jax.nn.relu(_pw_ref(x, p["conv1_w"], p["conv1_b"]))
    out = jax.nn.relu(_masconv_ref(out, m, p["conv2_w"], p["conv2_b"], 1))
    out = _pw_ref(out, p["conv3_w"], p["conv3_b"])
    identity = _pw_ref(x, p["expand_w"], p["expand_b"]) if "expand_w" in p else x
    return jax.nn.relu(out + identity), m


def _resmod_ref(params, x, m):
    x, m = _bottleneck_ref(params["expand"], x, m)
    x = _masconv_ref(x, m, params["pool"]["down_w"], params["pool"]["down_b"], 2)
    N, H, W, _ = m.shape
    m = m.reshape(N, H // 2, 2, W // 2, 2, 1).max(axis=(2, 4))
    for lp in params["layers"]:
        x, m = _bottleneck_ref(lp, x, m)
    return x, m


# ----------------------------------- main ------------------------------------

if __name__ == "__main__":
    key = jax.random.PRNGKey(0)
    k_x, k_m, k_p = jax.random.split(key, 3)

    N, cin, cout, H, W, reps = 2, 4, 8, 16, 16, 2
    x = jax.random.normal(k_x, (N, H, W, cin), jnp.float32)          # NHWC
    m = (jax.random.uniform(k_m, (N, H, W, 1)) > 0.3).astype(jnp.float32)

    params = init_resmod(k_p, cin, cout, reps)

    fwd = jax.jit(resmod_forward)
    out, m_out = jax.block_until_ready(fwd(params, x, m))
    assert out.shape == (N, H // 2, W // 2, cout), out.shape
    assert m_out.shape == (N, H // 2, W // 2, 1), m_out.shape

    ref_out, ref_m = _resmod_ref(params, x, m)
    # tolerance 2e-3 to cover the EUP approximate reciprocal in the MASConv normalisation
    assert jnp.allclose(out, ref_out, atol=2e-3, rtol=2e-3), \
        float(jnp.max(jnp.abs(out - ref_out)))
    assert jnp.allclose(m_out, ref_m), "mask maxpool mismatch"

    print("KERNEL_OK")
</pallas_src>

<mosaic_0001>
module attributes {stable_mosaic.version = 11 : i64} {
  func.func @_bottleneck_expand_kernel(%arg0: i32, %arg1: memref<1x16x16x4xf32, #tpu.memory_space<vmem>>, %arg2: memref<1x16x16x1xf32, #tpu.memory_space<vmem>>, %arg3: memref<4x4xf32, #tpu.memory_space<vmem>>, %arg4: memref<1x4xf32, #tpu.memory_space<vmem>>, %arg5: memref<36x4xf32, #tpu.memory_space<vmem>>, %arg6: memref<1x4xf32, #tpu.memory_space<vmem>>, %arg7: memref<4x8xf32, #tpu.memory_space<vmem>>, %arg8: memref<1x8xf32, #tpu.memory_space<vmem>>, %arg9: memref<4x8xf32, #tpu.memory_space<vmem>>, %arg10: memref<1x8xf32, #tpu.memory_space<vmem>>, %arg11: memref<1x16x16x8xf32, #tpu.memory_space<vmem>>, %arg12: memref<18x18x4xf32, #tpu.memory_space<vmem>>, %arg13: memref<18x18x1xf32, #tpu.memory_space<vmem>>, %arg14: memref<256x36xf32, #tpu.memory_space<vmem>>) attributes {dimension_semantics = [#tpu.dimension_semantics<parallel>], iteration_bounds = array<i64: 2>, scalar_prefetch = 0 : i64, scratch_operands = 3 : i64, tpu.core_type = #tpu.core_type<tc>, window_params = [{transform_indices = @transform_0, window_bounds = array<i64: 1, 16, 16, 4>}, {transform_indices = @transform_1, window_bounds = array<i64: 1, 16, 16, 1>}, {pipeline_mode = #tpu.pipeline_mode<synchronous>, transform_indices = @transform_2, window_bounds = array<i64: 4, 4>}, {pipeline_mode = #tpu.pipeline_mode<synchronous>, transform_indices = @transform_3, window_bounds = array<i64: 1, 4>}, {pipeline_mode = #tpu.pipeline_mode<synchronous>, transform_indices = @transform_4, window_bounds = array<i64: 36, 4>}, {pipeline_mode = #tpu.pipeline_mode<synchronous>, transform_indices = @transform_5, window_bounds = array<i64: 1, 4>}, {pipeline_mode = #tpu.pipeline_mode<synchronous>, transform_indices = @transform_6, window_bounds = array<i64: 4, 8>}, {pipeline_mode = #tpu.pipeline_mode<synchronous>, transform_indices = @transform_7, window_bounds = array<i64: 1, 8>}, {pipeline_mode = #tpu.pipeline_mode<synchronous>, transform_indices = @transform_8, window_bounds = array<i64: 4, 8>}, {pipeline_mode = #tpu.pipeline_mode<synchronous>, transform_indices = @transform_9, window_bounds = array<i64: 1, 8>}, {transform_indices = @transform_10, window_bounds = array<i64: 1, 16, 16, 8>}]} {
    %c0 = arith.constant 0 : index
    %c0_0 = arith.constant 0 : index
    %c0_1 = arith.constant 0 : index
    %c0_2 = arith.constant 0 : index
    %0 = vector.load %arg1[%c0, %c0_0, %c0_1, %c0_2] : memref<1x16x16x4xf32, #tpu.memory_space<vmem>>, vector<1x16x16x4xf32>
    %1 = vector.shape_cast %0 : vector<1x16x16x4xf32> to vector<16x16x4xf32>
    %2 = vector.shape_cast %1 : vector<16x16x4xf32> to vector<256x4xf32>
    %c0_3 = arith.constant 0 : index
    %c0_4 = arith.constant 0 : index
    %c0_5 = arith.constant 0 : index
    %c0_6 = arith.constant 0 : index
    %3 = vector.load %arg2[%c0_3, %c0_4, %c0_5, %c0_6] : memref<1x16x16x1xf32, #tpu.memory_space<vmem>>, vector<1x16x16x1xf32>
    %4 = vector.shape_cast %3 : vector<1x16x16x1xf32> to vector<16x16x1xf32>
    %c0_7 = arith.constant 0 : index
    %c0_8 = arith.constant 0 : index
    %5 = vector.load %arg3[%c0_7, %c0_8] : memref<4x4xf32, #tpu.memory_space<vmem>>, vector<4x4xf32>
    %cst = arith.constant dense<0.000000e+00> : vector<256x4xf32>
    %6 = tpu.matmul %2, %5, %cst {dimension_numbers = #tpu.dot_dimension_numbers<[1], [0], [0], [1], [0, 0, 1, 1], [], []>} : vector<256x4xf32>, vector<4x4xf32>, vector<256x4xf32> -> vector<256x4xf32>
    %c0_9 = arith.constant 0 : index
    %c0_10 = arith.constant 0 : index
    %7 = vector.load %arg4[%c0_9, %c0_10] : memref<1x4xf32, #tpu.memory_space<vmem>>, vector<1x4xf32>
    %8 = vector.broadcast %7 : vector<1x4xf32> to vector<256x4xf32>
    %9 = arith.addf %6, %8 : vector<256x4xf32>
    %cst_11 = arith.constant 0.000000e+00 : f32
    %10 = vector.broadcast %cst_11 : f32 to vector<256x4xf32>
    %11 = arith.maximumf %9, %10 : vector<256x4xf32>
    %cst_12 = arith.constant 0.000000e+00 : f32
    %12 = vector.broadcast %cst_12 : f32 to vector<18x18x4xf32>
    %c0_13 = arith.constant 0 : index
    %c0_14 = arith.constant 0 : index
    %c0_15 = arith.constant 0 : index
    %13 = vector.load %arg12[%c0_13, %c0_14, %c0_15] : memref<18x18x4xf32, #tpu.memory_space<vmem>>, vector<18x18x4xf32>
    tpu.vector_store %arg12[%c0_13, %c0_14, %c0_15], %12 {strides = array<i32>} : memref<18x18x4xf32, #tpu.memory_space<vmem>>, vector<18x18x4xf32>,
    %cst_16 = arith.constant 0.000000e+00 : f32
    %14 = vector.broadcast %cst_16 : f32 to vector<18x18x1xf32>
    %c0_17 = arith.constant 0 : index
    %c0_18 = arith.constant 0 : index
    %c0_19 = arith.constant 0 : index
    %15 = vector.load %arg13[%c0_17, %c0_18, %c0_19] : memref<18x18x1xf32, #tpu.memory_space<vmem>>, vector<18x18x1xf32>
    tpu.vector_store %arg13[%c0_17, %c0_18, %c0_19], %14 {strides = array<i32>} : memref<18x18x1xf32, #tpu.memory_space<vmem>>, vector<18x18x1xf32>,
    %16 = vector.shape_cast %11 : vector<256x4xf32> to vector<16x16x4xf32>
    %17 = vector.broadcast %4 : vector<16x16x1xf32> to vector<16x16x4xf32>
    %18 = arith.mulf %16, %17 : vector<16x16x4xf32>
    %c1 = arith.constant 1 : index
    %c1_20 = arith.constant 1 : index
    %c0_21 = arith.constant 0 : index
    %19 = vector.load %arg12[%c1, %c1_20, %c0_21] : memref<18x18x4xf32, #tpu.memory_space<vmem>>, vector<16x16x4xf32>
    tpu.vector_store %arg12[%c1, %c1_20, %c0_21], %18 {strides = array<i32>} : memref<18x18x4xf32, #tpu.memory_space<vmem>>, vector<16x16x4xf32>,
    %c1_22 = arith.constant 1 : index
    %c1_23 = arith.constant 1 : index
    %c0_24 = arith.constant 0 : index
    %20 = vector.load %arg13[%c1_22, %c1_23, %c0_24] : memref<18x18x1xf32, #tpu.memory_space<vmem>>, vector<16x16x1xf32>
    tpu.vector_store %arg13[%c1_22, %c1_23, %c0_24], %4 {strides = array<i32>} : memref<18x18x1xf32, #tpu.memory_space<vmem>>, vector<16x16x1xf32>,
    %cst_25 = arith.constant 0.000000e+00 : f32
    %21 = vector.broadcast %cst_25 : f32 to vector<16x16x1xf32>
    %c0_26 = arith.constant 0 : index
    %c0_27 = arith.constant 0 : index
    %c0_28 = arith.constant 0 : index
    %22 = vector.load %arg12[%c0_26, %c0_27, %c0_28] : memref<18x18x4xf32, #tpu.memory_space<vmem>>, vector<16x16x4xf32>
    %23 = vector.shape_cast %22 : vector<16x16x4xf32> to vector<256x4xf32>
    %c0_29 = arith.constant 0 : index
    %c0_30 = arith.constant 0 : index
    %24 = vector.load %arg14[%c0_29, %c0_30] : memref<256x36xf32, #tpu.memory_space<vmem>>, vector<256x4xf32>
    tpu.vector_store %arg14[%c0_29, %c0_30], %23 {strides = array<i32>} : memref<256x36xf32, #tpu.memory_space<vmem>>, vector<256x4xf32>,
    %c0_31 = arith.constant 0 : index
    %c0_32 = arith.constant 0 : index
    %c0_33 = arith.constant 0 : index
    %25 = vector.load %arg13[%c0_31, %c0_32, %c0_33] : memref<18x18x1xf32, #tpu.memory_space<vmem>>, vector<16x16x1xf32>
    %26 = arith.addf %21, %25 : vector<16x16x1xf32>
    %c0_34 = arith.constant 0 : index
    %c1_35 = arith.constant 1 : index
    %c0_36 = arith.constant 0 : index
    %27 = vector.load %arg12[%c0_34, %c1_35, %c0_36] : memref<18x18x4xf32, #tpu.memory_space<vmem>>, vector<16x16x4xf32>
    %28 = vector.shape_cast %27 : vector<16x16x4xf32> to vector<256x4xf32>
    %c0_37 = arith.constant 0 : index
    %c4 = arith.constant 4 : index
    %29 = vector.load %arg14[%c0_37, %c4] : memref<256x36xf32, #tpu.memory_space<vmem>>, vector<256x4xf32>
    tpu.vector_store %arg14[%c0_37, %c4], %28 {strides = array<i32>} : memref<256x36xf32, #tpu.memory_space<vmem>>, vector<256x4xf32>,
    %c0_38 = arith.constant 0 : index
    %c1_39 = arith.constant 1 : index
    %c0_40 = arith.constant 0 : index
    %30 = vector.load %arg13[%c0_38, %c1_39, %c0_40] : memref<18x18x1xf32, #tpu.memory_space<vmem>>, vector<16x16x1xf32>
    %31 = arith.addf %26, %30 : vector<16x16x1xf32>
    %c0_41 = arith.constant 0 : index
    %c2 = arith.constant 2 : index
    %c0_42 = arith.constant 0 : index
    %32 = vector.load %arg12[%c0_41, %c2, %c0_42] : memref<18x18x4xf32, #tpu.memory_space<vmem>>, vector<16x16x4xf32>
    %33 = vector.shape_cast %32 : vector<16x16x4xf32> to vector<256x4xf32>
    %c0_43 = arith.constant 0 : index
    %c8 = arith.constant 8 : index
    %34 = vector.load %arg14[%c0_43, %c8] : memref<256x36xf32, #tpu.memory_space<vmem>>, vector<256x4xf32>
    tpu.vector_store %arg14[%c0_43, %c8], %33 {strides = array<i32>} : memref<256x36xf32, #tpu.memory_space<vmem>>, vector<256x4xf32>,
    %c0_44 = arith.constant 0 : index
    %c2_45 = arith.constant 2 : index
    %c0_46 = arith.constant 0 : index
    %35 = vector.load %arg13[%c0_44, %c2_45, %c0_46] : memref<18x18x1xf32, #tpu.memory_space<vmem>>, vector<16x16x1xf32>
    %36 = arith.addf %31, %35 : vector<16x16x1xf32>
    %c1_47 = arith.constant 1 : index
    %c0_48 = arith.constant 0 : index
    %c0_49 = arith.constant 0 : index
    %37 = vector.load %arg12[%c1_47, %c0_48, %c0_49] : memref<18x18x4xf32, #tpu.memory_space<vmem>>, vector<16x16x4xf32>
    %38 = vector.shape_cast %37 : vector<16x16x4xf32> to vector<256x4xf32>
    %c0_50 = arith.constant 0 : index
    %c12 = arith.constant 12 : index
    %39 = vector.load %arg14[%c0_50, %c12] : memref<256x36xf32, #tpu.memory_space<vmem>>, vector<256x4xf32>
    tpu.vector_store %arg14[%c0_50, %c12], %38 {strides = array<i32>} : memref<256x36xf32, #tpu.memory_space<vmem>>, vector<256x4xf32>,
    %c1_51 = arith.constant 1 : index
    %c0_52 = arith.constant 0 : index
    %c0_53 = arith.constant 0 : index
    %40 = vector.load %arg13[%c1_51, %c0_52, %c0_53] : memref<18x18x1xf32, #tpu.memory_space<vmem>>, vector<16x16x1xf32>
    %41 = arith.addf %36, %40 : vector<16x16x1xf32>
    %c1_54 = arith.constant 1 : index
    %c1_55 = arith.constant 1 : index
    %c0_56 = arith.constant 0 : index
    %42 = vector.load %arg12[%c1_54, %c1_55, %c0_56] : memref<18x18x4xf32, #tpu.memory_space<vmem>>, vector<16x16x4xf32>
    %43 = vector.shape_cast %42 : vector<16x16x4xf32> to vector<256x4xf32>
    %c0_57 = arith.constant 0 : index
    %c16 = arith.constant 16 : index
    %44 = vector.load %arg14[%c0_57, %c16] : memref<256x36xf32, #tpu.memory_space<vmem>>, vector<256x4xf32>
    tpu.vector_store %arg14[%c0_57, %c16], %43 {strides = array<i32>} : memref<256x36xf32, #tpu.memory_space<vmem>>, vector<256x4xf32>,
    %c1_58 = arith.constant 1 : index
    %c1_59 = arith.constant 1 : index
    %c0_60 = arith.constant 0 : index
    %45 = vector.load %arg13[%c1_58, %c1_59, %c0_60] : memref<18x18x1xf32, #tpu.memory_space<vmem>>, vector<16x16x1xf32>
    %46 = arith.addf %41, %45 : vector<16x16x1xf32>
    %c1_61 = arith.constant 1 : index
    %c2_62 = arith.constant 2 : index
    %c0_63 = arith.constant 0 : index
    %47 = vector.load %arg12[%c1_61, %c2_62, %c0_63] : memref<18x18x4xf32, #tpu.memory_space<vmem>>, vector<16x16x4xf32>
    %48 = vector.shape_cast %47 : vector<16x16x4xf32> to vector<256x4xf32>
    %c0_64 = arith.constant 0 : index
    %c20 = arith.constant 20 : index
    %49 = vector.load %arg14[%c0_64, %c20] : memref<256x36xf32, #tpu.memory_space<vmem>>, vector<256x4xf32>
    tpu.vector_store %arg14[%c0_64, %c20], %48 {strides = array<i32>} : memref<256x36xf32, #tpu.memory_space<vmem>>, vector<256x4xf32>,
    %c1_65 = arith.constant 1 : index
    %c2_66 = arith.constant 2 : index
    %c0_67 = arith.constant 0 : index
    %50 = vector.load %arg13[%c1_65, %c2_66, %c0_67] : memref<18x18x1xf32, #tpu.memory_space<vmem>>, vector<16x16x1xf32>
    %51 = arith.addf %46, %50 : vector<16x16x1xf32>
    %c2_68 = arith.constant 2 : index
    %c0_69 = arith.constant 0 : index
    %c0_70 = arith.constant 0 : index
    %52 = vector.load %arg12[%c2_68, %c0_69, %c0_70] : memref<18x18x4xf32, #tpu.memory_space<vmem>>, vector<16x16x4xf32>
    %53 = vector.shape_cast %52 : vector<16x16x4xf32> to vector<256x4xf32>
    %c0_71 = arith.constant 0 : index
    %c24 = arith.constant 24 : index
    %54 = vector.load %arg14[%c0_71, %c24] : memref<256x36xf32, #tpu.memory_space<vmem>>, vector<256x4xf32>
    tpu.vector_store %arg14[%c0_71, %c24], %53 {strides = array<i32>} : memref<256x36xf32, #tpu.memory_space<vmem>>, vector<256x4xf32>,
    %c2_72 = arith.constant 2 : index
    %c0_73 = arith.constant 0 : index
    %c0_74 = arith.constant 0 : index
    %55 = vector.load %arg13[%c2_72, %c0_73, %c0_74] : memref<18x18x1xf32, #tpu.memory_space<vmem>>, vector<16x16x1xf32>
    %56 = arith.addf %51, %55 : vector<16x16x1xf32>
    %c2_75 = arith.constant 2 : index
    %c1_76 = arith.constant 1 : index
    %c0_77 = arith.constant 0 : index
    %57 = vector.load %arg12[%c2_75, %c1_76, %c0_77] : memref<18x18x4xf32, #tpu.memory_space<vmem>>, vector<16x16x4xf32>
    %58 = vector.shape_cast %57 : vector<16x16x4xf32> to vector<256x4xf32>
    %c0_78 = arith.constant 0 : index
    %c28 = arith.constant 28 : index
    %59 = vector.load %arg14[%c0_78, %c28] : memref<256x36xf32, #tpu.memory_space<vmem>>, vector<256x4xf32>
    tpu.vector_store %arg14[%c0_78, %c28], %58 {strides = array<i32>} : memref<256x36xf32, #tpu.memory_space<vmem>>, vector<256x4xf32>,
    %c2_79 = arith.constant 2 : index
    %c1_80 = arith.constant 1 : index
    %c0_81 = arith.constant 0 : index
    %60 = vector.load %arg13[%c2_79, %c1_80, %c0_81] : memref<18x18x1xf32, #tpu.memory_space<vmem>>, vector<16x16x1xf32>
    %61 = arith.addf %56, %60 : vector<16x16x1xf32>
    %c2_82 = arith.constant 2 : index
    %c2_83 = arith.constant 2 : index
    %c0_84 = arith.constant 0 : index
    %62 = vector.load %arg12[%c2_82, %c2_83, %c0_84] : memref<18x18x4xf32, #tpu.memory_space<vmem>>, vector<16x16x4xf32>
    %63 = vector.shape_cast %62 : vector<16x16x4xf32> to vector<256x4xf32>
    %c0_85 = arith.constant 0 : index
    %c32 = arith.constant 32 : index
    %64 = vector.load %arg14[%c0_85, %c32] : memref<256x36xf32, #tpu.memory_space<vmem>>, vector<256x4xf32>
    tpu.vector_store %arg14[%c0_85, %c32], %63 {strides = array<i32>} : memref<256x36xf32, #tpu.memory_space<vmem>>, vector<256x4xf32>,
    %c2_86 = arith.constant 2 : index
    %c2_87 = arith.constant 2 : index
    %c0_88 = arith.constant 0 : index
    %65 = vector.load %arg13[%c2_86, %c2_87, %c0_88] : memref<18x18x1xf32, #tpu.memory_space<vmem>>, vector<16x16x1xf32>
    %66 = arith.addf %61, %65 : vector<16x16x1xf32>
    %c0_89 = arith.constant 0 : index
    %c0_90 = arith.constant 0 : index
    %67 = vector.load %arg14[%c0_89, %c0_90] : memref<256x36xf32, #tpu.memory_space<vmem>>, vector<256x36xf32>
    %c0_91 = arith.constant 0 : index
    %c0_92 = arith.constant 0 : index
    %68 = vector.load %arg5[%c0_91, %c0_92] : memref<36x4xf32, #tpu.memory_space<vmem>>, vector<36x4xf32>
    %cst_93 = arith.constant dense<0.000000e+00> : vector<256x4xf32>
    %69 = tpu.matmul %67, %68, %cst_93 {dimension_numbers = #tpu.dot_dimension_numbers<[1], [0], [0], [1], [0, 0, 1, 1], [], []>} : vector<256x36xf32>, vector<36x4xf32>, vector<256x4xf32> -> vector<256x4xf32>
    %cst_94 = arith.constant 9.99999974E-6 : f32
    %70 = vector.broadcast %cst_94 : f32 to vector<16x16x1xf32>
    %71 = arith.maximumf %66, %70 : vector<16x16x1xf32>
    %72 = tpu.reciprocal %71 {approx = true} : vector<16x16x1xf32> -> vector<16x16x1xf32>
    %73 = vector.shape_cast %69 : vector<256x4xf32> to vector<16x16x4xf32>
    %74 = vector.broadcast %72 : vector<16x16x1xf32> to vector<16x16x4xf32>
    %75 = arith.mulf %73, %74 : vector<16x16x4xf32>
    %c0_95 = arith.constant 0 : index
    %c0_96 = arith.constant 0 : index
    %76 = vector.load %arg6[%c0_95, %c0_96] : memref<1x4xf32, #tpu.memory_space<vmem>>, vector<1x4xf32>
    %77 = vector.shape_cast %76 : vector<1x4xf32> to vector<1x1x4xf32>
    %78 = vector.broadcast %77 : vector<1x1x4xf32> to vector<16x16x4xf32>
    %79 = arith.addf %75, %78 : vector<16x16x4xf32>
    %cst_97 = arith.constant 0.000000e+00 : f32
    %80 = vector.broadcast %cst_97 : f32 to vector<16x16x4xf32>
    %81 = arith.maximumf %79, %80 : vector<16x16x4xf32>
    %82 = vector.shape_cast %81 : vector<16x16x4xf32> to vector<256x4xf32>
    %c0_98 = arith.constant 0 : index
    %c0_99 = arith.constant 0 : index
    %83 = vector.load %arg7[%c0_98, %c0_99] : memref<4x8xf32, #tpu.memory_space<vmem>>, vector<4x8xf32>
    %cst_100 = arith.constant dense<0.000000e+00> : vector<256x8xf32>
    %84 = tpu.matmul %82, %83, %cst_100 {dimension_numbers = #tpu.dot_dimension_numbers<[1], [0], [0], [1], [0, 0, 1, 1], [], []>} : vector<256x4xf32>, vector<4x8xf32>, vector<256x8xf32> -> vector<256x8xf32>
    %c0_101 = arith.constant 0 : index
    %c0_102 = arith.constant 0 : index
    %85 = vector.load %arg8[%c0_101, %c0_102] : memref<1x8xf32, #tpu.memory_space<vmem>>, vector<1x8xf32>
    %86 = vector.broadcast %85 : vector<1x8xf32> to vector<256x8xf32>
    %87 = arith.addf %84, %86 : vector<256x8xf32>
    %c0_103 = arith.constant 0 : index
    %c0_104 = arith.constant 0 : index
    %88 = vector.load %arg9[%c0_103, %c0_104] : memref<4x8xf32, #tpu.memory_space<vmem>>, vector<4x8xf32>
    %cst_105 = arith.constant dense<0.000000e+00> : vector<256x8xf32>
    %89 = tpu.matmul %2, %88, %cst_105 {dimension_numbers = #tpu.dot_dimension_numbers<[1], [0], [0], [1], [0, 0, 1, 1], [], []>} : vector<256x4xf32>, vector<4x8xf32>, vector<256x8xf32> -> vector<256x8xf32>
    %c0_106 = arith.constant 0 : index
    %c0_107 = arith.constant 0 : index
    %90 = vector.load %arg10[%c0_106, %c0_107] : memref<1x8xf32, #tpu.memory_space<vmem>>, vector<1x8xf32>
    %91 = vector.broadcast %90 : vector<1x8xf32> to vector<256x8xf32>
    %92 = arith.addf %89, %91 : vector<256x8xf32>
    %93 = arith.addf %87, %92 : vector<256x8xf32>
    %cst_108 = arith.constant 0.000000e+00 : f32
    %94 = vector.broadcast %cst_108 : f32 to vector<256x8xf32>
    %95 = arith.maximumf %93, %94 : vector<256x8xf32>
    %96 = vector.shape_cast %95 : vector<256x8xf32> to vector<16x16x8xf32>
    %c0_109 = arith.constant 0 : index
    %c0_110 = arith.constant 0 : index
    %c0_111 = arith.constant 0 : index
    %c0_112 = arith.constant 0 : index
    %97 = vector.load %arg11[%c0_109, %c0_110, %c0_111, %c0_112] : memref<1x16x16x8xf32, #tpu.memory_space<vmem>>, vector<1x16x16x8xf32>
    %98 = vector.shape_cast %97 : vector<1x16x16x8xf32> to vector<16x16x8xf32>
    %99 = vector.shape_cast %96 : vector<16x16x8xf32> to vector<1x16x16x8xf32>
    tpu.vector_store %arg11[%c0_109, %c0_110, %c0_111, %c0_112], %99 {strides = array<i32>} : memref<1x16x16x8xf32, #tpu.memory_space<vmem>>, vector<1x16x16x8xf32>,
    return
  }
  func.func @transform_0(%arg0: i32) -> (i32, i32, i32, i32) {
    %c0_i32 = arith.constant 0 : i32
    %c0_i32_0 = arith.constant 0 : i32
    %c0_i32_1 = arith.constant 0 : i32
    %c0_i32_2 = arith.constant 0 : i32
    return %arg0, %c0_i32, %c0_i32_0, %c0_i32_1 : i32, i32, i32, i32
  }
  func.func @transform_1(%arg0: i32) -> (i32, i32, i32, i32) {
    %c0_i32 = arith.constant 0 : i32
    %c0_i32_0 = arith.constant 0 : i32
    %c0_i32_1 = arith.constant 0 : i32
    %c0_i32_2 = arith.constant 0 : i32
    return %arg0, %c0_i32, %c0_i32_0, %c0_i32_1 : i32, i32, i32, i32
  }
  func.func @transform_2(%arg0: i32) -> (i32, i32) {
    %c0_i32 = arith.constant 0 : i32
    %c0_i32_0 = arith.constant 0 : i32
    %c0_i32_1 = arith.constant 0 : i32
    return %c0_i32, %c0_i32_0 : i32, i32
  }
  func.func @transform_3(%arg0: i32) -> (i32, i32) {
    %c0_i32 = arith.constant 0 : i32
    %c0_i32_0 = arith.constant 0 : i32
    %c0_i32_1 = arith.constant 0 : i32
    return %c0_i32, %c0_i32_0 : i32, i32
  }
  func.func @transform_4(%arg0: i32) -> (i32, i32) {
    %c0_i32 = arith.constant 0 : i32
    %c0_i32_0 = arith.constant 0 : i32
    %c0_i32_1 = arith.constant 0 : i32
    return %c0_i32, %c0_i32_0 : i32, i32
  }
  func.func @transform_5(%arg0: i32) -> (i32, i32) {
    %c0_i32 = arith.constant 0 : i32
    %c0_i32_0 = arith.constant 0 : i32
    %c0_i32_1 = arith.constant 0 : i32
    return %c0_i32, %c0_i32_0 : i32, i32
  }
  func.func @transform_6(%arg0: i32) -> (i32, i32) {
    %c0_i32 = arith.constant 0 : i32
    %c0_i32_0 = arith.constant 0 : i32
    %c0_i32_1 = arith.constant 0 : i32
    return %c0_i32, %c0_i32_0 : i32, i32
  }
  func.func @transform_7(%arg0: i32) -> (i32, i32) {
    %c0_i32 = arith.constant 0 : i32
    %c0_i32_0 = arith.constant 0 : i32
    %c0_i32_1 = arith.constant 0 : i32
    return %c0_i32, %c0_i32_0 : i32, i32
  }
  func.func @transform_8(%arg0: i32) -> (i32, i32) {
    %c0_i32 = arith.constant 0 : i32
    %c0_i32_0 = arith.constant 0 : i32
    %c0_i32_1 = arith.constant 0 : i32
    return %c0_i32, %c0_i32_0 : i32, i32
  }
  func.func @transform_9(%arg0: i32) -> (i32, i32) {
    %c0_i32 = arith.constant 0 : i32
    %c0_i32_0 = arith.constant 0 : i32
    %c0_i32_1 = arith.constant 0 : i32
    return %c0_i32, %c0_i32_0 : i32, i32
  }
  func.func @transform_10(%arg0: i32) -> (i32, i32, i32, i32) {
    %c0_i32 = arith.constant 0 : i32
    %c0_i32_0 = arith.constant 0 : i32
    %c0_i32_1 = arith.constant 0 : i32
    %c0_i32_2 = arith.constant 0 : i32
    return %arg0, %c0_i32, %c0_i32_0, %c0_i32_1 : i32, i32, i32, i32
  }
}

module attributes {stable_mosaic.version = 11 : i64} {
  func.func @_maspool_kernel(%arg0: i32, %arg1: memref<1x9x9x8xf32, #tpu.memory_space<vmem>>, %arg2: memref<1x9x9x8xf32, #tpu.memory_space<vmem>>, %arg3: memref<1x9x9x8xf32, #tpu.memory_space<vmem>>, %arg4: memref<1x9x9x8xf32, #tpu.memory_space<vmem>>, %arg5: memref<1x9x9x1xf32, #tpu.memory_space<vmem>>, %arg6: memref<1x9x9x1xf32, #tpu.memory_space<vmem>>, %arg7: memref<1x9x9x1xf32, #tpu.memory_space<vmem>>, %arg8: memref<1x9x9x1xf32, #tpu.memory_space<vmem>>, %arg9: memref<72x8xf32, #tpu.memory_space<vmem>>, %arg10: memref<1x8xf32, #tpu.memory_space<vmem>>, %arg11: memref<1x8x8x8xf32, #tpu.memory_space<vmem>>, %arg12: memref<1x8x8x1xf32, #tpu.memory_space<vmem>>, %arg13: memref<64x72xf32, #tpu.memory_space<vmem>>) attributes {dimension_semantics = [#tpu.dimension_semantics<parallel>], iteration_bounds = array<i64: 2>, scalar_prefetch = 0 : i64, scratch_operands = 1 : i64, tpu.core_type = #tpu.core_type<tc>, window_params = [{transform_indices = @transform_0, window_bounds = array<i64: 1, 9, 9, 8>}, {transform_indices = @transform_1, window_bounds = array<i64: 1, 9, 9, 8>}, {transform_indices = @transform_2, window_bounds = array<i64: 1, 9, 9, 8>}, {transform_indices = @transform_3, window_bounds = array<i64: 1, 9, 9, 8>}, {transform_indices = @transform_4, window_bounds = array<i64: 1, 9, 9, 1>}, {transform_indices = @transform_5, window_bounds = array<i64: 1, 9, 9, 1>}, {transform_indices = @transform_6, window_bounds = array<i64: 1, 9, 9, 1>}, {transform_indices = @transform_7, window_bounds = array<i64: 1, 9, 9, 1>}, {pipeline_mode = #tpu.pipeline_mode<synchronous>, transform_indices = @transform_8, window_bounds = array<i64: 72, 8>}, {pipeline_mode = #tpu.pipeline_mode<synchronous>, transform_indices = @transform_9, window_bounds = array<i64: 1, 8>}, {transform_indices = @transform_10, window_bounds = array<i64: 1, 8, 8, 8>}, {transform_indices = @transform_11, window_bounds = array<i64: 1, 8, 8, 1>}]} {
    %c0 = arith.constant 0 : index
    %c0_0 = arith.constant 0 : index
    %c0_1 = arith.constant 0 : index
    %c0_2 = arith.constant 0 : index
    %0 = vector.load %arg1[%c0, %c0_0, %c0_1, %c0_2] : memref<1x9x9x8xf32, #tpu.memory_space<vmem>>, vector<1x9x9x8xf32>
    %1 = vector.shape_cast %0 : vector<1x9x9x8xf32> to vector<9x9x8xf32>
    %c0_3 = arith.constant 0 : index
    %c0_4 = arith.constant 0 : index
    %c0_5 = arith.constant 0 : index
    %c0_6 = arith.constant 0 : index
    %2 = vector.load %arg2[%c0_3, %c0_4, %c0_5, %c0_6] : memref<1x9x9x8xf32, #tpu.memory_space<vmem>>, vector<1x9x9x8xf32>
    %3 = vector.shape_cast %2 : vector<1x9x9x8xf32> to vector<9x9x8xf32>
    %c0_7 = arith.constant 0 : index
    %c0_8 = arith.constant 0 : index
    %c0_9 = arith.constant 0 : index
    %c0_10 = arith.constant 0 : index
    %4 = vector.load %arg3[%c0_7, %c0_8, %c0_9, %c0_10] : memref<1x9x9x8xf32, #tpu.memory_space<vmem>>, vector<1x9x9x8xf32>
    %5 = vector.shape_cast %4 : vector<1x9x9x8xf32> to vector<9x9x8xf32>
    %c0_11 = arith.constant 0 : index
    %c0_12 = arith.constant 0 : index
    %c0_13 = arith.constant 0 : index
    %c0_14 = arith.constant 0 : index
    %6 = vector.load %arg4[%c0_11, %c0_12, %c0_13, %c0_14] : memref<1x9x9x8xf32, #tpu.memory_space<vmem>>, vector<1x9x9x8xf32>
    %7 = vector.shape_cast %6 : vector<1x9x9x8xf32> to vector<9x9x8xf32>
    %c0_15 = arith.constant 0 : index
    %c0_16 = arith.constant 0 : index
    %c0_17 = arith.constant 0 : index
    %c0_18 = arith.constant 0 : index
    %8 = vector.load %arg5[%c0_15, %c0_16, %c0_17, %c0_18] : memref<1x9x9x1xf32, #tpu.memory_space<vmem>>, vector<1x9x9x1xf32>
    %9 = vector.shape_cast %8 : vector<1x9x9x1xf32> to vector<9x9x1xf32>
    %c0_19 = arith.constant 0 : index
    %c0_20 = arith.constant 0 : index
    %c0_21 = arith.constant 0 : index
    %c0_22 = arith.constant 0 : index
    %10 = vector.load %arg6[%c0_19, %c0_20, %c0_21, %c0_22] : memref<1x9x9x1xf32, #tpu.memory_space<vmem>>, vector<1x9x9x1xf32>
    %11 = vector.shape_cast %10 : vector<1x9x9x1xf32> to vector<9x9x1xf32>
    %c0_23 = arith.constant 0 : index
    %c0_24 = arith.constant 0 : index
    %c0_25 = arith.constant 0 : index
    %c0_26 = arith.constant 0 : index
    %12 = vector.load %arg7[%c0_23, %c0_24, %c0_25, %c0_26] : memref<1x9x9x1xf32, #tpu.memory_space<vmem>>, vector<1x9x9x1xf32>
    %13 = vector.shape_cast %12 : vector<1x9x9x1xf32> to vector<9x9x1xf32>
    %c0_27 = arith.constant 0 : index
    %c0_28 = arith.constant 0 : index
    %c0_29 = arith.constant 0 : index
    %c0_30 = arith.constant 0 : index
    %14 = vector.load %arg8[%c0_27, %c0_28, %c0_29, %c0_30] : memref<1x9x9x1xf32, #tpu.memory_space<vmem>>, vector<1x9x9x1xf32>
    %15 = vector.shape_cast %14 : vector<1x9x9x1xf32> to vector<9x9x1xf32>
    %cst = arith.constant 0.000000e+00 : f32
    %16 = vector.broadcast %cst : f32 to vector<8x8x1xf32>
    %17 = vector.extract_strided_slice %1 {offsets = [0, 0, 0], sizes = [8, 8, 8], strides = [1, 1, 1]} : vector<9x9x8xf32> to vector<8x8x8xf32>
    %18 = vector.extract_strided_slice %9 {offsets = [0, 0, 0], sizes = [8, 8, 1], strides = [1, 1, 1]} : vector<9x9x1xf32> to vector<8x8x1xf32>
    %19 = vector.broadcast %18 : vector<8x8x1xf32> to vector<8x8x8xf32>
    %20 = arith.mulf %17, %19 : vector<8x8x8xf32>
    %21 = vector.shape_cast %20 : vector<8x8x8xf32> to vector<64x8xf32>
    %c0_31 = arith.constant 0 : index
    %c0_32 = arith.constant 0 : index
    %22 = vector.load %arg13[%c0_31, %c0_32] : memref<64x72xf32, #tpu.memory_space<vmem>>, vector<64x8xf32>
    tpu.vector_store %arg13[%c0_31, %c0_32], %21 {strides = array<i32>} : memref<64x72xf32, #tpu.memory_space<vmem>>, vector<64x8xf32>,
    %23 = arith.addf %16, %18 : vector<8x8x1xf32>
    %24 = vector.extract_strided_slice %3 {offsets = [0, 0, 0], sizes = [8, 8, 8], strides = [1, 1, 1]} : vector<9x9x8xf32> to vector<8x8x8xf32>
    %25 = vector.extract_strided_slice %11 {offsets = [0, 0, 0], sizes = [8, 8, 1], strides = [1, 1, 1]} : vector<9x9x1xf32> to vector<8x8x1xf32>
    %26 = vector.broadcast %25 : vector<8x8x1xf32> to vector<8x8x8xf32>
    %27 = arith.mulf %24, %26 : vector<8x8x8xf32>
    %28 = vector.shape_cast %27 : vector<8x8x8xf32> to vector<64x8xf32>
    %c0_33 = arith.constant 0 : index
    %c8 = arith.constant 8 : index
    %29 = vector.load %arg13[%c0_33, %c8] : memref<64x72xf32, #tpu.memory_space<vmem>>, vector<64x8xf32>
    tpu.vector_store %arg13[%c0_33, %c8], %28 {strides = array<i32>} : memref<64x72xf32, #tpu.memory_space<vmem>>, vector<64x8xf32>,
    %30 = arith.addf %23, %25 : vector<8x8x1xf32>
    %31 = vector.extract_strided_slice %1 {offsets = [0, 1, 0], sizes = [8, 8, 8], strides = [1, 1, 1]} : vector<9x9x8xf32> to vector<8x8x8xf32>
    %32 = vector.extract_strided_slice %9 {offsets = [0, 1, 0], sizes = [8, 8, 1], strides = [1, 1, 1]} : vector<9x9x1xf32> to vector<8x8x1xf32>
    %33 = vector.broadcast %32 : vector<8x8x1xf32> to vector<8x8x8xf32>
    %34 = arith.mulf %31, %33 : vector<8x8x8xf32>
    %35 = vector.shape_cast %34 : vector<8x8x8xf32> to vector<64x8xf32>
    %c0_34 = arith.constant 0 : index
    %c16 = arith.constant 16 : index
    %36 = vector.load %arg13[%c0_34, %c16] : memref<64x72xf32, #tpu.memory_space<vmem>>, vector<64x8xf32>
    tpu.vector_store %arg13[%c0_34, %c16], %35 {strides = array<i32>} : memref<64x72xf32, #tpu.memory_space<vmem>>, vector<64x8xf32>,
    %37 = arith.addf %30, %32 : vector<8x8x1xf32>
    %38 = vector.extract_strided_slice %5 {offsets = [0, 0, 0], sizes = [8, 8, 8], strides = [1, 1, 1]} : vector<9x9x8xf32> to vector<8x8x8xf32>
    %39 = vector.extract_strided_slice %13 {offsets = [0, 0, 0], sizes = [8, 8, 1], strides = [1, 1, 1]} : vector<9x9x1xf32> to vector<8x8x1xf32>
    %40 = vector.broadcast %39 : vector<8x8x1xf32> to vector<8x8x8xf32>
    %41 = arith.mulf %38, %40 : vector<8x8x8xf32>
    %42 = vector.shape_cast %41 : vector<8x8x8xf32> to vector<64x8xf32>
    %c0_35 = arith.constant 0 : index
    %c24 = arith.constant 24 : index
    %43 = vector.load %arg13[%c0_35, %c24] : memref<64x72xf32, #tpu.memory_space<vmem>>, vector<64x8xf32>
    tpu.vector_store %arg13[%c0_35, %c24], %42 {strides = array<i32>} : memref<64x72xf32, #tpu.memory_space<vmem>>, vector<64x8xf32>,
    %44 = arith.addf %37, %39 : vector<8x8x1xf32>
    %45 = vector.extract_strided_slice %7 {offsets = [0, 0, 0], sizes = [8, 8, 8], strides = [1, 1, 1]} : vector<9x9x8xf32> to vector<8x8x8xf32>
    %46 = vector.extract_strided_slice %15 {offsets = [0, 0, 0], sizes = [8, 8, 1], strides = [1, 1, 1]} : vector<9x9x1xf32> to vector<8x8x1xf32>
    %47 = vector.broadcast %46 : vector<8x8x1xf32> to vector<8x8x8xf32>
    %48 = arith.mulf %45, %47 : vector<8x8x8xf32>
    %49 = vector.shape_cast %48 : vector<8x8x8xf32> to vector<64x8xf32>
    %c0_36 = arith.constant 0 : index
    %c32 = arith.constant 32 : index
    %50 = vector.load %arg13[%c0_36, %c32] : memref<64x72xf32, #tpu.memory_space<vmem>>, vector<64x8xf32>
    tpu.vector_store %arg13[%c0_36, %c32], %49 {strides = array<i32>} : memref<64x72xf32, #tpu.memory_space<vmem>>, vector<64x8xf32>,
    %51 = arith.addf %44, %46 : vector<8x8x1xf32>
    %52 = vector.extract_strided_slice %5 {offsets = [0, 1, 0], sizes = [8, 8, 8], strides = [1, 1, 1]} : vector<9x9x8xf32> to vector<8x8x8xf32>
    %53 = vector.extract_strided_slice %13 {offsets = [0, 1, 0], sizes = [8, 8, 1], strides = [1, 1, 1]} : vector<9x9x1xf32> to vector<8x8x1xf32>
    %54 = vector.broadcast %53 : vector<8x8x1xf32> to vector<8x8x8xf32>
    %55 = arith.mulf %52, %54 : vector<8x8x8xf32>
    %56 = vector.shape_cast %55 : vector<8x8x8xf32> to vector<64x8xf32>
    %c0_37 = arith.constant 0 : index
    %c40 = arith.constant 40 : index
    %57 = vector.load %arg13[%c0_37, %c40] : memref<64x72xf32, #tpu.memory_space<vmem>>, vector<64x8xf32>
    tpu.vector_store %arg13[%c0_37, %c40], %56 {strides = array<i32>} : memref<64x72xf32, #tpu.memory_space<vmem>>, vector<64x8xf32>,
    %58 = arith.addf %51, %53 : vector<8x8x1xf32>
    %59 = vector.extract_strided_slice %1 {offsets = [1, 0, 0], sizes = [8, 8, 8], strides = [1, 1, 1]} : vector<9x9x8xf32> to vector<8x8x8xf32>
    %60 = vector.extract_strided_slice %9 {offsets = [1, 0, 0], sizes = [8, 8, 1], strides = [1, 1, 1]} : vector<9x9x1xf32> to vector<8x8x1xf32>
    %61 = vector.broadcast %60 : vector<8x8x1xf32> to vector<8x8x8xf32>
    %62 = arith.mulf %59, %61 : vector<8x8x8xf32>
    %63 = vector.shape_cast %62 : vector<8x8x8xf32> to vector<64x8xf32>
    %c0_38 = arith.constant 0 : index
    %c48 = arith.constant 48 : index
    %64 = vector.load %arg13[%c0_38, %c48] : memref<64x72xf32, #tpu.memory_space<vmem>>, vector<64x8xf32>
    tpu.vector_store %arg13[%c0_38, %c48], %63 {strides = array<i32>} : memref<64x72xf32, #tpu.memory_space<vmem>>, vector<64x8xf32>,
    %65 = arith.addf %58, %60 : vector<8x8x1xf32>
    %66 = vector.extract_strided_slice %3 {offsets = [1, 0, 0], sizes = [8, 8, 8], strides = [1, 1, 1]} : vector<9x9x8xf32> to vector<8x8x8xf32>
    %67 = vector.extract_strided_slice %11 {offsets = [1, 0, 0], sizes = [8, 8, 1], strides = [1, 1, 1]} : vector<9x9x1xf32> to vector<8x8x1xf32>
    %68 = vector.broadcast %67 : vector<8x8x1xf32> to vector<8x8x8xf32>
    %69 = arith.mulf %66, %68 : vector<8x8x8xf32>
    %70 = vector.shape_cast %69 : vector<8x8x8xf32> to vector<64x8xf32>
    %c0_39 = arith.constant 0 : index
    %c56 = arith.constant 56 : index
    %71 = vector.load %arg13[%c0_39, %c56] : memref<64x72xf32, #tpu.memory_space<vmem>>, vector<64x8xf32>
    tpu.vector_store %arg13[%c0_39, %c56], %70 {strides = array<i32>} : memref<64x72xf32, #tpu.memory_space<vmem>>, vector<64x8xf32>,
    %72 = arith.addf %65, %67 : vector<8x8x1xf32>
    %73 = vector.extract_strided_slice %1 {offsets = [1, 1, 0], sizes = [8, 8, 8], strides = [1, 1, 1]} : vector<9x9x8xf32> to vector<8x8x8xf32>
    %74 = vector.extract_strided_slice %9 {offsets = [1, 1, 0], sizes = [8, 8, 1], strides = [1, 1, 1]} : vector<9x9x1xf32> to vector<8x8x1xf32>
    %75 = vector.broadcast %74 : vector<8x8x1xf32> to vector<8x8x8xf32>
    %76 = arith.mulf %73, %75 : vector<8x8x8xf32>
    %77 = vector.shape_cast %76 : vector<8x8x8xf32> to vector<64x8xf32>
    %c0_40 = arith.constant 0 : index
    %c64 = arith.constant 64 : index
    %78 = vector.load %arg13[%c0_40, %c64] : memref<64x72xf32, #tpu.memory_space<vmem>>, vector<64x8xf32>
    tpu.vector_store %arg13[%c0_40, %c64], %77 {strides = array<i32>} : memref<64x72xf32, #tpu.memory_space<vmem>>, vector<64x8xf32>,
    %79 = arith.addf %72, %74 : vector<8x8x1xf32>
    %c0_41 = arith.constant 0 : index
    %c0_42 = arith.constant 0 : index
    %80 = vector.load %arg13[%c0_41, %c0_42] : memref<64x72xf32, #tpu.memory_space<vmem>>, vector<64x72xf32>
    %c0_43 = arith.constant 0 : index
    %c0_44 = arith.constant 0 : index
    %81 = vector.load %arg9[%c0_43, %c0_44] : memref<72x8xf32, #tpu.memory_space<vmem>>, vector<72x8xf32>
    %cst_45 = arith.constant dense<0.000000e+00> : vector<64x8xf32>
    %82 = tpu.matmul %80, %81, %cst_45 {dimension_numbers = #tpu.dot_dimension_numbers<[1], [0], [0], [1], [0, 0, 1, 1], [], []>} : vector<64x72xf32>, vector<72x8xf32>, vector<64x8xf32> -> vector<64x8xf32>
    %cst_46 = arith.constant 9.99999974E-6 : f32
    %83 = vector.broadcast %cst_46 : f32 to vector<8x8x1xf32>
    %84 = arith.maximumf %79, %83 : vector<8x8x1xf32>
    %85 = tpu.reciprocal %84 {approx = true} : vector<8x8x1xf32> -> vector<8x8x1xf32>
    %86 = vector.shape_cast %82 : vector<64x8xf32> to vector<8x8x8xf32>
    %87 = vector.broadcast %85 : vector<8x8x1xf32> to vector<8x8x8xf32>
    %88 = arith.mulf %86, %87 : vector<8x8x8xf32>
    %c0_47 = arith.constant 0 : index
    %c0_48 = arith.constant 0 : index
    %89 = vector.load %arg10[%c0_47, %c0_48] : memref<1x8xf32, #tpu.memory_space<vmem>>, vector<1x8xf32>
    %90 = vector.shape_cast %89 : vector<1x8xf32> to vector<1x1x8xf32>
    %91 = vector.broadcast %90 : vector<1x1x8xf32> to vector<8x8x8xf32>
    %92 = arith.addf %88, %91 : vector<8x8x8xf32>
    %c0_49 = arith.constant 0 : index
    %c0_50 = arith.constant 0 : index
    %c0_51 = arith.constant 0 : index
    %c0_52 = arith.constant 0 : index
    %93 = vector.load %arg11[%c0_49, %c0_50, %c0_51, %c0_52] : memref<1x8x8x8xf32, #tpu.memory_space<vmem>>, vector<1x8x8x8xf32>
    %94 = vector.shape_cast %93 : vector<1x8x8x8xf32> to vector<8x8x8xf32>
    %95 = vector.shape_cast %92 : vector<8x8x8xf32> to vector<1x8x8x8xf32>
    tpu.vector_store %arg11[%c0_49, %c0_50, %c0_51, %c0_52], %95 {strides = array<i32>} : memref<1x8x8x8xf32, #tpu.memory_space<vmem>>, vector<1x8x8x8xf32>,
    %96 = vector.extract_strided_slice %15 {offsets = [0, 0, 0], sizes = [8, 8, 1], strides = [1, 1, 1]} : vector<9x9x1xf32> to vector<8x8x1xf32>
    %97 = vector.extract_strided_slice %13 {offsets = [0, 1, 0], sizes = [8, 8, 1], strides = [1, 1, 1]} : vector<9x9x1xf32> to vector<8x8x1xf32>
    %98 = arith.maximumf %96, %97 : vector<8x8x1xf32>
    %99 = vector.extract_strided_slice %11 {offsets = [1, 0, 0], sizes = [8, 8, 1], strides = [1, 1, 1]} : vector<9x9x1xf32> to vector<8x8x1xf32>
    %100 = vector.extract_strided_slice %9 {offsets = [1, 1, 0], sizes = [8, 8, 1], strides = [1, 1, 1]} : vector<9x9x1xf32> to vector<8x8x1xf32>
    %101 = arith.maximumf %99, %100 : vector<8x8x1xf32>
    %102 = arith.maximumf %98, %101 : vector<8x8x1xf32>
    %c0_53 = arith.constant 0 : index
    %c0_54 = arith.constant 0 : index
    %c0_55 = arith.constant 0 : index
    %c0_56 = arith.constant 0 : index
    %103 = vector.load %arg12[%c0_53, %c0_54, %c0_55, %c0_56] : memref<1x8x8x1xf32, #tpu.memory_space<vmem>>, vector<1x8x8x1xf32>
    %104 = vector.shape_cast %103 : vector<1x8x8x1xf32> to vector<8x8x1xf32>
    %105 = vector.shape_cast %102 : vector<8x8x1xf32> to vector<1x8x8x1xf32>
    tpu.vector_store %arg12[%c0_53, %c0_54, %c0_55, %c0_56], %105 {strides = array<i32>} : memref<1x8x8x1xf32, #tpu.memory_space<vmem>>, vector<1x8x8x1xf32>,
    return
  }
  func.func @transform_0(%arg0: i32) -> (i32, i32, i32, i32) {
    %c0_i32 = arith.constant 0 : i32
    %c0_i32_0 = arith.constant 0 : i32
    %c0_i32_1 = arith.constant 0 : i32
    %c0_i32_2 = arith.constant 0 : i32
    return %arg0, %c0_i32, %c0_i32_0, %c0_i32_1 : i32, i32, i32, i32
  }
  func.func @transform_1(%arg0: i32) -> (i32, i32, i32, i32) {
    %c0_i32 = arith.constant 0 : i32
    %c0_i32_0 = arith.constant 0 : i32
    %c0_i32_1 = arith.constant 0 : i32
    %c0_i32_2 = arith.constant 0 : i32
    return %arg0, %c0_i32, %c0_i32_0, %c0_i32_1 : i32, i32, i32, i32
  }
  func.func @transform_2(%arg0: i32) -> (i32, i32, i32, i32) {
    %c0_i32 = arith.constant 0 : i32
    %c0_i32_0 = arith.constant 0 : i32
    %c0_i32_1 = arith.constant 0 : i32
    %c0_i32_2 = arith.constant 0 : i32
    return %arg0, %c0_i32, %c0_i32_0, %c0_i32_1 : i32, i32, i32, i32
  }
  func.func @transform_3(%arg0: i32) -> (i32, i32, i32, i32) {
    %c0_i32 = arith.constant 0 : i32
    %c0_i32_0 = arith.constant 0 : i32
    %c0_i32_1 = arith.constant 0 : i32
    %c0_i32_2 = arith.constant 0 : i32
    return %arg0, %c0_i32, %c0_i32_0, %c0_i32_1 : i32, i32, i32, i32
  }
  func.func @transform_4(%arg0: i32) -> (i32, i32, i32, i32) {
    %c0_i32 = arith.constant 0 : i32
    %c0_i32_0 = arith.constant 0 : i32
    %c0_i32_1 = arith.constant 0 : i32
    %c0_i32_2 = arith.constant 0 : i32
    return %arg0, %c0_i32, %c0_i32_0, %c0_i32_1 : i32, i32, i32, i32
  }
  func.func @transform_5(%arg0: i32) -> (i32, i32, i32, i32) {
    %c0_i32 = arith.constant 0 : i32
    %c0_i32_0 = arith.constant 0 : i32
    %c0_i32_1 = arith.constant 0 : i32
    %c0_i32_2 = arith.constant 0 : i32
    return %arg0, %c0_i32, %c0_i32_0, %c0_i32_1 : i32, i32, i32, i32
  }
  func.func @transform_6(%arg0: i32) -> (i32, i32, i32, i32) {
    %c0_i32 = arith.constant 0 : i32
    %c0_i32_0 = arith.constant 0 : i32
    %c0_i32_1 = arith.constant 0 : i32
    %c0_i32_2 = arith.constant 0 : i32
    return %arg0, %c0_i32, %c0_i32_0, %c0_i32_1 : i32, i32, i32, i32
  }
  func.func @transform_7(%arg0: i32) -> (i32, i32, i32, i32) {
    %c0_i32 = arith.constant 0 : i32
    %c0_i32_0 = arith.constant 0 : i32
    %c0_i32_1 = arith.constant 0 : i32
    %c0_i32_2 = arith.constant 0 : i32
    return %arg0, %c0_i32, %c0_i32_0, %c0_i32_1 : i32, i32, i32, i32
  }
  func.func @transform_8(%arg0: i32) -> (i32, i32) {
    %c0_i32 = arith.constant 0 : i32
    %c0_i32_0 = arith.constant 0 : i32
    %c0_i32_1 = arith.constant 0 : i32
    return %c0_i32, %c0_i32_0 : i32, i32
  }
  func.func @transform_9(%arg0: i32) -> (i32, i32) {
    %c0_i32 = arith.constant 0 : i32
    %c0_i32_0 = arith.constant 0 : i32
    %c0_i32_1 = arith.constant 0 : i32
    return %c0_i32, %c0_i32_0 : i32, i32
  }
  func.func @transform_10(%arg0: i32) -> (i32, i32, i32, i32) {
    %c0_i32 = arith.constant 0 : i32
    %c0_i32_0 = arith.constant 0 : i32
    %c0_i32_1 = arith.constant 0 : i32
    %c0_i32_2 = arith.constant 0 : i32
    return %arg0, %c0_i32, %c0_i32_0, %c0_i32_1 : i32, i32, i32, i32
  }
  func.func @transform_11(%arg0: i32) -> (i32, i32, i32, i32) {
    %c0_i32 = arith.constant 0 : i32
    %c0_i32_0 = arith.constant 0 : i32
    %c0_i32_1 = arith.constant 0 : i32
    %c0_i32_2 = arith.constant 0 : i32
    return %arg0, %c0_i32, %c0_i32_0, %c0_i32_1 : i32, i32, i32, i32
  }
}

module attributes {stable_mosaic.version = 11 : i64} {
  func.func @_bottleneck_plain_kernel(%arg0: i32, %arg1: memref<1x8x8x8xf32, #tpu.memory_space<vmem>>, %arg2: memref<1x8x8x1xf32, #tpu.memory_space<vmem>>, %arg3: memref<8x4xf32, #tpu.memory_space<vmem>>, %arg4: memref<1x4xf32, #tpu.memory_space<vmem>>, %arg5: memref<36x4xf32, #tpu.memory_space<vmem>>, %arg6: memref<1x4xf32, #tpu.memory_space<vmem>>, %arg7: memref<4x8xf32, #tpu.memory_space<vmem>>, %arg8: memref<1x8xf32, #tpu.memory_space<vmem>>, %arg9: memref<1x8x8x8xf32, #tpu.memory_space<vmem>>, %arg10: memref<10x10x4xf32, #tpu.memory_space<vmem>>, %arg11: memref<10x10x1xf32, #tpu.memory_space<vmem>>, %arg12: memref<64x36xf32, #tpu.memory_space<vmem>>) attributes {dimension_semantics = [#tpu.dimension_semantics<parallel>], iteration_bounds = array<i64: 2>, scalar_prefetch = 0 : i64, scratch_operands = 3 : i64, tpu.core_type = #tpu.core_type<tc>, window_params = [{transform_indices = @transform_0, window_bounds = array<i64: 1, 8, 8, 8>}, {transform_indices = @transform_1, window_bounds = array<i64: 1, 8, 8, 1>}, {pipeline_mode = #tpu.pipeline_mode<synchronous>, transform_indices = @transform_2, window_bounds = array<i64: 8, 4>}, {pipeline_mode = #tpu.pipeline_mode<synchronous>, transform_indices = @transform_3, window_bounds = array<i64: 1, 4>}, {pipeline_mode = #tpu.pipeline_mode<synchronous>, transform_indices = @transform_4, window_bounds = array<i64: 36, 4>}, {pipeline_mode = #tpu.pipeline_mode<synchronous>, transform_indices = @transform_5, window_bounds = array<i64: 1, 4>}, {pipeline_mode = #tpu.pipeline_mode<synchronous>, transform_indices = @transform_6, window_bounds = array<i64: 4, 8>}, {pipeline_mode = #tpu.pipeline_mode<synchronous>, transform_indices = @transform_7, window_bounds = array<i64: 1, 8>}, {transform_indices = @transform_8, window_bounds = array<i64: 1, 8, 8, 8>}]} {
    %c0 = arith.constant 0 : index
    %c0_0 = arith.constant 0 : index
    %c0_1 = arith.constant 0 : index
    %c0_2 = arith.constant 0 : index
    %0 = vector.load %arg1[%c0, %c0_0, %c0_1, %c0_2] : memref<1x8x8x8xf32, #tpu.memory_space<vmem>>, vector<1x8x8x8xf32>
    %1 = vector.shape_cast %0 : vector<1x8x8x8xf32> to vector<8x8x8xf32>
    %2 = vector.shape_cast %1 : vector<8x8x8xf32> to vector<64x8xf32>
    %c0_3 = arith.constant 0 : index
    %c0_4 = arith.constant 0 : index
    %c0_5 = arith.constant 0 : index
    %c0_6 = arith.constant 0 : index
    %3 = vector.load %arg2[%c0_3, %c0_4, %c0_5, %c0_6] : memref<1x8x8x1xf32, #tpu.memory_space<vmem>>, vector<1x8x8x1xf32>
    %4 = vector.shape_cast %3 : vector<1x8x8x1xf32> to vector<8x8x1xf32>
    %c0_7 = arith.constant 0 : index
    %c0_8 = arith.constant 0 : index
    %5 = vector.load %arg3[%c0_7, %c0_8] : memref<8x4xf32, #tpu.memory_space<vmem>>, vector<8x4xf32>
    %cst = arith.constant dense<0.000000e+00> : vector<64x4xf32>
    %6 = tpu.matmul %2, %5, %cst {dimension_numbers = #tpu.dot_dimension_numbers<[1], [0], [0], [1], [0, 0, 1, 1], [], []>} : vector<64x8xf32>, vector<8x4xf32>, vector<64x4xf32> -> vector<64x4xf32>
    %c0_9 = arith.constant 0 : index
    %c0_10 = arith.constant 0 : index
    %7 = vector.load %arg4[%c0_9, %c0_10] : memref<1x4xf32, #tpu.memory_space<vmem>>, vector<1x4xf32>
    %8 = vector.broadcast %7 : vector<1x4xf32> to vector<64x4xf32>
    %9 = arith.addf %6, %8 : vector<64x4xf32>
    %cst_11 = arith.constant 0.000000e+00 : f32
    %10 = vector.broadcast %cst_11 : f32 to vector<64x4xf32>
    %11 = arith.maximumf %9, %10 : vector<64x4xf32>
    %cst_12 = arith.constant 0.000000e+00 : f32
    %12 = vector.broadcast %cst_12 : f32 to vector<10x10x4xf32>
    %c0_13 = arith.constant 0 : index
    %c0_14 = arith.constant 0 : index
    %c0_15 = arith.constant 0 : index
    %13 = vector.load %arg10[%c0_13, %c0_14, %c0_15] : memref<10x10x4xf32, #tpu.memory_space<vmem>>, vector<10x10x4xf32>
    tpu.vector_store %arg10[%c0_13, %c0_14, %c0_15], %12 {strides = array<i32>} : memref<10x10x4xf32, #tpu.memory_space<vmem>>, vector<10x10x4xf32>,
    %cst_16 = arith.constant 0.000000e+00 : f32
    %14 = vector.broadcast %cst_16 : f32 to vector<10x10x1xf32>
    %c0_17 = arith.constant 0 : index
    %c0_18 = arith.constant 0 : index
    %c0_19 = arith.constant 0 : index
    %15 = vector.load %arg11[%c0_17, %c0_18, %c0_19] : memref<10x10x1xf32, #tpu.memory_space<vmem>>, vector<10x10x1xf32>
    tpu.vector_store %arg11[%c0_17, %c0_18, %c0_19], %14 {strides = array<i32>} : memref<10x10x1xf32, #tpu.memory_space<vmem>>, vector<10x10x1xf32>,
    %16 = vector.shape_cast %11 : vector<64x4xf32> to vector<8x8x4xf32>
    %17 = vector.broadcast %4 : vector<8x8x1xf32> to vector<8x8x4xf32>
    %18 = arith.mulf %16, %17 : vector<8x8x4xf32>
    %c1 = arith.constant 1 : index
    %c1_20 = arith.constant 1 : index
    %c0_21 = arith.constant 0 : index
    %19 = vector.load %arg10[%c1, %c1_20, %c0_21] : memref<10x10x4xf32, #tpu.memory_space<vmem>>, vector<8x8x4xf32>
    tpu.vector_store %arg10[%c1, %c1_20, %c0_21], %18 {strides = array<i32>} : memref<10x10x4xf32, #tpu.memory_space<vmem>>, vector<8x8x4xf32>,
    %c1_22 = arith.constant 1 : index
    %c1_23 = arith.constant 1 : index
    %c0_24 = arith.constant 0 : index
    %20 = vector.load %arg11[%c1_22, %c1_23, %c0_24] : memref<10x10x1xf32, #tpu.memory_space<vmem>>, vector<8x8x1xf32>
    tpu.vector_store %arg11[%c1_22, %c1_23, %c0_24], %4 {strides = array<i32>} : memref<10x10x1xf32, #tpu.memory_space<vmem>>, vector<8x8x1xf32>,
    %cst_25 = arith.constant 0.000000e+00 : f32
    %21 = vector.broadcast %cst_25 : f32 to vector<8x8x1xf32>
    %c0_26 = arith.constant 0 : index
    %c0_27 = arith.constant 0 : index
    %c0_28 = arith.constant 0 : index
    %22 = vector.load %arg10[%c0_26, %c0_27, %c0_28] : memref<10x10x4xf32, #tpu.memory_space<vmem>>, vector<8x8x4xf32>
    %23 = vector.shape_cast %22 : vector<8x8x4xf32> to vector<64x4xf32>
    %c0_29 = arith.constant 0 : index
    %c0_30 = arith.constant 0 : index
    %24 = vector.load %arg12[%c0_29, %c0_30] : memref<64x36xf32, #tpu.memory_space<vmem>>, vector<64x4xf32>
    tpu.vector_store %arg12[%c0_29, %c0_30], %23 {strides = array<i32>} : memref<64x36xf32, #tpu.memory_space<vmem>>, vector<64x4xf32>,
    %c0_31 = arith.constant 0 : index
    %c0_32 = arith.constant 0 : index
    %c0_33 = arith.constant 0 : index
    %25 = vector.load %arg11[%c0_31, %c0_32, %c0_33] : memref<10x10x1xf32, #tpu.memory_space<vmem>>, vector<8x8x1xf32>
    %26 = arith.addf %21, %25 : vector<8x8x1xf32>
    %c0_34 = arith.constant 0 : index
    %c1_35 = arith.constant 1 : index
    %c0_36 = arith.constant 0 : index
    %27 = vector.load %arg10[%c0_34, %c1_35, %c0_36] : memref<10x10x4xf32, #tpu.memory_space<vmem>>, vector<8x8x4xf32>
    %28 = vector.shape_cast %27 : vector<8x8x4xf32> to vector<64x4xf32>
    %c0_37 = arith.constant 0 : index
    %c4 = arith.constant 4 : index
    %29 = vector.load %arg12[%c0_37, %c4] : memref<64x36xf32, #tpu.memory_space<vmem>>, vector<64x4xf32>
    tpu.vector_store %arg12[%c0_37, %c4], %28 {strides = array<i32>} : memref<64x36xf32, #tpu.memory_space<vmem>>, vector<64x4xf32>,
    %c0_38 = arith.constant 0 : index
    %c1_39 = arith.constant 1 : index
    %c0_40 = arith.constant 0 : index
    %30 = vector.load %arg11[%c0_38, %c1_39, %c0_40] : memref<10x10x1xf32, #tpu.memory_space<vmem>>, vector<8x8x1xf32>
    %31 = arith.addf %26, %30 : vector<8x8x1xf32>
    %c0_41 = arith.constant 0 : index
    %c2 = arith.constant 2 : index
    %c0_42 = arith.constant 0 : index
    %32 = vector.load %arg10[%c0_41, %c2, %c0_42] : memref<10x10x4xf32, #tpu.memory_space<vmem>>, vector<8x8x4xf32>
    %33 = vector.shape_cast %32 : vector<8x8x4xf32> to vector<64x4xf32>
    %c0_43 = arith.constant 0 : index
    %c8 = arith.constant 8 : index
    %34 = vector.load %arg12[%c0_43, %c8] : memref<64x36xf32, #tpu.memory_space<vmem>>, vector<64x4xf32>
    tpu.vector_store %arg12[%c0_43, %c8], %33 {strides = array<i32>} : memref<64x36xf32, #tpu.memory_space<vmem>>, vector<64x4xf32>,
    %c0_44 = arith.constant 0 : index
    %c2_45 = arith.constant 2 : index
    %c0_46 = arith.constant 0 : index
    %35 = vector.load %arg11[%c0_44, %c2_45, %c0_46] : memref<10x10x1xf32, #tpu.memory_space<vmem>>, vector<8x8x1xf32>
    %36 = arith.addf %31, %35 : vector<8x8x1xf32>
    %c1_47 = arith.constant 1 : index
    %c0_48 = arith.constant 0 : index
    %c0_49 = arith.constant 0 : index
    %37 = vector.load %arg10[%c1_47, %c0_48, %c0_49] : memref<10x10x4xf32, #tpu.memory_space<vmem>>, vector<8x8x4xf32>
    %38 = vector.shape_cast %37 : vector<8x8x4xf32> to vector<64x4xf32>
    %c0_50 = arith.constant 0 : index
    %c12 = arith.constant 12 : index
    %39 = vector.load %arg12[%c0_50, %c12] : memref<64x36xf32, #tpu.memory_space<vmem>>, vector<64x4xf32>
    tpu.vector_store %arg12[%c0_50, %c12], %38 {strides = array<i32>} : memref<64x36xf32, #tpu.memory_space<vmem>>, vector<64x4xf32>,
    %c1_51 = arith.constant 1 : index
    %c0_52 = arith.constant 0 : index
    %c0_53 = arith.constant 0 : index
    %40 = vector.load %arg11[%c1_51, %c0_52, %c0_53] : memref<10x10x1xf32, #tpu.memory_space<vmem>>, vector<8x8x1xf32>
    %41 = arith.addf %36, %40 : vector<8x8x1xf32>
    %c1_54 = arith.constant 1 : index
    %c1_55 = arith.constant 1 : index
    %c0_56 = arith.constant 0 : index
    %42 = vector.load %arg10[%c1_54, %c1_55, %c0_56] : memref<10x10x4xf32, #tpu.memory_space<vmem>>, vector<8x8x4xf32>
    %43 = vector.shape_cast %42 : vector<8x8x4xf32> to vector<64x4xf32>
    %c0_57 = arith.constant 0 : index
    %c16 = arith.constant 16 : index
    %44 = vector.load %arg12[%c0_57, %c16] : memref<64x36xf32, #tpu.memory_space<vmem>>, vector<64x4xf32>
    tpu.vector_store %arg12[%c0_57, %c16], %43 {strides = array<i32>} : memref<64x36xf32, #tpu.memory_space<vmem>>, vector<64x4xf32>,
    %c1_58 = arith.constant 1 : index
    %c1_59 = arith.constant 1 : index
    %c0_60 = arith.constant 0 : index
    %45 = vector.load %arg11[%c1_58, %c1_59, %c0_60] : memref<10x10x1xf32, #tpu.memory_space<vmem>>, vector<8x8x1xf32>
    %46 = arith.addf %41, %45 : vector<8x8x1xf32>
    %c1_61 = arith.constant 1 : index
    %c2_62 = arith.constant 2 : index
    %c0_63 = arith.constant 0 : index
    %47 = vector.load %arg10[%c1_61, %c2_62, %c0_63] : memref<10x10x4xf32, #tpu.memory_space<vmem>>, vector<8x8x4xf32>
    %48 = vector.shape_cast %47 : vector<8x8x4xf32> to vector<64x4xf32>
    %c0_64 = arith.constant 0 : index
    %c20 = arith.constant 20 : index
    %49 = vector.load %arg12[%c0_64, %c20] : memref<64x36xf32, #tpu.memory_space<vmem>>, vector<64x4xf32>
    tpu.vector_store %arg12[%c0_64, %c20], %48 {strides = array<i32>} : memref<64x36xf32, #tpu.memory_space<vmem>>, vector<64x4xf32>,
    %c1_65 = arith.constant 1 : index
    %c2_66 = arith.constant 2 : index
    %c0_67 = arith.constant 0 : index
    %50 = vector.load %arg11[%c1_65, %c2_66, %c0_67] : memref<10x10x1xf32, #tpu.memory_space<vmem>>, vector<8x8x1xf32>
    %51 = arith.addf %46, %50 : vector<8x8x1xf32>
    %c2_68 = arith.constant 2 : index
    %c0_69 = arith.constant 0 : index
    %c0_70 = arith.constant 0 : index
    %52 = vector.load %arg10[%c2_68, %c0_69, %c0_70] : memref<10x10x4xf32, #tpu.memory_space<vmem>>, vector<8x8x4xf32>
    %53 = vector.shape_cast %52 : vector<8x8x4xf32> to vector<64x4xf32>
    %c0_71 = arith.constant 0 : index
    %c24 = arith.constant 24 : index
    %54 = vector.load %arg12[%c0_71, %c24] : memref<64x36xf32, #tpu.memory_space<vmem>>, vector<64x4xf32>
    tpu.vector_store %arg12[%c0_71, %c24], %53 {strides = array<i32>} : memref<64x36xf32, #tpu.memory_space<vmem>>, vector<64x4xf32>,
    %c2_72 = arith.constant 2 : index
    %c0_73 = arith.constant 0 : index
    %c0_74 = arith.constant 0 : index
    %55 = vector.load %arg11[%c2_72, %c0_73, %c0_74] : memref<10x10x1xf32, #tpu.memory_space<vmem>>, vector<8x8x1xf32>
    %56 = arith.addf %51, %55 : vector<8x8x1xf32>
    %c2_75 = arith.constant 2 : index
    %c1_76 = arith.constant 1 : index
    %c0_77 = arith.constant 0 : index
    %57 = vector.load %arg10[%c2_75, %c1_76, %c0_77] : memref<10x10x4xf32, #tpu.memory_space<vmem>>, vector<8x8x4xf32>
    %58 = vector.shape_cast %57 : vector<8x8x4xf32> to vector<64x4xf32>
    %c0_78 = arith.constant 0 : index
    %c28 = arith.constant 28 : index
    %59 = vector.load %arg12[%c0_78, %c28] : memref<64x36xf32, #tpu.memory_space<vmem>>, vector<64x4xf32>
    tpu.vector_store %arg12[%c0_78, %c28], %58 {strides = array<i32>} : memref<64x36xf32, #tpu.memory_space<vmem>>, vector<64x4xf32>,
    %c2_79 = arith.constant 2 : index
    %c1_80 = arith.constant 1 : index
    %c0_81 = arith.constant 0 : index
    %60 = vector.load %arg11[%c2_79, %c1_80, %c0_81] : memref<10x10x1xf32, #tpu.memory_space<vmem>>, vector<8x8x1xf32>
    %61 = arith.addf %56, %60 : vector<8x8x1xf32>
    %c2_82 = arith.constant 2 : index
    %c2_83 = arith.constant 2 : index
    %c0_84 = arith.constant 0 : index
    %62 = vector.load %arg10[%c2_82, %c2_83, %c0_84] : memref<10x10x4xf32, #tpu.memory_space<vmem>>, vector<8x8x4xf32>
    %63 = vector.shape_cast %62 : vector<8x8x4xf32> to vector<64x4xf32>
    %c0_85 = arith.constant 0 : index
    %c32 = arith.constant 32 : index
    %64 = vector.load %arg12[%c0_85, %c32] : memref<64x36xf32, #tpu.memory_space<vmem>>, vector<64x4xf32>
    tpu.vector_store %arg12[%c0_85, %c32], %63 {strides = array<i32>} : memref<64x36xf32, #tpu.memory_space<vmem>>, vector<64x4xf32>,
    %c2_86 = arith.constant 2 : index
    %c2_87 = arith.constant 2 : index
    %c0_88 = arith.constant 0 : index
    %65 = vector.load %arg11[%c2_86, %c2_87, %c0_88] : memref<10x10x1xf32, #tpu.memory_space<vmem>>, vector<8x8x1xf32>
    %66 = arith.addf %61, %65 : vector<8x8x1xf32>
    %c0_89 = arith.constant 0 : index
    %c0_90 = arith.constant 0 : index
    %67 = vector.load %arg12[%c0_89, %c0_90] : memref<64x36xf32, #tpu.memory_space<vmem>>, vector<64x36xf32>
    %c0_91 = arith.constant 0 : index
    %c0_92 = arith.constant 0 : index
    %68 = vector.load %arg5[%c0_91, %c0_92] : memref<36x4xf32, #tpu.memory_space<vmem>>, vector<36x4xf32>
    %cst_93 = arith.constant dense<0.000000e+00> : vector<64x4xf32>
    %69 = tpu.matmul %67, %68, %cst_93 {dimension_numbers = #tpu.dot_dimension_numbers<[1], [0], [0], [1], [0, 0, 1, 1], [], []>} : vector<64x36xf32>, vector<36x4xf32>, vector<64x4xf32> -> vector<64x4xf32>
    %cst_94 = arith.constant 9.99999974E-6 : f32
    %70 = vector.broadcast %cst_94 : f32 to vector<8x8x1xf32>
    %71 = arith.maximumf %66, %70 : vector<8x8x1xf32>
    %72 = tpu.reciprocal %71 {approx = true} : vector<8x8x1xf32> -> vector<8x8x1xf32>
    %73 = vector.shape_cast %69 : vector<64x4xf32> to vector<8x8x4xf32>
    %74 = vector.broadcast %72 : vector<8x8x1xf32> to vector<8x8x4xf32>
    %75 = arith.mulf %73, %74 : vector<8x8x4xf32>
    %c0_95 = arith.constant 0 : index
    %c0_96 = arith.constant 0 : index
    %76 = vector.load %arg6[%c0_95, %c0_96] : memref<1x4xf32, #tpu.memory_space<vmem>>, vector<1x4xf32>
    %77 = vector.shape_cast %76 : vector<1x4xf32> to vector<1x1x4xf32>
    %78 = vector.broadcast %77 : vector<1x1x4xf32> to vector<8x8x4xf32>
    %79 = arith.addf %75, %78 : vector<8x8x4xf32>
    %cst_97 = arith.constant 0.000000e+00 : f32
    %80 = vector.broadcast %cst_97 : f32 to vector<8x8x4xf32>
    %81 = arith.maximumf %79, %80 : vector<8x8x4xf32>
    %82 = vector.shape_cast %81 : vector<8x8x4xf32> to vector<64x4xf32>
    %c0_98 = arith.constant 0 : index
    %c0_99 = arith.constant 0 : index
    %83 = vector.load %arg7[%c0_98, %c0_99] : memref<4x8xf32, #tpu.memory_space<vmem>>, vector<4x8xf32>
    %cst_100 = arith.constant dense<0.000000e+00> : vector<64x8xf32>
    %84 = tpu.matmul %82, %83, %cst_100 {dimension_numbers = #tpu.dot_dimension_numbers<[1], [0], [0], [1], [0, 0, 1, 1], [], []>} : vector<64x4xf32>, vector<4x8xf32>, vector<64x8xf32> -> vector<64x8xf32>
    %c0_101 = arith.constant 0 : index
    %c0_102 = arith.constant 0 : index
    %85 = vector.load %arg8[%c0_101, %c0_102] : memref<1x8xf32, #tpu.memory_space<vmem>>, vector<1x8xf32>
    %86 = vector.broadcast %85 : vector<1x8xf32> to vector<64x8xf32>
    %87 = arith.addf %84, %86 : vector<64x8xf32>
    %88 = arith.addf %87, %2 : vector<64x8xf32>
    %cst_103 = arith.constant 0.000000e+00 : f32
    %89 = vector.broadcast %cst_103 : f32 to vector<64x8xf32>
    %90 = arith.maximumf %88, %89 : vector<64x8xf32>
    %91 = vector.shape_cast %90 : vector<64x8xf32> to vector<8x8x8xf32>
    %c0_104 = arith.constant 0 : index
    %c0_105 = arith.constant 0 : index
    %c0_106 = arith.constant 0 : index
    %c0_107 = arith.constant 0 : index
    %92 = vector.load %arg9[%c0_104, %c0_105, %c0_106, %c0_107] : memref<1x8x8x8xf32, #tpu.memory_space<vmem>>, vector<1x8x8x8xf32>
    %93 = vector.shape_cast %92 : vector<1x8x8x8xf32> to vector<8x8x8xf32>
    %94 = vector.shape_cast %91 : vector<8x8x8xf32> to vector<1x8x8x8xf32>
    tpu.vector_store %arg9[%c0_104, %c0_105, %c0_106, %c0_107], %94 {strides = array<i32>} : memref<1x8x8x8xf32, #tpu.memory_space<vmem>>, vector<1x8x8x8xf32>,
    return
  }
  func.func @transform_0(%arg0: i32) -> (i32, i32, i32, i32) {
    %c0_i32 = arith.constant 0 : i32
    %c0_i32_0 = arith.constant 0 : i32
    %c0_i32_1 = arith.constant 0 : i32
    %c0_i32_2 = arith.constant 0 : i32
    return %arg0, %c0_i32, %c0_i32_0, %c0_i32_1 : i32, i32, i32, i32
  }
  func.func @transform_1(%arg0: i32) -> (i32, i32, i32, i32) {
    %c0_i32 = arith.constant 0 : i32
    %c0_i32_0 = arith.constant 0 : i32
    %c0_i32_1 = arith.constant 0 : i32
    %c0_i32_2 = arith.constant 0 : i32
    return %arg0, %c0_i32, %c0_i32_0, %c0_i32_1 : i32, i32, i32, i32
  }
  func.func @transform_2(%arg0: i32) -> (i32, i32) {
    %c0_i32 = arith.constant 0 : i32
    %c0_i32_0 = arith.constant 0 : i32
    %c0_i32_1 = arith.constant 0 : i32
    return %c0_i32, %c0_i32_0 : i32, i32
  }
  func.func @transform_3(%arg0: i32) -> (i32, i32) {
    %c0_i32 = arith.constant 0 : i32
    %c0_i32_0 = arith.constant 0 : i32
    %c0_i32_1 = arith.constant 0 : i32
    return %c0_i32, %c0_i32_0 : i32, i32
  }
  func.func @transform_4(%arg0: i32) -> (i32, i32) {
    %c0_i32 = arith.constant 0 : i32
    %c0_i32_0 = arith.constant 0 : i32
    %c0_i32_1 = arith.constant 0 : i32
    return %c0_i32, %c0_i32_0 : i32, i32
  }
  func.func @transform_5(%arg0: i32) -> (i32, i32) {
    %c0_i32 = arith.constant 0 : i32
    %c0_i32_0 = arith.constant 0 : i32
    %c0_i32_1 = arith.constant 0 : i32
    return %c0_i32, %c0_i32_0 : i32, i32
  }
  func.func @transform_6(%arg0: i32) -> (i32, i32) {
    %c0_i32 = arith.constant 0 : i32
    %c0_i32_0 = arith.constant 0 : i32
    %c0_i32_1 = arith.constant 0 : i32
    return %c0_i32, %c0_i32_0 : i32, i32
  }
  func.func @transform_7(%arg0: i32) -> (i32, i32) {
    %c0_i32 = arith.constant 0 : i32
    %c0_i32_0 = arith.constant 0 : i32
    %c0_i32_1 = arith.constant 0 : i32
    return %c0_i32, %c0_i32_0 : i32, i32
  }
  func.func @transform_8(%arg0: i32) -> (i32, i32, i32, i32) {
    %c0_i32 = arith.constant 0 : i32
    %c0_i32_0 = arith.constant 0 : i32
    %c0_i32_1 = arith.constant 0 : i32
    %c0_i32_2 = arith.constant 0 : i32
    return %arg0, %c0_i32, %c0_i32_0, %c0_i32_1 : i32, i32, i32, i32
  }
}

module attributes {stable_mosaic.version = 11 : i64} {
  func.func @_bottleneck_plain_kernel(%arg0: i32, %arg1: memref<1x8x8x8xf32, #tpu.memory_space<vmem>>, %arg2: memref<1x8x8x1xf32, #tpu.memory_space<vmem>>, %arg3: memref<8x4xf32, #tpu.memory_space<vmem>>, %arg4: memref<1x4xf32, #tpu.memory_space<vmem>>, %arg5: memref<36x4xf32, #tpu.memory_space<vmem>>, %arg6: memref<1x4xf32, #tpu.memory_space<vmem>>, %arg7: memref<4x8xf32, #tpu.memory_space<vmem>>, %arg8: memref<1x8xf32, #tpu.memory_space<vmem>>, %arg9: memref<1x8x8x8xf32, #tpu.memory_space<vmem>>, %arg10: memref<10x10x4xf32, #tpu.memory_space<vmem>>, %arg11: memref<10x10x1xf32, #tpu.memory_space<vmem>>, %arg12: memref<64x36xf32, #tpu.memory_space<vmem>>) attributes {dimension_semantics = [#tpu.dimension_semantics<parallel>], iteration_bounds = array<i64: 2>, scalar_prefetch = 0 : i64, scratch_operands = 3 : i64, tpu.core_type = #tpu.core_type<tc>, window_params = [{transform_indices = @transform_0, window_bounds = array<i64: 1, 8, 8, 8>}, {transform_indices = @transform_1, window_bounds = array<i64: 1, 8, 8, 1>}, {pipeline_mode = #tpu.pipeline_mode<synchronous>, transform_indices = @transform_2, window_bounds = array<i64: 8, 4>}, {pipeline_mode = #tpu.pipeline_mode<synchronous>, transform_indices = @transform_3, window_bounds = array<i64: 1, 4>}, {pipeline_mode = #tpu.pipeline_mode<synchronous>, transform_indices = @transform_4, window_bounds = array<i64: 36, 4>}, {pipeline_mode = #tpu.pipeline_mode<synchronous>, transform_indices = @transform_5, window_bounds = array<i64: 1, 4>}, {pipeline_mode = #tpu.pipeline_mode<synchronous>, transform_indices = @transform_6, window_bounds = array<i64: 4, 8>}, {pipeline_mode = #tpu.pipeline_mode<synchronous>, transform_indices = @transform_7, window_bounds = array<i64: 1, 8>}, {transform_indices = @transform_8, window_bounds = array<i64: 1, 8, 8, 8>}]} {
    %c0 = arith.constant 0 : index
    %c0_0 = arith.constant 0 : index
    %c0_1 = arith.constant 0 : index
    %c0_2 = arith.constant 0 : index
    %0 = vector.load %arg1[%c0, %c0_0, %c0_1, %c0_2] : memref<1x8x8x8xf32, #tpu.memory_space<vmem>>, vector<1x8x8x8xf32>
    %1 = vector.shape_cast %0 : vector<1x8x8x8xf32> to vector<8x8x8xf32>
    %2 = vector.shape_cast %1 : vector<8x8x8xf32> to vector<64x8xf32>
    %c0_3 = arith.constant 0 : index
    %c0_4 = arith.constant 0 : index
    %c0_5 = arith.constant 0 : index
    %c0_6 = arith.constant 0 : index
    %3 = vector.load %arg2[%c0_3, %c0_4, %c0_5, %c0_6] : memref<1x8x8x1xf32, #tpu.memory_space<vmem>>, vector<1x8x8x1xf32>
    %4 = vector.shape_cast %3 : vector<1x8x8x1xf32> to vector<8x8x1xf32>
    %c0_7 = arith.constant 0 : index
    %c0_8 = arith.constant 0 : index
    %5 = vector.load %arg3[%c0_7, %c0_8] : memref<8x4xf32, #tpu.memory_space<vmem>>, vector<8x4xf32>
    %cst = arith.constant dense<0.000000e+00> : vector<64x4xf32>
    %6 = tpu.matmul %2, %5, %cst {dimension_numbers = #tpu.dot_dimension_numbers<[1], [0], [0], [1], [0, 0, 1, 1], [], []>} : vector<64x8xf32>, vector<8x4xf32>, vector<64x4xf32> -> vector<64x4xf32>
    %c0_9 = arith.constant 0 : index
    %c0_10 = arith.constant 0 : index
    %7 = vector.load %arg4[%c0_9, %c0_10] : memref<1x4xf32, #tpu.memory_space<vmem>>, vector<1x4xf32>
    %8 = vector.broadcast %7 : vector<1x4xf32> to vector<64x4xf32>
    %9 = arith.addf %6, %8 : vector<64x4xf32>
    %cst_11 = arith.constant 0.000000e+00 : f32
    %10 = vector.broadcast %cst_11 : f32 to vector<64x4xf32>
    %11 = arith.maximumf %9, %10 : vector<64x4xf32>
    %cst_12 = arith.constant 0.000000e+00 : f32
    %12 = vector.broadcast %cst_12 : f32 to vector<10x10x4xf32>
    %c0_13 = arith.constant 0 : index
    %c0_14 = arith.constant 0 : index
    %c0_15 = arith.constant 0 : index
    %13 = vector.load %arg10[%c0_13, %c0_14, %c0_15] : memref<10x10x4xf32, #tpu.memory_space<vmem>>, vector<10x10x4xf32>
    tpu.vector_store %arg10[%c0_13, %c0_14, %c0_15], %12 {strides = array<i32>} : memref<10x10x4xf32, #tpu.memory_space<vmem>>, vector<10x10x4xf32>,
    %cst_16 = arith.constant 0.000000e+00 : f32
    %14 = vector.broadcast %cst_16 : f32 to vector<10x10x1xf32>
    %c0_17 = arith.constant 0 : index
    %c0_18 = arith.constant 0 : index
    %c0_19 = arith.constant 0 : index
    %15 = vector.load %arg11[%c0_17, %c0_18, %c0_19] : memref<10x10x1xf32, #tpu.memory_space<vmem>>, vector<10x10x1xf32>
    tpu.vector_store %arg11[%c0_17, %c0_18, %c0_19], %14 {strides = array<i32>} : memref<10x10x1xf32, #tpu.memory_space<vmem>>, vector<10x10x1xf32>,
    %16 = vector.shape_cast %11 : vector<64x4xf32> to vector<8x8x4xf32>
    %17 = vector.broadcast %4 : vector<8x8x1xf32> to vector<8x8x4xf32>
    %18 = arith.mulf %16, %17 : vector<8x8x4xf32>
    %c1 = arith.constant 1 : index
    %c1_20 = arith.constant 1 : index
    %c0_21 = arith.constant 0 : index
    %19 = vector.load %arg10[%c1, %c1_20, %c0_21] : memref<10x10x4xf32, #tpu.memory_space<vmem>>, vector<8x8x4xf32>
    tpu.vector_store %arg10[%c1, %c1_20, %c0_21], %18 {strides = array<i32>} : memref<10x10x4xf32, #tpu.memory_space<vmem>>, vector<8x8x4xf32>,
    %c1_22 = arith.constant 1 : index
    %c1_23 = arith.constant 1 : index
    %c0_24 = arith.constant 0 : index
    %20 = vector.load %arg11[%c1_22, %c1_23, %c0_24] : memref<10x10x1xf32, #tpu.memory_space<vmem>>, vector<8x8x1xf32>
    tpu.vector_store %arg11[%c1_22, %c1_23, %c0_24], %4 {strides = array<i32>} : memref<10x10x1xf32, #tpu.memory_space<vmem>>, vector<8x8x1xf32>,
    %cst_25 = arith.constant 0.000000e+00 : f32
    %21 = vector.broadcast %cst_25 : f32 to vector<8x8x1xf32>
    %c0_26 = arith.constant 0 : index
    %c0_27 = arith.constant 0 : index
    %c0_28 = arith.constant 0 : index
    %22 = vector.load %arg10[%c0_26, %c0_27, %c0_28] : memref<10x10x4xf32, #tpu.memory_space<vmem>>, vector<8x8x4xf32>
    %23 = vector.shape_cast %22 : vector<8x8x4xf32> to vector<64x4xf32>
    %c0_29 = arith.constant 0 : index
    %c0_30 = arith.constant 0 : index
    %24 = vector.load %arg12[%c0_29, %c0_30] : memref<64x36xf32, #tpu.memory_space<vmem>>, vector<64x4xf32>
    tpu.vector_store %arg12[%c0_29, %c0_30], %23 {strides = array<i32>} : memref<64x36xf32, #tpu.memory_space<vmem>>, vector<64x4xf32>,
    %c0_31 = arith.constant 0 : index
    %c0_32 = arith.constant 0 : index
    %c0_33 = arith.constant 0 : index
    %25 = vector.load %arg11[%c0_31, %c0_32, %c0_33] : memref<10x10x1xf32, #tpu.memory_space<vmem>>, vector<8x8x1xf32>
    %26 = arith.addf %21, %25 : vector<8x8x1xf32>
    %c0_34 = arith.constant 0 : index
    %c1_35 = arith.constant 1 : index
    %c0_36 = arith.constant 0 : index
    %27 = vector.load %arg10[%c0_34, %c1_35, %c0_36] : memref<10x10x4xf32, #tpu.memory_space<vmem>>, vector<8x8x4xf32>
    %28 = vector.shape_cast %27 : vector<8x8x4xf32> to vector<64x4xf32>
    %c0_37 = arith.constant 0 : index
    %c4 = arith.constant 4 : index
    %29 = vector.load %arg12[%c0_37, %c4] : memref<64x36xf32, #tpu.memory_space<vmem>>, vector<64x4xf32>
    tpu.vector_store %arg12[%c0_37, %c4], %28 {strides = array<i32>} : memref<64x36xf32, #tpu.memory_space<vmem>>, vector<64x4xf32>,
    %c0_38 = arith.constant 0 : index
    %c1_39 = arith.constant 1 : index
    %c0_40 = arith.constant 0 : index
    %30 = vector.load %arg11[%c0_38, %c1_39, %c0_40] : memref<10x10x1xf32, #tpu.memory_space<vmem>>, vector<8x8x1xf32>
    %31 = arith.addf %26, %30 : vector<8x8x1xf32>
    %c0_41 = arith.constant 0 : index
    %c2 = arith.constant 2 : index
    %c0_42 = arith.constant 0 : index
    %32 = vector.load %arg10[%c0_41, %c2, %c0_42] : memref<10x10x4xf32, #tpu.memory_space<vmem>>, vector<8x8x4xf32>
    %33 = vector.shape_cast %32 : vector<8x8x4xf32> to vector<64x4xf32>
    %c0_43 = arith.constant 0 : index
    %c8 = arith.constant 8 : index
    %34 = vector.load %arg12[%c0_43, %c8] : memref<64x36xf32, #tpu.memory_space<vmem>>, vector<64x4xf32>
    tpu.vector_store %arg12[%c0_43, %c8], %33 {strides = array<i32>} : memref<64x36xf32, #tpu.memory_space<vmem>>, vector<64x4xf32>,
    %c0_44 = arith.constant 0 : index
    %c2_45 = arith.constant 2 : index
    %c0_46 = arith.constant 0 : index
    %35 = vector.load %arg11[%c0_44, %c2_45, %c0_46] : memref<10x10x1xf32, #tpu.memory_space<vmem>>, vector<8x8x1xf32>
    %36 = arith.addf %31, %35 : vector<8x8x1xf32>
    %c1_47 = arith.constant 1 : index
    %c0_48 = arith.constant 0 : index
    %c0_49 = arith.constant 0 : index
    %37 = vector.load %arg10[%c1_47, %c0_48, %c0_49] : memref<10x10x4xf32, #tpu.memory_space<vmem>>, vector<8x8x4xf32>
    %38 = vector.shape_cast %37 : vector<8x8x4xf32> to vector<64x4xf32>
    %c0_50 = arith.constant 0 : index
    %c12 = arith.constant 12 : index
    %39 = vector.load %arg12[%c0_50, %c12] : memref<64x36xf32, #tpu.memory_space<vmem>>, vector<64x4xf32>
    tpu.vector_store %arg12[%c0_50, %c12], %38 {strides = array<i32>} : memref<64x36xf32, #tpu.memory_space<vmem>>, vector<64x4xf32>,
    %c1_51 = arith.constant 1 : index
    %c0_52 = arith.constant 0 : index
    %c0_53 = arith.constant 0 : index
    %40 = vector.load %arg11[%c1_51, %c0_52, %c0_53] : memref<10x10x1xf32, #tpu.memory_space<vmem>>, vector<8x8x1xf32>
    %41 = arith.addf %36, %40 : vector<8x8x1xf32>
    %c1_54 = arith.constant 1 : index
    %c1_55 = arith.constant 1 : index
    %c0_56 = arith.constant 0 : index
    %42 = vector.load %arg10[%c1_54, %c1_55, %c0_56] : memref<10x10x4xf32, #tpu.memory_space<vmem>>, vector<8x8x4xf32>
    %43 = vector.shape_cast %42 : vector<8x8x4xf32> to vector<64x4xf32>
    %c0_57 = arith.constant 0 : index
    %c16 = arith.constant 16 : index
    %44 = vector.load %arg12[%c0_57, %c16] : memref<64x36xf32, #tpu.memory_space<vmem>>, vector<64x4xf32>
    tpu.vector_store %arg12[%c0_57, %c16], %43 {strides = array<i32>} : memref<64x36xf32, #tpu.memory_space<vmem>>, vector<64x4xf32>,
    %c1_58 = arith.constant 1 : index
    %c1_59 = arith.constant 1 : index
    %c0_60 = arith.constant 0 : index
    %45 = vector.load %arg11[%c1_58, %c1_59, %c0_60] : memref<10x10x1xf32, #tpu.memory_space<vmem>>, vector<8x8x1xf32>
    %46 = arith.addf %41, %45 : vector<8x8x1xf32>
    %c1_61 = arith.constant 1 : index
    %c2_62 = arith.constant 2 : index
    %c0_63 = arith.constant 0 : index
    %47 = vector.load %arg10[%c1_61, %c2_62, %c0_63] : memref<10x10x4xf32, #tpu.memory_space<vmem>>, vector<8x8x4xf32>
    %48 = vector.shape_cast %47 : vector<8x8x4xf32> to vector<64x4xf32>
    %c0_64 = arith.constant 0 : index
    %c20 = arith.constant 20 : index
    %49 = vector.load %arg12[%c0_64, %c20] : memref<64x36xf32, #tpu.memory_space<vmem>>, vector<64x4xf32>
    tpu.vector_store %arg12[%c0_64, %c20], %48 {strides = array<i32>} : memref<64x36xf32, #tpu.memory_space<vmem>>, vector<64x4xf32>,
    %c1_65 = arith.constant 1 : index
    %c2_66 = arith.constant 2 : index
    %c0_67 = arith.constant 0 : index
    %50 = vector.load %arg11[%c1_65, %c2_66, %c0_67] : memref<10x10x1xf32, #tpu.memory_space<vmem>>, vector<8x8x1xf32>
    %51 = arith.addf %46, %50 : vector<8x8x1xf32>
    %c2_68 = arith.constant 2 : index
    %c0_69 = arith.constant 0 : index
    %c0_70 = arith.constant 0 : index
    %52 = vector.load %arg10[%c2_68, %c0_69, %c0_70] : memref<10x10x4xf32, #tpu.memory_space<vmem>>, vector<8x8x4xf32>
    %53 = vector.shape_cast %52 : vector<8x8x4xf32> to vector<64x4xf32>
    %c0_71 = arith.constant 0 : index
    %c24 = arith.constant 24 : index
    %54 = vector.load %arg12[%c0_71, %c24] : memref<64x36xf32, #tpu.memory_space<vmem>>, vector<64x4xf32>
    tpu.vector_store %arg12[%c0_71, %c24], %53 {strides = array<i32>} : memref<64x36xf32, #tpu.memory_space<vmem>>, vector<64x4xf32>,
    %c2_72 = arith.constant 2 : index
    %c0_73 = arith.constant 0 : index
    %c0_74 = arith.constant 0 : index
    %55 = vector.load %arg11[%c2_72, %c0_73, %c0_74] : memref<10x10x1xf32, #tpu.memory_space<vmem>>, vector<8x8x1xf32>
    %56 = arith.addf %51, %55 : vector<8x8x1xf32>
    %c2_75 = arith.constant 2 : index
    %c1_76 = arith.constant 1 : index
    %c0_77 = arith.constant 0 : index
    %57 = vector.load %arg10[%c2_75, %c1_76, %c0_77] : memref<10x10x4xf32, #tpu.memory_space<vmem>>, vector<8x8x4xf32>
    %58 = vector.shape_cast %57 : vector<8x8x4xf32> to vector<64x4xf32>
    %c0_78 = arith.constant 0 : index
    %c28 = arith.constant 28 : index
    %59 = vector.load %arg12[%c0_78, %c28] : memref<64x36xf32, #tpu.memory_space<vmem>>, vector<64x4xf32>
    tpu.vector_store %arg12[%c0_78, %c28], %58 {strides = array<i32>} : memref<64x36xf32, #tpu.memory_space<vmem>>, vector<64x4xf32>,
    %c2_79 = arith.constant 2 : index
    %c1_80 = arith.constant 1 : index
    %c0_81 = arith.constant 0 : index
    %60 = vector.load %arg11[%c2_79, %c1_80, %c0_81] : memref<10x10x1xf32, #tpu.memory_space<vmem>>, vector<8x8x1xf32>
    %61 = arith.addf %56, %60 : vector<8x8x1xf32>
    %c2_82 = arith.constant 2 : index
    %c2_83 = arith.constant 2 : index
    %c0_84 = arith.constant 0 : index
    %62 = vector.load %arg10[%c2_82, %c2_83, %c0_84] : memref<10x10x4xf32, #tpu.memory_space<vmem>>, vector<8x8x4xf32>
    %63 = vector.shape_cast %62 : vector<8x8x4xf32> to vector<64x4xf32>
    %c0_85 = arith.constant 0 : index
    %c32 = arith.constant 32 : index
    %64 = vector.load %arg12[%c0_85, %c32] : memref<64x36xf32, #tpu.memory_space<vmem>>, vector<64x4xf32>
    tpu.vector_store %arg12[%c0_85, %c32], %63 {strides = array<i32>} : memref<64x36xf32, #tpu.memory_space<vmem>>, vector<64x4xf32>,
    %c2_86 = arith.constant 2 : index
    %c2_87 = arith.constant 2 : index
    %c0_88 = arith.constant 0 : index
    %65 = vector.load %arg11[%c2_86, %c2_87, %c0_88] : memref<10x10x1xf32, #tpu.memory_space<vmem>>, vector<8x8x1xf32>
    %66 = arith.addf %61, %65 : vector<8x8x1xf32>
    %c0_89 = arith.constant 0 : index
    %c0_90 = arith.constant 0 : index
    %67 = vector.load %arg12[%c0_89, %c0_90] : memref<64x36xf32, #tpu.memory_space<vmem>>, vector<64x36xf32>
    %c0_91 = arith.constant 0 : index
    %c0_92 = arith.constant 0 : index
    %68 = vector.load %arg5[%c0_91, %c0_92] : memref<36x4xf32, #tpu.memory_space<vmem>>, vector<36x4xf32>
    %cst_93 = arith.constant dense<0.000000e+00> : vector<64x4xf32>
    %69 = tpu.matmul %67, %68, %cst_93 {dimension_numbers = #tpu.dot_dimension_numbers<[1], [0], [0], [1], [0, 0, 1, 1], [], []>} : vector<64x36xf32>, vector<36x4xf32>, vector<64x4xf32> -> vector<64x4xf32>
    %cst_94 = arith.constant 9.99999974E-6 : f32
    %70 = vector.broadcast %cst_94 : f32 to vector<8x8x1xf32>
    %71 = arith.maximumf %66, %70 : vector<8x8x1xf32>
    %72 = tpu.reciprocal %71 {approx = true} : vector<8x8x1xf32> -> vector<8x8x1xf32>
    %73 = vector.shape_cast %69 : vector<64x4xf32> to vector<8x8x4xf32>
    %74 = vector.broadcast %72 : vector<8x8x1xf32> to vector<8x8x4xf32>
    %75 = arith.mulf %73, %74 : vector<8x8x4xf32>
    %c0_95 = arith.constant 0 : index
    %c0_96 = arith.constant 0 : index
    %76 = vector.load %arg6[%c0_95, %c0_96] : memref<1x4xf32, #tpu.memory_space<vmem>>, vector<1x4xf32>
    %77 = vector.shape_cast %76 : vector<1x4xf32> to vector<1x1x4xf32>
    %78 = vector.broadcast %77 : vector<1x1x4xf32> to vector<8x8x4xf32>
    %79 = arith.addf %75, %78 : vector<8x8x4xf32>
    %cst_97 = arith.constant 0.000000e+00 : f32
    %80 = vector.broadcast %cst_97 : f32 to vector<8x8x4xf32>
    %81 = arith.maximumf %79, %80 : vector<8x8x4xf32>
    %82 = vector.shape_cast %81 : vector<8x8x4xf32> to vector<64x4xf32>
    %c0_98 = arith.constant 0 : index
    %c0_99 = arith.constant 0 : index
    %83 = vector.load %arg7[%c0_98, %c0_99] : memref<4x8xf32, #tpu.memory_space<vmem>>, vector<4x8xf32>
    %cst_100 = arith.constant dense<0.000000e+00> : vector<64x8xf32>
    %84 = tpu.matmul %82, %83, %cst_100 {dimension_numbers = #tpu.dot_dimension_numbers<[1], [0], [0], [1], [0, 0, 1, 1], [], []>} : vector<64x4xf32>, vector<4x8xf32>, vector<64x8xf32> -> vector<64x8xf32>
    %c0_101 = arith.constant 0 : index
    %c0_102 = arith.constant 0 : index
    %85 = vector.load %arg8[%c0_101, %c0_102] : memref<1x8xf32, #tpu.memory_space<vmem>>, vector<1x8xf32>
    %86 = vector.broadcast %85 : vector<1x8xf32> to vector<64x8xf32>
    %87 = arith.addf %84, %86 : vector<64x8xf32>
    %88 = arith.addf %87, %2 : vector<64x8xf32>
    %cst_103 = arith.constant 0.000000e+00 : f32
    %89 = vector.broadcast %cst_103 : f32 to vector<64x8xf32>
    %90 = arith.maximumf %88, %89 : vector<64x8xf32>
    %91 = vector.shape_cast %90 : vector<64x8xf32> to vector<8x8x8xf32>
    %c0_104 = arith.constant 0 : index
    %c0_105 = arith.constant 0 : index
    %c0_106 = arith.constant 0 : index
    %c0_107 = arith.constant 0 : index
    %92 = vector.load %arg9[%c0_104, %c0_105, %c0_106, %c0_107] : memref<1x8x8x8xf32, #tpu.memory_space<vmem>>, vector<1x8x8x8xf32>
    %93 = vector.shape_cast %92 : vector<1x8x8x8xf32> to vector<8x8x8xf32>
    %94 = vector.shape_cast %91 : vector<8x8x8xf32> to vector<1x8x8x8xf32>
    tpu.vector_store %arg9[%c0_104, %c0_105, %c0_106, %c0_107], %94 {strides = array<i32>} : memref<1x8x8x8xf32, #tpu.memory_space<vmem>>, vector<1x8x8x8xf32>,
    return
  }
  func.func @transform_0(%arg0: i32) -> (i32, i32, i32, i32) {
    %c0_i32 = arith.constant 0 : i32
    %c0_i32_0 = arith.constant 0 : i32
    %c0_i32_1 = arith.constant 0 : i32
    %c0_i32_2 = arith.constant 0 : i32
    return %arg0, %c0_i32, %c0_i32_0, %c0_i32_1 : i32, i32, i32, i32
  }
  func.func @transform_1(%arg0: i32) -> (i32, i32, i32, i32) {
    %c0_i32 = arith.constant 0 : i32
    %c0_i32_0 = arith.constant 0 : i32
    %c0_i32_1 = arith.constant 0 : i32
    %c0_i32_2 = arith.constant 0 : i32
    return %arg0, %c0_i32, %c0_i32_0, %c0_i32_1 : i32, i32, i32, i32
  }
  func.func @transform_2(%arg0: i32) -> (i32, i32) {
    %c0_i32 = arith.constant 0 : i32
    %c0_i32_0 = arith.constant 0 : i32
    %c0_i32_1 = arith.constant 0 : i32
    return %c0_i32, %c0_i32_0 : i32, i32
  }
  func.func @transform_3(%arg0: i32) -> (i32, i32) {
    %c0_i32 = arith.constant 0 : i32
    %c0_i32_0 = arith.constant 0 : i32
    %c0_i32_1 = arith.constant 0 : i32
    return %c0_i32, %c0_i32_0 : i32, i32
  }
  func.func @transform_4(%arg0: i32) -> (i32, i32) {
    %c0_i32 = arith.constant 0 : i32
    %c0_i32_0 = arith.constant 0 : i32
    %c0_i32_1 = arith.constant 0 : i32
    return %c0_i32, %c0_i32_0 : i32, i32
  }
  func.func @transform_5(%arg0: i32) -> (i32, i32) {
    %c0_i32 = arith.constant 0 : i32
    %c0_i32_0 = arith.constant 0 : i32
    %c0_i32_1 = arith.constant 0 : i32
    return %c0_i32, %c0_i32_0 : i32, i32
  }
  func.func @transform_6(%arg0: i32) -> (i32, i32) {
    %c0_i32 = arith.constant 0 : i32
    %c0_i32_0 = arith.constant 0 : i32
    %c0_i32_1 = arith.constant 0 : i32
    return %c0_i32, %c0_i32_0 : i32, i32
  }
  func.func @transform_7(%arg0: i32) -> (i32, i32) {
    %c0_i32 = arith.constant 0 : i32
    %c0_i32_0 = arith.constant 0 : i32
    %c0_i32_1 = arith.constant 0 : i32
    return %c0_i32, %c0_i32_0 : i32, i32
  }
  func.func @transform_8(%arg0: i32) -> (i32, i32, i32, i32) {
    %c0_i32 = arith.constant 0 : i32
    %c0_i32_0 = arith.constant 0 : i32
    %c0_i32_1 = arith.constant 0 : i32
    %c0_i32_2 = arith.constant 0 : i32
    return %arg0, %c0_i32, %c0_i32_0, %c0_i32_1 : i32, i32, i32, i32
  }
}

</mosaic_0001>

<llo_original>
// kernel: resmod_forward.6
$region0: #{resmod_forward.6}
  #allocation0 [shape = 'u32[]', space=smem, size = 0x4, offset = 0x4, fixed_abs, tag = 'smem constant byte address 0x4 - core index']
  #allocation1 [shape = 'u32[72,128]{1,0:T(1,128)}', space=vmem, size = 0x9000, scoped, tag = 'internal scratch']
  #allocation2 [shape = 'f32[10,10,4]{2,1,0:T(8,128)}', space=vmem, size = 0x14000, scoped, tag = 'scratch operand']
  #allocation3 [shape = 'f32[10,10,1]{2,1,0:T(8,128)}', space=vmem, size = 0x14000, scoped, tag = 'scratch operand']
  #allocation4 [shape = 'f32[64,36]{1,0:T(8,128)}', space=vmem, size = 0x8000, scoped, tag = 'scratch operand']
  %s0 = inlined_call_operand.vmem [shape: f32[2,8,8,8], index: 0, kind: input, shape index: {}]
  %s1 = inlined_call_operand.vmem [shape: f32[2,8,8,1], index: 1, kind: input, shape index: {}]
  %s2 = inlined_call_operand.vmem [shape: f32[8,4], index: 2, kind: input, shape index: {}]
  %s3 = inlined_call_operand.vmem [shape: f32[1,4], index: 3, kind: input, shape index: {}]
  %s4 = inlined_call_operand.vmem [shape: f32[36,4], index: 4, kind: input, shape index: {}]
  %s5 = inlined_call_operand.vmem [shape: f32[1,4], index: 5, kind: input, shape index: {}]
  %s6 = inlined_call_operand.vmem [shape: f32[4,8], index: 6, kind: input, shape index: {}]
  %s7 = inlined_call_operand.vmem [shape: f32[1,8], index: 7, kind: input, shape index: {}]
  %s8 = inlined_call_operand.vmem [shape: f32[2,8,8,8], index: 8, kind: output, shape index: {}]
  %s9 = sld [smem:[#allocation0]]
  $region65: #{resmod_forward.6} parent=0
    _
  %s11 = ssub.s32 1, %s9
  %s12 = scalar_select 0, %s11, %s9
  loop: start=0, step=1, limit=4
  $region2: #{resmod_forward.6} parent=0 // loop_pre_header
    _
  $region3: #{resmod_forward.6} parent=0 // loop_header
    %s14 = sphi 0, %s18
    %p15 = scmp.ge.s32.totalorder %s14, 4
    %s24 = sphi 0, %s26
    %s27 = sphi 0, %s24
    %s28 = sphi 0, %s27
    %s44 = sphi 0, %s28
    %s50 = sphi 0, %s52
    %s53 = sphi 0, %s50
    %s54 = sphi 0, %s53
    %s70 = sphi 0, %s54
    %s74 = sphi 0, %s74
    %s76 = sphi 0, %s74
    %s77 = sphi 0, %s76
    %s91 = sphi 0, %s77
    %s95 = sphi 0, %s95
    %s97 = sphi 0, %s95
    %s98 = sphi 0, %s97
    %s112 = sphi 0, %s98
    %s116 = sphi 0, %s116
    %s118 = sphi 0, %s116
    %s119 = sphi 0, %s118
    %s133 = sphi 0, %s119
    %s137 = sphi 0, %s137
    %s139 = sphi 0, %s137
    %s140 = sphi 0, %s139
    %s154 = sphi 0, %s140
    %s158 = sphi 0, %s158
    %s160 = sphi 0, %s158
    %s161 = sphi 0, %s160
    %s175 = sphi 0, %s161
    %s179 = sphi 0, %s179
    %s181 = sphi 0, %s179
    %s182 = sphi 0, %s181
    %s196 = sphi 0, %s182
    %s202 = sphi 0, %s204
    %s205 = sphi 0, %s202
    %s206 = sphi 0, %s205
    %s222 = sphi 0, %s206
  $region4: #{resmod_forward.6} parent=0 // loop_header_branch
    %17 = sbr.rel (%p15) target = $region8
  $region5: #{resmod_forward.6} parent=0 // loop_body
    %s19 = ssub.s32 %s14, 1
    %s20 = ssub.s32 %s14, 2
    %s21 = sadd.s32 %s14, 1
    %s22 = ssub.s32 %s14, %s21
    %p23 = scmp.eq.s32.totalorder %s22, 0
    %s25 = sadd.s32 %s24, 1
    %s26 = scalar_select %p23, %s24, %s25
    %p29 = pneg %p23
    %p30 = scmp.eq.s32.totalorder %s14, 1
    %p31 = por %p29, %p30
    %p32 = scmp.ne.s32.totalorder %s24, %s27
    %p33 = scmp.eq.s32.totalorder %s14, 0
    %p34 = por %p32, %p33
    %p35 = scmp.ne.s32.totalorder %s24, %s27
    %p36 = scmp.eq.s32.totalorder %s19, 1
    %p37 = por %p35, %p36
    %p38 = scmp.ne.s32.totalorder %s27, %s28
    %p39 = scmp.eq.s32.totalorder %s19, 0
    %p40 = por %p38, %p39
    %p41 = scmp.ne.s32.totalorder %s27, %s28
    %p42 = scmp.eq.s32.totalorder %s20, 1
    %p43 = por %p41, %p42
    %p45 = scmp.ne.s32.totalorder %s28, %s44
    %p46 = scmp.eq.s32.totalorder %s20, 0
    %p47 = por %p45, %p46
    %s48 = ssub.s32 %s14, %s21
    %p49 = scmp.eq.s32.totalorder %s48, 0
    %s51 = sadd.s32 %s50, 1
    %s52 = scalar_select %p49, %s50, %s51
    %p55 = pneg %p49
    %p56 = scmp.eq.s32.totalorder %s14, 1
    %p57 = por %p55, %p56
    %p58 = scmp.ne.s32.totalorder %s50, %s53
    %p59 = scmp.eq.s32.totalorder %s14, 0
    %p60 = por %p58, %p59
    %p61 = scmp.ne.s32.totalorder %s50, %s53
    %p62 = scmp.eq.s32.totalorder %s19, 1
    %p63 = por %p61, %p62
    %p64 = scmp.ne.s32.totalorder %s53, %s54
    %p65 = scmp.eq.s32.totalorder %s19, 0
    %p66 = por %p64, %p65
    %p67 = scmp.ne.s32.totalorder %s53, %s54
    %p68 = scmp.eq.s32.totalorder %s20, 1
    %p69 = por %p67, %p68
    %p71 = scmp.ne.s32.totalorder %s54, %s70
    %p72 = scmp.eq.s32.totalorder %s20, 0
    %p73 = por %p71, %p72
    %s75 = sadd.s32 %s74, 1
    %p78 = scmp.eq.s32.totalorder %s14, 1
    %p79 = scmp.ne.s32.totalorder %s74, %s76
    %p80 = scmp.eq.s32.totalorder %s14, 0
    %p81 = por %p79, %p80
    %p82 = scmp.ne.s32.totalorder %s74, %s76
    %p83 = scmp.eq.s32.totalorder %s19, 1
    %p84 = por %p82, %p83
    %p85 = scmp.ne.s32.totalorder %s76, %s77
    %p86 = scmp.eq.s32.totalorder %s19, 0
    %p87 = por %p85, %p86
    %p88 = scmp.ne.s32.totalorder %s76, %s77
    %p89 = scmp.eq.s32.totalorder %s20, 1
    %p90 = por %p88, %p89
    %p92 = scmp.ne.s32.totalorder %s77, %s91
    %p93 = scmp.eq.s32.totalorder %s20, 0
    %p94 = por %p92, %p93
    %s96 = sadd.s32 %s95, 1
    %p99 = scmp.eq.s32.totalorder %s14, 1
    %p100 = scmp.ne.s32.totalorder %s95, %s97
    %p101 = scmp.eq.s32.totalorder %s14, 0
    %p102 = por %p100, %p101
    %p103 = scmp.ne.s32.totalorder %s95, %s97
    %p104 = scmp.eq.s32.totalorder %s19, 1
    %p105 = por %p103, %p104
    %p106 = scmp.ne.s32.totalorder %s97, %s98
    %p107 = scmp.eq.s32.totalorder %s19, 0
    %p108 = por %p106, %p107
    %p109 = scmp.ne.s32.totalorder %s97, %s98
    %p110 = scmp.eq.s32.totalorder %s20, 1
    %p111 = por %p109, %p110
    %p113 = scmp.ne.s32.totalorder %s98, %s112
    %p114 = scmp.eq.s32.totalorder %s20, 0
    %p115 = por %p113, %p114
    %s117 = sadd.s32 %s116, 1
    %p120 = scmp.eq.s32.totalorder %s14, 1
    %p121 = scmp.ne.s32.totalorder %s116, %s118
    %p122 = scmp.eq.s32.totalorder %s14, 0
    %p123 = por %p121, %p122
    %p124 = scmp.ne.s32.totalorder %s116, %s118
    %p125 = scmp.eq.s32.totalorder %s19, 1
    %p126 = por %p124, %p125
    %p127 = scmp.ne.s32.totalorder %s118, %s119
    %p128 = scmp.eq.s32.totalorder %s19, 0
    %p129 = por %p127, %p128
    %p130 = scmp.ne.s32.totalorder %s118, %s119
    %p131 = scmp.eq.s32.totalorder %s20, 1
    %p132 = por %p130, %p131
    %p134 = scmp.ne.s32.totalorder %s119, %s133
    %p135 = scmp.eq.s32.totalorder %s20, 0
    %p136 = por %p134, %p135
    %s138 = sadd.s32 %s137, 1
    %p141 = scmp.eq.s32.totalorder %s14, 1
    %p142 = scmp.ne.s32.totalorder %s137, %s139
    %p143 = scmp.eq.s32.totalorder %s14, 0
    %p144 = por %p142, %p143
    %p145 = scmp.ne.s32.totalorder %s137, %s139
    %p146 = scmp.eq.s32.totalorder %s19, 1
    %p147 = por %p145, %p146
    %p148 = scmp.ne.s32.totalorder %s139, %s140
    %p149 = scmp.eq.s32.totalorder %s19, 0
    %p150 = por %p148, %p149
    %p151 = scmp.ne.s32.totalorder %s139, %s140
    %p152 = scmp.eq.s32.totalorder %s20, 1
    %p153 = por %p151, %p152
    %p155 = scmp.ne.s32.totalorder %s140, %s154
    %p156 = scmp.eq.s32.totalorder %s20, 0
    %p157 = por %p155, %p156
    %s159 = sadd.s32 %s158, 1
    %p162 = scmp.eq.s32.totalorder %s14, 1
    %p163 = scmp.ne.s32.totalorder %s158, %s160
    %p164 = scmp.eq.s32.totalorder %s14, 0
    %p165 = por %p163, %p164
    %p166 = scmp.ne.s32.totalorder %s158, %s160
    %p167 = scmp.eq.s32.totalorder %s19, 1
    %p168 = por %p166, %p167
    %p169 = scmp.ne.s32.totalorder %s160, %s161
    %p170 = scmp.eq.s32.totalorder %s19, 0
    %p171 = por %p169, %p170
    %p172 = scmp.ne.s32.totalorder %s160, %s161
    %p173 = scmp.eq.s32.totalorder %s20, 1
    %p174 = por %p172, %p173
    %p176 = scmp.ne.s32.totalorder %s161, %s175
    %p177 = scmp.eq.s32.totalorder %s20, 0
    %p178 = por %p176, %p177
    %s180 = sadd.s32 %s179, 1
    %p183 = scmp.eq.s32.totalorder %s14, 1
    %p184 = scmp.ne.s32.totalorder %s179, %s181
    %p185 = scmp.eq.s32.totalorder %s14, 0
    %p186 = por %p184, %p185
    %p187 = scmp.ne.s32.totalorder %s179, %s181
    %p188 = scmp.eq.s32.totalorder %s19, 1
    %p189 = por %p187, %p188
    %p190 = scmp.ne.s32.totalorder %s181, %s182
    %p191 = scmp.eq.s32.totalorder %s19, 0
    %p192 = por %p190, %p191
    %p193 = scmp.ne.s32.totalorder %s181, %s182
    %p194 = scmp.eq.s32.totalorder %s20, 1
    %p195 = por %p193, %p194
    %p197 = scmp.ne.s32.totalorder %s182, %s196
    %p198 = scmp.eq.s32.totalorder %s20, 0
    %p199 = por %p197, %p198
    %s200 = ssub.s32 %s14, %s21
    %p201 = scmp.eq.s32.totalorder %s200, 0
    %s203 = sadd.s32 %s202, 1
    %s204 = scalar_select %p201, %s202, %s203
    %p207 = pneg %p201
    %p208 = scmp.eq.s32.totalorder %s14, 1
    %p209 = por %p207, %p208
    %p210 = scmp.ne.s32.totalorder %s202, %s205
    %p211 = scmp.eq.s32.totalorder %s14, 0
    %p212 = por %p210, %p211
    %p213 = scmp.ne.s32.totalorder %s202, %s205
    %p214 = scmp.eq.s32.totalorder %s19, 1
    %p215 = por %p213, %p214
    %p216 = scmp.ne.s32.totalorder %s205, %s206
    %p217 = scmp.eq.s32.totalorder %s19, 0
    %p218 = por %p216, %p217
    %p219 = scmp.ne.s32.totalorder %s205, %s206
    %p220 = scmp.eq.s32.totalorder %s20, 1
    %p221 = por %p219, %p220
    %p223 = scmp.ne.s32.totalorder %s206, %s222
    %p224 = scmp.eq.s32.totalorder %s20, 0
    %p225 = por %p223, %p224
    %p226 = scmp.le.s32.totalorder 1, %s14
    %p227 = scmp.lt.s32.totalorder %s14, 3
    %p228 = pnand %p226, %p227
    %p229 = pneg %p228
    // Predicated region
    $region9: #{resmod_forward.6} parent=5 // pred_check
      _
    $region10: #{resmod_forward.6} parent=5 // pred_check_branch
      %231 = sbr.rel (%p228) target = $region12
    $region11: #{resmod_forward.6} parent=5 // pred_region
      %s232 = ssub.s32 %s14, 1
      // Predicated region
      $region13: #{resmod_forward.6} parent=11 // pred_check
        %p233 = pneg %p87
      $region14: #{resmod_forward.6} parent=11 // pred_check_branch
        %235 = sbr.rel (%p233) target = $region16
      $region15: #{resmod_forward.6} parent=11 // pred_region
        _
      $region16: #{resmod_forward.6} parent=11 // pred_fallthru
        _
      // Predicated region
      $region17: #{resmod_forward.6} parent=11 // pred_check
        %p236 = pneg %p108
      $region18: #{resmod_forward.6} parent=11 // pred_check_branch
        %238 = sbr.rel (%p236) target = $region20
      $region19: #{resmod_forward.6} parent=11 // pred_region
        _
      $region20: #{resmod_forward.6} parent=11 // pred_fallthru
        _
      // Predicated region
      $region21: #{resmod_forward.6} parent=11 // pred_check
        %p239 = pneg %p129
      $region22: #{resmod_forward.6} parent=11 // pred_check_branch
        %241 = sbr.rel (%p239) target = $region24
      $region23: #{resmod_forward.6} parent=11 // pred_region
        _
      $region24: #{resmod_forward.6} parent=11 // pred_fallthru
        _
      // Predicated region
      $region25: #{resmod_forward.6} parent=11 // pred_check
        %p242 = pneg %p150
      $region26: #{resmod_forward.6} parent=11 // pred_check_branch
        %244 = sbr.rel (%p242) target = $region28
      $region27: #{resmod_forward.6} parent=11 // pred_region
        _
      $region28: #{resmod_forward.6} parent=11 // pred_fallthru
        _
      // Predicated region
      $region29: #{resmod_forward.6} parent=11 // pred_check
        %p245 = pneg %p171
      $region30: #{resmod_forward.6} parent=11 // pred_check_branch
        %247 = sbr.rel (%p245) target = $region32
      $region31: #{resmod_forward.6} parent=11 // pred_region
        _
      $region32: #{resmod_forward.6} parent=11 // pred_fallthru
        _
      // Predicated region
      $region33: #{resmod_forward.6} parent=11 // pred_check
        %p248 = pneg %p192
      $region34: #{resmod_forward.6} parent=11 // pred_check_branch
        %250 = sbr.rel (%p248) target = $region36
      $region35: #{resmod_forward.6} parent=11 // pred_region
        _
      $region36: #{resmod_forward.6} parent=11 // pred_fallthru
        _
    $region12: #{resmod_forward.6} parent=5 // pred_fallthru
      _
    %p251 = scmp.lt.s32.totalorder %s14, 2
    // Predicated region
    $region37: #{resmod_forward.6} parent=5 // pred_check
      %p252 = pneg %p251
    $region38: #{resmod_forward.6} parent=5 // pred_check_branch
      %254 = sbr.rel (%p252) target = $region40
    $region39: #{resmod_forward.6} parent=5 // pred_region
      // Predicated region
      $region41: #{resmod_forward.6} parent=39 // pred_check
        %p255 = pneg %p34
      $region42: #{resmod_forward.6} parent=39 // pred_check_branch
        %257 = sbr.rel (%p255) target = $region44
      $region43: #{resmod_forward.6} parent=39 // pred_region
        %p258 = scmp.lt.s32.totalorder %s14, 1
        %s259 = scalar_select %p258, %s14, 1
        %s260 = smul.addr %s259, 8
        %s261 = smul.addr %s260, 8
        %s262 = scalar_lea.vmem %s0, %s261
      $region44: #{resmod_forward.6} parent=39 // pred_fallthru
        _
      // Predicated region
      $region45: #{resmod_forward.6} parent=39 // pred_check
        %p263 = pneg %p60
      $region46: #{resmod_forward.6} parent=39 // pred_check_branch
        %265 = sbr.rel (%p263) target = $region48
      $region47: #{resmod_forward.6} parent=39 // pred_region
        %p266 = scmp.lt.s32.totalorder %s14, 1
        %s267 = scalar_select %p266, %s14, 1
        %s268 = smul.addr %s267, 8
        %s269 = smul.addr %s268, 8
        %s270 = scalar_lea.vmem %s1, %s269
      $region48: #{resmod_forward.6} parent=39 // pred_fallthru
        _
    $region40: #{resmod_forward.6} parent=5 // pred_fallthru
      _
    %p271 = scmp.le.s32.totalorder 1, %s14
    %p272 = scmp.lt.s32.totalorder %s14, 3
    %p273 = pnand %p271, %p272
    %p274 = pneg %p273
    // Predicated region
    $region49: #{resmod_forward.6} parent=5 // pred_check
      _
    $region50: #{resmod_forward.6} parent=5 // pred_check_branch
      %276 = sbr.rel (%p273) target = $region52
    $region51: #{resmod_forward.6} parent=5 // pred_region
      %s277 = ssub.s32 %s14, 1
      %p278 = scmp.lt.s32.totalorder %s19, 1
      %s279 = scalar_select %p278, %s19, 1
      %s280 = smul.addr %s279, 8
      %s281 = smul.addr %s280, 8
      %s282 = scalar_lea.vmem %s0, %s281
      %p283 = pneg %p40
      %p284 = pneg %p37
      %p285 = scmp.lt.s32.totalorder %s19, 1
      %s286 = scalar_select %p285, %s19, 1
      %s287 = smul.addr %s286, 8
      %s288 = smul.addr %s287, 8
      %s289 = scalar_lea.vmem %s1, %s288
      %p290 = pneg %p66
      %p291 = pneg %p63
      %p292 = pneg %p87
      %p293 = pneg %p84
      %p294 = pneg %p108
      %p295 = pneg %p105
      %p296 = pneg %p129
      %p297 = pneg %p126
      %p298 = pneg %p150
      %p299 = pneg %p147
      %p300 = pneg %p171
      %p301 = pneg %p168
      %p302 = pneg %p192
      %p303 = pneg %p189
      %p304 = pneg %p218
      %p305 = pneg %p215
      %p306 = scmp.lt.s32.totalorder %s19, 1
      %s307 = scalar_select %p306, %s19, 1
      %s308 = smul.addr %s307, 8
      %s309 = smul.addr %s308, 8
      %s310 = scalar_lea.vmem %s8, %s309
      %p311 = scmp.lt.s32.totalorder %s19, 1
      %s312 = scalar_select %p311, %s19, 1
      %s313 = smul.addr %s312, 8
      %s314 = smul.addr %s313, 8
      %s315 = scalar_lea.vmem %s0, %s314
      %p316 = scmp.lt.s32.totalorder %s19, 1
      %s317 = scalar_select %p316, %s19, 1
      %s318 = smul.addr %s317, 8
      %s319 = smul.addr %s318, 8
      %s320 = scalar_lea.vmem %s1, %s319
      %p321 = scmp.lt.s32.totalorder %s19, 1
      %s322 = scalar_select %p321, %s19, 1
      %s323 = smul.addr %s322, 8
      %s324 = smul.addr %s323, 8
      %s325 = scalar_lea.vmem %s8, %s324
      %v326 = vld [vmem:[%s315] sm:$0xff]
      %v327 = vld [vmem:[%s315 + $0x8] sm:$0xff]
      %v328 = vld [vmem:[%s315 + $0x10] sm:$0xff]
      %v329 = vld [vmem:[%s315 + $0x18] sm:$0xff]
      %v330 = vld [vmem:[%s315 + $0x20] sm:$0xff]
      %v331 = vld [vmem:[%s315 + $0x28] sm:$0xff]
      %v332 = vld [vmem:[%s315 + $0x30] sm:$0xff]
      %v333 = vld [vmem:[%s315 + $0x38] sm:$0xff]
      %v334 = vld [vmem:[%s320] sm:$0xff]
      %v335 = vld [vmem:[%s320 + $0x8] sm:$0xff]
      %v336 = vld [vmem:[%s320 + $0x10] sm:$0xff]
      %v337 = vld [vmem:[%s320 + $0x18] sm:$0xff]
      %v338 = vld [vmem:[%s320 + $0x20] sm:$0xff]
      %v339 = vld [vmem:[%s320 + $0x28] sm:$0xff]
      %v340 = vld [vmem:[%s320 + $0x30] sm:$0xff]
      %v341 = vld [vmem:[%s320 + $0x38] sm:$0xff]
      %v342 = vld [vmem:[%s2] sm:$0xff]
      %v343 = vld [vmem:[%s3] sm:$0x1]
      %v345 = vperm.slane %v343, 0
      %vm347 = vcmask 64512
      %v349 = vsel %vm347, %v326, 0
      %v352 = vsel %vm347, %v327, 0
      %v355 = vsel %vm347, %v328, 0
      %v358 = vsel %vm347, %v329, 0
      %v361 = vsel %vm347, %v330, 0
      %v364 = vsel %vm347, %v331, 0
      %v367 = vsel %vm347, %v332, 0
      %v370 = vsel %vm347, %v333, 0
      %372 = vmatpush.msra.mxu0 0.0
      %373 = vmatpush.msra.mxu0 0.0
      %374 = vmatpush.msra.mxu0 0.0
      %375 = vmatpush.msra.mxu0 0.0
      %376 = vmatpush.msra.mxu0 0.0
      %377 = vmatpush.msra.mxu0 0.0
      %378 = vmatpush.msra.mxu0 0.0
      %379 = vmatpush.msra.mxu0 0.0
      %380 = vmatpush.msra.mxu0 0.0
      %381 = vmatpush.msra.mxu0 0.0
      %382 = vmatpush.msra.mxu0 0.0
      %383 = vmatpush.msra.mxu0 0.0
      %384 = vmatpush.msra.mxu0 0.0
      %385 = vmatpush.msra.mxu0 0.0
      %386 = vmatpush.msra.mxu0 0.0
      %387 = vmatpush.msra.mxu0 %v342
      %388 = vmatmul.f32.gmra.mxu0 %v349
      %v389 = vpop.f32.mrf.mxu0
      %v390 = vadd.f32 %v345, %v389
      %391 = vmatmul.f32.gmra.mxu0 %v352
      %v392 = vpop.f32.mrf.mxu0
      %v393 = vadd.f32 %v345, %v392
      %394 = vmatmul.f32.gmra.mxu0 %v355
      %v395 = vpop.f32.mrf.mxu0
      %v396 = vadd.f32 %v345, %v395
      %397 = vmatmul.f32.gmra.mxu0 %v358
      %v398 = vpop.f32.mrf.mxu0
      %v399 = vadd.f32 %v345, %v398
      %400 = vmatmul.f32.gmra.mxu0 %v361
      %v401 = vpop.f32.mrf.mxu0
      %v402 = vadd.f32 %v345, %v401
      %403 = vmatmul.f32.gmra.mxu0 %v364
      %v404 = vpop.f32.mrf.mxu0
      %v405 = vadd.f32 %v345, %v404
      %406 = vmatmul.f32.gmra.mxu0 %v367
      %v407 = vpop.f32.mrf.mxu0
      %v408 = vadd.f32 %v345, %v407
      %409 = vmatmul.f32.gmra.mxu0 %v370
      %v410 = vpop.f32.mrf.mxu0
      %v411 = vadd.f32 %v345, %v410
      %412 = vdwg.mxu0
      %v413 = vmax.f32 %v390, 0.0
      %v414 = vmax.f32 %v393, 0.0
      %v415 = vmax.f32 %v396, 0.0
      %v416 = vmax.f32 %v399, 0.0
      %v417 = vmax.f32 %v402, 0.0
      %v418 = vmax.f32 %v405, 0.0
      %v419 = vmax.f32 %v408, 0.0
      %v420 = vmax.f32 %v411, 0.0
      %vm421 = vcmask 31744
      %422 = vst.msk [vmem:[#allocation2] sm:$0xff] %vm421, 0.0
      %vm423 = vcmask 25600
      %424 = vst.msk [vmem:[#allocation2 + $0x8] sm:$0x3] %vm423, 0.0
      %425 = vst.msk [vmem:[#allocation2 + $0x10] sm:$0xff] %vm421, 0.0
      %426 = vst.msk [vmem:[#allocation2 + $0x18] sm:$0x3] %vm423, 0.0
      %427 = vst.msk [vmem:[#allocation2 + $0x20] sm:$0xff] %vm421, 0.0
      %428 = vst.msk [vmem:[#allocation2 + $0x28] sm:$0x3] %vm423, 0.0
      %429 = vst.msk [vmem:[#allocation2 + $0x30] sm:$0xff] %vm421, 0.0
      %430 = vst.msk [vmem:[#allocation2 + $0x38] sm:$0x3] %vm423, 0.0
      %431 = vst.msk [vmem:[#allocation2 + $0x40] sm:$0xff] %vm421, 0.0
      %432 = vst.msk [vmem:[#allocation2 + $0x48] sm:$0x3] %vm423, 0.0
      %433 = vst.msk [vmem:[#allocation2 + $0x50] sm:$0xff] %vm421, 0.0
      %434 = vst.msk [vmem:[#allocation2 + $0x58] sm:$0x3] %vm423, 0.0
      %435 = vst.msk [vmem:[#allocation2 + $0x60] sm:$0xff] %vm421, 0.0
      %436 = vst.msk [vmem:[#allocation2 + $0x68] sm:$0x3] %vm423, 0.0
      %437 = vst.msk [vmem:[#allocation2 + $0x70] sm:$0xff] %vm421, 0.0
      %438 = vst.msk [vmem:[#allocation2 + $0x78] sm:$0x3] %vm423, 0.0
      %439 = vst.msk [vmem:[#allocation2 + $0x80] sm:$0xff] %vm421, 0.0
      %440 = vst.msk [vmem:[#allocation2 + $0x88] sm:$0x3] %vm423, 0.0
      %441 = vst.msk [vmem:[#allocation2 + $0x90] sm:$0xff] %vm421, 0.0
      %442 = vst.msk [vmem:[#allocation2 + $0x98] sm:$0x3] %vm423, 0.0
      %vm443 = vcmask 7168
      %444 = vst.msk [vmem:[#allocation3] sm:$0xff] %vm443, 0.0
      %vm445 = vcmask 1024
      %446 = vst.msk [vmem:[#allocation3 + $0x8] sm:$0x3] %vm445, 0.0
      %447 = vst.msk [vmem:[#allocation3 + $0x10] sm:$0xff] %vm443, 0.0
      %448 = vst.msk [vmem:[#allocation3 + $0x18] sm:$0x3] %vm445, 0.0
      %449 = vst.msk [vmem:[#allocation3 + $0x20] sm:$0xff] %vm443, 0.0
      %450 = vst.msk [vmem:[#allocation3 + $0x28] sm:$0x3] %vm445, 0.0
      %451 = vst.msk [vmem:[#allocation3 + $0x30] sm:$0xff] %vm443, 0.0
      %452 = vst.msk [vmem:[#allocation3 + $0x38] sm:$0x3] %vm445, 0.0
      %453 = vst.msk [vmem:[#allocation3 + $0x40] sm:$0xff] %vm443, 0.0
      %454 = vst.msk [vmem:[#allocation3 + $0x48] sm:$0x3] %vm445, 0.0
      %455 = vst.msk [vmem:[#allocation3 + $0x50] sm:$0xff] %vm443, 0.0
      %456 = vst.msk [vmem:[#allocation3 + $0x58] sm:$0x3] %vm445, 0.0
      %457 = vst.msk [vmem:[#allocation3 + $0x60] sm:$0xff] %vm443, 0.0
      %458 = vst.msk [vmem:[#allocation3 + $0x68] sm:$0x3] %vm445, 0.0
      %459 = vst.msk [vmem:[#allocation3 + $0x70] sm:$0xff] %vm443, 0.0
      %460 = vst.msk [vmem:[#allocation3 + $0x78] sm:$0x3] %vm445, 0.0
      %461 = vst.msk [vmem:[#allocation3 + $0x80] sm:$0xff] %vm443, 0.0
      %462 = vst.msk [vmem:[#allocation3 + $0x88] sm:$0x3] %vm445, 0.0
      %463 = vst.msk [vmem:[#allocation3 + $0x90] sm:$0xff] %vm443, 0.0
      %464 = vst.msk [vmem:[#allocation3 + $0x98] sm:$0x3] %vm445, 0.0
      %466 = vset.pattern.permute.xlu0 0
      %467 = vperm.xlu0 %466, %v334
      %v468 = vpop.permute.xlu0 %467
      %471 = vset.pattern.permute.xlu0 0
      %472 = vperm.xlu0 %471, %v335
      %v473 = vpop.permute.xlu0 %472
      %476 = vset.pattern.permute.xlu0 0
      %477 = vperm.xlu0 %476, %v336
      %v478 = vpop.permute.xlu0 %477
      %481 = vset.pattern.permute.xlu0 0
      %482 = vperm.xlu0 %481, %v337
      %v483 = vpop.permute.xlu0 %482
      %486 = vset.pattern.permute.xlu0 0
      %487 = vperm.xlu0 %486, %v338
      %v488 = vpop.permute.xlu0 %487
      %491 = vset.pattern.permute.xlu0 0
      %492 = vperm.xlu0 %491, %v339
      %v493 = vpop.permute.xlu0 %492
      %496 = vset.pattern.permute.xlu0 0
      %497 = vperm.xlu0 %496, %v340
      %v498 = vpop.permute.xlu0 %497
      %501 = vset.pattern.permute.xlu0 0
      %502 = vperm.xlu0 %501, %v341
      %v503 = vpop.permute.xlu0 %502
      %v505 = vmul.f32 %v413, %v468
      %v506 = vmul.f32 %v414, %v473
      %v507 = vmul.f32 %v415, %v478
      %v508 = vmul.f32 %v416, %v483
      %v509 = vmul.f32 %v417, %v488
      %v510 = vmul.f32 %v418, %v493
      %v511 = vmul.f32 %v419, %v498
      %v512 = vmul.f32 %v420, %v503
      %s513 = scalar_lea.vmem [#allocation2], 16
      %514 = vst.msk [vmem:[%s513 + $0x1] sm:$0xff] %vm421, %v505
      %515 = vst.msk [vmem:[%s513 + $0x11] sm:$0xff] %vm421, %v506
      %516 = vst.msk [vmem:[%s513 + $0x21] sm:$0xff] %vm421, %v507
      %517 = vst.msk [vmem:[%s513 + $0x31] sm:$0xff] %vm421, %v508
      %518 = vst.msk [vmem:[%s513 + $0x41] sm:$0xff] %vm421, %v509
      %519 = vst.msk [vmem:[%s513 + $0x51] sm:$0xff] %vm421, %v510
      %520 = vst.msk [vmem:[%s513 + $0x61] sm:$0xff] %vm421, %v511
      %521 = vst.msk [vmem:[%s513 + $0x71] sm:$0xff] %vm421, %v512
      %s522 = scalar_lea.vmem [#allocation3], 16
      %523 = vst.msk [vmem:[%s522 + $0x1] sm:$0xff] %vm443, %v334
      %524 = vst.msk [vmem:[%s522 + $0x11] sm:$0xff] %vm443, %v335
      %525 = vst.msk [vmem:[%s522 + $0x21] sm:$0xff] %vm443, %v336
      %526 = vst.msk [vmem:[%s522 + $0x31] sm:$0xff] %vm443, %v337
      %527 = vst.msk [vmem:[%s522 + $0x41] sm:$0xff] %vm443, %v338
      %528 = vst.msk [vmem:[%s522 + $0x51] sm:$0xff] %vm443, %v339
      %529 = vst.msk [vmem:[%s522 + $0x61] sm:$0xff] %vm443, %v340
      %530 = vst.msk [vmem:[%s522 + $0x71] sm:$0xff] %vm443, %v341
      %v531 = vld [vmem:[#allocation2] sm:$0xff]
      %v532 = vld [vmem:[#allocation2 + $0x10] sm:$0xff]
      %v533 = vld [vmem:[#allocation2 + $0x20] sm:$0xff]
      %v534 = vld [vmem:[#allocation2 + $0x30] sm:$0xff]
      %v535 = vld [vmem:[#allocation2 + $0x40] sm:$0xff]
      %v536 = vld [vmem:[#allocation2 + $0x50] sm:$0xff]
      %v537 = vld [vmem:[#allocation2 + $0x60] sm:$0xff]
      %v538 = vld [vmem:[#allocation2 + $0x70] sm:$0xff]
      %539 = vst.msk [vmem:[#allocation4] sm:$0xff] %vm421, %v531
      %540 = vst.msk [vmem:[#allocation4 + $0x8] sm:$0xff] %vm421, %v532
      %541 = vst.msk [vmem:[#allocation4 + $0x10] sm:$0xff] %vm421, %v533
      %542 = vst.msk [vmem:[#allocation4 + $0x18] sm:$0xff] %vm421, %v534
      %543 = vst.msk [vmem:[#allocation4 + $0x20] sm:$0xff] %vm421, %v535
      %544 = vst.msk [vmem:[#allocation4 + $0x28] sm:$0xff] %vm421, %v536
      %545 = vst.msk [vmem:[#allocation4 + $0x30] sm:$0xff] %vm421, %v537
      %546 = vst.msk [vmem:[#allocation4 + $0x38] sm:$0xff] %vm421, %v538
      %v547 = vld [vmem:[#allocation3] sm:$0xff]
      %v548 = vld [vmem:[#allocation3 + $0x10] sm:$0xff]
      %v549 = vld [vmem:[#allocation3 + $0x20] sm:$0xff]
      %v550 = vld [vmem:[#allocation3 + $0x30] sm:$0xff]
      %v551 = vld [vmem:[#allocation3 + $0x40] sm:$0xff]
      %v552 = vld [vmem:[#allocation3 + $0x50] sm:$0xff]
      %v553 = vld [vmem:[#allocation3 + $0x60] sm:$0xff]
      %v554 = vld [vmem:[#allocation3 + $0x70] sm:$0xff]
      %v555 = vadd.f32 %v547, 0.0
      %v556 = vadd.f32 %v548, 0.0
      %v557 = vadd.f32 %v549, 0.0
      %v558 = vadd.f32 %v550, 0.0
      %v559 = vadd.f32 %v551, 0.0
      %v560 = vadd.f32 %v552, 0.0
      %v561 = vadd.f32 %v553, 0.0
      %v562 = vadd.f32 %v554, 0.0
      %v563 = vld [vmem:[#allocation2 + $0x1] sm:$0xff]
      %v564 = vld [vmem:[#allocation2 + $0x11] sm:$0xff]
      %v565 = vld [vmem:[#allocation2 + $0x21] sm:$0xff]
      %v566 = vld [vmem:[#allocation2 + $0x31] sm:$0xff]
      %v567 = vld [vmem:[#allocation2 + $0x41] sm:$0xff]
      %v568 = vld [vmem:[#allocation2 + $0x51] sm:$0xff]
      %v569 = vld [vmem:[#allocation2 + $0x61] sm:$0xff]
      %v570 = vld [vmem:[#allocation2 + $0x71] sm:$0xff]
      %579 = vrot.lane.b32.xlu0 %v563, 4
      %v580 = vpop.permute.xlu0 %579
      %581 = vrot.lane.b32.xlu0 %v564, 4
      %v582 = vpop.permute.xlu0 %581
      %583 = vrot.lane.b32.xlu0 %v565, 4
      %v584 = vpop.permute.xlu0 %583
      %585 = vrot.lane.b32.xlu0 %v566, 4
      %v586 = vpop.permute.xlu0 %585
      %587 = vrot.lane.b32.xlu0 %v567, 4
      %v588 = vpop.permute.xlu0 %587
      %589 = vrot.lane.b32.xlu0 %v568, 4
      %v590 = vpop.permute.xlu0 %589
      %591 = vrot.lane.b32.xlu0 %v569, 4
      %v592 = vpop.permute.xlu0 %591
      %593 = vrot.lane.b32.xlu0 %v570, 4
      %v594 = vpop.permute.xlu0 %593
      %vm603 = vcmask 64544
      %604 = vst.msk [vmem:[#allocation4] sm:$0xff] %vm603, %v580
      %605 = vst.msk [vmem:[#allocation4 + $0x8] sm:$0xff] %vm603, %v582
      %606 = vst.msk [vmem:[#allocation4 + $0x10] sm:$0xff] %vm603, %v584
      %607 = vst.msk [vmem:[#allocation4 + $0x18] sm:$0xff] %vm603, %v586
      %608 = vst.msk [vmem:[#allocation4 + $0x20] sm:$0xff] %vm603, %v588
      %609 = vst.msk [vmem:[#allocation4 + $0x28] sm:$0xff] %vm603, %v590
      %610 = vst.msk [vmem:[#allocation4 + $0x30] sm:$0xff] %vm603, %v592
      %611 = vst.msk [vmem:[#allocation4 + $0x38] sm:$0xff] %vm603, %v594
      %v612 = vld [vmem:[#allocation3 + $0x1] sm:$0xff]
      %v613 = vld [vmem:[#allocation3 + $0x11] sm:$0xff]
      %v614 = vld [vmem:[#allocation3 + $0x21] sm:$0xff]
      %v615 = vld [vmem:[#allocation3 + $0x31] sm:$0xff]
      %v616 = vld [vmem:[#allocation3 + $0x41] sm:$0xff]
      %v617 = vld [vmem:[#allocation3 + $0x51] sm:$0xff]
      %v618 = vld [vmem:[#allocation3 + $0x61] sm:$0xff]
      %v619 = vld [vmem:[#allocation3 + $0x71] sm:$0xff]
      %v620 = vadd.f32 %v555, %v612
      %v621 = vadd.f32 %v556, %v613
      %v622 = vadd.f32 %v557, %v614
      %v623 = vadd.f32 %v558, %v615
      %v624 = vadd.f32 %v559, %v616
      %v625 = vadd.f32 %v560, %v617
      %v626 = vadd.f32 %v561, %v618
      %v627 = vadd.f32 %v562, %v619
      %v628 = vld [vmem:[#allocation2 + $0x2] sm:$0xff]
      %v629 = vld [vmem:[#allocation2 + $0x12] sm:$0xff]
      %v630 = vld [vmem:[#allocation2 + $0x22] sm:$0xff]
      %v631 = vld [vmem:[#allocation2 + $0x32] sm:$0xff]
      %v632 = vld [vmem:[#allocation2 + $0x42] sm:$0xff]
      %v633 = vld [vmem:[#allocation2 + $0x52] sm:$0xff]
      %v634 = vld [vmem:[#allocation2 + $0x62] sm:$0xff]
      %v635 = vld [vmem:[#allocation2 + $0x72] sm:$0xff]
      %644 = vrot.lane.b32.xlu0 %v628, 8
      %v645 = vpop.permute.xlu0 %644
      %646 = vrot.lane.b32.xlu0 %v629, 8
      %v647 = vpop.permute.xlu0 %646
      %648 = vrot.lane.b32.xlu0 %v630, 8
      %v649 = vpop.permute.xlu0 %648
      %650 = vrot.lane.b32.xlu0 %v631, 8
      %v651 = vpop.permute.xlu0 %650
      %652 = vrot.lane.b32.xlu0 %v632, 8
      %v653 = vpop.permute.xlu0 %652
      %654 = vrot.lane.b32.xlu0 %v633, 8
      %v655 = vpop.permute.xlu0 %654
      %656 = vrot.lane.b32.xlu0 %v634, 8
      %v657 = vpop.permute.xlu0 %656
      %658 = vrot.lane.b32.xlu0 %v635, 8
      %v659 = vpop.permute.xlu0 %658
      %vm668 = vcmask 97344
      %669 = vst.msk [vmem:[#allocation4] sm:$0xff] %vm668, %v645
      %670 = vst.msk [vmem:[#allocation4 + $0x8] sm:$0xff] %vm668, %v647
      %671 = vst.msk [vmem:[#allocation4 + $0x10] sm:$0xff] %vm668, %v649
      %672 = vst.msk [vmem:[#allocation4 + $0x18] sm:$0xff] %vm668, %v651
      %673 = vst.msk [vmem:[#allocation4 + $0x20] sm:$0xff] %vm668, %v653
      %674 = vst.msk [vmem:[#allocation4 + $0x28] sm:$0xff] %vm668, %v655
      %675 = vst.msk [vmem:[#allocation4 + $0x30] sm:$0xff] %vm668, %v657
      %676 = vst.msk [vmem:[#allocation4 + $0x38] sm:$0xff] %vm668, %v659
      %v677 = vld [vmem:[#allocation3 + $0x2] sm:$0xff]
      %v678 = vld [vmem:[#allocation3 + $0x12] sm:$0xff]
      %v679 = vld [vmem:[#allocation3 + $0x22] sm:$0xff]
      %v680 = vld [vmem:[#allocation3 + $0x32] sm:$0xff]
      %v681 = vld [vmem:[#allocation3 + $0x42] sm:$0xff]
      %v682 = vld [vmem:[#allocation3 + $0x52] sm:$0xff]
      %v683 = vld [vmem:[#allocation3 + $0x62] sm:$0xff]
      %v684 = vld [vmem:[#allocation3 + $0x72] sm:$0xff]
      %v685 = vadd.f32 %v620, %v677
      %v686 = vadd.f32 %v621, %v678
      %v687 = vadd.f32 %v622, %v679
      %v688 = vadd.f32 %v623, %v680
      %v689 = vadd.f32 %v624, %v681
      %v690 = vadd.f32 %v625, %v682
      %v691 = vadd.f32 %v626, %v683
      %v692 = vadd.f32 %v627, %v684
      %v693 = vld [vmem:[%s513] sm:$0xff]
      %v694 = vld [vmem:[%s513 + $0x10] sm:$0xff]
      %v695 = vld [vmem:[%s513 + $0x20] sm:$0xff]
      %v696 = vld [vmem:[%s513 + $0x30] sm:$0xff]
      %v697 = vld [vmem:[%s513 + $0x40] sm:$0xff]
      %v698 = vld [vmem:[%s513 + $0x50] sm:$0xff]
      %v699 = vld [vmem:[%s513 + $0x60] sm:$0xff]
      %v700 = vld [vmem:[%s513 + $0x70] sm:$0xff]
      %709 = vrot.lane.b32.xlu0 %v693, 12
      %v710 = vpop.permute.xlu0 %709
      %711 = vrot.lane.b32.xlu0 %v694, 12
      %v712 = vpop.permute.xlu0 %711
      %713 = vrot.lane.b32.xlu0 %v695, 12
      %v714 = vpop.permute.xlu0 %713
      %715 = vrot.lane.b32.xlu0 %v696, 12
      %v716 = vpop.permute.xlu0 %715
      %717 = vrot.lane.b32.xlu0 %v697, 12
      %v718 = vpop.permute.xlu0 %717
      %719 = vrot.lane.b32.xlu0 %v698, 12
      %v720 = vpop.permute.xlu0 %719
      %721 = vrot.lane.b32.xlu0 %v699, 12
      %v722 = vpop.permute.xlu0 %721
      %723 = vrot.lane.b32.xlu0 %v700, 12
      %v724 = vpop.permute.xlu0 %723
      %vm733 = vcmask 130144
      %734 = vst.msk [vmem:[#allocation4] sm:$0xff] %vm733, %v710
      %735 = vst.msk [vmem:[#allocation4 + $0x8] sm:$0xff] %vm733, %v712
      %736 = vst.msk [vmem:[#allocation4 + $0x10] sm:$0xff] %vm733, %v714
      %737 = vst.msk [vmem:[#allocation4 + $0x18] sm:$0xff] %vm733, %v716
      %738 = vst.msk [vmem:[#allocation4 + $0x20] sm:$0xff] %vm733, %v718
      %739 = vst.msk [vmem:[#allocation4 + $0x28] sm:$0xff] %vm733, %v720
      %740 = vst.msk [vmem:[#allocation4 + $0x30] sm:$0xff] %vm733, %v722
      %741 = vst.msk [vmem:[#allocation4 + $0x38] sm:$0xff] %vm733, %v724
      %v742 = vld [vmem:[%s522] sm:$0xff]
      %v743 = vld [vmem:[%s522 + $0x10] sm:$0xff]
      %v744 = vld [vmem:[%s522 + $0x20] sm:$0xff]
      %v745 = vld [vmem:[%s522 + $0x30] sm:$0xff]
      %v746 = vld [vmem:[%s522 + $0x40] sm:$0xff]
      %v747 = vld [vmem:[%s522 + $0x50] sm:$0xff]
      %v748 = vld [vmem:[%s522 + $0x60] sm:$0xff]
      %v749 = vld [vmem:[%s522 + $0x70] sm:$0xff]
      %v750 = vadd.f32 %v685, %v742
      %v751 = vadd.f32 %v686, %v743
      %v752 = vadd.f32 %v687, %v744
      %v753 = vadd.f32 %v688, %v745
      %v754 = vadd.f32 %v689, %v746
      %v755 = vadd.f32 %v690, %v747
      %v756 = vadd.f32 %v691, %v748
      %v757 = vadd.f32 %v692, %v749
      %v758 = vld [vmem:[%s513 + $0x1] sm:$0xff]
      %v759 = vld [vmem:[%s513 + $0x11] sm:$0xff]
      %v760 = vld [vmem:[%s513 + $0x21] sm:$0xff]
      %v761 = vld [vmem:[%s513 + $0x31] sm:$0xff]
      %v762 = vld [vmem:[%s513 + $0x41] sm:$0xff]
      %v763 = vld [vmem:[%s513 + $0x51] sm:$0xff]
      %v764 = vld [vmem:[%s513 + $0x61] sm:$0xff]
      %v765 = vld [vmem:[%s513 + $0x71] sm:$0xff]
      %774 = vrot.lane.b32.xlu0 %v758, 16
      %v775 = vpop.permute.xlu0 %774
      %776 = vrot.lane.b32.xlu0 %v759, 16
      %v777 = vpop.permute.xlu0 %776
      %778 = vrot.lane.b32.xlu0 %v760, 16
      %v779 = vpop.permute.xlu0 %778
      %780 = vrot.lane.b32.xlu0 %v761, 16
      %v781 = vpop.permute.xlu0 %780
      %782 = vrot.lane.b32.xlu0 %v762, 16
      %v783 = vpop.permute.xlu0 %782
      %784 = vrot.lane.b32.xlu0 %v763, 16
      %v785 = vpop.permute.xlu0 %784
      %786 = vrot.lane.b32.xlu0 %v764, 16
      %v787 = vpop.permute.xlu0 %786
      %788 = vrot.lane.b32.xlu0 %v765, 16
      %v789 = vpop.permute.xlu0 %788
      %vm798 = vcmask 162944
      %799 = vst.msk [vmem:[#allocation4] sm:$0xff] %vm798, %v775
      %800 = vst.msk [vmem:[#allocation4 + $0x8] sm:$0xff] %vm798, %v777
      %801 = vst.msk [vmem:[#allocation4 + $0x10] sm:$0xff] %vm798, %v779
      %802 = vst.msk [vmem:[#allocation4 + $0x18] sm:$0xff] %vm798, %v781
      %803 = vst.msk [vmem:[#allocation4 + $0x20] sm:$0xff] %vm798, %v783
      %804 = vst.msk [vmem:[#allocation4 + $0x28] sm:$0xff] %vm798, %v785
      %805 = vst.msk [vmem:[#allocation4 + $0x30] sm:$0xff] %vm798, %v787
      %806 = vst.msk [vmem:[#allocation4 + $0x38] sm:$0xff] %vm798, %v789
      %v807 = vld [vmem:[%s522 + $0x1] sm:$0xff]
      %v808 = vld [vmem:[%s522 + $0x11] sm:$0xff]
      %v809 = vld [vmem:[%s522 + $0x21] sm:$0xff]
      %v810 = vld [vmem:[%s522 + $0x31] sm:$0xff]
      %v811 = vld [vmem:[%s522 + $0x41] sm:$0xff]
      %v812 = vld [vmem:[%s522 + $0x51] sm:$0xff]
      %v813 = vld [vmem:[%s522 + $0x61] sm:$0xff]
      %v814 = vld [vmem:[%s522 + $0x71] sm:$0xff]
      %v815 = vadd.f32 %v750, %v807
      %v816 = vadd.f32 %v751, %v808
      %v817 = vadd.f32 %v752, %v809
      %v818 = vadd.f32 %v753, %v810
      %v819 = vadd.f32 %v754, %v811
      %v820 = vadd.f32 %v755, %v812
      %v821 = vadd.f32 %v756, %v813
      %v822 = vadd.f32 %v757, %v814
      %v823 = vld [vmem:[%s513 + $0x2] sm:$0xff]
      %v824 = vld [vmem:[%s513 + $0x12] sm:$0xff]
      %v825 = vld [vmem:[%s513 + $0x22] sm:$0xff]
      %v826 = vld [vmem:[%s513 + $0x32] sm:$0xff]
      %v827 = vld [vmem:[%s513 + $0x42] sm:$0xff]
      %v828 = vld [vmem:[%s513 + $0x52] sm:$0xff]
      %v829 = vld [vmem:[%s513 + $0x62] sm:$0xff]
      %v830 = vld [vmem:[%s513 + $0x72] sm:$0xff]
      %839 = vrot.lane.b32.xlu0 %v823, 20
      %v840 = vpop.permute.xlu0 %839
      %841 = vrot.lane.b32.xlu0 %v824, 20
      %v842 = vpop.permute.xlu0 %841
      %843 = vrot.lane.b32.xlu0 %v825, 20
      %v844 = vpop.permute.xlu0 %843
      %845 = vrot.lane.b32.xlu0 %v826, 20
      %v846 = vpop.permute.xlu0 %845
      %847 = vrot.lane.b32.xlu0 %v827, 20
      %v848 = vpop.permute.xlu0 %847
      %849 = vrot.lane.b32.xlu0 %v828, 20
      %v850 = vpop.permute.xlu0 %849
      %851 = vrot.lane.b32.xlu0 %v829, 20
      %v852 = vpop.permute.xlu0 %851
      %853 = vrot.lane.b32.xlu0 %v830, 20
      %v854 = vpop.permute.xlu0 %853
      %vm863 = vcmask 195744
      %864 = vst.msk [vmem:[#allocation4] sm:$0xff] %vm863, %v840
      %865 = vst.msk [vmem:[#allocation4 + $0x8] sm:$0xff] %vm863, %v842
      %866 = vst.msk [vmem:[#allocation4 + $0x10] sm:$0xff] %vm863, %v844
      %867 = vst.msk [vmem:[#allocation4 + $0x18] sm:$0xff] %vm863, %v846
      %868 = vst.msk [vmem:[#allocation4 + $0x20] sm:$0xff] %vm863, %v848
      %869 = vst.msk [vmem:[#allocation4 + $0x28] sm:$0xff] %vm863, %v850
      %870 = vst.msk [vmem:[#allocation4 + $0x30] sm:$0xff] %vm863, %v852
      %871 = vst.msk [vmem:[#allocation4 + $0x38] sm:$0xff] %vm863, %v854
      %v872 = vld [vmem:[%s522 + $0x2] sm:$0xff]
      %v873 = vld [vmem:[%s522 + $0x12] sm:$0xff]
      %v874 = vld [vmem:[%s522 + $0x22] sm:$0xff]
      %v875 = vld [vmem:[%s522 + $0x32] sm:$0xff]
      %v876 = vld [vmem:[%s522 + $0x42] sm:$0xff]
      %v877 = vld [vmem:[%s522 + $0x52] sm:$0xff]
      %v878 = vld [vmem:[%s522 + $0x62] sm:$0xff]
      %v879 = vld [vmem:[%s522 + $0x72] sm:$0xff]
      %v880 = vadd.f32 %v815, %v872
      %v881 = vadd.f32 %v816, %v873
      %v882 = vadd.f32 %v817, %v874
      %v883 = vadd.f32 %v818, %v875
      %v884 = vadd.f32 %v819, %v876
      %v885 = vadd.f32 %v820, %v877
      %v886 = vadd.f32 %v821, %v878
      %v887 = vadd.f32 %v822, %v879
      %s888 = scalar_lea.vmem [#allocation2], 32
      %v889 = vld [vmem:[%s888] sm:$0xff]
      %v890 = vld [vmem:[%s888 + $0x10] sm:$0xff]
      %v891 = vld [vmem:[%s888 + $0x20] sm:$0xff]
      %v892 = vld [vmem:[%s888 + $0x30] sm:$0xff]
      %v893 = vld [vmem:[%s888 + $0x40] sm:$0xff]
      %v894 = vld [vmem:[%s888 + $0x50] sm:$0xff]
      %v895 = vld [vmem:[%s888 + $0x60] sm:$0xff]
      %v896 = vld [vmem:[%s888 + $0x70] sm:$0xff]
      %905 = vrot.lane.b32.xlu0 %v889, 24
      %v906 = vpop.permute.xlu0 %905
      %907 = vrot.lane.b32.xlu0 %v890, 24
      %v908 = vpop.permute.xlu0 %907
      %909 = vrot.lane.b32.xlu0 %v891, 24
      %v910 = vpop.permute.xlu0 %909
      %911 = vrot.lane.b32.xlu0 %v892, 24
      %v912 = vpop.permute.xlu0 %911
      %913 = vrot.lane.b32.xlu0 %v893, 24
      %v914 = vpop.permute.xlu0 %913
      %915 = vrot.lane.b32.xlu0 %v894, 24
      %v916 = vpop.permute.xlu0 %915
      %917 = vrot.lane.b32.xlu0 %v895, 24
      %v918 = vpop.permute.xlu0 %917
      %919 = vrot.lane.b32.xlu0 %v896, 24
      %v920 = vpop.permute.xlu0 %919
      %vm929 = vcmask 228544
      %930 = vst.msk [vmem:[#allocation4] sm:$0xff] %vm929, %v906
      %931 = vst.msk [vmem:[#allocation4 + $0x8] sm:$0xff] %vm929, %v908
      %932 = vst.msk [vmem:[#allocation4 + $0x10] sm:$0xff] %vm929, %v910
      %933 = vst.msk [vmem:[#allocation4 + $0x18] sm:$0xff] %vm929, %v912
      %934 = vst.msk [vmem:[#allocation4 + $0x20] sm:$0xff] %vm929, %v914
      %935 = vst.msk [vmem:[#allocation4 + $0x28] sm:$0xff] %vm929, %v916
      %936 = vst.msk [vmem:[#allocation4 + $0x30] sm:$0xff] %vm929, %v918
      %937 = vst.msk [vmem:[#allocation4 + $0x38] sm:$0xff] %vm929, %v920
      %s938 = scalar_lea.vmem [#allocation3], 32
      %v939 = vld [vmem:[%s938] sm:$0xff]
      %v940 = vld [vmem:[%s938 + $0x10] sm:$0xff]
      %v941 = vld [vmem:[%s938 + $0x20] sm:$0xff]
      %v942 = vld [vmem:[%s938 + $0x30] sm:$0xff]
      %v943 = vld [vmem:[%s938 + $0x40] sm:$0xff]
      %v944 = vld [vmem:[%s938 + $0x50] sm:$0xff]
      %v945 = vld [vmem:[%s938 + $0x60] sm:$0xff]
      %v946 = vld [vmem:[%s938 + $0x70] sm:$0xff]
      %v947 = vadd.f32 %v880, %v939
      %v948 = vadd.f32 %v881, %v940
      %v949 = vadd.f32 %v882, %v941
      %v950 = vadd.f32 %v883, %v942
      %v951 = vadd.f32 %v884, %v943
      %v952 = vadd.f32 %v885, %v944
      %v953 = vadd.f32 %v886, %v945
      %v954 = vadd.f32 %v887, %v946
      %v955 = vld [vmem:[%s888 + $0x1] sm:$0xff]
      %v956 = vld [vmem:[%s888 + $0x11] sm:$0xff]
      %v957 = vld [vmem:[%s888 + $0x21] sm:$0xff]
      %v958 = vld [vmem:[%s888 + $0x31] sm:$0xff]
      %v959 = vld [vmem:[%s888 + $0x41] sm:$0xff]
      %v960 = vld [vmem:[%s888 + $0x51] sm:$0xff]
      %v961 = vld [vmem:[%s888 + $0x61] sm:$0xff]
      %v962 = vld [vmem:[%s888 + $0x71] sm:$0xff]
      %971 = vrot.lane.b32.xlu0 %v955, 28
      %v972 = vpop.permute.xlu0 %971
      %973 = vrot.lane.b32.xlu0 %v956, 28
      %v974 = vpop.permute.xlu0 %973
      %975 = vrot.lane.b32.xlu0 %v957, 28
      %v976 = vpop.permute.xlu0 %975
      %977 = vrot.lane.b32.xlu0 %v958, 28
      %v978 = vpop.permute.xlu0 %977
      %979 = vrot.lane.b32.xlu0 %v959, 28
      %v980 = vpop.permute.xlu0 %979
      %981 = vrot.lane.b32.xlu0 %v960, 28
      %v982 = vpop.permute.xlu0 %981
      %983 = vrot.lane.b32.xlu0 %v961, 28
      %v984 = vpop.permute.xlu0 %983
      %985 = vrot.lane.b32.xlu0 %v962, 28
      %v986 = vpop.permute.xlu0 %985
      %vm995 = vcmask 261344
      %996 = vst.msk [vmem:[#allocation4] sm:$0xff] %vm995, %v972
      %997 = vst.msk [vmem:[#allocation4 + $0x8] sm:$0xff] %vm995, %v974
      %998 = vst.msk [vmem:[#allocation4 + $0x10] sm:$0xff] %vm995, %v976
      %999 = vst.msk [vmem:[#allocation4 + $0x18] sm:$0xff] %vm995, %v978
      %1000 = vst.msk [vmem:[#allocation4 + $0x20] sm:$0xff] %vm995, %v980
      %1001 = vst.msk [vmem:[#allocation4 + $0x28] sm:$0xff] %vm995, %v982
      %1002 = vst.msk [vmem:[#allocation4 + $0x30] sm:$0xff] %vm995, %v984
      %1003 = vst.msk [vmem:[#allocation4 + $0x38] sm:$0xff] %vm995, %v986
      %v1004 = vld [vmem:[%s938 + $0x1] sm:$0xff]
      %v1005 = vld [vmem:[%s938 + $0x11] sm:$0xff]
      %v1006 = vld [vmem:[%s938 + $0x21] sm:$0xff]
      %v1007 = vld [vmem:[%s938 + $0x31] sm:$0xff]
      %v1008 = vld [vmem:[%s938 + $0x41] sm:$0xff]
      %v1009 = vld [vmem:[%s938 + $0x51] sm:$0xff]
      %v1010 = vld [vmem:[%s938 + $0x61] sm:$0xff]
      %v1011 = vld [vmem:[%s938 + $0x71] sm:$0xff]
      %v1012 = vadd.f32 %v947, %v1004
      %v1013 = vadd.f32 %v948, %v1005
      %v1014 = vadd.f32 %v949, %v1006
      %v1015 = vadd.f32 %v950, %v1007
      %v1016 = vadd.f32 %v951, %v1008
      %v1017 = vadd.f32 %v952, %v1009
      %v1018 = vadd.f32 %v953, %v1010
      %v1019 = vadd.f32 %v954, %v1011
      %v1020 = vld [vmem:[%s888 + $0x2] sm:$0xff]
      %v1021 = vld [vmem:[%s888 + $0x12] sm:$0xff]
      %v1022 = vld [vmem:[%s888 + $0x22] sm:$0xff]
      %v1023 = vld [vmem:[%s888 + $0x32] sm:$0xff]
      %v1024 = vld [vmem:[%s888 + $0x42] sm:$0xff]
      %v1025 = vld [vmem:[%s888 + $0x52] sm:$0xff]
      %v1026 = vld [vmem:[%s888 + $0x62] sm:$0xff]
      %v1027 = vld [vmem:[%s888 + $0x72] sm:$0xff]
      %1036 = vrot.lane.b32.xlu0 %v1020, 32
      %v1037 = vpop.permute.xlu0 %1036
      %1038 = vrot.lane.b32.xlu0 %v1021, 32
      %v1039 = vpop.permute.xlu0 %1038
      %1040 = vrot.lane.b32.xlu0 %v1022, 32
      %v1041 = vpop.permute.xlu0 %1040
      %1042 = vrot.lane.b32.xlu0 %v1023, 32
      %v1043 = vpop.permute.xlu0 %1042
      %1044 = vrot.lane.b32.xlu0 %v1024, 32
      %v1045 = vpop.permute.xlu0 %1044
      %1046 = vrot.lane.b32.xlu0 %v1025, 32
      %v1047 = vpop.permute.xlu0 %1046
      %1048 = vrot.lane.b32.xlu0 %v1026, 32
      %v1049 = vpop.permute.xlu0 %1048
      %1050 = vrot.lane.b32.xlu0 %v1027, 32
      %v1051 = vpop.permute.xlu0 %1050
      %vm1060 = vcmask 294144
      %1061 = vst.msk [vmem:[#allocation4] sm:$0xff] %vm1060, %v1037
      %1062 = vst.msk [vmem:[#allocation4 + $0x8] sm:$0xff] %vm1060, %v1039
      %1063 = vst.msk [vmem:[#allocation4 + $0x10] sm:$0xff] %vm1060, %v1041
      %1064 = vst.msk [vmem:[#allocation4 + $0x18] sm:$0xff] %vm1060, %v1043
      %1065 = vst.msk [vmem:[#allocation4 + $0x20] sm:$0xff] %vm1060, %v1045
      %1066 = vst.msk [vmem:[#allocation4 + $0x28] sm:$0xff] %vm1060, %v1047
      %1067 = vst.msk [vmem:[#allocation4 + $0x30] sm:$0xff] %vm1060, %v1049
      %1068 = vst.msk [vmem:[#allocation4 + $0x38] sm:$0xff] %vm1060, %v1051
      %v1069 = vld [vmem:[%s938 + $0x2] sm:$0xff]
      %v1070 = vld [vmem:[%s938 + $0x12] sm:$0xff]
      %v1071 = vld [vmem:[%s938 + $0x22] sm:$0xff]
      %v1072 = vld [vmem:[%s938 + $0x32] sm:$0xff]
      %v1073 = vld [vmem:[%s938 + $0x42] sm:$0xff]
      %v1074 = vld [vmem:[%s938 + $0x52] sm:$0xff]
      %v1075 = vld [vmem:[%s938 + $0x62] sm:$0xff]
      %v1076 = vld [vmem:[%s938 + $0x72] sm:$0xff]
      %v1077 = vadd.f32 %v1012, %v1069
      %v1078 = vadd.f32 %v1013, %v1070
      %v1079 = vadd.f32 %v1014, %v1071
      %v1080 = vadd.f32 %v1015, %v1072
      %v1081 = vadd.f32 %v1016, %v1073
      %v1082 = vadd.f32 %v1017, %v1074
      %v1083 = vadd.f32 %v1018, %v1075
      %v1084 = vadd.f32 %v1019, %v1076
      %v1085 = vld [vmem:[#allocation4] sm:$0xff]
      %v1086 = vld [vmem:[#allocation4 + $0x8] sm:$0xff]
      %v1087 = vld [vmem:[#allocation4 + $0x10] sm:$0xff]
      %v1088 = vld [vmem:[#allocation4 + $0x18] sm:$0xff]
      %v1089 = vld [vmem:[#allocation4 + $0x20] sm:$0xff]
      %v1090 = vld [vmem:[#allocation4 + $0x28] sm:$0xff]
      %v1091 = vld [vmem:[#allocation4 + $0x30] sm:$0xff]
      %v1092 = vld [vmem:[#allocation4 + $0x38] sm:$0xff]
      %v1093 = vld [vmem:[%s4] sm:$0xff]
      %v1094 = vld [vmem:[%s4 + $0x8] sm:$0xff]
      %v1095 = vld [vmem:[%s4 + $0x10] sm:$0xff]
      %v1096 = vld [vmem:[%s4 + $0x18] sm:$0xff]
      %v1097 = vld [vmem:[%s4 + $0x20] sm:$0xf]
      %vm1098 = vcmask 293888
      %v1100 = vsel %vm1098, %v1085, 0
      %v1103 = vsel %vm1098, %v1086, 0
      %v1106 = vsel %vm1098, %v1087, 0
      %v1109 = vsel %vm1098, %v1088, 0
      %v1112 = vsel %vm1098, %v1089, 0
      %v1115 = vsel %vm1098, %v1090, 0
      %v1118 = vsel %vm1098, %v1091, 0
      %v1121 = vsel %vm1098, %v1092, 0
      %vm1123 = vcmask 1043456
      %v1125 = vsel %vm1123, %v1097, 0
      %1127 = vmatpush.msra.mxu0 0.0
      %1128 = vmatpush.msra.mxu0 0.0
      %1129 = vmatpush.msra.mxu0 0.0
      %1130 = vmatpush.msra.mxu0 0.0
      %1131 = vmatpush.msra.mxu0 0.0
      %1132 = vmatpush.msra.mxu0 0.0
      %1133 = vmatpush.msra.mxu0 0.0
      %1134 = vmatpush.msra.mxu0 0.0
      %1135 = vmatpush.msra.mxu0 0.0
      %1136 = vmatpush.msra.mxu0 0.0
      %1137 = vmatpush.msra.mxu0 0.0
      %1138 = vmatpush.msra.mxu0 %v1125
      %1139 = vmatpush.msra.mxu0 %v1096
      %1140 = vmatpush.msra.mxu0 %v1095
      %1141 = vmatpush.msra.mxu0 %v1094
      %1142 = vmatpush.msra.mxu0 %v1093
      %1143 = vmatmul.f32.gmra.mxu0 %v1100
      %v1144 = vpop.f32.mrf.mxu0
      %v1145 = vadd.f32 0.0, %v1144
      %1146 = vmatmul.f32.gmra.mxu0 %v1103
      %v1147 = vpop.f32.mrf.mxu0
      %v1148 = vadd.f32 0.0, %v1147
      %1149 = vmatmul.f32.gmra.mxu0 %v1106
      %v1150 = vpop.f32.mrf.mxu0
      %v1151 = vadd.f32 0.0, %v1150
      %1152 = vmatmul.f32.gmra.mxu0 %v1109
      %v1153 = vpop.f32.mrf.mxu0
      %v1154 = vadd.f32 0.0, %v1153
      %1155 = vmatmul.f32.gmra.mxu0 %v1112
      %v1156 = vpop.f32.mrf.mxu0
      %v1157 = vadd.f32 0.0, %v1156
      %1158 = vmatmul.f32.gmra.mxu0 %v1115
      %v1159 = vpop.f32.mrf.mxu0
      %v1160 = vadd.f32 0.0, %v1159
      %1161 = vmatmul.f32.gmra.mxu0 %v1118
      %v1162 = vpop.f32.mrf.mxu0
      %v1163 = vadd.f32 0.0, %v1162
      %1164 = vmatmul.f32.gmra.mxu0 %v1121
      %v1165 = vpop.f32.mrf.mxu0
      %v1166 = vadd.f32 0.0, %v1165
      %1167 = vdwg.mxu0
      %v1168 = vmax.f32 %v1077, 1e-05
      %v1169 = vmax.f32 %v1078, 1e-05
      %v1170 = vmax.f32 %v1079, 1e-05
      %v1171 = vmax.f32 %v1080, 1e-05
      %v1172 = vmax.f32 %v1081, 1e-05
      %v1173 = vmax.f32 %v1082, 1e-05
      %v1174 = vmax.f32 %v1083, 1e-05
      %v1175 = vmax.f32 %v1084, 1e-05
      %v1176 = vrcp.pop %v1168
      %v1177 = vrcp.pop %v1169
      %v1178 = vrcp.pop %v1170
      %v1179 = vrcp.pop %v1171
      %v1180 = vrcp.pop %v1172
      %v1181 = vrcp.pop %v1173
      %v1182 = vrcp.pop %v1174
      %v1183 = vrcp.pop %v1175
      %1185 = vset.pattern.permute.xlu0 0
      %1186 = vperm.xlu0 %1185, %v1176
      %v1187 = vpop.permute.xlu0 %1186
      %1190 = vset.pattern.permute.xlu0 0
      %1191 = vperm.xlu0 %1190, %v1177
      %v1192 = vpop.permute.xlu0 %1191
      %1195 = vset.pattern.permute.xlu0 0
      %1196 = vperm.xlu0 %1195, %v1178
      %v1197 = vpop.permute.xlu0 %1196
      %1200 = vset.pattern.permute.xlu0 0
      %1201 = vperm.xlu0 %1200, %v1179
      %v1202 = vpop.permute.xlu0 %1201
      %1205 = vset.pattern.permute.xlu0 0
      %1206 = vperm.xlu0 %1205, %v1180
      %v1207 = vpop.permute.xlu0 %1206
      %1210 = vset.pattern.permute.xlu0 0
      %1211 = vperm.xlu0 %1210, %v1181
      %v1212 = vpop.permute.xlu0 %1211
      %1215 = vset.pattern.permute.xlu0 0
      %1216 = vperm.xlu0 %1215, %v1182
      %v1217 = vpop.permute.xlu0 %1216
      %1220 = vset.pattern.permute.xlu0 0
      %1221 = vperm.xlu0 %1220, %v1183
      %v1222 = vpop.permute.xlu0 %1221
      %v1224 = vmul.f32 %v1145, %v1187
      %v1225 = vmul.f32 %v1148, %v1192
      %v1226 = vmul.f32 %v1151, %v1197
      %v1227 = vmul.f32 %v1154, %v1202
      %v1228 = vmul.f32 %v1157, %v1207
      %v1229 = vmul.f32 %v1160, %v1212
      %v1230 = vmul.f32 %v1163, %v1217
      %v1231 = vmul.f32 %v1166, %v1222
      %v1232 = vld [vmem:[%s5] sm:$0x1]
      %v1234 = vperm.slane %v1232, 0
      %v1236 = vadd.f32 %v1224, %v1234
      %v1237 = vadd.f32 %v1225, %v1234
      %v1238 = vadd.f32 %v1226, %v1234
      %v1239 = vadd.f32 %v1227, %v1234
      %v1240 = vadd.f32 %v1228, %v1234
      %v1241 = vadd.f32 %v1229, %v1234
      %v1242 = vadd.f32 %v1230, %v1234
      %v1243 = vadd.f32 %v1231, %v1234
      %v1244 = vmax.f32 %v1236, 0.0
      %v1245 = vmax.f32 %v1237, 0.0
      %v1246 = vmax.f32 %v1238, 0.0
      %v1247 = vmax.f32 %v1239, 0.0
      %v1248 = vmax.f32 %v1240, 0.0
      %v1249 = vmax.f32 %v1241, 0.0
      %v1250 = vmax.f32 %v1242, 0.0
      %v1251 = vmax.f32 %v1243, 0.0
      %v1252 = vld [vmem:[%s6] sm:$0xf]
      %v1253 = vld [vmem:[%s7] sm:$0x1]
      %v1255 = vperm.slane %v1253, 0
      %v1258 = vsel %vm421, %v1244, 0
      %v1261 = vsel %vm421, %v1245, 0
      %v1264 = vsel %vm421, %v1246, 0
      %v1267 = vsel %vm421, %v1247, 0
      %v1270 = vsel %vm421, %v1248, 0
      %v1273 = vsel %vm421, %v1249, 0
      %v1276 = vsel %vm421, %v1250, 0
      %v1279 = vsel %vm421, %v1251, 0
      %v1282 = vsel %vm1123, %v1252, 0
      %1284 = vmatpush.msra.mxu0 0.0
      %1285 = vmatpush.msra.mxu0 0.0
      %1286 = vmatpush.msra.mxu0 0.0
      %1287 = vmatpush.msra.mxu0 0.0
      %1288 = vmatpush.msra.mxu0 0.0
      %1289 = vmatpush.msra.mxu0 0.0
      %1290 = vmatpush.msra.mxu0 0.0
      %1291 = vmatpush.msra.mxu0 0.0
      %1292 = vmatpush.msra.mxu0 0.0
      %1293 = vmatpush.msra.mxu0 0.0
      %1294 = vmatpush.msra.mxu0 0.0
      %1295 = vmatpush.msra.mxu0 0.0
      %1296 = vmatpush.msra.mxu0 0.0
      %1297 = vmatpush.msra.mxu0 0.0
      %1298 = vmatpush.msra.mxu0 0.0
      %1299 = vmatpush.msra.mxu0 %v1282
      %1300 = vmatmul.f32.gmra.mxu0 %v1258
      %v1301 = vpop.f32.mrf.mxu0
      %v1302 = vadd.f32 %v1255, %v1301
      %1303 = vmatmul.f32.gmra.mxu0 %v1261
      %v1304 = vpop.f32.mrf.mxu0
      %v1305 = vadd.f32 %v1255, %v1304
      %1306 = vmatmul.f32.gmra.mxu0 %v1264
      %v1307 = vpop.f32.mrf.mxu0
      %v1308 = vadd.f32 %v1255, %v1307
      %1309 = vmatmul.f32.gmra.mxu0 %v1267
      %v1310 = vpop.f32.mrf.mxu0
      %v1311 = vadd.f32 %v1255, %v1310
      %1312 = vmatmul.f32.gmra.mxu0 %v1270
      %v1313 = vpop.f32.mrf.mxu0
      %v1314 = vadd.f32 %v1255, %v1313
      %1315 = vmatmul.f32.gmra.mxu0 %v1273
      %v1316 = vpop.f32.mrf.mxu0
      %v1317 = vadd.f32 %v1255, %v1316
      %1318 = vmatmul.f32.gmra.mxu0 %v1276
      %v1319 = vpop.f32.mrf.mxu0
      %v1320 = vadd.f32 %v1255, %v1319
      %1321 = vmatmul.f32.gmra.mxu0 %v1279
      %v1322 = vpop.f32.mrf.mxu0
      %v1323 = vadd.f32 %v1255, %v1322
      %1324 = vdwg.mxu0
      %v1325 = vadd.f32 %v1302, %v326
      %v1326 = vadd.f32 %v1305, %v327
      %v1327 = vadd.f32 %v1308, %v328
      %v1328 = vadd.f32 %v1311, %v329
      %v1329 = vadd.f32 %v1314, %v330
      %v1330 = vadd.f32 %v1317, %v331
      %v1331 = vadd.f32 %v1320, %v332
      %v1332 = vadd.f32 %v1323, %v333
      %v1333 = vmax.f32 %v1325, 0.0
      %v1334 = vmax.f32 %v1326, 0.0
      %v1335 = vmax.f32 %v1327, 0.0
      %v1336 = vmax.f32 %v1328, 0.0
      %v1337 = vmax.f32 %v1329, 0.0
      %v1338 = vmax.f32 %v1330, 0.0
      %v1339 = vmax.f32 %v1331, 0.0
      %v1340 = vmax.f32 %v1332, 0.0
      %1341 = vst.msk [vmem:[%s325] sm:$0xff] %vm347, %v1333
      %1342 = vst.msk [vmem:[%s325 + $0x8] sm:$0xff] %vm347, %v1334
      %1343 = vst.msk [vmem:[%s325 + $0x10] sm:$0xff] %vm347, %v1335
      %1344 = vst.msk [vmem:[%s325 + $0x18] sm:$0xff] %vm347, %v1336
      %1345 = vst.msk [vmem:[%s325 + $0x20] sm:$0xff] %vm347, %v1337
      %1346 = vst.msk [vmem:[%s325 + $0x28] sm:$0xff] %vm347, %v1338
      %1347 = vst.msk [vmem:[%s325 + $0x30] sm:$0xff] %vm347, %v1339
      %1348 = vst.msk [vmem:[%s325 + $0x38] sm:$0xff] %vm347, %v1340
      %p1349 = scmp.lt.s32.totalorder %s19, 1
      %s1350 = scalar_select %p1349, %s19, 1
      %s1351 = smul.addr %s1350, 8
      %s1352 = smul.addr %s1351, 8
      %s1353 = scalar_lea.vmem %s8, %s1352
      // Predicated region
      $region53: #{resmod_forward.6} parent=51 // pred_check
        %p1354 = pneg %p215
      $region54: #{resmod_forward.6} parent=51 // pred_check_branch
        %1356 = sbr.rel (%p1354) target = $region56
      $region55: #{resmod_forward.6} parent=51 // pred_region
        _
      $region56: #{resmod_forward.6} parent=51 // pred_fallthru
        _
    $region52: #{resmod_forward.6} parent=5 // pred_fallthru
      _
    %p1357 = scmp.le.s32.totalorder 2, %s14
    // Predicated region
    $region57: #{resmod_forward.6} parent=5 // pred_check
      %p1358 = pneg %p1357
    $region58: #{resmod_forward.6} parent=5 // pred_check_branch
      %1360 = sbr.rel (%p1358) target = $region60
    $region59: #{resmod_forward.6} parent=5 // pred_region
      %s1361 = ssub.s32 %s14, 2
      // Predicated region
      $region61: #{resmod_forward.6} parent=59 // pred_check
        %p1362 = pneg %p221
      $region62: #{resmod_forward.6} parent=59 // pred_check_branch
        %1364 = sbr.rel (%p1362) target = $region64
      $region63: #{resmod_forward.6} parent=59 // pred_region
        %p1365 = scmp.lt.s32.totalorder %s20, 1
        %s1366 = scalar_select %p1365, %s20, 1
        %s1367 = smul.addr %s1366, 8
        %s1368 = smul.addr %s1367, 8
        %s1369 = scalar_lea.vmem %s8, %s1368
      $region64: #{resmod_forward.6} parent=59 // pred_fallthru
        _
    $region60: #{resmod_forward.6} parent=5 // pred_fallthru
      _
  $region6: #{resmod_forward.6} parent=0 // loop_footer
    %s18 = sadd.s32 1, %s14
  $region7: #{resmod_forward.6} parent=0 // loop_footer_branch
    %13 = sbr.rel target = $region3
  $region8: #{resmod_forward.6} parent=0 // loop_exit
    _

// kernel: resmod_forward.5
$region0: #{resmod_forward.5}
  #allocation0 [shape = 'u32[]', space=smem, size = 0x4, offset = 0x4, fixed_abs, tag = 'smem constant byte address 0x4 - core index']
  #allocation1 [shape = 'u32[72,128]{1,0:T(1,128)}', space=vmem, size = 0x9000, scoped, tag = 'internal scratch']
  #allocation2 [shape = 'f32[64,72]{1,0:T(8,128)}', space=vmem, size = 0x8000, scoped, tag = 'scratch operand']
  %s0 = inlined_call_operand.vmem [shape: f32[2,9,9,8], index: 0, kind: input, shape index: {}]
  %s1 = inlined_call_operand.vmem [shape: f32[2,9,9,8], index: 1, kind: input, shape index: {}]
  %s2 = inlined_call_operand.vmem [shape: f32[2,9,9,8], index: 2, kind: input, shape index: {}]
  %s3 = inlined_call_operand.vmem [shape: f32[2,9,9,8], index: 3, kind: input, shape index: {}]
  %s4 = inlined_call_operand.vmem [shape: f32[2,9,9,1], index: 4, kind: input, shape index: {}]
  %s5 = inlined_call_operand.vmem [shape: f32[2,9,9,1], index: 5, kind: input, shape index: {}]
  %s6 = inlined_call_operand.vmem [shape: f32[2,9,9,1], index: 6, kind: input, shape index: {}]
  %s7 = inlined_call_operand.vmem [shape: f32[2,9,9,1], index: 7, kind: input, shape index: {}]
  %s8 = inlined_call_operand.vmem [shape: f32[72,8], index: 8, kind: input, shape index: {}]
  %s9 = inlined_call_operand.vmem [shape: f32[1,8], index: 9, kind: input, shape index: {}]
  %s10 = inlined_call_operand.vmem [shape: f32[2,8,8,8], index: 10, kind: output, shape index: {0}]
  %s11 = inlined_call_operand.vmem [shape: f32[2,8,8,1], index: 11, kind: output, shape index: {1}]
  %12 = xla_tuple %s10, %s11
  %s13 = sld [smem:[#allocation0]]
  $region81: #{resmod_forward.5} parent=0
    _
  %s15 = ssub.s32 1, %s13
  %s16 = scalar_select 0, %s15, %s13
  loop: start=0, step=1, limit=4
  $region2: #{resmod_forward.5} parent=0 // loop_pre_header
    _
  $region3: #{resmod_forward.5} parent=0 // loop_header
    %s18 = sphi 0, %s22
    %p19 = scmp.ge.s32.totalorder %s18, 4
    %s28 = sphi 0, %s30
    %s31 = sphi 0, %s28
    %s32 = sphi 0, %s31
    %s48 = sphi 0, %s32
    %s54 = sphi 0, %s56
    %s57 = sphi 0, %s54
    %s58 = sphi 0, %s57
    %s74 = sphi 0, %s58
    %s80 = sphi 0, %s82
    %s83 = sphi 0, %s80
    %s84 = sphi 0, %s83
    %s100 = sphi 0, %s84
    %s106 = sphi 0, %s108
    %s109 = sphi 0, %s106
    %s110 = sphi 0, %s109
    %s126 = sphi 0, %s110
    %s132 = sphi 0, %s134
    %s135 = sphi 0, %s132
    %s136 = sphi 0, %s135
    %s152 = sphi 0, %s136
    %s158 = sphi 0, %s160
    %s161 = sphi 0, %s158
    %s162 = sphi 0, %s161
    %s178 = sphi 0, %s162
    %s184 = sphi 0, %s186
    %s187 = sphi 0, %s184
    %s188 = sphi 0, %s187
    %s204 = sphi 0, %s188
    %s210 = sphi 0, %s212
    %s213 = sphi 0, %s210
    %s214 = sphi 0, %s213
    %s230 = sphi 0, %s214
    %s234 = sphi 0, %s234
    %s236 = sphi 0, %s234
    %s237 = sphi 0, %s236
    %s251 = sphi 0, %s237
    %s255 = sphi 0, %s255
    %s257 = sphi 0, %s255
    %s258 = sphi 0, %s257
    %s272 = sphi 0, %s258
    %s278 = sphi 0, %s280
    %s281 = sphi 0, %s278
    %s282 = sphi 0, %s281
    %s298 = sphi 0, %s282
    %s304 = sphi 0, %s306
    %s307 = sphi 0, %s304
    %s308 = sphi 0, %s307
    %s324 = sphi 0, %s308
  $region4: #{resmod_forward.5} parent=0 // loop_header_branch
    %21 = sbr.rel (%p19) target = $region8
  $region5: #{resmod_forward.5} parent=0 // loop_body
    %s23 = ssub.s32 %s18, 1
    %s24 = ssub.s32 %s18, 2
    %s25 = sadd.s32 %s18, 1
    %s26 = ssub.s32 %s18, %s25
    %p27 = scmp.eq.s32.totalorder %s26, 0
    %s29 = sadd.s32 %s28, 1
    %s30 = scalar_select %p27, %s28, %s29
    %p33 = pneg %p27
    %p34 = scmp.eq.s32.totalorder %s18, 1
    %p35 = por %p33, %p34
    %p36 = scmp.ne.s32.totalorder %s28, %s31
    %p37 = scmp.eq.s32.totalorder %s18, 0
    %p38 = por %p36, %p37
    %p39 = scmp.ne.s32.totalorder %s28, %s31
    %p40 = scmp.eq.s32.totalorder %s23, 1
    %p41 = por %p39, %p40
    %p42 = scmp.ne.s32.totalorder %s31, %s32
    %p43 = scmp.eq.s32.totalorder %s23, 0
    %p44 = por %p42, %p43
    %p45 = scmp.ne.s32.totalorder %s31, %s32
    %p46 = scmp.eq.s32.totalorder %s24, 1
    %p47 = por %p45, %p46
    %p49 = scmp.ne.s32.totalorder %s32, %s48
    %p50 = scmp.eq.s32.totalorder %s24, 0
    %p51 = por %p49, %p50
    %s52 = ssub.s32 %s18, %s25
    %p53 = scmp.eq.s32.totalorder %s52, 0
    %s55 = sadd.s32 %s54, 1
    %s56 = scalar_select %p53, %s54, %s55
    %p59 = pneg %p53
    %p60 = scmp.eq.s32.totalorder %s18, 1
    %p61 = por %p59, %p60
    %p62 = scmp.ne.s32.totalorder %s54, %s57
    %p63 = scmp.eq.s32.totalorder %s18, 0
    %p64 = por %p62, %p63
    %p65 = scmp.ne.s32.totalorder %s54, %s57
    %p66 = scmp.eq.s32.totalorder %s23, 1
    %p67 = por %p65, %p66
    %p68 = scmp.ne.s32.totalorder %s57, %s58
    %p69 = scmp.eq.s32.totalorder %s23, 0
    %p70 = por %p68, %p69
    %p71 = scmp.ne.s32.totalorder %s57, %s58
    %p72 = scmp.eq.s32.totalorder %s24, 1
    %p73 = por %p71, %p72
    %p75 = scmp.ne.s32.totalorder %s58, %s74
    %p76 = scmp.eq.s32.totalorder %s24, 0
    %p77 = por %p75, %p76
    %s78 = ssub.s32 %s18, %s25
    %p79 = scmp.eq.s32.totalorder %s78, 0
    %s81 = sadd.s32 %s80, 1
    %s82 = scalar_select %p79, %s80, %s81
    %p85 = pneg %p79
    %p86 = scmp.eq.s32.totalorder %s18, 1
    %p87 = por %p85, %p86
    %p88 = scmp.ne.s32.totalorder %s80, %s83
    %p89 = scmp.eq.s32.totalorder %s18, 0
    %p90 = por %p88, %p89
    %p91 = scmp.ne.s32.totalorder %s80, %s83
    %p92 = scmp.eq.s32.totalorder %s23, 1
    %p93 = por %p91, %p92
    %p94 = scmp.ne.s32.totalorder %s83, %s84
    %p95 = scmp.eq.s32.totalorder %s23, 0
    %p96 = por %p94, %p95
    %p97 = scmp.ne.s32.totalorder %s83, %s84
    %p98 = scmp.eq.s32.totalorder %s24, 1
    %p99 = por %p97, %p98
    %p101 = scmp.ne.s32.totalorder %s84, %s100
    %p102 = scmp.eq.s32.totalorder %s24, 0
    %p103 = por %p101, %p102
    %s104 = ssub.s32 %s18, %s25
    %p105 = scmp.eq.s32.totalorder %s104, 0
    %s107 = sadd.s32 %s106, 1
    %s108 = scalar_select %p105, %s106, %s107
    %p111 = pneg %p105
    %p112 = scmp.eq.s32.totalorder %s18, 1
    %p113 = por %p111, %p112
    %p114 = scmp.ne.s32.totalorder %s106, %s109
    %p115 = scmp.eq.s32.totalorder %s18, 0
    %p116 = por %p114, %p115
    %p117 = scmp.ne.s32.totalorder %s106, %s109
    %p118 = scmp.eq.s32.totalorder %s23, 1
    %p119 = por %p117, %p118
    %p120 = scmp.ne.s32.totalorder %s109, %s110
    %p121 = scmp.eq.s32.totalorder %s23, 0
    %p122 = por %p120, %p121
    %p123 = scmp.ne.s32.totalorder %s109, %s110
    %p124 = scmp.eq.s32.totalorder %s24, 1
    %p125 = por %p123, %p124
    %p127 = scmp.ne.s32.totalorder %s110, %s126
    %p128 = scmp.eq.s32.totalorder %s24, 0
    %p129 = por %p127, %p128
    %s130 = ssub.s32 %s18, %s25
    %p131 = scmp.eq.s32.totalorder %s130, 0
    %s133 = sadd.s32 %s132, 1
    %s134 = scalar_select %p131, %s132, %s133
    %p137 = pneg %p131
    %p138 = scmp.eq.s32.totalorder %s18, 1
    %p139 = por %p137, %p138
    %p140 = scmp.ne.s32.totalorder %s132, %s135
    %p141 = scmp.eq.s32.totalorder %s18, 0
    %p142 = por %p140, %p141
    %p143 = scmp.ne.s32.totalorder %s132, %s135
    %p144 = scmp.eq.s32.totalorder %s23, 1
    %p145 = por %p143, %p144
    %p146 = scmp.ne.s32.totalorder %s135, %s136
    %p147 = scmp.eq.s32.totalorder %s23, 0
    %p148 = por %p146, %p147
    %p149 = scmp.ne.s32.totalorder %s135, %s136
    %p150 = scmp.eq.s32.totalorder %s24, 1
    %p151 = por %p149, %p150
    %p153 = scmp.ne.s32.totalorder %s136, %s152
    %p154 = scmp.eq.s32.totalorder %s24, 0
    %p155 = por %p153, %p154
    %s156 = ssub.s32 %s18, %s25
    %p157 = scmp.eq.s32.totalorder %s156, 0
    %s159 = sadd.s32 %s158, 1
    %s160 = scalar_select %p157, %s158, %s159
    %p163 = pneg %p157
    %p164 = scmp.eq.s32.totalorder %s18, 1
    %p165 = por %p163, %p164
    %p166 = scmp.ne.s32.totalorder %s158, %s161
    %p167 = scmp.eq.s32.totalorder %s18, 0
    %p168 = por %p166, %p167
    %p169 = scmp.ne.s32.totalorder %s158, %s161
    %p170 = scmp.eq.s32.totalorder %s23, 1
    %p171 = por %p169, %p170
    %p172 = scmp.ne.s32.totalorder %s161, %s162
    %p173 = scmp.eq.s32.totalorder %s23, 0
    %p174 = por %p172, %p173
    %p175 = scmp.ne.s32.totalorder %s161, %s162
    %p176 = scmp.eq.s32.totalorder %s24, 1
    %p177 = por %p175, %p176
    %p179 = scmp.ne.s32.totalorder %s162, %s178
    %p180 = scmp.eq.s32.totalorder %s24, 0
    %p181 = por %p179, %p180
    %s182 = ssub.s32 %s18, %s25
    %p183 = scmp.eq.s32.totalorder %s182, 0
    %s185 = sadd.s32 %s184, 1
    %s186 = scalar_select %p183, %s184, %s185
    %p189 = pneg %p183
    %p190 = scmp.eq.s32.totalorder %s18, 1
    %p191 = por %p189, %p190
    %p192 = scmp.ne.s32.totalorder %s184, %s187
    %p193 = scmp.eq.s32.totalorder %s18, 0
    %p194 = por %p192, %p193
    %p195 = scmp.ne.s32.totalorder %s184, %s187
    %p196 = scmp.eq.s32.totalorder %s23, 1
    %p197 = por %p195, %p196
    %p198 = scmp.ne.s32.totalorder %s187, %s188
    %p199 = scmp.eq.s32.totalorder %s23, 0
    %p200 = por %p198, %p199
    %p201 = scmp.ne.s32.totalorder %s187, %s188
    %p202 = scmp.eq.s32.totalorder %s24, 1
    %p203 = por %p201, %p202
    %p205 = scmp.ne.s32.totalorder %s188, %s204
    %p206 = scmp.eq.s32.totalorder %s24, 0
    %p207 = por %p205, %p206
    %s208 = ssub.s32 %s18, %s25
    %p209 = scmp.eq.s32.totalorder %s208, 0
    %s211 = sadd.s32 %s210, 1
    %s212 = scalar_select %p209, %s210, %s211
    %p215 = pneg %p209
    %p216 = scmp.eq.s32.totalorder %s18, 1
    %p217 = por %p215, %p216
    %p218 = scmp.ne.s32.totalorder %s210, %s213
    %p219 = scmp.eq.s32.totalorder %s18, 0
    %p220 = por %p218, %p219
    %p221 = scmp.ne.s32.totalorder %s210, %s213
    %p222 = scmp.eq.s32.totalorder %s23, 1
    %p223 = por %p221, %p222
    %p224 = scmp.ne.s32.totalorder %s213, %s214
    %p225 = scmp.eq.s32.totalorder %s23, 0
    %p226 = por %p224, %p225
    %p227 = scmp.ne.s32.totalorder %s213, %s214
    %p228 = scmp.eq.s32.totalorder %s24, 1
    %p229 = por %p227, %p228
    %p231 = scmp.ne.s32.totalorder %s214, %s230
    %p232 = scmp.eq.s32.totalorder %s24, 0
    %p233 = por %p231, %p232
    %s235 = sadd.s32 %s234, 1
    %p238 = scmp.eq.s32.totalorder %s18, 1
    %p239 = scmp.ne.s32.totalorder %s234, %s236
    %p240 = scmp.eq.s32.totalorder %s18, 0
    %p241 = por %p239, %p240
    %p242 = scmp.ne.s32.totalorder %s234, %s236
    %p243 = scmp.eq.s32.totalorder %s23, 1
    %p244 = por %p242, %p243
    %p245 = scmp.ne.s32.totalorder %s236, %s237
    %p246 = scmp.eq.s32.totalorder %s23, 0
    %p247 = por %p245, %p246
    %p248 = scmp.ne.s32.totalorder %s236, %s237
    %p249 = scmp.eq.s32.totalorder %s24, 1
    %p250 = por %p248, %p249
    %p252 = scmp.ne.s32.totalorder %s237, %s251
    %p253 = scmp.eq.s32.totalorder %s24, 0
    %p254 = por %p252, %p253
    %s256 = sadd.s32 %s255, 1
    %p259 = scmp.eq.s32.totalorder %s18, 1
    %p260 = scmp.ne.s32.totalorder %s255, %s257
    %p261 = scmp.eq.s32.totalorder %s18, 0
    %p262 = por %p260, %p261
    %p263 = scmp.ne.s32.totalorder %s255, %s257
    %p264 = scmp.eq.s32.totalorder %s23, 1
    %p265 = por %p263, %p264
    %p266 = scmp.ne.s32.totalorder %s257, %s258
    %p267 = scmp.eq.s32.totalorder %s23, 0
    %p268 = por %p266, %p267
    %p269 = scmp.ne.s32.totalorder %s257, %s258
    %p270 = scmp.eq.s32.totalorder %s24, 1
    %p271 = por %p269, %p270
    %p273 = scmp.ne.s32.totalorder %s258, %s272
    %p274 = scmp.eq.s32.totalorder %s24, 0
    %p275 = por %p273, %p274
    %s276 = ssub.s32 %s18, %s25
    %p277 = scmp.eq.s32.totalorder %s276, 0
    %s279 = sadd.s32 %s278, 1
    %s280 = scalar_select %p277, %s278, %s279
    %p283 = pneg %p277
    %p284 = scmp.eq.s32.totalorder %s18, 1
    %p285 = por %p283, %p284
    %p286 = scmp.ne.s32.totalorder %s278, %s281
    %p287 = scmp.eq.s32.totalorder %s18, 0
    %p288 = por %p286, %p287
    %p289 = scmp.ne.s32.totalorder %s278, %s281
    %p290 = scmp.eq.s32.totalorder %s23, 1
    %p291 = por %p289, %p290
    %p292 = scmp.ne.s32.totalorder %s281, %s282
    %p293 = scmp.eq.s32.totalorder %s23, 0
    %p294 = por %p292, %p293
    %p295 = scmp.ne.s32.totalorder %s281, %s282
    %p296 = scmp.eq.s32.totalorder %s24, 1
    %p297 = por %p295, %p296
    %p299 = scmp.ne.s32.totalorder %s282, %s298
    %p300 = scmp.eq.s32.totalorder %s24, 0
    %p301 = por %p299, %p300
    %s302 = ssub.s32 %s18, %s25
    %p303 = scmp.eq.s32.totalorder %s302, 0
    %s305 = sadd.s32 %s304, 1
    %s306 = scalar_select %p303, %s304, %s305
    %p309 = pneg %p303
    %p310 = scmp.eq.s32.totalorder %s18, 1
    %p311 = por %p309, %p310
    %p312 = scmp.ne.s32.totalorder %s304, %s307
    %p313 = scmp.eq.s32.totalorder %s18, 0
    %p314 = por %p312, %p313
    %p315 = scmp.ne.s32.totalorder %s304, %s307
    %p316 = scmp.eq.s32.totalorder %s23, 1
    %p317 = por %p315, %p316
    %p318 = scmp.ne.s32.totalorder %s307, %s308
    %p319 = scmp.eq.s32.totalorder %s23, 0
    %p320 = por %p318, %p319
    %p321 = scmp.ne.s32.totalorder %s307, %s308
    %p322 = scmp.eq.s32.totalorder %s24, 1
    %p323 = por %p321, %p322
    %p325 = scmp.ne.s32.totalorder %s308, %s324
    %p326 = scmp.eq.s32.totalorder %s24, 0
    %p327 = por %p325, %p326
    %p328 = scmp.le.s32.totalorder 1, %s18
    %p329 = scmp.lt.s32.totalorder %s18, 3
    %p330 = pnand %p328, %p329
    %p331 = pneg %p330
    // Predicated region
    $region9: #{resmod_forward.5} parent=5 // pred_check
      _
    $region10: #{resmod_forward.5} parent=5 // pred_check_branch
      %333 = sbr.rel (%p330) target = $region12
    $region11: #{resmod_forward.5} parent=5 // pred_region
      %s334 = ssub.s32 %s18, 1
      // Predicated region
      $region13: #{resmod_forward.5} parent=11 // pred_check
        %p335 = pneg %p247
      $region14: #{resmod_forward.5} parent=11 // pred_check_branch
        %337 = sbr.rel (%p335) target = $region16
      $region15: #{resmod_forward.5} parent=11 // pred_region
        _
      $region16: #{resmod_forward.5} parent=11 // pred_fallthru
        _
      // Predicated region
      $region17: #{resmod_forward.5} parent=11 // pred_check
        %p338 = pneg %p268
      $region18: #{resmod_forward.5} parent=11 // pred_check_branch
        %340 = sbr.rel (%p338) target = $region20
      $region19: #{resmod_forward.5} parent=11 // pred_region
        _
      $region20: #{resmod_forward.5} parent=11 // pred_fallthru
        _
    $region12: #{resmod_forward.5} parent=5 // pred_fallthru
      _
    %p341 = scmp.lt.s32.totalorder %s18, 2
    // Predicated region
    $region21: #{resmod_forward.5} parent=5 // pred_check
      %p342 = pneg %p341
    $region22: #{resmod_forward.5} parent=5 // pred_check_branch
      %344 = sbr.rel (%p342) target = $region24
    $region23: #{resmod_forward.5} parent=5 // pred_region
      // Predicated region
      $region25: #{resmod_forward.5} parent=23 // pred_check
        %p345 = pneg %p38
      $region26: #{resmod_forward.5} parent=23 // pred_check_branch
        %347 = sbr.rel (%p345) target = $region28
      $region27: #{resmod_forward.5} parent=23 // pred_region
        %p348 = scmp.lt.s32.totalorder %s18, 1
        %s349 = scalar_select %p348, %s18, 1
        %s350 = smul.addr %s349, 18
        %s351 = smul.addr %s350, 8
        %s352 = scalar_lea.vmem %s0, %s351
      $region28: #{resmod_forward.5} parent=23 // pred_fallthru
        _
      // Predicated region
      $region29: #{resmod_forward.5} parent=23 // pred_check
        %p353 = pneg %p64
      $region30: #{resmod_forward.5} parent=23 // pred_check_branch
        %355 = sbr.rel (%p353) target = $region32
      $region31: #{resmod_forward.5} parent=23 // pred_region
        %p356 = scmp.lt.s32.totalorder %s18, 1
        %s357 = scalar_select %p356, %s18, 1
        %s358 = smul.addr %s357, 18
        %s359 = smul.addr %s358, 8
        %s360 = scalar_lea.vmem %s1, %s359
      $region32: #{resmod_forward.5} parent=23 // pred_fallthru
        _
      // Predicated region
      $region33: #{resmod_forward.5} parent=23 // pred_check
        %p361 = pneg %p90
      $region34: #{resmod_forward.5} parent=23 // pred_check_branch
        %363 = sbr.rel (%p361) target = $region36
      $region35: #{resmod_forward.5} parent=23 // pred_region
        %p364 = scmp.lt.s32.totalorder %s18, 1
        %s365 = scalar_select %p364, %s18, 1
        %s366 = smul.addr %s365, 18
        %s367 = smul.addr %s366, 8
        %s368 = scalar_lea.vmem %s2, %s367
      $region36: #{resmod_forward.5} parent=23 // pred_fallthru
        _
      // Predicated region
      $region37: #{resmod_forward.5} parent=23 // pred_check
        %p369 = pneg %p116
      $region38: #{resmod_forward.5} parent=23 // pred_check_branch
        %371 = sbr.rel (%p369) target = $region40
      $region39: #{resmod_forward.5} parent=23 // pred_region
        %p372 = scmp.lt.s32.totalorder %s18, 1
        %s373 = scalar_select %p372, %s18, 1
        %s374 = smul.addr %s373, 18
        %s375 = smul.addr %s374, 8
        %s376 = scalar_lea.vmem %s3, %s375
      $region40: #{resmod_forward.5} parent=23 // pred_fallthru
        _
      // Predicated region
      $region41: #{resmod_forward.5} parent=23 // pred_check
        %p377 = pneg %p142
      $region42: #{resmod_forward.5} parent=23 // pred_check_branch
        %379 = sbr.rel (%p377) target = $region44
      $region43: #{resmod_forward.5} parent=23 // pred_region
        %p380 = scmp.lt.s32.totalorder %s18, 1
        %s381 = scalar_select %p380, %s18, 1
        %s382 = smul.addr %s381, 18
        %s383 = smul.addr %s382, 8
        %s384 = scalar_lea.vmem %s4, %s383
      $region44: #{resmod_forward.5} parent=23 // pred_fallthru
        _
      // Predicated region
      $region45: #{resmod_forward.5} parent=23 // pred_check
        %p385 = pneg %p168
      $region46: #{resmod_forward.5} parent=23 // pred_check_branch
        %387 = sbr.rel (%p385) target = $region48
      $region47: #{resmod_forward.5} parent=23 // pred_region
        %p388 = scmp.lt.s32.totalorder %s18, 1
        %s389 = scalar_select %p388, %s18, 1
        %s390 = smul.addr %s389, 18
        %s391 = smul.addr %s390, 8
        %s392 = scalar_lea.vmem %s5, %s391
      $region48: #{resmod_forward.5} parent=23 // pred_fallthru
        _
      // Predicated region
      $region49: #{resmod_forward.5} parent=23 // pred_check
        %p393 = pneg %p194
      $region50: #{resmod_forward.5} parent=23 // pred_check_branch
        %395 = sbr.rel (%p393) target = $region52
      $region51: #{resmod_forward.5} parent=23 // pred_region
        %p396 = scmp.lt.s32.totalorder %s18, 1
        %s397 = scalar_select %p396, %s18, 1
        %s398 = smul.addr %s397, 18
        %s399 = smul.addr %s398, 8
        %s400 = scalar_lea.vmem %s6, %s399
      $region52: #{resmod_forward.5} parent=23 // pred_fallthru
        _
      // Predicated region
      $region53: #{resmod_forward.5} parent=23 // pred_check
        %p401 = pneg %p220
      $region54: #{resmod_forward.5} parent=23 // pred_check_branch
        %403 = sbr.rel (%p401) target = $region56
      $region55: #{resmod_forward.5} parent=23 // pred_region
        %p404 = scmp.lt.s32.totalorder %s18, 1
        %s405 = scalar_select %p404, %s18, 1
        %s406 = smul.addr %s405, 18
        %s407 = smul.addr %s406, 8
        %s408 = scalar_lea.vmem %s7, %s407
      $region56: #{resmod_forward.5} parent=23 // pred_fallthru
        _
    $region24: #{resmod_forward.5} parent=5 // pred_fallthru
      _
    %p409 = scmp.le.s32.totalorder 1, %s18
    %p410 = scmp.lt.s32.totalorder %s18, 3
    %p411 = pnand %p409, %p410
    %p412 = pneg %p411
    // Predicated region
    $region57: #{resmod_forward.5} parent=5 // pred_check
      _
    $region58: #{resmod_forward.5} parent=5 // pred_check_branch
      %414 = sbr.rel (%p411) target = $region60
    $region59: #{resmod_forward.5} parent=5 // pred_region
      %s415 = ssub.s32 %s18, 1
      %p416 = scmp.lt.s32.totalorder %s23, 1
      %s417 = scalar_select %p416, %s23, 1
      %s418 = smul.addr %s417, 18
      %s419 = smul.addr %s418, 8
      %s420 = scalar_lea.vmem %s0, %s419
      %p421 = pneg %p44
      %p422 = pneg %p41
      %p423 = scmp.lt.s32.totalorder %s23, 1
      %s424 = scalar_select %p423, %s23, 1
      %s425 = smul.addr %s424, 18
      %s426 = smul.addr %s425, 8
      %s427 = scalar_lea.vmem %s1, %s426
      %p428 = pneg %p70
      %p429 = pneg %p67
      %p430 = scmp.lt.s32.totalorder %s23, 1
      %s431 = scalar_select %p430, %s23, 1
      %s432 = smul.addr %s431, 18
      %s433 = smul.addr %s432, 8
      %s434 = scalar_lea.vmem %s2, %s433
      %p435 = pneg %p96
      %p436 = pneg %p93
      %p437 = scmp.lt.s32.totalorder %s23, 1
      %s438 = scalar_select %p437, %s23, 1
      %s439 = smul.addr %s438, 18
      %s440 = smul.addr %s439, 8
      %s441 = scalar_lea.vmem %s3, %s440
      %p442 = pneg %p122
      %p443 = pneg %p119
      %p444 = scmp.lt.s32.totalorder %s23, 1
      %s445 = scalar_select %p444, %s23, 1
      %s446 = smul.addr %s445, 18
      %s447 = smul.addr %s446, 8
      %s448 = scalar_lea.vmem %s4, %s447
      %p449 = pneg %p148
      %p450 = pneg %p145
      %p451 = scmp.lt.s32.totalorder %s23, 1
      %s452 = scalar_select %p451, %s23, 1
      %s453 = smul.addr %s452, 18
      %s454 = smul.addr %s453, 8
      %s455 = scalar_lea.vmem %s5, %s454
      %p456 = pneg %p174
      %p457 = pneg %p171
      %p458 = scmp.lt.s32.totalorder %s23, 1
      %s459 = scalar_select %p458, %s23, 1
      %s460 = smul.addr %s459, 18
      %s461 = smul.addr %s460, 8
      %s462 = scalar_lea.vmem %s6, %s461
      %p463 = pneg %p200
      %p464 = pneg %p197
      %p465 = scmp.lt.s32.totalorder %s23, 1
      %s466 = scalar_select %p465, %s23, 1
      %s467 = smul.addr %s466, 18
      %s468 = smul.addr %s467, 8
      %s469 = scalar_lea.vmem %s7, %s468
      %p470 = pneg %p226
      %p471 = pneg %p223
      %p472 = pneg %p247
      %p473 = pneg %p244
      %p474 = pneg %p268
      %p475 = pneg %p265
      %p476 = pneg %p294
      %p477 = pneg %p291
      %p478 = scmp.lt.s32.totalorder %s23, 1
      %s479 = scalar_select %p478, %s23, 1
      %s480 = smul.addr %s479, 8
      %s481 = smul.addr %s480, 8
      %s482 = scalar_lea.vmem %s10, %s481
      %p483 = pneg %p320
      %p484 = pneg %p317
      %p485 = scmp.lt.s32.totalorder %s23, 1
      %s486 = scalar_select %p485, %s23, 1
      %s487 = smul.addr %s486, 8
      %s488 = smul.addr %s487, 8
      %s489 = scalar_lea.vmem %s11, %s488
      %p490 = scmp.lt.s32.totalorder %s23, 1
      %s491 = scalar_select %p490, %s23, 1
      %s492 = smul.addr %s491, 18
      %s493 = smul.addr %s492, 8
      %s494 = scalar_lea.vmem %s0, %s493
      %p495 = scmp.lt.s32.totalorder %s23, 1
      %s496 = scalar_select %p495, %s23, 1
      %s497 = smul.addr %s496, 18
      %s498 = smul.addr %s497, 8
      %s499 = scalar_lea.vmem %s1, %s498
      %p500 = scmp.lt.s32.totalorder %s23, 1
      %s501 = scalar_select %p500, %s23, 1
      %s502 = smul.addr %s501, 18
      %s503 = smul.addr %s502, 8
      %s504 = scalar_lea.vmem %s2, %s503
      %p505 = scmp.lt.s32.totalorder %s23, 1
      %s506 = scalar_select %p505, %s23, 1
      %s507 = smul.addr %s506, 18
      %s508 = smul.addr %s507, 8
      %s509 = scalar_lea.vmem %s3, %s508
      %p510 = scmp.lt.s32.totalorder %s23, 1
      %s511 = scalar_select %p510, %s23, 1
      %s512 = smul.addr %s511, 18
      %s513 = smul.addr %s512, 8
      %s514 = scalar_lea.vmem %s4, %s513
      %p515 = scmp.lt.s32.totalorder %s23, 1
      %s516 = scalar_select %p515, %s23, 1
      %s517 = smul.addr %s516, 18
      %s518 = smul.addr %s517, 8
      %s519 = scalar_lea.vmem %s5, %s518
      %p520 = scmp.lt.s32.totalorder %s23, 1
      %s521 = scalar_select %p520, %s23, 1
      %s522 = smul.addr %s521, 18
      %s523 = smul.addr %s522, 8
      %s524 = scalar_lea.vmem %s6, %s523
      %p525 = scmp.lt.s32.totalorder %s23, 1
      %s526 = scalar_select %p525, %s23, 1
      %s527 = smul.addr %s526, 18
      %s528 = smul.addr %s527, 8
      %s529 = scalar_lea.vmem %s7, %s528
      %p530 = scmp.lt.s32.totalorder %s23, 1
      %s531 = scalar_select %p530, %s23, 1
      %s532 = smul.addr %s531, 8
      %s533 = smul.addr %s532, 8
      %s534 = scalar_lea.vmem %s10, %s533
      %p535 = scmp.lt.s32.totalorder %s23, 1
      %s536 = scalar_select %p535, %s23, 1
      %s537 = smul.addr %s536, 8
      %s538 = smul.addr %s537, 8
      %s539 = scalar_lea.vmem %s11, %s538
      %v540 = vld [vmem:[%s494] sm:$0xff]
      %v541 = vld [vmem:[%s494 + $0x8] sm:$0x1]
      %v542 = vld [vmem:[%s494 + $0x10] sm:$0xff]
      %v543 = vld [vmem:[%s494 + $0x18] sm:$0x1]
      %v544 = vld [vmem:[%s494 + $0x20] sm:$0xff]
      %v545 = vld [vmem:[%s494 + $0x28] sm:$0x1]
      %v546 = vld [vmem:[%s494 + $0x30] sm:$0xff]
      %v547 = vld [vmem:[%s494 + $0x38] sm:$0x1]
      %v548 = vld [vmem:[%s494 + $0x40] sm:$0xff]
      %v549 = vld [vmem:[%s494 + $0x48] sm:$0x1]
      %v550 = vld [vmem:[%s494 + $0x50] sm:$0xff]
      %v551 = vld [vmem:[%s494 + $0x58] sm:$0x1]
      %v552 = vld [vmem:[%s494 + $0x60] sm:$0xff]
      %v553 = vld [vmem:[%s494 + $0x68] sm:$0x1]
      %v554 = vld [vmem:[%s494 + $0x70] sm:$0xff]
      %v555 = vld [vmem:[%s494 + $0x78] sm:$0x1]
      %v556 = vld [vmem:[%s494 + $0x80] sm:$0xff]
      %v557 = vld [vmem:[%s494 + $0x88] sm:$0x1]
      %v558 = vld [vmem:[%s499] sm:$0xff]
      %v559 = vld [vmem:[%s499 + $0x10] sm:$0xff]
      %v560 = vld [vmem:[%s499 + $0x20] sm:$0xff]
      %v561 = vld [vmem:[%s499 + $0x30] sm:$0xff]
      %v562 = vld [vmem:[%s499 + $0x40] sm:$0xff]
      %v563 = vld [vmem:[%s499 + $0x50] sm:$0xff]
      %v564 = vld [vmem:[%s499 + $0x60] sm:$0xff]
      %v565 = vld [vmem:[%s499 + $0x70] sm:$0xff]
      %v566 = vld [vmem:[%s499 + $0x80] sm:$0xff]
      %v567 = vld [vmem:[%s504] sm:$0xff]
      %v568 = vld [vmem:[%s504 + $0x8] sm:$0x1]
      %v569 = vld [vmem:[%s504 + $0x10] sm:$0xff]
      %v570 = vld [vmem:[%s504 + $0x18] sm:$0x1]
      %v571 = vld [vmem:[%s504 + $0x20] sm:$0xff]
      %v572 = vld [vmem:[%s504 + $0x28] sm:$0x1]
      %v573 = vld [vmem:[%s504 + $0x30] sm:$0xff]
      %v574 = vld [vmem:[%s504 + $0x38] sm:$0x1]
      %v575 = vld [vmem:[%s504 + $0x40] sm:$0xff]
      %v576 = vld [vmem:[%s504 + $0x48] sm:$0x1]
      %v577 = vld [vmem:[%s504 + $0x50] sm:$0xff]
      %v578 = vld [vmem:[%s504 + $0x58] sm:$0x1]
      %v579 = vld [vmem:[%s504 + $0x60] sm:$0xff]
      %v580 = vld [vmem:[%s504 + $0x68] sm:$0x1]
      %v581 = vld [vmem:[%s504 + $0x70] sm:$0xff]
      %v582 = vld [vmem:[%s504 + $0x78] sm:$0x1]
      %v583 = vld [vmem:[%s509] sm:$0xff]
      %v584 = vld [vmem:[%s509 + $0x10] sm:$0xff]
      %v585 = vld [vmem:[%s509 + $0x20] sm:$0xff]
      %v586 = vld [vmem:[%s509 + $0x30] sm:$0xff]
      %v587 = vld [vmem:[%s509 + $0x40] sm:$0xff]
      %v588 = vld [vmem:[%s509 + $0x50] sm:$0xff]
      %v589 = vld [vmem:[%s509 + $0x60] sm:$0xff]
      %v590 = vld [vmem:[%s509 + $0x70] sm:$0xff]
      %v591 = vld [vmem:[%s514] sm:$0xff]
      %v592 = vld [vmem:[%s514 + $0x8] sm:$0x1]
      %v593 = vld [vmem:[%s514 + $0x10] sm:$0xff]
      %v594 = vld [vmem:[%s514 + $0x18] sm:$0x1]
      %v595 = vld [vmem:[%s514 + $0x20] sm:$0xff]
      %v596 = vld [vmem:[%s514 + $0x28] sm:$0x1]
      %v597 = vld [vmem:[%s514 + $0x30] sm:$0xff]
      %v598 = vld [vmem:[%s514 + $0x38] sm:$0x1]
      %v599 = vld [vmem:[%s514 + $0x40] sm:$0xff]
      %v600 = vld [vmem:[%s514 + $0x48] sm:$0x1]
      %v601 = vld [vmem:[%s514 + $0x50] sm:$0xff]
      %v602 = vld [vmem:[%s514 + $0x58] sm:$0x1]
      %v603 = vld [vmem:[%s514 + $0x60] sm:$0xff]
      %v604 = vld [vmem:[%s514 + $0x68] sm:$0x1]
      %v605 = vld [vmem:[%s514 + $0x70] sm:$0xff]
      %v606 = vld [vmem:[%s514 + $0x78] sm:$0x1]
      %v607 = vld [vmem:[%s514 + $0x80] sm:$0xff]
      %v608 = vld [vmem:[%s514 + $0x88] sm:$0x1]
      %v609 = vld [vmem:[%s519] sm:$0xff]
      %v610 = vld [vmem:[%s519 + $0x10] sm:$0xff]
      %v611 = vld [vmem:[%s519 + $0x20] sm:$0xff]
      %v612 = vld [vmem:[%s519 + $0x30] sm:$0xff]
      %v613 = vld [vmem:[%s519 + $0x40] sm:$0xff]
      %v614 = vld [vmem:[%s519 + $0x50] sm:$0xff]
      %v615 = vld [vmem:[%s519 + $0x60] sm:$0xff]
      %v616 = vld [vmem:[%s519 + $0x70] sm:$0xff]
      %v617 = vld [vmem:[%s519 + $0x80] sm:$0xff]
      %v618 = vld [vmem:[%s524] sm:$0xff]
      %v619 = vld [vmem:[%s524 + $0x8] sm:$0x1]
      %v620 = vld [vmem:[%s524 + $0x10] sm:$0xff]
      %v621 = vld [vmem:[%s524 + $0x18] sm:$0x1]
      %v622 = vld [vmem:[%s524 + $0x20] sm:$0xff]
      %v623 = vld [vmem:[%s524 + $0x28] sm:$0x1]
      %v624 = vld [vmem:[%s524 + $0x30] sm:$0xff]
      %v625 = vld [vmem:[%s524 + $0x38] sm:$0x1]
      %v626 = vld [vmem:[%s524 + $0x40] sm:$0xff]
      %v627 = vld [vmem:[%s524 + $0x48] sm:$0x1]
      %v628 = vld [vmem:[%s524 + $0x50] sm:$0xff]
      %v629 = vld [vmem:[%s524 + $0x58] sm:$0x1]
      %v630 = vld [vmem:[%s524 + $0x60] sm:$0xff]
      %v631 = vld [vmem:[%s524 + $0x68] sm:$0x1]
      %v632 = vld [vmem:[%s524 + $0x70] sm:$0xff]
      %v633 = vld [vmem:[%s524 + $0x78] sm:$0x1]
      %v634 = vld [vmem:[%s529] sm:$0xff]
      %v635 = vld [vmem:[%s529 + $0x10] sm:$0xff]
      %v636 = vld [vmem:[%s529 + $0x20] sm:$0xff]
      %v637 = vld [vmem:[%s529 + $0x30] sm:$0xff]
      %v638 = vld [vmem:[%s529 + $0x40] sm:$0xff]
      %v639 = vld [vmem:[%s529 + $0x50] sm:$0xff]
      %v640 = vld [vmem:[%s529 + $0x60] sm:$0xff]
      %v641 = vld [vmem:[%s529 + $0x70] sm:$0xff]
      %643 = vset.pattern.permute.xlu0 0
      %644 = vperm.xlu0 %643, %v591
      %v645 = vpop.permute.xlu0 %644
      %648 = vset.pattern.permute.xlu0 0
      %649 = vperm.xlu0 %648, %v593
      %v650 = vpop.permute.xlu0 %649
      %653 = vset.pattern.permute.xlu0 0
      %654 = vperm.xlu0 %653, %v595
      %v655 = vpop.permute.xlu0 %654
      %658 = vset.pattern.permute.xlu0 0
      %659 = vperm.xlu0 %658, %v597
      %v660 = vpop.permute.xlu0 %659
      %663 = vset.pattern.permute.xlu0 0
      %664 = vperm.xlu0 %663, %v599
      %v665 = vpop.permute.xlu0 %664
      %668 = vset.pattern.permute.xlu0 0
      %669 = vperm.xlu0 %668, %v601
      %v670 = vpop.permute.xlu0 %669
      %673 = vset.pattern.permute.xlu0 0
      %674 = vperm.xlu0 %673, %v603
      %v675 = vpop.permute.xlu0 %674
      %678 = vset.pattern.permute.xlu0 0
      %679 = vperm.xlu0 %678, %v605
      %v680 = vpop.permute.xlu0 %679
      %v682 = vmul.f32 %v540, %v645
      %v683 = vmul.f32 %v542, %v650
      %v684 = vmul.f32 %v544, %v655
      %v685 = vmul.f32 %v546, %v660
      %v686 = vmul.f32 %v548, %v665
      %v687 = vmul.f32 %v550, %v670
      %v688 = vmul.f32 %v552, %v675
      %v689 = vmul.f32 %v554, %v680
      %vm690 = vcmask 64512
      %691 = vst.msk [vmem:[#allocation2] sm:$0xff] %vm690, %v682
      %692 = vst.msk [vmem:[#allocation2 + $0x8] sm:$0xff] %vm690, %v683
      %693 = vst.msk [vmem:[#allocation2 + $0x10] sm:$0xff] %vm690, %v684
      %694 = vst.msk [vmem:[#allocation2 + $0x18] sm:$0xff] %vm690, %v685
      %695 = vst.msk [vmem:[#allocation2 + $0x20] sm:$0xff] %vm690, %v686
      %696 = vst.msk [vmem:[#allocation2 + $0x28] sm:$0xff] %vm690, %v687
      %697 = vst.msk [vmem:[#allocation2 + $0x30] sm:$0xff] %vm690, %v688
      %698 = vst.msk [vmem:[#allocation2 + $0x38] sm:$0xff] %vm690, %v689
      %v699 = vadd.f32 %v591, 0.0
      %v700 = vadd.f32 %v593, 0.0
      %v701 = vadd.f32 %v595, 0.0
      %v702 = vadd.f32 %v597, 0.0
      %v703 = vadd.f32 %v599, 0.0
      %v704 = vadd.f32 %v601, 0.0
      %v705 = vadd.f32 %v603, 0.0
      %v706 = vadd.f32 %v605, 0.0
      %708 = vset.pattern.permute.xlu0 0
      %709 = vperm.xlu0 %708, %v609
      %v710 = vpop.permute.xlu0 %709
      %713 = vset.pattern.permute.xlu0 0
      %714 = vperm.xlu0 %713, %v610
      %v715 = vpop.permute.xlu0 %714
      %718 = vset.pattern.permute.xlu0 0
      %719 = vperm.xlu0 %718, %v611
      %v720 = vpop.permute.xlu0 %719
      %723 = vset.pattern.permute.xlu0 0
      %724 = vperm.xlu0 %723, %v612
      %v725 = vpop.permute.xlu0 %724
      %728 = vset.pattern.permute.xlu0 0
      %729 = vperm.xlu0 %728, %v613
      %v730 = vpop.permute.xlu0 %729
      %733 = vset.pattern.permute.xlu0 0
      %734 = vperm.xlu0 %733, %v614
      %v735 = vpop.permute.xlu0 %734
      %738 = vset.pattern.permute.xlu0 0
      %739 = vperm.xlu0 %738, %v615
      %v740 = vpop.permute.xlu0 %739
      %743 = vset.pattern.permute.xlu0 0
      %744 = vperm.xlu0 %743, %v616
      %v745 = vpop.permute.xlu0 %744
      %v747 = vmul.f32 %v558, %v710
      %v748 = vmul.f32 %v559, %v715
      %v749 = vmul.f32 %v560, %v720
      %v750 = vmul.f32 %v561, %v725
      %v751 = vmul.f32 %v562, %v730
      %v752 = vmul.f32 %v563, %v735
      %v753 = vmul.f32 %v564, %v740
      %v754 = vmul.f32 %v565, %v745
      %763 = vrot.lane.b32.xlu0 %v747, 8
      %v764 = vpop.permute.xlu0 %763
      %765 = vrot.lane.b32.xlu0 %v748, 8
      %v766 = vpop.permute.xlu0 %765
      %767 = vrot.lane.b32.xlu0 %v749, 8
      %v768 = vpop.permute.xlu0 %767
      %769 = vrot.lane.b32.xlu0 %v750, 8
      %v770 = vpop.permute.xlu0 %769
      %771 = vrot.lane.b32.xlu0 %v751, 8
      %v772 = vpop.permute.xlu0 %771
      %773 = vrot.lane.b32.xlu0 %v752, 8
      %v774 = vpop.permute.xlu0 %773
      %775 = vrot.lane.b32.xlu0 %v753, 8
      %v776 = vpop.permute.xlu0 %775
      %777 = vrot.lane.b32.xlu0 %v754, 8
      %v778 = vpop.permute.xlu0 %777
      %vm787 = vcmask 130112
      %788 = vst.msk [vmem:[#allocation2] sm:$0xff] %vm787, %v764
      %789 = vst.msk [vmem:[#allocation2 + $0x8] sm:$0xff] %vm787, %v766
      %790 = vst.msk [vmem:[#allocation2 + $0x10] sm:$0xff] %vm787, %v768
      %791 = vst.msk [vmem:[#allocation2 + $0x18] sm:$0xff] %vm787, %v770
      %792 = vst.msk [vmem:[#allocation2 + $0x20] sm:$0xff] %vm787, %v772
      %793 = vst.msk [vmem:[#allocation2 + $0x28] sm:$0xff] %vm787, %v774
      %794 = vst.msk [vmem:[#allocation2 + $0x30] sm:$0xff] %vm787, %v776
      %795 = vst.msk [vmem:[#allocation2 + $0x38] sm:$0xff] %vm787, %v778
      %v796 = vadd.f32 %v699, %v609
      %v797 = vadd.f32 %v700, %v610
      %v798 = vadd.f32 %v701, %v611
      %v799 = vadd.f32 %v702, %v612
      %v800 = vadd.f32 %v703, %v613
      %v801 = vadd.f32 %v704, %v614
      %v802 = vadd.f32 %v705, %v615
      %v803 = vadd.f32 %v706, %v616
      %805 = vset.pattern.permute.xlu0 0
      %806 = vperm.xlu0 %805, %v592
      %v807 = vpop.permute.xlu0 %806
      %810 = vset.pattern.permute.xlu0 0
      %811 = vperm.xlu0 %810, %v594
      %v812 = vpop.permute.xlu0 %811
      %815 = vset.pattern.permute.xlu0 0
      %816 = vperm.xlu0 %815, %v596
      %v817 = vpop.permute.xlu0 %816
      %820 = vset.pattern.permute.xlu0 0
      %821 = vperm.xlu0 %820, %v598
      %v822 = vpop.permute.xlu0 %821
      %825 = vset.pattern.permute.xlu0 0
      %826 = vperm.xlu0 %825, %v600
      %v827 = vpop.permute.xlu0 %826
      %830 = vset.pattern.permute.xlu0 0
      %831 = vperm.xlu0 %830, %v602
      %v832 = vpop.permute.xlu0 %831
      %835 = vset.pattern.permute.xlu0 0
      %836 = vperm.xlu0 %835, %v604
      %v837 = vpop.permute.xlu0 %836
      %840 = vset.pattern.permute.xlu0 0
      %841 = vperm.xlu0 %840, %v606
      %v842 = vpop.permute.xlu0 %841
      %v844 = vmul.f32 %v541, %v807
      %v845 = vmul.f32 %v543, %v812
      %v846 = vmul.f32 %v545, %v817
      %v847 = vmul.f32 %v547, %v822
      %v848 = vmul.f32 %v549, %v827
      %v849 = vmul.f32 %v551, %v832
      %v850 = vmul.f32 %v553, %v837
      %v851 = vmul.f32 %v555, %v842
      %vm868 = vcmask 1046528
      %v869 = vrot.slane %v682, 1
      %v870 = vrot.slane %v844, 1
      %v871 = vsel %vm868, %v869, %v870
      %v872 = vrot.slane %v683, 1
      %v873 = vrot.slane %v845, 1
      %v874 = vsel %vm868, %v872, %v873
      %v875 = vrot.slane %v684, 1
      %v876 = vrot.slane %v846, 1
      %v877 = vsel %vm868, %v875, %v876
      %v878 = vrot.slane %v685, 1
      %v879 = vrot.slane %v847, 1
      %v880 = vsel %vm868, %v878, %v879
      %v881 = vrot.slane %v686, 1
      %v882 = vrot.slane %v848, 1
      %v883 = vsel %vm868, %v881, %v882
      %v884 = vrot.slane %v687, 1
      %v885 = vrot.slane %v849, 1
      %v886 = vsel %vm868, %v884, %v885
      %v887 = vrot.slane %v688, 1
      %v888 = vrot.slane %v850, 1
      %v889 = vsel %vm868, %v887, %v888
      %v890 = vrot.slane %v689, 1
      %v891 = vrot.slane %v851, 1
      %v892 = vsel %vm868, %v890, %v891
      %893 = vrot.lane.b32.xlu0 %v871, 16
      %v894 = vpop.permute.xlu0 %893
      %895 = vrot.lane.b32.xlu0 %v874, 16
      %v896 = vpop.permute.xlu0 %895
      %897 = vrot.lane.b32.xlu0 %v877, 16
      %v898 = vpop.permute.xlu0 %897
      %899 = vrot.lane.b32.xlu0 %v880, 16
      %v900 = vpop.permute.xlu0 %899
      %901 = vrot.lane.b32.xlu0 %v883, 16
      %v902 = vpop.permute.xlu0 %901
      %903 = vrot.lane.b32.xlu0 %v886, 16
      %v904 = vpop.permute.xlu0 %903
      %905 = vrot.lane.b32.xlu0 %v889, 16
      %v906 = vpop.permute.xlu0 %905
      %907 = vrot.lane.b32.xlu0 %v892, 16
      %v908 = vpop.permute.xlu0 %907
      %vm917 = vcmask 195712
      %918 = vst.msk [vmem:[#allocation2] sm:$0xff] %vm917, %v894
      %919 = vst.msk [vmem:[#allocation2 + $0x8] sm:$0xff] %vm917, %v896
      %920 = vst.msk [vmem:[#allocation2 + $0x10] sm:$0xff] %vm917, %v898
      %921 = vst.msk [vmem:[#allocation2 + $0x18] sm:$0xff] %vm917, %v900
      %922 = vst.msk [vmem:[#allocation2 + $0x20] sm:$0xff] %vm917, %v902
      %923 = vst.msk [vmem:[#allocation2 + $0x28] sm:$0xff] %vm917, %v904
      %924 = vst.msk [vmem:[#allocation2 + $0x30] sm:$0xff] %vm917, %v906
      %925 = vst.msk [vmem:[#allocation2 + $0x38] sm:$0xff] %vm917, %v908
      %v926 = vrot.slane %v591, 1
      %v927 = vrot.slane %v592, 1
      %v928 = vsel %vm868, %v926, %v927
      %v929 = vrot.slane %v593, 1
      %v930 = vrot.slane %v594, 1
      %v931 = vsel %vm868, %v929, %v930
      %v932 = vrot.slane %v595, 1
      %v933 = vrot.slane %v596, 1
      %v934 = vsel %vm868, %v932, %v933
      %v935 = vrot.slane %v597, 1
      %v936 = vrot.slane %v598, 1
      %v937 = vsel %vm868, %v935, %v936
      %v938 = vrot.slane %v599, 1
      %v939 = vrot.slane %v600, 1
      %v940 = vsel %vm868, %v938, %v939
      %v941 = vrot.slane %v601, 1
      %v942 = vrot.slane %v602, 1
      %v943 = vsel %vm868, %v941, %v942
      %v944 = vrot.slane %v603, 1
      %v945 = vrot.slane %v604, 1
      %v946 = vsel %vm868, %v944, %v945
      %v947 = vrot.slane %v605, 1
      %v948 = vrot.slane %v606, 1
      %v949 = vsel %vm868, %v947, %v948
      %v958 = vadd.f32 %v796, %v928
      %v959 = vadd.f32 %v797, %v931
      %v960 = vadd.f32 %v798, %v934
      %v961 = vadd.f32 %v799, %v937
      %v962 = vadd.f32 %v800, %v940
      %v963 = vadd.f32 %v801, %v943
      %v964 = vadd.f32 %v802, %v946
      %v965 = vadd.f32 %v803, %v949
      %967 = vset.pattern.permute.xlu0 0
      %968 = vperm.xlu0 %967, %v618
      %v969 = vpop.permute.xlu0 %968
      %972 = vset.pattern.permute.xlu0 0
      %973 = vperm.xlu0 %972, %v620
      %v974 = vpop.permute.xlu0 %973
      %977 = vset.pattern.permute.xlu0 0
      %978 = vperm.xlu0 %977, %v622
      %v979 = vpop.permute.xlu0 %978
      %982 = vset.pattern.permute.xlu0 0
      %983 = vperm.xlu0 %982, %v624
      %v984 = vpop.permute.xlu0 %983
      %987 = vset.pattern.permute.xlu0 0
      %988 = vperm.xlu0 %987, %v626
      %v989 = vpop.permute.xlu0 %988
      %992 = vset.pattern.permute.xlu0 0
      %993 = vperm.xlu0 %992, %v628
      %v994 = vpop.permute.xlu0 %993
      %997 = vset.pattern.permute.xlu0 0
      %998 = vperm.xlu0 %997, %v630
      %v999 = vpop.permute.xlu0 %998
      %1002 = vset.pattern.permute.xlu0 0
      %1003 = vperm.xlu0 %1002, %v632
      %v1004 = vpop.permute.xlu0 %1003
      %v1006 = vmul.f32 %v567, %v969
      %v1007 = vmul.f32 %v569, %v974
      %v1008 = vmul.f32 %v571, %v979
      %v1009 = vmul.f32 %v573, %v984
      %v1010 = vmul.f32 %v575, %v989
      %v1011 = vmul.f32 %v577, %v994
      %v1012 = vmul.f32 %v579, %v999
      %v1013 = vmul.f32 %v581, %v1004
      %1022 = vrot.lane.b32.xlu0 %v1006, 24
      %v1023 = vpop.permute.xlu0 %1022
      %1024 = vrot.lane.b32.xlu0 %v1007, 24
      %v1025 = vpop.permute.xlu0 %1024
      %1026 = vrot.lane.b32.xlu0 %v1008, 24
      %v1027 = vpop.permute.xlu0 %1026
      %1028 = vrot.lane.b32.xlu0 %v1009, 24
      %v1029 = vpop.permute.xlu0 %1028
      %1030 = vrot.lane.b32.xlu0 %v1010, 24
      %v1031 = vpop.permute.xlu0 %1030
      %1032 = vrot.lane.b32.xlu0 %v1011, 24
      %v1033 = vpop.permute.xlu0 %1032
      %1034 = vrot.lane.b32.xlu0 %v1012, 24
      %v1035 = vpop.permute.xlu0 %1034
      %1036 = vrot.lane.b32.xlu0 %v1013, 24
      %v1037 = vpop.permute.xlu0 %1036
      %vm1046 = vcmask 261312
      %1047 = vst.msk [vmem:[#allocation2] sm:$0xff] %vm1046, %v1023
      %1048 = vst.msk [vmem:[#allocation2 + $0x8] sm:$0xff] %vm1046, %v1025
      %1049 = vst.msk [vmem:[#allocation2 + $0x10] sm:$0xff] %vm1046, %v1027
      %1050 = vst.msk [vmem:[#allocation2 + $0x18] sm:$0xff] %vm1046, %v1029
      %1051 = vst.msk [vmem:[#allocation2 + $0x20] sm:$0xff] %vm1046, %v1031
      %1052 = vst.msk [vmem:[#allocation2 + $0x28] sm:$0xff] %vm1046, %v1033
      %1053 = vst.msk [vmem:[#allocation2 + $0x30] sm:$0xff] %vm1046, %v1035
      %1054 = vst.msk [vmem:[#allocation2 + $0x38] sm:$0xff] %vm1046, %v1037
      %v1055 = vadd.f32 %v958, %v618
      %v1056 = vadd.f32 %v959, %v620
      %v1057 = vadd.f32 %v960, %v622
      %v1058 = vadd.f32 %v961, %v624
      %v1059 = vadd.f32 %v962, %v626
      %v1060 = vadd.f32 %v963, %v628
      %v1061 = vadd.f32 %v964, %v630
      %v1062 = vadd.f32 %v965, %v632
      %1064 = vset.pattern.permute.xlu0 0
      %1065 = vperm.xlu0 %1064, %v634
      %v1066 = vpop.permute.xlu0 %1065
      %1069 = vset.pattern.permute.xlu0 0
      %1070 = vperm.xlu0 %1069, %v635
      %v1071 = vpop.permute.xlu0 %1070
      %1074 = vset.pattern.permute.xlu0 0
      %1075 = vperm.xlu0 %1074, %v636
      %v1076 = vpop.permute.xlu0 %1075
      %1079 = vset.pattern.permute.xlu0 0
      %1080 = vperm.xlu0 %1079, %v637
      %v1081 = vpop.permute.xlu0 %1080
      %1084 = vset.pattern.permute.xlu0 0
      %1085 = vperm.xlu0 %1084, %v638
      %v1086 = vpop.permute.xlu0 %1085
      %1089 = vset.pattern.permute.xlu0 0
      %1090 = vperm.xlu0 %1089, %v639
      %v1091 = vpop.permute.xlu0 %1090
      %1094 = vset.pattern.permute.xlu0 0
      %1095 = vperm.xlu0 %1094, %v640
      %v1096 = vpop.permute.xlu0 %1095
      %1099 = vset.pattern.permute.xlu0 0
      %1100 = vperm.xlu0 %1099, %v641
      %v1101 = vpop.permute.xlu0 %1100
      %v1103 = vmul.f32 %v583, %v1066
      %v1104 = vmul.f32 %v584, %v1071
      %v1105 = vmul.f32 %v585, %v1076
      %v1106 = vmul.f32 %v586, %v1081
      %v1107 = vmul.f32 %v587, %v1086
      %v1108 = vmul.f32 %v588, %v1091
      %v1109 = vmul.f32 %v589, %v1096
      %v1110 = vmul.f32 %v590, %v1101
      %1119 = vrot.lane.b32.xlu0 %v1103, 32
      %v1120 = vpop.permute.xlu0 %1119
      %1121 = vrot.lane.b32.xlu0 %v1104, 32
      %v1122 = vpop.permute.xlu0 %1121
      %1123 = vrot.lane.b32.xlu0 %v1105, 32
      %v1124 = vpop.permute.xlu0 %1123
      %1125 = vrot.lane.b32.xlu0 %v1106, 32
      %v1126 = vpop.permute.xlu0 %1125
      %1127 = vrot.lane.b32.xlu0 %v1107, 32
      %v1128 = vpop.permute.xlu0 %1127
      %1129 = vrot.lane.b32.xlu0 %v1108, 32
      %v1130 = vpop.permute.xlu0 %1129
      %1131 = vrot.lane.b32.xlu0 %v1109, 32
      %v1132 = vpop.permute.xlu0 %1131
      %1133 = vrot.lane.b32.xlu0 %v1110, 32
      %v1134 = vpop.permute.xlu0 %1133
      %vm1143 = vcmask 326912
      %1144 = vst.msk [vmem:[#allocation2] sm:$0xff] %vm1143, %v1120
      %1145 = vst.msk [vmem:[#allocation2 + $0x8] sm:$0xff] %vm1143, %v1122
      %1146 = vst.msk [vmem:[#allocation2 + $0x10] sm:$0xff] %vm1143, %v1124
      %1147 = vst.msk [vmem:[#allocation2 + $0x18] sm:$0xff] %vm1143, %v1126
      %1148 = vst.msk [vmem:[#allocation2 + $0x20] sm:$0xff] %vm1143, %v1128
      %1149 = vst.msk [vmem:[#allocation2 + $0x28] sm:$0xff] %vm1143, %v1130
      %1150 = vst.msk [vmem:[#allocation2 + $0x30] sm:$0xff] %vm1143, %v1132
      %1151 = vst.msk [vmem:[#allocation2 + $0x38] sm:$0xff] %vm1143, %v1134
      %v1152 = vadd.f32 %v1055, %v634
      %v1153 = vadd.f32 %v1056, %v635
      %v1154 = vadd.f32 %v1057, %v636
      %v1155 = vadd.f32 %v1058, %v637
      %v1156 = vadd.f32 %v1059, %v638
      %v1157 = vadd.f32 %v1060, %v639
      %v1158 = vadd.f32 %v1061, %v640
      %v1159 = vadd.f32 %v1062, %v641
      %1161 = vset.pattern.permute.xlu0 0
      %1162 = vperm.xlu0 %1161, %v619
      %v1163 = vpop.permute.xlu0 %1162
      %1166 = vset.pattern.permute.xlu0 0
      %1167 = vperm.xlu0 %1166, %v621
      %v1168 = vpop.permute.xlu0 %1167
      %1171 = vset.pattern.permute.xlu0 0
      %1172 = vperm.xlu0 %1171, %v623
      %v1173 = vpop.permute.xlu0 %1172
      %1176 = vset.pattern.permute.xlu0 0
      %1177 = vperm.xlu0 %1176, %v625
      %v1178 = vpop.permute.xlu0 %1177
      %1181 = vset.pattern.permute.xlu0 0
      %1182 = vperm.xlu0 %1181, %v627
      %v1183 = vpop.permute.xlu0 %1182
      %1186 = vset.pattern.permute.xlu0 0
      %1187 = vperm.xlu0 %1186, %v629
      %v1188 = vpop.permute.xlu0 %1187
      %1191 = vset.pattern.permute.xlu0 0
      %1192 = vperm.xlu0 %1191, %v631
      %v1193 = vpop.permute.xlu0 %1192
      %1196 = vset.pattern.permute.xlu0 0
      %1197 = vperm.xlu0 %1196, %v633
      %v1198 = vpop.permute.xlu0 %1197
      %v1200 = vmul.f32 %v568, %v1163
      %v1201 = vmul.f32 %v570, %v1168
      %v1202 = vmul.f32 %v572, %v1173
      %v1203 = vmul.f32 %v574, %v1178
      %v1204 = vmul.f32 %v576, %v1183
      %v1205 = vmul.f32 %v578, %v1188
      %v1206 = vmul.f32 %v580, %v1193
      %v1207 = vmul.f32 %v582, %v1198
      %v1216 = vrot.slane %v1006, 1
      %v1217 = vrot.slane %v1200, 1
      %v1218 = vsel %vm868, %v1216, %v1217
      %v1219 = vrot.slane %v1007, 1
      %v1220 = vrot.slane %v1201, 1
      %v1221 = vsel %vm868, %v1219, %v1220
      %v1222 = vrot.slane %v1008, 1
      %v1223 = vrot.slane %v1202, 1
      %v1224 = vsel %vm868, %v1222, %v1223
      %v1225 = vrot.slane %v1009, 1
      %v1226 = vrot.slane %v1203, 1
      %v1227 = vsel %vm868, %v1225, %v1226
      %v1228 = vrot.slane %v1010, 1
      %v1229 = vrot.slane %v1204, 1
      %v1230 = vsel %vm868, %v1228, %v1229
      %v1231 = vrot.slane %v1011, 1
      %v1232 = vrot.slane %v1205, 1
      %v1233 = vsel %vm868, %v1231, %v1232
      %v1234 = vrot.slane %v1012, 1
      %v1235 = vrot.slane %v1206, 1
      %v1236 = vsel %vm868, %v1234, %v1235
      %v1237 = vrot.slane %v1013, 1
      %v1238 = vrot.slane %v1207, 1
      %v1239 = vsel %vm868, %v1237, %v1238
      %1240 = vrot.lane.b32.xlu0 %v1218, 40
      %v1241 = vpop.permute.xlu0 %1240
      %1242 = vrot.lane.b32.xlu0 %v1221, 40
      %v1243 = vpop.permute.xlu0 %1242
      %1244 = vrot.lane.b32.xlu0 %v1224, 40
      %v1245 = vpop.permute.xlu0 %1244
      %1246 = vrot.lane.b32.xlu0 %v1227, 40
      %v1247 = vpop.permute.xlu0 %1246
      %1248 = vrot.lane.b32.xlu0 %v1230, 40
      %v1249 = vpop.permute.xlu0 %1248
      %1250 = vrot.lane.b32.xlu0 %v1233, 40
      %v1251 = vpop.permute.xlu0 %1250
      %1252 = vrot.lane.b32.xlu0 %v1236, 40
      %v1253 = vpop.permute.xlu0 %1252
      %1254 = vrot.lane.b32.xlu0 %v1239, 40
      %v1255 = vpop.permute.xlu0 %1254
      %vm1264 = vcmask 392512
      %1265 = vst.msk [vmem:[#allocation2] sm:$0xff] %vm1264, %v1241
      %1266 = vst.msk [vmem:[#allocation2 + $0x8] sm:$0xff] %vm1264, %v1243
      %1267 = vst.msk [vmem:[#allocation2 + $0x10] sm:$0xff] %vm1264, %v1245
      %1268 = vst.msk [vmem:[#allocation2 + $0x18] sm:$0xff] %vm1264, %v1247
      %1269 = vst.msk [vmem:[#allocation2 + $0x20] sm:$0xff] %vm1264, %v1249
      %1270 = vst.msk [vmem:[#allocation2 + $0x28] sm:$0xff] %vm1264, %v1251
      %1271 = vst.msk [vmem:[#allocation2 + $0x30] sm:$0xff] %vm1264, %v1253
      %1272 = vst.msk [vmem:[#allocation2 + $0x38] sm:$0xff] %vm1264, %v1255
      %v1273 = vrot.slane %v618, 1
      %v1274 = vrot.slane %v619, 1
      %v1275 = vsel %vm868, %v1273, %v1274
      %v1276 = vrot.slane %v620, 1
      %v1277 = vrot.slane %v621, 1
      %v1278 = vsel %vm868, %v1276, %v1277
      %v1279 = vrot.slane %v622, 1
      %v1280 = vrot.slane %v623, 1
      %v1281 = vsel %vm868, %v1279, %v1280
      %v1282 = vrot.slane %v624, 1
      %v1283 = vrot.slane %v625, 1
      %v1284 = vsel %vm868, %v1282, %v1283
      %v1285 = vrot.slane %v626, 1
      %v1286 = vrot.slane %v627, 1
      %v1287 = vsel %vm868, %v1285, %v1286
      %v1288 = vrot.slane %v628, 1
      %v1289 = vrot.slane %v629, 1
      %v1290 = vsel %vm868, %v1288, %v1289
      %v1291 = vrot.slane %v630, 1
      %v1292 = vrot.slane %v631, 1
      %v1293 = vsel %vm868, %v1291, %v1292
      %v1294 = vrot.slane %v632, 1
      %v1295 = vrot.slane %v633, 1
      %v1296 = vsel %vm868, %v1294, %v1295
      %v1305 = vadd.f32 %v1152, %v1275
      %v1306 = vadd.f32 %v1153, %v1278
      %v1307 = vadd.f32 %v1154, %v1281
      %v1308 = vadd.f32 %v1155, %v1284
      %v1309 = vadd.f32 %v1156, %v1287
      %v1310 = vadd.f32 %v1157, %v1290
      %v1311 = vadd.f32 %v1158, %v1293
      %v1312 = vadd.f32 %v1159, %v1296
      %1314 = vset.pattern.permute.xlu0 0
      %1315 = vperm.xlu0 %1314, %v607
      %v1316 = vpop.permute.xlu0 %1315
      %v1318 = vmul.f32 %v556, %v1316
      %1320 = vrot.lane.b32.xlu0 %v683, 48
      %v1321 = vpop.permute.xlu0 %1320
      %1322 = vrot.lane.b32.xlu0 %v684, 48
      %v1323 = vpop.permute.xlu0 %1322
      %1324 = vrot.lane.b32.xlu0 %v685, 48
      %v1325 = vpop.permute.xlu0 %1324
      %1326 = vrot.lane.b32.xlu0 %v686, 48
      %v1327 = vpop.permute.xlu0 %1326
      %1328 = vrot.lane.b32.xlu0 %v687, 48
      %v1329 = vpop.permute.xlu0 %1328
      %1330 = vrot.lane.b32.xlu0 %v688, 48
      %v1331 = vpop.permute.xlu0 %1330
      %1332 = vrot.lane.b32.xlu0 %v689, 48
      %v1333 = vpop.permute.xlu0 %1332
      %1334 = vrot.lane.b32.xlu0 %v1318, 48
      %v1335 = vpop.permute.xlu0 %1334
      %vm1344 = vcmask 458112
      %1345 = vst.msk [vmem:[#allocation2] sm:$0xff] %vm1344, %v1321
      %1346 = vst.msk [vmem:[#allocation2 + $0x8] sm:$0xff] %vm1344, %v1323
      %1347 = vst.msk [vmem:[#allocation2 + $0x10] sm:$0xff] %vm1344, %v1325
      %1348 = vst.msk [vmem:[#allocation2 + $0x18] sm:$0xff] %vm1344, %v1327
      %1349 = vst.msk [vmem:[#allocation2 + $0x20] sm:$0xff] %vm1344, %v1329
      %1350 = vst.msk [vmem:[#allocation2 + $0x28] sm:$0xff] %vm1344, %v1331
      %1351 = vst.msk [vmem:[#allocation2 + $0x30] sm:$0xff] %vm1344, %v1333
      %1352 = vst.msk [vmem:[#allocation2 + $0x38] sm:$0xff] %vm1344, %v1335
      %v1353 = vadd.f32 %v1305, %v593
      %v1354 = vadd.f32 %v1306, %v595
      %v1355 = vadd.f32 %v1307, %v597
      %v1356 = vadd.f32 %v1308, %v599
      %v1357 = vadd.f32 %v1309, %v601
      %v1358 = vadd.f32 %v1310, %v603
      %v1359 = vadd.f32 %v1311, %v605
      %v1360 = vadd.f32 %v1312, %v607
      %1362 = vset.pattern.permute.xlu0 0
      %1363 = vperm.xlu0 %1362, %v617
      %v1364 = vpop.permute.xlu0 %1363
      %v1366 = vmul.f32 %v566, %v1364
      %1368 = vrot.lane.b32.xlu0 %v748, 56
      %v1369 = vpop.permute.xlu0 %1368
      %1370 = vrot.lane.b32.xlu0 %v749, 56
      %v1371 = vpop.permute.xlu0 %1370
      %1372 = vrot.lane.b32.xlu0 %v750, 56
      %v1373 = vpop.permute.xlu0 %1372
      %1374 = vrot.lane.b32.xlu0 %v751, 56
      %v1375 = vpop.permute.xlu0 %1374
      %1376 = vrot.lane.b32.xlu0 %v752, 56
      %v1377 = vpop.permute.xlu0 %1376
      %1378 = vrot.lane.b32.xlu0 %v753, 56
      %v1379 = vpop.permute.xlu0 %1378
      %1380 = vrot.lane.b32.xlu0 %v754, 56
      %v1381 = vpop.permute.xlu0 %1380
      %1382 = vrot.lane.b32.xlu0 %v1366, 56
      %v1383 = vpop.permute.xlu0 %1382
      %vm1392 = vcmask 523712
      %1393 = vst.msk [vmem:[#allocation2] sm:$0xff] %vm1392, %v1369
      %1394 = vst.msk [vmem:[#allocation2 + $0x8] sm:$0xff] %vm1392, %v1371
      %1395 = vst.msk [vmem:[#allocation2 + $0x10] sm:$0xff] %vm1392, %v1373
      %1396 = vst.msk [vmem:[#allocation2 + $0x18] sm:$0xff] %vm1392, %v1375
      %1397 = vst.msk [vmem:[#allocation2 + $0x20] sm:$0xff] %vm1392, %v1377
      %1398 = vst.msk [vmem:[#allocation2 + $0x28] sm:$0xff] %vm1392, %v1379
      %1399 = vst.msk [vmem:[#allocation2 + $0x30] sm:$0xff] %vm1392, %v1381
      %1400 = vst.msk [vmem:[#allocation2 + $0x38] sm:$0xff] %vm1392, %v1383
      %v1401 = vadd.f32 %v1353, %v610
      %v1402 = vadd.f32 %v1354, %v611
      %v1403 = vadd.f32 %v1355, %v612
      %v1404 = vadd.f32 %v1356, %v613
      %v1405 = vadd.f32 %v1357, %v614
      %v1406 = vadd.f32 %v1358, %v615
      %v1407 = vadd.f32 %v1359, %v616
      %v1408 = vadd.f32 %v1360, %v617
      %1410 = vset.pattern.permute.xlu0 0
      %1411 = vperm.xlu0 %1410, %v608
      %v1412 = vpop.permute.xlu0 %1411
      %v1414 = vmul.f32 %v557, %v1412
      %v1416 = vrot.slane %v1318, 1
      %v1417 = vrot.slane %v1414, 1
      %v1418 = vsel %vm868, %v1416, %v1417
      %1419 = vrot.lane.b32.xlu0 %v874, 64
      %v1420 = vpop.permute.xlu0 %1419
      %1421 = vrot.lane.b32.xlu0 %v877, 64
      %v1422 = vpop.permute.xlu0 %1421
      %1423 = vrot.lane.b32.xlu0 %v880, 64
      %v1424 = vpop.permute.xlu0 %1423
      %1425 = vrot.lane.b32.xlu0 %v883, 64
      %v1426 = vpop.permute.xlu0 %1425
      %1427 = vrot.lane.b32.xlu0 %v886, 64
      %v1428 = vpop.permute.xlu0 %1427
      %1429 = vrot.lane.b32.xlu0 %v889, 64
      %v1430 = vpop.permute.xlu0 %1429
      %1431 = vrot.lane.b32.xlu0 %v892, 64
      %v1432 = vpop.permute.xlu0 %1431
      %1433 = vrot.lane.b32.xlu0 %v1418, 64
      %v1434 = vpop.permute.xlu0 %1433
      %vm1443 = vcmask 589312
      %1444 = vst.msk [vmem:[#allocation2] sm:$0xff] %vm1443, %v1420
      %1445 = vst.msk [vmem:[#allocation2 + $0x8] sm:$0xff] %vm1443, %v1422
      %1446 = vst.msk [vmem:[#allocation2 + $0x10] sm:$0xff] %vm1443, %v1424
      %1447 = vst.msk [vmem:[#allocation2 + $0x18] sm:$0xff] %vm1443, %v1426
      %1448 = vst.msk [vmem:[#allocation2 + $0x20] sm:$0xff] %vm1443, %v1428
      %1449 = vst.msk [vmem:[#allocation2 + $0x28] sm:$0xff] %vm1443, %v1430
      %1450 = vst.msk [vmem:[#allocation2 + $0x30] sm:$0xff] %vm1443, %v1432
      %1451 = vst.msk [vmem:[#allocation2 + $0x38] sm:$0xff] %vm1443, %v1434
      %v1452 = vrot.slane %v607, 1
      %v1453 = vrot.slane %v608, 1
      %v1454 = vsel %vm868, %v1452, %v1453
      %v1456 = vadd.f32 %v1401, %v931
      %v1457 = vadd.f32 %v1402, %v934
      %v1458 = vadd.f32 %v1403, %v937
      %v1459 = vadd.f32 %v1404, %v940
      %v1460 = vadd.f32 %v1405, %v943
      %v1461 = vadd.f32 %v1406, %v946
      %v1462 = vadd.f32 %v1407, %v949
      %v1463 = vadd.f32 %v1408, %v1454
      %v1464 = vld [vmem:[#allocation2] sm:$0xff]
      %v1465 = vld [vmem:[#allocation2 + $0x8] sm:$0xff]
      %v1466 = vld [vmem:[#allocation2 + $0x10] sm:$0xff]
      %v1467 = vld [vmem:[#allocation2 + $0x18] sm:$0xff]
      %v1468 = vld [vmem:[#allocation2 + $0x20] sm:$0xff]
      %v1469 = vld [vmem:[#allocation2 + $0x28] sm:$0xff]
      %v1470 = vld [vmem:[#allocation2 + $0x30] sm:$0xff]
      %v1471 = vld [vmem:[#allocation2 + $0x38] sm:$0xff]
      %v1472 = vld [vmem:[%s8] sm:$0xff]
      %v1473 = vld [vmem:[%s8 + $0x8] sm:$0xff]
      %v1474 = vld [vmem:[%s8 + $0x10] sm:$0xff]
      %v1475 = vld [vmem:[%s8 + $0x18] sm:$0xff]
      %v1476 = vld [vmem:[%s8 + $0x20] sm:$0xff]
      %v1477 = vld [vmem:[%s8 + $0x28] sm:$0xff]
      %v1478 = vld [vmem:[%s8 + $0x30] sm:$0xff]
      %v1479 = vld [vmem:[%s8 + $0x38] sm:$0xff]
      %v1480 = vld [vmem:[%s8 + $0x40] sm:$0xff]
      %vm1481 = vcmask 588800
      %v1483 = vsel %vm1481, %v1464, 0
      %v1486 = vsel %vm1481, %v1465, 0
      %v1489 = vsel %vm1481, %v1466, 0
      %v1492 = vsel %vm1481, %v1467, 0
      %v1495 = vsel %vm1481, %v1468, 0
      %v1498 = vsel %vm1481, %v1469, 0
      %v1501 = vsel %vm1481, %v1470, 0
      %v1504 = vsel %vm1481, %v1471, 0
      %1506 = vmatpush.msra.mxu0 0.0
      %1507 = vmatpush.msra.mxu0 0.0
      %1508 = vmatpush.msra.mxu0 0.0
      %1509 = vmatpush.msra.mxu0 0.0
      %1510 = vmatpush.msra.mxu0 0.0
      %1511 = vmatpush.msra.mxu0 0.0
      %1512 = vmatpush.msra.mxu0 0.0
      %1513 = vmatpush.msra.mxu0 %v1480
      %1514 = vmatpush.msra.mxu0 %v1479
      %1515 = vmatpush.msra.mxu0 %v1478
      %1516 = vmatpush.msra.mxu0 %v1477
      %1517 = vmatpush.msra.mxu0 %v1476
      %1518 = vmatpush.msra.mxu0 %v1475
      %1519 = vmatpush.msra.mxu0 %v1474
      %1520 = vmatpush.msra.mxu0 %v1473
      %1521 = vmatpush.msra.mxu0 %v1472
      %1522 = vmatmul.f32.gmra.mxu0 %v1483
      %v1523 = vpop.f32.mrf.mxu0
      %v1524 = vadd.f32 0.0, %v1523
      %1525 = vmatmul.f32.gmra.mxu0 %v1486
      %v1526 = vpop.f32.mrf.mxu0
      %v1527 = vadd.f32 0.0, %v1526
      %1528 = vmatmul.f32.gmra.mxu0 %v1489
      %v1529 = vpop.f32.mrf.mxu0
      %v1530 = vadd.f32 0.0, %v1529
      %1531 = vmatmul.f32.gmra.mxu0 %v1492
      %v1532 = vpop.f32.mrf.mxu0
      %v1533 = vadd.f32 0.0, %v1532
      %1534 = vmatmul.f32.gmra.mxu0 %v1495
      %v1535 = vpop.f32.mrf.mxu0
      %v1536 = vadd.f32 0.0, %v1535
      %1537 = vmatmul.f32.gmra.mxu0 %v1498
      %v1538 = vpop.f32.mrf.mxu0
      %v1539 = vadd.f32 0.0, %v1538
      %1540 = vmatmul.f32.gmra.mxu0 %v1501
      %v1541 = vpop.f32.mrf.mxu0
      %v1542 = vadd.f32 0.0, %v1541
      %1543 = vmatmul.f32.gmra.mxu0 %v1504
      %v1544 = vpop.f32.mrf.mxu0
      %v1545 = vadd.f32 0.0, %v1544
      %1546 = vdwg.mxu0
      %v1547 = vmax.f32 %v1456, 1e-05
      %v1548 = vmax.f32 %v1457, 1e-05
      %v1549 = vmax.f32 %v1458, 1e-05
      %v1550 = vmax.f32 %v1459, 1e-05
      %v1551 = vmax.f32 %v1460, 1e-05
      %v1552 = vmax.f32 %v1461, 1e-05
      %v1553 = vmax.f32 %v1462, 1e-05
      %v1554 = vmax.f32 %v1463, 1e-05
      %v1555 = vrcp.pop %v1547
      %v1556 = vrcp.pop %v1548
      %v1557 = vrcp.pop %v1549
      %v1558 = vrcp.pop %v1550
      %v1559 = vrcp.pop %v1551
      %v1560 = vrcp.pop %v1552
      %v1561 = vrcp.pop %v1553
      %v1562 = vrcp.pop %v1554
      %1564 = vset.pattern.permute.xlu0 0
      %1565 = vperm.xlu0 %1564, %v1555
      %v1566 = vpop.permute.xlu0 %1565
      %1569 = vset.pattern.permute.xlu0 0
      %1570 = vperm.xlu0 %1569, %v1556
      %v1571 = vpop.permute.xlu0 %1570
      %1574 = vset.pattern.permute.xlu0 0
      %1575 = vperm.xlu0 %1574, %v1557
      %v1576 = vpop.permute.xlu0 %1575
      %1579 = vset.pattern.permute.xlu0 0
      %1580 = vperm.xlu0 %1579, %v1558
      %v1581 = vpop.permute.xlu0 %1580
      %1584 = vset.pattern.permute.xlu0 0
      %1585 = vperm.xlu0 %1584, %v1559
      %v1586 = vpop.permute.xlu0 %1585
      %1589 = vset.pattern.permute.xlu0 0
      %1590 = vperm.xlu0 %1589, %v1560
      %v1591 = vpop.permute.xlu0 %1590
      %1594 = vset.pattern.permute.xlu0 0
      %1595 = vperm.xlu0 %1594, %v1561
      %v1596 = vpop.permute.xlu0 %1595
      %1599 = vset.pattern.permute.xlu0 0
      %1600 = vperm.xlu0 %1599, %v1562
      %v1601 = vpop.permute.xlu0 %1600
      %v1603 = vmul.f32 %v1524, %v1566
      %v1604 = vmul.f32 %v1527, %v1571
      %v1605 = vmul.f32 %v1530, %v1576
      %v1606 = vmul.f32 %v1533, %v1581
      %v1607 = vmul.f32 %v1536, %v1586
      %v1608 = vmul.f32 %v1539, %v1591
      %v1609 = vmul.f32 %v1542, %v1596
      %v1610 = vmul.f32 %v1545, %v1601
      %v1611 = vld [vmem:[%s9] sm:$0x1]
      %v1613 = vperm.slane %v1611, 0
      %v1615 = vadd.f32 %v1603, %v1613
      %v1616 = vadd.f32 %v1604, %v1613
      %v1617 = vadd.f32 %v1605, %v1613
      %v1618 = vadd.f32 %v1606, %v1613
      %v1619 = vadd.f32 %v1607, %v1613
      %v1620 = vadd.f32 %v1608, %v1613
      %v1621 = vadd.f32 %v1609, %v1613
      %v1622 = vadd.f32 %v1610, %v1613
      %1623 = vst.msk [vmem:[%s534] sm:$0xff] %vm690, %v1615
      %1624 = vst.msk [vmem:[%s534 + $0x8] sm:$0xff] %vm690, %v1616
      %1625 = vst.msk [vmem:[%s534 + $0x10] sm:$0xff] %vm690, %v1617
      %1626 = vst.msk [vmem:[%s534 + $0x18] sm:$0xff] %vm690, %v1618
      %1627 = vst.msk [vmem:[%s534 + $0x20] sm:$0xff] %vm690, %v1619
      %1628 = vst.msk [vmem:[%s534 + $0x28] sm:$0xff] %vm690, %v1620
      %1629 = vst.msk [vmem:[%s534 + $0x30] sm:$0xff] %vm690, %v1621
      %1630 = vst.msk [vmem:[%s534 + $0x38] sm:$0xff] %vm690, %v1622
      %v1631 = vmax.f32 %v634, %v1275
      %v1632 = vmax.f32 %v635, %v1278
      %v1633 = vmax.f32 %v636, %v1281
      %v1634 = vmax.f32 %v637, %v1284
      %v1635 = vmax.f32 %v638, %v1287
      %v1636 = vmax.f32 %v639, %v1290
      %v1637 = vmax.f32 %v640, %v1293
      %v1638 = vmax.f32 %v641, %v1296
      %v1639 = vmax.f32 %v610, %v931
      %v1640 = vmax.f32 %v611, %v934
      %v1641 = vmax.f32 %v612, %v937
      %v1642 = vmax.f32 %v613, %v940
      %v1643 = vmax.f32 %v614, %v943
      %v1644 = vmax.f32 %v615, %v946
      %v1645 = vmax.f32 %v616, %v949
      %v1646 = vmax.f32 %v617, %v1454
      %v1647 = vmax.f32 %v1631, %v1639
      %v1648 = vmax.f32 %v1632, %v1640
      %v1649 = vmax.f32 %v1633, %v1641
      %v1650 = vmax.f32 %v1634, %v1642
      %v1651 = vmax.f32 %v1635, %v1643
      %v1652 = vmax.f32 %v1636, %v1644
      %v1653 = vmax.f32 %v1637, %v1645
      %v1654 = vmax.f32 %v1638, %v1646
      %vm1655 = vcmask 7168
      %1656 = vst.msk [vmem:[%s539] sm:$0xff] %vm1655, %v1647
      %1657 = vst.msk [vmem:[%s539 + $0x8] sm:$0xff] %vm1655, %v1648
      %1658 = vst.msk [vmem:[%s539 + $0x10] sm:$0xff] %vm1655, %v1649
      %1659 = vst.msk [vmem:[%s539 + $0x18] sm:$0xff] %vm1655, %v1650
      %1660 = vst.msk [vmem:[%s539 + $0x20] sm:$0xff] %vm1655, %v1651
      %1661 = vst.msk [vmem:[%s539 + $0x28] sm:$0xff] %vm1655, %v1652
      %1662 = vst.msk [vmem:[%s539 + $0x30] sm:$0xff] %vm1655, %v1653
      %1663 = vst.msk [vmem:[%s539 + $0x38] sm:$0xff] %vm1655, %v1654
      %p1664 = scmp.lt.s32.totalorder %s23, 1
      %s1665 = scalar_select %p1664, %s23, 1
      %s1666 = smul.addr %s1665, 8
      %s1667 = smul.addr %s1666, 8
      %s1668 = scalar_lea.vmem %s10, %s1667
      %p1669 = scmp.lt.s32.totalorder %s23, 1
      %s1670 = scalar_select %p1669, %s23, 1
      %s1671 = smul.addr %s1670, 8
      %s1672 = smul.addr %s1671, 8
      %s1673 = scalar_lea.vmem %s11, %s1672
      // Predicated region
      $region61: #{resmod_forward.5} parent=59 // pred_check
        %p1674 = pneg %p291
      $region62: #{resmod_forward.5} parent=59 // pred_check_branch
        %1676 = sbr.rel (%p1674) target = $region64
      $region63: #{resmod_forward.5} parent=59 // pred_region
        _
      $region64: #{resmod_forward.5} parent=59 // pred_fallthru
        _
      // Predicated region
      $region65: #{resmod_forward.5} parent=59 // pred_check
        %p1677 = pneg %p317
      $region66: #{resmod_forward.5} parent=59 // pred_check_branch
        %1679 = sbr.rel (%p1677) target = $region68
      $region67: #{resmod_forward.5} parent=59 // pred_region
        _
      $region68: #{resmod_forward.5} parent=59 // pred_fallthru
        _
    $region60: #{resmod_forward.5} parent=5 // pred_fallthru
      _
    %p1680 = scmp.le.s32.totalorder 2, %s18
    // Predicated region
    $region69: #{resmod_forward.5} parent=5 // pred_check
      %p1681 = pneg %p1680
    $region70: #{resmod_forward.5} parent=5 // pred_check_branch
      %1683 = sbr.rel (%p1681) target = $region72
    $region71: #{resmod_forward.5} parent=5 // pred_region
      %s1684 = ssub.s32 %s18, 2
      // Predicated region
      $region73: #{resmod_forward.5} parent=71 // pred_check
        %p1685 = pneg %p297
      $region74: #{resmod_forward.5} parent=71 // pred_check_branch
        %1687 = sbr.rel (%p1685) target = $region76
      $region75: #{resmod_forward.5} parent=71 // pred_region
        %p1688 = scmp.lt.s32.totalorder %s24, 1
        %s1689 = scalar_select %p1688, %s24, 1
        %s1690 = smul.addr %s1689, 8
        %s1691 = smul.addr %s1690, 8
        %s1692 = scalar_lea.vmem %s10, %s1691
      $region76: #{resmod_forward.5} parent=71 // pred_fallthru
        _
      // Predicated region
      $region77: #{resmod_forward.5} parent=71 // pred_check
        %p1693 = pneg %p323
      $region78: #{resmod_forward.5} parent=71 // pred_check_branch
        %1695 = sbr.rel (%p1693) target = $region80
      $region79: #{resmod_forward.5} parent=71 // pred_region
        %p1696 = scmp.lt.s32.totalorder %s24, 1
        %s1697 = scalar_select %p1696, %s24, 1
        %s1698 = smul.addr %s1697, 8
        %s1699 = smul.addr %s1698, 8
        %s1700 = scalar_lea.vmem %s11, %s1699
      $region80: #{resmod_forward.5} parent=71 // pred_fallthru
        _
    $region72: #{resmod_forward.5} parent=5 // pred_fallthru
      _
  $region6: #{resmod_forward.5} parent=0 // loop_footer
    %s22 = sadd.s32 1, %s18
  $region7: #{resmod_forward.5} parent=0 // loop_footer_branch
    %17 = sbr.rel target = $region3
  $region8: #{resmod_forward.5} parent=0 // loop_exit
    _

// kernel: resmod_forward.7
$region0: #{resmod_forward.7}
  #allocation0 [shape = 'u32[]', space=smem, size = 0x4, offset = 0x4, fixed_abs, tag = 'smem constant byte address 0x4 - core index']
  #allocation1 [shape = 'u32[72,128]{1,0:T(1,128)}', space=vmem, size = 0x9000, scoped, tag = 'internal scratch']
  #allocation2 [shape = 'f32[10,10,4]{2,1,0:T(8,128)}', space=vmem, size = 0x14000, scoped, tag = 'scratch operand']
  #allocation3 [shape = 'f32[10,10,1]{2,1,0:T(8,128)}', space=vmem, size = 0x14000, scoped, tag = 'scratch operand']
  #allocation4 [shape = 'f32[64,36]{1,0:T(8,128)}', space=vmem, size = 0x8000, scoped, tag = 'scratch operand']
  %s0 = inlined_call_operand.vmem [shape: f32[2,8,8,8], index: 0, kind: input, shape index: {}]
  %s1 = inlined_call_operand.vmem [shape: f32[2,8,8,1], index: 1, kind: input, shape index: {}]
  %s2 = inlined_call_operand.vmem [shape: f32[8,4], index: 2, kind: input, shape index: {}]
  %s3 = inlined_call_operand.vmem [shape: f32[1,4], index: 3, kind: input, shape index: {}]
  %s4 = inlined_call_operand.vmem [shape: f32[36,4], index: 4, kind: input, shape index: {}]
  %s5 = inlined_call_operand.vmem [shape: f32[1,4], index: 5, kind: input, shape index: {}]
  %s6 = inlined_call_operand.vmem [shape: f32[4,8], index: 6, kind: input, shape index: {}]
  %s7 = inlined_call_operand.vmem [shape: f32[1,8], index: 7, kind: input, shape index: {}]
  %s8 = inlined_call_operand.hbm [shape: f32[2,8,8,8], index: 8, kind: output, shape index: {}]
  %s9 = sld [smem:[#allocation0]]
  $region65: #{resmod_forward.7} parent=0
    _
  %s11 = ssub.s32 1, %s9
  %s12 = scalar_select 0, %s11, %s9
  $region1: #{resmod_forward.7} parent=0
    #allocation5 [shape = 'u8[65536]{0}', space=vmem, size = 0x10000, scoped, tag = 'output window, operand 0']
    #allocation6 [shape = 's32[2]{0}', space=sflag, size = 0x8, scoped, tag = 'scoped memory for resmod_forward.7']
    %13 = vsyncpa [#allocation6], 0
    %s14 = scalar_lea.sflag [#allocation6], 1
    %15 = vsyncpa %s14, 0
    loop: start=0, step=1, limit=4
    $region2: #{resmod_forward.7} parent=1 // loop_pre_header
      _
    $region3: #{resmod_forward.7} parent=1 // loop_header
      %s17 = sphi 0, %s21
      %p18 = scmp.ge.s32.totalorder %s17, 4
      %s27 = sphi 0, %s29
      %s30 = sphi 0, %s27
      %s31 = sphi 0, %s30
      %s47 = sphi 0, %s31
      %s53 = sphi 0, %s55
      %s56 = sphi 0, %s53
      %s57 = sphi 0, %s56
      %s73 = sphi 0, %s57
      %s77 = sphi 0, %s77
      %s79 = sphi 0, %s77
      %s80 = sphi 0, %s79
      %s94 = sphi 0, %s80
      %s98 = sphi 0, %s98
      %s100 = sphi 0, %s98
      %s101 = sphi 0, %s100
      %s115 = sphi 0, %s101
      %s119 = sphi 0, %s119
      %s121 = sphi 0, %s119
      %s122 = sphi 0, %s121
      %s136 = sphi 0, %s122
      %s140 = sphi 0, %s140
      %s142 = sphi 0, %s140
      %s143 = sphi 0, %s142
      %s157 = sphi 0, %s143
      %s161 = sphi 0, %s161
      %s163 = sphi 0, %s161
      %s164 = sphi 0, %s163
      %s178 = sphi 0, %s164
      %s182 = sphi 0, %s182
      %s184 = sphi 0, %s182
      %s185 = sphi 0, %s184
      %s199 = sphi 0, %s185
      %s205 = sphi 0, %s207
      %s208 = sphi 0, %s205
      %s209 = sphi 0, %s208
      %s225 = sphi 0, %s209
    $region4: #{resmod_forward.7} parent=1 // loop_header_branch
      %20 = sbr.rel (%p18) target = $region8
    $region5: #{resmod_forward.7} parent=1 // loop_body
      %s22 = ssub.s32 %s17, 1
      %s23 = ssub.s32 %s17, 2
      %s24 = sadd.s32 %s17, 1
      %s25 = ssub.s32 %s17, %s24
      %p26 = scmp.eq.s32.totalorder %s25, 0
      %s28 = sadd.s32 %s27, 1
      %s29 = scalar_select %p26, %s27, %s28
      %p32 = pneg %p26
      %p33 = scmp.eq.s32.totalorder %s17, 1
      %p34 = por %p32, %p33
      %p35 = scmp.ne.s32.totalorder %s27, %s30
      %p36 = scmp.eq.s32.totalorder %s17, 0
      %p37 = por %p35, %p36
      %p38 = scmp.ne.s32.totalorder %s27, %s30
      %p39 = scmp.eq.s32.totalorder %s22, 1
      %p40 = por %p38, %p39
      %p41 = scmp.ne.s32.totalorder %s30, %s31
      %p42 = scmp.eq.s32.totalorder %s22, 0
      %p43 = por %p41, %p42
      %p44 = scmp.ne.s32.totalorder %s30, %s31
      %p45 = scmp.eq.s32.totalorder %s23, 1
      %p46 = por %p44, %p45
      %p48 = scmp.ne.s32.totalorder %s31, %s47
      %p49 = scmp.eq.s32.totalorder %s23, 0
      %p50 = por %p48, %p49
      %s51 = ssub.s32 %s17, %s24
      %p52 = scmp.eq.s32.totalorder %s51, 0
      %s54 = sadd.s32 %s53, 1
      %s55 = scalar_select %p52, %s53, %s54
      %p58 = pneg %p52
      %p59 = scmp.eq.s32.totalorder %s17, 1
      %p60 = por %p58, %p59
      %p61 = scmp.ne.s32.totalorder %s53, %s56
      %p62 = scmp.eq.s32.totalorder %s17, 0
      %p63 = por %p61, %p62
      %p64 = scmp.ne.s32.totalorder %s53, %s56
      %p65 = scmp.eq.s32.totalorder %s22, 1
      %p66 = por %p64, %p65
      %p67 = scmp.ne.s32.totalorder %s56, %s57
      %p68 = scmp.eq.s32.totalorder %s22, 0
      %p69 = por %p67, %p68
      %p70 = scmp.ne.s32.totalorder %s56, %s57
      %p71 = scmp.eq.s32.totalorder %s23, 1
      %p72 = por %p70, %p71
      %p74 = scmp.ne.s32.totalorder %s57, %s73
      %p75 = scmp.eq.s32.totalorder %s23, 0
      %p76 = por %p74, %p75
      %s78 = sadd.s32 %s77, 1
      %p81 = scmp.eq.s32.totalorder %s17, 1
      %p82 = scmp.ne.s32.totalorder %s77, %s79
      %p83 = scmp.eq.s32.totalorder %s17, 0
      %p84 = por %p82, %p83
      %p85 = scmp.ne.s32.totalorder %s77, %s79
      %p86 = scmp.eq.s32.totalorder %s22, 1
      %p87 = por %p85, %p86
      %p88 = scmp.ne.s32.totalorder %s79, %s80
      %p89 = scmp.eq.s32.totalorder %s22, 0
      %p90 = por %p88, %p89
      %p91 = scmp.ne.s32.totalorder %s79, %s80
      %p92 = scmp.eq.s32.totalorder %s23, 1
      %p93 = por %p91, %p92
      %p95 = scmp.ne.s32.totalorder %s80, %s94
      %p96 = scmp.eq.s32.totalorder %s23, 0
      %p97 = por %p95, %p96
      %s99 = sadd.s32 %s98, 1
      %p102 = scmp.eq.s32.totalorder %s17, 1
      %p103 = scmp.ne.s32.totalorder %s98, %s100
      %p104 = scmp.eq.s32.totalorder %s17, 0
      %p105 = por %p103, %p104
      %p106 = scmp.ne.s32.totalorder %s98, %s100
      %p107 = scmp.eq.s32.totalorder %s22, 1
      %p108 = por %p106, %p107
      %p109 = scmp.ne.s32.totalorder %s100, %s101
      %p110 = scmp.eq.s32.totalorder %s22, 0
      %p111 = por %p109, %p110
      %p112 = scmp.ne.s32.totalorder %s100, %s101
      %p113 = scmp.eq.s32.totalorder %s23, 1
      %p114 = por %p112, %p113
      %p116 = scmp.ne.s32.totalorder %s101, %s115
      %p117 = scmp.eq.s32.totalorder %s23, 0
      %p118 = por %p116, %p117
      %s120 = sadd.s32 %s119, 1
      %p123 = scmp.eq.s32.totalorder %s17, 1
      %p124 = scmp.ne.s32.totalorder %s119, %s121
      %p125 = scmp.eq.s32.totalorder %s17, 0
      %p126 = por %p124, %p125
      %p127 = scmp.ne.s32.totalorder %s119, %s121
      %p128 = scmp.eq.s32.totalorder %s22, 1
      %p129 = por %p127, %p128
      %p130 = scmp.ne.s32.totalorder %s121, %s122
      %p131 = scmp.eq.s32.totalorder %s22, 0
      %p132 = por %p130, %p131
      %p133 = scmp.ne.s32.totalorder %s121, %s122
      %p134 = scmp.eq.s32.totalorder %s23, 1
      %p135 = por %p133, %p134
      %p137 = scmp.ne.s32.totalorder %s122, %s136
      %p138 = scmp.eq.s32.totalorder %s23, 0
      %p139 = por %p137, %p138
      %s141 = sadd.s32 %s140, 1
      %p144 = scmp.eq.s32.totalorder %s17, 1
      %p145 = scmp.ne.s32.totalorder %s140, %s142
      %p146 = scmp.eq.s32.totalorder %s17, 0
      %p147 = por %p145, %p146
      %p148 = scmp.ne.s32.totalorder %s140, %s142
      %p149 = scmp.eq.s32.totalorder %s22, 1
      %p150 = por %p148, %p149
      %p151 = scmp.ne.s32.totalorder %s142, %s143
      %p152 = scmp.eq.s32.totalorder %s22, 0
      %p153 = por %p151, %p152
      %p154 = scmp.ne.s32.totalorder %s142, %s143
      %p155 = scmp.eq.s32.totalorder %s23, 1
      %p156 = por %p154, %p155
      %p158 = scmp.ne.s32.totalorder %s143, %s157
      %p159 = scmp.eq.s32.totalorder %s23, 0
      %p160 = por %p158, %p159
      %s162 = sadd.s32 %s161, 1
      %p165 = scmp.eq.s32.totalorder %s17, 1
      %p166 = scmp.ne.s32.totalorder %s161, %s163
      %p167 = scmp.eq.s32.totalorder %s17, 0
      %p168 = por %p166, %p167
      %p169 = scmp.ne.s32.totalorder %s161, %s163
      %p170 = scmp.eq.s32.totalorder %s22, 1
      %p171 = por %p169, %p170
      %p172 = scmp.ne.s32.totalorder %s163, %s164
      %p173 = scmp.eq.s32.totalorder %s22, 0
      %p174 = por %p172, %p173
      %p175 = scmp.ne.s32.totalorder %s163, %s164
      %p176 = scmp.eq.s32.totalorder %s23, 1
      %p177 = por %p175, %p176
      %p179 = scmp.ne.s32.totalorder %s164, %s178
      %p180 = scmp.eq.s32.totalorder %s23, 0
      %p181 = por %p179, %p180
      %s183 = sadd.s32 %s182, 1
      %p186 = scmp.eq.s32.totalorder %s17, 1
      %p187 = scmp.ne.s32.totalorder %s182, %s184
      %p188 = scmp.eq.s32.totalorder %s17, 0
      %p189 = por %p187, %p188
      %p190 = scmp.ne.s32.totalorder %s182, %s184
      %p191 = scmp.eq.s32.totalorder %s22, 1
      %p192 = por %p190, %p191
      %p193 = scmp.ne.s32.totalorder %s184, %s185
      %p194 = scmp.eq.s32.totalorder %s22, 0
      %p195 = por %p193, %p194
      %p196 = scmp.ne.s32.totalorder %s184, %s185
      %p197 = scmp.eq.s32.totalorder %s23, 1
      %p198 = por %p196, %p197
      %p200 = scmp.ne.s32.totalorder %s185, %s199
      %p201 = scmp.eq.s32.totalorder %s23, 0
      %p202 = por %p200, %p201
      %s203 = ssub.s32 %s17, %s24
      %p204 = scmp.eq.s32.totalorder %s203, 0
      %s206 = sadd.s32 %s205, 1
      %s207 = scalar_select %p204, %s205, %s206
      %p210 = pneg %p204
      %p211 = scmp.eq.s32.totalorder %s17, 1
      %p212 = por %p210, %p211
      %p213 = scmp.ne.s32.totalorder %s205, %s208
      %p214 = scmp.eq.s32.totalorder %s17, 0
      %p215 = por %p213, %p214
      %p216 = scmp.ne.s32.totalorder %s205, %s208
      %p217 = scmp.eq.s32.totalorder %s22, 1
      %p218 = por %p216, %p217
      %p219 = scmp.ne.s32.totalorder %s208, %s209
      %p220 = scmp.eq.s32.totalorder %s22, 0
      %p221 = por %p219, %p220
      %p222 = scmp.ne.s32.totalorder %s208, %s209
      %p223 = scmp.eq.s32.totalorder %s23, 1
      %p224 = por %p222, %p223
      %p226 = scmp.ne.s32.totalorder %s209, %s225
      %p227 = scmp.eq.s32.totalorder %s23, 0
      %p228 = por %p226, %p227
      %p229 = scmp.le.s32.totalorder 1, %s17
      %p230 = scmp.lt.s32.totalorder %s17, 3
      %p231 = pnand %p229, %p230
      %p232 = pneg %p231
      // Predicated region
      $region9: #{resmod_forward.7} parent=5 // pred_check
        _
      $region10: #{resmod_forward.7} parent=5 // pred_check_branch
        %234 = sbr.rel (%p231) target = $region12
      $region11: #{resmod_forward.7} parent=5 // pred_region
        %s235 = ssub.s32 %s17, 1
        // Predicated region
        $region13: #{resmod_forward.7} parent=11 // pred_check
          %p236 = pneg %p90
        $region14: #{resmod_forward.7} parent=11 // pred_check_branch
          %238 = sbr.rel (%p236) target = $region16
        $region15: #{resmod_forward.7} parent=11 // pred_region
          _
        $region16: #{resmod_forward.7} parent=11 // pred_fallthru
          _
        // Predicated region
        $region17: #{resmod_forward.7} parent=11 // pred_check
          %p239 = pneg %p111
        $region18: #{resmod_forward.7} parent=11 // pred_check_branch
          %241 = sbr.rel (%p239) target = $region20
        $region19: #{resmod_forward.7} parent=11 // pred_region
          _
        $region20: #{resmod_forward.7} parent=11 // pred_fallthru
          _
        // Predicated region
        $region21: #{resmod_forward.7} parent=11 // pred_check
          %p242 = pneg %p132
        $region22: #{resmod_forward.7} parent=11 // pred_check_branch
          %244 = sbr.rel (%p242) target = $region24
        $region23: #{resmod_forward.7} parent=11 // pred_region
          _
        $region24: #{resmod_forward.7} parent=11 // pred_fallthru
          _
        // Predicated region
        $region25: #{resmod_forward.7} parent=11 // pred_check
          %p245 = pneg %p153
        $region26: #{resmod_forward.7} parent=11 // pred_check_branch
          %247 = sbr.rel (%p245) target = $region28
        $region27: #{resmod_forward.7} parent=11 // pred_region
          _
        $region28: #{resmod_forward.7} parent=11 // pred_fallthru
          _
        // Predicated region
        $region29: #{resmod_forward.7} parent=11 // pred_check
          %p248 = pneg %p174
        $region30: #{resmod_forward.7} parent=11 // pred_check_branch
          %250 = sbr.rel (%p248) target = $region32
        $region31: #{resmod_forward.7} parent=11 // pred_region
          _
        $region32: #{resmod_forward.7} parent=11 // pred_fallthru
          _
        // Predicated region
        $region33: #{resmod_forward.7} parent=11 // pred_check
          %p251 = pneg %p195
        $region34: #{resmod_forward.7} parent=11 // pred_check_branch
          %253 = sbr.rel (%p251) target = $region36
        $region35: #{resmod_forward.7} parent=11 // pred_region
          _
        $region36: #{resmod_forward.7} parent=11 // pred_fallthru
          _
      $region12: #{resmod_forward.7} parent=5 // pred_fallthru
        _
      %p254 = scmp.lt.s32.totalorder %s17, 2
      // Predicated region
      $region37: #{resmod_forward.7} parent=5 // pred_check
        %p255 = pneg %p254
      $region38: #{resmod_forward.7} parent=5 // pred_check_branch
        %257 = sbr.rel (%p255) target = $region40
      $region39: #{resmod_forward.7} parent=5 // pred_region
        // Predicated region
        $region41: #{resmod_forward.7} parent=39 // pred_check
          %p258 = pneg %p37
        $region42: #{resmod_forward.7} parent=39 // pred_check_branch
          %260 = sbr.rel (%p258) target = $region44
        $region43: #{resmod_forward.7} parent=39 // pred_region
          %p261 = scmp.lt.s32.totalorder %s17, 1
          %s262 = scalar_select %p261, %s17, 1
          %s263 = smul.addr %s262, 8
          %s264 = smul.addr %s263, 8
          %s265 = scalar_lea.vmem %s0, %s264
        $region44: #{resmod_forward.7} parent=39 // pred_fallthru
          _
        // Predicated region
        $region45: #{resmod_forward.7} parent=39 // pred_check
          %p266 = pneg %p63
        $region46: #{resmod_forward.7} parent=39 // pred_check_branch
          %268 = sbr.rel (%p266) target = $region48
        $region47: #{resmod_forward.7} parent=39 // pred_region
          %p269 = scmp.lt.s32.totalorder %s17, 1
          %s270 = scalar_select %p269, %s17, 1
          %s271 = smul.addr %s270, 8
          %s272 = smul.addr %s271, 8
          %s273 = scalar_lea.vmem %s1, %s272
        $region48: #{resmod_forward.7} parent=39 // pred_fallthru
          _
      $region40: #{resmod_forward.7} parent=5 // pred_fallthru
        _
      %p274 = scmp.le.s32.totalorder 1, %s17
      %p275 = scmp.lt.s32.totalorder %s17, 3
      %p276 = pnand %p274, %p275
      %p277 = pneg %p276
      // Predicated region
      $region49: #{resmod_forward.7} parent=5 // pred_check
        _
      $region50: #{resmod_forward.7} parent=5 // pred_check_branch
        %279 = sbr.rel (%p276) target = $region52
      $region51: #{resmod_forward.7} parent=5 // pred_region
        %s280 = ssub.s32 %s17, 1
        %p281 = scmp.lt.s32.totalorder %s22, 1
        %s282 = scalar_select %p281, %s22, 1
        %s283 = smul.addr %s282, 8
        %s284 = smul.addr %s283, 8
        %s285 = scalar_lea.vmem %s0, %s284
        %p286 = pneg %p43
        %p287 = pneg %p40
        %p288 = scmp.lt.s32.totalorder %s22, 1
        %s289 = scalar_select %p288, %s22, 1
        %s290 = smul.addr %s289, 8
        %s291 = smul.addr %s290, 8
        %s292 = scalar_lea.vmem %s1, %s291
        %p293 = pneg %p69
        %p294 = pneg %p66
        %p295 = pneg %p90
        %p296 = pneg %p87
        %p297 = pneg %p111
        %p298 = pneg %p108
        %p299 = pneg %p132
        %p300 = pneg %p129
        %p301 = pneg %p153
        %p302 = pneg %p150
        %p303 = pneg %p174
        %p304 = pneg %p171
        %p305 = pneg %p195
        %p306 = pneg %p192
        %p307 = pneg %p221
        %p308 = pneg %p218
        %s309 = sand.u32 %s208, 1
        %s310 = scalar_lea.sflag [#allocation6], %s309
        %s311 = sand.u32 %s208, 1
        %s312 = smul.addr %s311, 64
        %s313 = scalar_lea.vmem [#allocation5], %s312
        %p314 = scmp.lt.s32.totalorder %s22, 1
        %s315 = scalar_select %p314, %s22, 1
        %s316 = smul.addr %s315, 8
        %s317 = smul.addr %s316, 8
        %s318 = scalar_lea.vmem %s0, %s317
        %p319 = scmp.lt.s32.totalorder %s22, 1
        %s320 = scalar_select %p319, %s22, 1
        %s321 = smul.addr %s320, 8
        %s322 = smul.addr %s321, 8
        %s323 = scalar_lea.vmem %s1, %s322
        %v324 = vld [vmem:[%s318] sm:$0xff]
        %v325 = vld [vmem:[%s318 + $0x8] sm:$0xff]
        %v326 = vld [vmem:[%s318 + $0x10] sm:$0xff]
        %v327 = vld [vmem:[%s318 + $0x18] sm:$0xff]
        %v328 = vld [vmem:[%s318 + $0x20] sm:$0xff]
        %v329 = vld [vmem:[%s318 + $0x28] sm:$0xff]
        %v330 = vld [vmem:[%s318 + $0x30] sm:$0xff]
        %v331 = vld [vmem:[%s318 + $0x38] sm:$0xff]
        %v332 = vld [vmem:[%s323] sm:$0xff]
        %v333 = vld [vmem:[%s323 + $0x8] sm:$0xff]
        %v334 = vld [vmem:[%s323 + $0x10] sm:$0xff]
        %v335 = vld [vmem:[%s323 + $0x18] sm:$0xff]
        %v336 = vld [vmem:[%s323 + $0x20] sm:$0xff]
        %v337 = vld [vmem:[%s323 + $0x28] sm:$0xff]
        %v338 = vld [vmem:[%s323 + $0x30] sm:$0xff]
        %v339 = vld [vmem:[%s323 + $0x38] sm:$0xff]
        %v340 = vld [vmem:[%s2] sm:$0xff]
        %v341 = vld [vmem:[%s3] sm:$0x1]
        %v343 = vperm.slane %v341, 0
        %vm345 = vcmask 64512
        %v347 = vsel %vm345, %v324, 0
        %v350 = vsel %vm345, %v325, 0
        %v353 = vsel %vm345, %v326, 0
        %v356 = vsel %vm345, %v327, 0
        %v359 = vsel %vm345, %v328, 0
        %v362 = vsel %vm345, %v329, 0
        %v365 = vsel %vm345, %v330, 0
        %v368 = vsel %vm345, %v331, 0
        %370 = vmatpush.msra.mxu0 0.0
        %371 = vmatpush.msra.mxu0 0.0
        %372 = vmatpush.msra.mxu0 0.0
        %373 = vmatpush.msra.mxu0 0.0
        %374 = vmatpush.msra.mxu0 0.0
        %375 = vmatpush.msra.mxu0 0.0
        %376 = vmatpush.msra.mxu0 0.0
        %377 = vmatpush.msra.mxu0 0.0
        %378 = vmatpush.msra.mxu0 0.0
        %379 = vmatpush.msra.mxu0 0.0
        %380 = vmatpush.msra.mxu0 0.0
        %381 = vmatpush.msra.mxu0 0.0
        %382 = vmatpush.msra.mxu0 0.0
        %383 = vmatpush.msra.mxu0 0.0
        %384 = vmatpush.msra.mxu0 0.0
        %385 = vmatpush.msra.mxu0 %v340
        %386 = vmatmul.f32.gmra.mxu0 %v347
        %v387 = vpop.f32.mrf.mxu0
        %v388 = vadd.f32 %v343, %v387
        %389 = vmatmul.f32.gmra.mxu0 %v350
        %v390 = vpop.f32.mrf.mxu0
        %v391 = vadd.f32 %v343, %v390
        %392 = vmatmul.f32.gmra.mxu0 %v353
        %v393 = vpop.f32.mrf.mxu0
        %v394 = vadd.f32 %v343, %v393
        %395 = vmatmul.f32.gmra.mxu0 %v356
        %v396 = vpop.f32.mrf.mxu0
        %v397 = vadd.f32 %v343, %v396
        %398 = vmatmul.f32.gmra.mxu0 %v359
        %v399 = vpop.f32.mrf.mxu0
        %v400 = vadd.f32 %v343, %v399
        %401 = vmatmul.f32.gmra.mxu0 %v362
        %v402 = vpop.f32.mrf.mxu0
        %v403 = vadd.f32 %v343, %v402
        %404 = vmatmul.f32.gmra.mxu0 %v365
        %v405 = vpop.f32.mrf.mxu0
        %v406 = vadd.f32 %v343, %v405
        %407 = vmatmul.f32.gmra.mxu0 %v368
        %v408 = vpop.f32.mrf.mxu0
        %v409 = vadd.f32 %v343, %v408
        %410 = vdwg.mxu0
        %v411 = vmax.f32 %v388, 0.0
        %v412 = vmax.f32 %v391, 0.0
        %v413 = vmax.f32 %v394, 0.0
        %v414 = vmax.f32 %v397, 0.0
        %v415 = vmax.f32 %v400, 0.0
        %v416 = vmax.f32 %v403, 0.0
        %v417 = vmax.f32 %v406, 0.0
        %v418 = vmax.f32 %v409, 0.0
        %vm419 = vcmask 31744
        %420 = vst.msk [vmem:[#allocation2] sm:$0xff] %vm419, 0.0
        %vm421 = vcmask 25600
        %422 = vst.msk [vmem:[#allocation2 + $0x8] sm:$0x3] %vm421, 0.0
        %423 = vst.msk [vmem:[#allocation2 + $0x10] sm:$0xff] %vm419, 0.0
        %424 = vst.msk [vmem:[#allocation2 + $0x18] sm:$0x3] %vm421, 0.0
        %425 = vst.msk [vmem:[#allocation2 + $0x20] sm:$0xff] %vm419, 0.0
        %426 = vst.msk [vmem:[#allocation2 + $0x28] sm:$0x3] %vm421, 0.0
        %427 = vst.msk [vmem:[#allocation2 + $0x30] sm:$0xff] %vm419, 0.0
        %428 = vst.msk [vmem:[#allocation2 + $0x38] sm:$0x3] %vm421, 0.0
        %429 = vst.msk [vmem:[#allocation2 + $0x40] sm:$0xff] %vm419, 0.0
        %430 = vst.msk [vmem:[#allocation2 + $0x48] sm:$0x3] %vm421, 0.0
        %431 = vst.msk [vmem:[#allocation2 + $0x50] sm:$0xff] %vm419, 0.0
        %432 = vst.msk [vmem:[#allocation2 + $0x58] sm:$0x3] %vm421, 0.0
        %433 = vst.msk [vmem:[#allocation2 + $0x60] sm:$0xff] %vm419, 0.0
        %434 = vst.msk [vmem:[#allocation2 + $0x68] sm:$0x3] %vm421, 0.0
        %435 = vst.msk [vmem:[#allocation2 + $0x70] sm:$0xff] %vm419, 0.0
        %436 = vst.msk [vmem:[#allocation2 + $0x78] sm:$0x3] %vm421, 0.0
        %437 = vst.msk [vmem:[#allocation2 + $0x80] sm:$0xff] %vm419, 0.0
        %438 = vst.msk [vmem:[#allocation2 + $0x88] sm:$0x3] %vm421, 0.0
        %439 = vst.msk [vmem:[#allocation2 + $0x90] sm:$0xff] %vm419, 0.0
        %440 = vst.msk [vmem:[#allocation2 + $0x98] sm:$0x3] %vm421, 0.0
        %vm441 = vcmask 7168
        %442 = vst.msk [vmem:[#allocation3] sm:$0xff] %vm441, 0.0
        %vm443 = vcmask 1024
        %444 = vst.msk [vmem:[#allocation3 + $0x8] sm:$0x3] %vm443, 0.0
        %445 = vst.msk [vmem:[#allocation3 + $0x10] sm:$0xff] %vm441, 0.0
        %446 = vst.msk [vmem:[#allocation3 + $0x18] sm:$0x3] %vm443, 0.0
        %447 = vst.msk [vmem:[#allocation3 + $0x20] sm:$0xff] %vm441, 0.0
        %448 = vst.msk [vmem:[#allocation3 + $0x28] sm:$0x3] %vm443, 0.0
        %449 = vst.msk [vmem:[#allocation3 + $0x30] sm:$0xff] %vm441, 0.0
        %450 = vst.msk [vmem:[#allocation3 + $0x38] sm:$0x3] %vm443, 0.0
        %451 = vst.msk [vmem:[#allocation3 + $0x40] sm:$0xff] %vm441, 0.0
        %452 = vst.msk [vmem:[#allocation3 + $0x48] sm:$0x3] %vm443, 0.0
        %453 = vst.msk [vmem:[#allocation3 + $0x50] sm:$0xff] %vm441, 0.0
        %454 = vst.msk [vmem:[#allocation3 + $0x58] sm:$0x3] %vm443, 0.0
        %455 = vst.msk [vmem:[#allocation3 + $0x60] sm:$0xff] %vm441, 0.0
        %456 = vst.msk [vmem:[#allocation3 + $0x68] sm:$0x3] %vm443, 0.0
        %457 = vst.msk [vmem:[#allocation3 + $0x70] sm:$0xff] %vm441, 0.0
        %458 = vst.msk [vmem:[#allocation3 + $0x78] sm:$0x3] %vm443, 0.0
        %459 = vst.msk [vmem:[#allocation3 + $0x80] sm:$0xff] %vm441, 0.0
        %460 = vst.msk [vmem:[#allocation3 + $0x88] sm:$0x3] %vm443, 0.0
        %461 = vst.msk [vmem:[#allocation3 + $0x90] sm:$0xff] %vm441, 0.0
        %462 = vst.msk [vmem:[#allocation3 + $0x98] sm:$0x3] %vm443, 0.0
        %464 = vset.pattern.permute.xlu0 0
        %465 = vperm.xlu0 %464, %v332
        %v466 = vpop.permute.xlu0 %465
        %469 = vset.pattern.permute.xlu0 0
        %470 = vperm.xlu0 %469, %v333
        %v471 = vpop.permute.xlu0 %470
        %474 = vset.pattern.permute.xlu0 0
        %475 = vperm.xlu0 %474, %v334
        %v476 = vpop.permute.xlu0 %475
        %479 = vset.pattern.permute.xlu0 0
        %480 = vperm.xlu0 %479, %v335
        %v481 = vpop.permute.xlu0 %480
        %484 = vset.pattern.permute.xlu0 0
        %485 = vperm.xlu0 %484, %v336
        %v486 = vpop.permute.xlu0 %485
        %489 = vset.pattern.permute.xlu0 0
        %490 = vperm.xlu0 %489, %v337
        %v491 = vpop.permute.xlu0 %490
        %494 = vset.pattern.permute.xlu0 0
        %495 = vperm.xlu0 %494, %v338
        %v496 = vpop.permute.xlu0 %495
        %499 = vset.pattern.permute.xlu0 0
        %500 = vperm.xlu0 %499, %v339
        %v501 = vpop.permute.xlu0 %500
        %v503 = vmul.f32 %v411, %v466
        %v504 = vmul.f32 %v412, %v471
        %v505 = vmul.f32 %v413, %v476
        %v506 = vmul.f32 %v414, %v481
        %v507 = vmul.f32 %v415, %v486
        %v508 = vmul.f32 %v416, %v491
        %v509 = vmul.f32 %v417, %v496
        %v510 = vmul.f32 %v418, %v501
        %s511 = scalar_lea.vmem [#allocation2], 16
        %512 = vst.msk [vmem:[%s511 + $0x1] sm:$0xff] %vm419, %v503
        %513 = vst.msk [vmem:[%s511 + $0x11] sm:$0xff] %vm419, %v504
        %514 = vst.msk [vmem:[%s511 + $0x21] sm:$0xff] %vm419, %v505
        %515 = vst.msk [vmem:[%s511 + $0x31] sm:$0xff] %vm419, %v506
        %516 = vst.msk [vmem:[%s511 + $0x41] sm:$0xff] %vm419, %v507
        %517 = vst.msk [vmem:[%s511 + $0x51] sm:$0xff] %vm419, %v508
        %518 = vst.msk [vmem:[%s511 + $0x61] sm:$0xff] %vm419, %v509
        %519 = vst.msk [vmem:[%s511 + $0x71] sm:$0xff] %vm419, %v510
        %s520 = scalar_lea.vmem [#allocation3], 16
        %521 = vst.msk [vmem:[%s520 + $0x1] sm:$0xff] %vm441, %v332
        %522 = vst.msk [vmem:[%s520 + $0x11] sm:$0xff] %vm441, %v333
        %523 = vst.msk [vmem:[%s520 + $0x21] sm:$0xff] %vm441, %v334
        %524 = vst.msk [vmem:[%s520 + $0x31] sm:$0xff] %vm441, %v335
        %525 = vst.msk [vmem:[%s520 + $0x41] sm:$0xff] %vm441, %v336
        %526 = vst.msk [vmem:[%s520 + $0x51] sm:$0xff] %vm441, %v337
        %527 = vst.msk [vmem:[%s520 + $0x61] sm:$0xff] %vm441, %v338
        %528 = vst.msk [vmem:[%s520 + $0x71] sm:$0xff] %vm441, %v339
        %v529 = vld [vmem:[#allocation2] sm:$0xff]
        %v530 = vld [vmem:[#allocation2 + $0x10] sm:$0xff]
        %v531 = vld [vmem:[#allocation2 + $0x20] sm:$0xff]
        %v532 = vld [vmem:[#allocation2 + $0x30] sm:$0xff]
        %v533 = vld [vmem:[#allocation2 + $0x40] sm:$0xff]
        %v534 = vld [vmem:[#allocation2 + $0x50] sm:$0xff]
        %v535 = vld [vmem:[#allocation2 + $0x60] sm:$0xff]
        %v536 = vld [vmem:[#allocation2 + $0x70] sm:$0xff]
        %537 = vst.msk [vmem:[#allocation4] sm:$0xff] %vm419, %v529
        %538 = vst.msk [vmem:[#allocation4 + $0x8] sm:$0xff] %vm419, %v530
        %539 = vst.msk [vmem:[#allocation4 + $0x10] sm:$0xff] %vm419, %v531
        %540 = vst.msk [vmem:[#allocation4 + $0x18] sm:$0xff] %vm419, %v532
        %541 = vst.msk [vmem:[#allocation4 + $0x20] sm:$0xff] %vm419, %v533
        %542 = vst.msk [vmem:[#allocation4 + $0x28] sm:$0xff] %vm419, %v534
        %543 = vst.msk [vmem:[#allocation4 + $0x30] sm:$0xff] %vm419, %v535
        %544 = vst.msk [vmem:[#allocation4 + $0x38] sm:$0xff] %vm419, %v536
        %v545 = vld [vmem:[#allocation3] sm:$0xff]
        %v546 = vld [vmem:[#allocation3 + $0x10] sm:$0xff]
        %v547 = vld [vmem:[#allocation3 + $0x20] sm:$0xff]
        %v548 = vld [vmem:[#allocation3 + $0x30] sm:$0xff]
        %v549 = vld [vmem:[#allocation3 + $0x40] sm:$0xff]
        %v550 = vld [vmem:[#allocation3 + $0x50] sm:$0xff]
        %v551 = vld [vmem:[#allocation3 + $0x60] sm:$0xff]
        %v552 = vld [vmem:[#allocation3 + $0x70] sm:$0xff]
        %v553 = vadd.f32 %v545, 0.0
        %v554 = vadd.f32 %v546, 0.0
        %v555 = vadd.f32 %v547, 0.0
        %v556 = vadd.f32 %v548, 0.0
        %v557 = vadd.f32 %v549, 0.0
        %v558 = vadd.f32 %v550, 0.0
        %v559 = vadd.f32 %v551, 0.0
        %v560 = vadd.f32 %v552, 0.0
        %v561 = vld [vmem:[#allocation2 + $0x1] sm:$0xff]
        %v562 = vld [vmem:[#allocation2 + $0x11] sm:$0xff]
        %v563 = vld [vmem:[#allocation2 + $0x21] sm:$0xff]
        %v564 = vld [vmem:[#allocation2 + $0x31] sm:$0xff]
        %v565 = vld [vmem:[#allocation2 + $0x41] sm:$0xff]
        %v566 = vld [vmem:[#allocation2 + $0x51] sm:$0xff]
        %v567 = vld [vmem:[#allocation2 + $0x61] sm:$0xff]
        %v568 = vld [vmem:[#allocation2 + $0x71] sm:$0xff]
        %577 = vrot.lane.b32.xlu0 %v561, 4
        %v578 = vpop.permute.xlu0 %577
        %579 = vrot.lane.b32.xlu0 %v562, 4
        %v580 = vpop.permute.xlu0 %579
        %581 = vrot.lane.b32.xlu0 %v563, 4
        %v582 = vpop.permute.xlu0 %581
        %583 = vrot.lane.b32.xlu0 %v564, 4
        %v584 = vpop.permute.xlu0 %583
        %585 = vrot.lane.b32.xlu0 %v565, 4
        %v586 = vpop.permute.xlu0 %585
        %587 = vrot.lane.b32.xlu0 %v566, 4
        %v588 = vpop.permute.xlu0 %587
        %589 = vrot.lane.b32.xlu0 %v567, 4
        %v590 = vpop.permute.xlu0 %589
        %591 = vrot.lane.b32.xlu0 %v568, 4
        %v592 = vpop.permute.xlu0 %591
        %vm601 = vcmask 64544
        %602 = vst.msk [vmem:[#allocation4] sm:$0xff] %vm601, %v578
        %603 = vst.msk [vmem:[#allocation4 + $0x8] sm:$0xff] %vm601, %v580
        %604 = vst.msk [vmem:[#allocation4 + $0x10] sm:$0xff] %vm601, %v582
        %605 = vst.msk [vmem:[#allocation4 + $0x18] sm:$0xff] %vm601, %v584
        %606 = vst.msk [vmem:[#allocation4 + $0x20] sm:$0xff] %vm601, %v586
        %607 = vst.msk [vmem:[#allocation4 + $0x28] sm:$0xff] %vm601, %v588
        %608 = vst.msk [vmem:[#allocation4 + $0x30] sm:$0xff] %vm601, %v590
        %609 = vst.msk [vmem:[#allocation4 + $0x38] sm:$0xff] %vm601, %v592
        %v610 = vld [vmem:[#allocation3 + $0x1] sm:$0xff]
        %v611 = vld [vmem:[#allocation3 + $0x11] sm:$0xff]
        %v612 = vld [vmem:[#allocation3 + $0x21] sm:$0xff]
        %v613 = vld [vmem:[#allocation3 + $0x31] sm:$0xff]
        %v614 = vld [vmem:[#allocation3 + $0x41] sm:$0xff]
        %v615 = vld [vmem:[#allocation3 + $0x51] sm:$0xff]
        %v616 = vld [vmem:[#allocation3 + $0x61] sm:$0xff]
        %v617 = vld [vmem:[#allocation3 + $0x71] sm:$0xff]
        %v618 = vadd.f32 %v553, %v610
        %v619 = vadd.f32 %v554, %v611
        %v620 = vadd.f32 %v555, %v612
        %v621 = vadd.f32 %v556, %v613
        %v622 = vadd.f32 %v557, %v614
        %v623 = vadd.f32 %v558, %v615
        %v624 = vadd.f32 %v559, %v616
        %v625 = vadd.f32 %v560, %v617
        %v626 = vld [vmem:[#allocation2 + $0x2] sm:$0xff]
        %v627 = vld [vmem:[#allocation2 + $0x12] sm:$0xff]
        %v628 = vld [vmem:[#allocation2 + $0x22] sm:$0xff]
        %v629 = vld [vmem:[#allocation2 + $0x32] sm:$0xff]
        %v630 = vld [vmem:[#allocation2 + $0x42] sm:$0xff]
        %v631 = vld [vmem:[#allocation2 + $0x52] sm:$0xff]
        %v632 = vld [vmem:[#allocation2 + $0x62] sm:$0xff]
        %v633 = vld [vmem:[#allocation2 + $0x72] sm:$0xff]
        %642 = vrot.lane.b32.xlu0 %v626, 8
        %v643 = vpop.permute.xlu0 %642
        %644 = vrot.lane.b32.xlu0 %v627, 8
        %v645 = vpop.permute.xlu0 %644
        %646 = vrot.lane.b32.xlu0 %v628, 8
        %v647 = vpop.permute.xlu0 %646
        %648 = vrot.lane.b32.xlu0 %v629, 8
        %v649 = vpop.permute.xlu0 %648
        %650 = vrot.lane.b32.xlu0 %v630, 8
        %v651 = vpop.permute.xlu0 %650
        %652 = vrot.lane.b32.xlu0 %v631, 8
        %v653 = vpop.permute.xlu0 %652
        %654 = vrot.lane.b32.xlu0 %v632, 8
        %v655 = vpop.permute.xlu0 %654
        %656 = vrot.lane.b32.xlu0 %v633, 8
        %v657 = vpop.permute.xlu0 %656
        %vm666 = vcmask 97344
        %667 = vst.msk [vmem:[#allocation4] sm:$0xff] %vm666, %v643
        %668 = vst.msk [vmem:[#allocation4 + $0x8] sm:$0xff] %vm666, %v645
        %669 = vst.msk [vmem:[#allocation4 + $0x10] sm:$0xff] %vm666, %v647
        %670 = vst.msk [vmem:[#allocation4 + $0x18] sm:$0xff] %vm666, %v649
        %671 = vst.msk [vmem:[#allocation4 + $0x20] sm:$0xff] %vm666, %v651
        %672 = vst.msk [vmem:[#allocation4 + $0x28] sm:$0xff] %vm666, %v653
        %673 = vst.msk [vmem:[#allocation4 + $0x30] sm:$0xff] %vm666, %v655
        %674 = vst.msk [vmem:[#allocation4 + $0x38] sm:$0xff] %vm666, %v657
        %v675 = vld [vmem:[#allocation3 + $0x2] sm:$0xff]
        %v676 = vld [vmem:[#allocation3 + $0x12] sm:$0xff]
        %v677 = vld [vmem:[#allocation3 + $0x22] sm:$0xff]
        %v678 = vld [vmem:[#allocation3 + $0x32] sm:$0xff]
        %v679 = vld [vmem:[#allocation3 + $0x42] sm:$0xff]
        %v680 = vld [vmem:[#allocation3 + $0x52] sm:$0xff]
        %v681 = vld [vmem:[#allocation3 + $0x62] sm:$0xff]
        %v682 = vld [vmem:[#allocation3 + $0x72] sm:$0xff]
        %v683 = vadd.f32 %v618, %v675
        %v684 = vadd.f32 %v619, %v676
        %v685 = vadd.f32 %v620, %v677
        %v686 = vadd.f32 %v621, %v678
        %v687 = vadd.f32 %v622, %v679
        %v688 = vadd.f32 %v623, %v680
        %v689 = vadd.f32 %v624, %v681
        %v690 = vadd.f32 %v625, %v682
        %v691 = vld [vmem:[%s511] sm:$0xff]
        %v692 = vld [vmem:[%s511 + $0x10] sm:$0xff]
        %v693 = vld [vmem:[%s511 + $0x20] sm:$0xff]
        %v694 = vld [vmem:[%s511 + $0x30] sm:$0xff]
        %v695 = vld [vmem:[%s511 + $0x40] sm:$0xff]
        %v696 = vld [vmem:[%s511 + $0x50] sm:$0xff]
        %v697 = vld [vmem:[%s511 + $0x60] sm:$0xff]
        %v698 = vld [vmem:[%s511 + $0x70] sm:$0xff]
        %707 = vrot.lane.b32.xlu0 %v691, 12
        %v708 = vpop.permute.xlu0 %707
        %709 = vrot.lane.b32.xlu0 %v692, 12
        %v710 = vpop.permute.xlu0 %709
        %711 = vrot.lane.b32.xlu0 %v693, 12
        %v712 = vpop.permute.xlu0 %711
        %713 = vrot.lane.b32.xlu0 %v694, 12
        %v714 = vpop.permute.xlu0 %713
        %715 = vrot.lane.b32.xlu0 %v695, 12
        %v716 = vpop.permute.xlu0 %715
        %717 = vrot.lane.b32.xlu0 %v696, 12
        %v718 = vpop.permute.xlu0 %717
        %719 = vrot.lane.b32.xlu0 %v697, 12
        %v720 = vpop.permute.xlu0 %719
        %721 = vrot.lane.b32.xlu0 %v698, 12
        %v722 = vpop.permute.xlu0 %721
        %vm731 = vcmask 130144
        %732 = vst.msk [vmem:[#allocation4] sm:$0xff] %vm731, %v708
        %733 = vst.msk [vmem:[#allocation4 + $0x8] sm:$0xff] %vm731, %v710
        %734 = vst.msk [vmem:[#allocation4 + $0x10] sm:$0xff] %vm731, %v712
        %735 = vst.msk [vmem:[#allocation4 + $0x18] sm:$0xff] %vm731, %v714
        %736 = vst.msk [vmem:[#allocation4 + $0x20] sm:$0xff] %vm731, %v716
        %737 = vst.msk [vmem:[#allocation4 + $0x28] sm:$0xff] %vm731, %v718
        %738 = vst.msk [vmem:[#allocation4 + $0x30] sm:$0xff] %vm731, %v720
        %739 = vst.msk [vmem:[#allocation4 + $0x38] sm:$0xff] %vm731, %v722
        %v740 = vld [vmem:[%s520] sm:$0xff]
        %v741 = vld [vmem:[%s520 + $0x10] sm:$0xff]
        %v742 = vld [vmem:[%s520 + $0x20] sm:$0xff]
        %v743 = vld [vmem:[%s520 + $0x30] sm:$0xff]
        %v744 = vld [vmem:[%s520 + $0x40] sm:$0xff]
        %v745 = vld [vmem:[%s520 + $0x50] sm:$0xff]
        %v746 = vld [vmem:[%s520 + $0x60] sm:$0xff]
        %v747 = vld [vmem:[%s520 + $0x70] sm:$0xff]
        %v748 = vadd.f32 %v683, %v740
        %v749 = vadd.f32 %v684, %v741
        %v750 = vadd.f32 %v685, %v742
        %v751 = vadd.f32 %v686, %v743
        %v752 = vadd.f32 %v687, %v744
        %v753 = vadd.f32 %v688, %v745
        %v754 = vadd.f32 %v689, %v746
        %v755 = vadd.f32 %v690, %v747
        %v756 = vld [vmem:[%s511 + $0x1] sm:$0xff]
        %v757 = vld [vmem:[%s511 + $0x11] sm:$0xff]
        %v758 = vld [vmem:[%s511 + $0x21] sm:$0xff]
        %v759 = vld [vmem:[%s511 + $0x31] sm:$0xff]
        %v760 = vld [vmem:[%s511 + $0x41] sm:$0xff]
        %v761 = vld [vmem:[%s511 + $0x51] sm:$0xff]
        %v762 = vld [vmem:[%s511 + $0x61] sm:$0xff]
        %v763 = vld [vmem:[%s511 + $0x71] sm:$0xff]
        %772 = vrot.lane.b32.xlu0 %v756, 16
        %v773 = vpop.permute.xlu0 %772
        %774 = vrot.lane.b32.xlu0 %v757, 16
        %v775 = vpop.permute.xlu0 %774
        %776 = vrot.lane.b32.xlu0 %v758, 16
        %v777 = vpop.permute.xlu0 %776
        %778 = vrot.lane.b32.xlu0 %v759, 16
        %v779 = vpop.permute.xlu0 %778
        %780 = vrot.lane.b32.xlu0 %v760, 16
        %v781 = vpop.permute.xlu0 %780
        %782 = vrot.lane.b32.xlu0 %v761, 16
        %v783 = vpop.permute.xlu0 %782
        %784 = vrot.lane.b32.xlu0 %v762, 16
        %v785 = vpop.permute.xlu0 %784
        %786 = vrot.lane.b32.xlu0 %v763, 16
        %v787 = vpop.permute.xlu0 %786
        %vm796 = vcmask 162944
        %797 = vst.msk [vmem:[#allocation4] sm:$0xff] %vm796, %v773
        %798 = vst.msk [vmem:[#allocation4 + $0x8] sm:$0xff] %vm796, %v775
        %799 = vst.msk [vmem:[#allocation4 + $0x10] sm:$0xff] %vm796, %v777
        %800 = vst.msk [vmem:[#allocation4 + $0x18] sm:$0xff] %vm796, %v779
        %801 = vst.msk [vmem:[#allocation4 + $0x20] sm:$0xff] %vm796, %v781
        %802 = vst.msk [vmem:[#allocation4 + $0x28] sm:$0xff] %vm796, %v783
        %803 = vst.msk [vmem:[#allocation4 + $0x30] sm:$0xff] %vm796, %v785
        %804 = vst.msk [vmem:[#allocation4 + $0x38] sm:$0xff] %vm796, %v787
        %v805 = vld [vmem:[%s520 + $0x1] sm:$0xff]
        %v806 = vld [vmem:[%s520 + $0x11] sm:$0xff]
        %v807 = vld [vmem:[%s520 + $0x21] sm:$0xff]
        %v808 = vld [vmem:[%s520 + $0x31] sm:$0xff]
        %v809 = vld [vmem:[%s520 + $0x41] sm:$0xff]
        %v810 = vld [vmem:[%s520 + $0x51] sm:$0xff]
        %v811 = vld [vmem:[%s520 + $0x61] sm:$0xff]
        %v812 = vld [vmem:[%s520 + $0x71] sm:$0xff]
        %v813 = vadd.f32 %v748, %v805
        %v814 = vadd.f32 %v749, %v806
        %v815 = vadd.f32 %v750, %v807
        %v816 = vadd.f32 %v751, %v808
        %v817 = vadd.f32 %v752, %v809
        %v818 = vadd.f32 %v753, %v810
        %v819 = vadd.f32 %v754, %v811
        %v820 = vadd.f32 %v755, %v812
        %v821 = vld [vmem:[%s511 + $0x2] sm:$0xff]
        %v822 = vld [vmem:[%s511 + $0x12] sm:$0xff]
        %v823 = vld [vmem:[%s511 + $0x22] sm:$0xff]
        %v824 = vld [vmem:[%s511 + $0x32] sm:$0xff]
        %v825 = vld [vmem:[%s511 + $0x42] sm:$0xff]
        %v826 = vld [vmem:[%s511 + $0x52] sm:$0xff]
        %v827 = vld [vmem:[%s511 + $0x62] sm:$0xff]
        %v828 = vld [vmem:[%s511 + $0x72] sm:$0xff]
        %837 = vrot.lane.b32.xlu0 %v821, 20
        %v838 = vpop.permute.xlu0 %837
        %839 = vrot.lane.b32.xlu0 %v822, 20
        %v840 = vpop.permute.xlu0 %839
        %841 = vrot.lane.b32.xlu0 %v823, 20
        %v842 = vpop.permute.xlu0 %841
        %843 = vrot.lane.b32.xlu0 %v824, 20
        %v844 = vpop.permute.xlu0 %843
        %845 = vrot.lane.b32.xlu0 %v825, 20
        %v846 = vpop.permute.xlu0 %845
        %847 = vrot.lane.b32.xlu0 %v826, 20
        %v848 = vpop.permute.xlu0 %847
        %849 = vrot.lane.b32.xlu0 %v827, 20
        %v850 = vpop.permute.xlu0 %849
        %851 = vrot.lane.b32.xlu0 %v828, 20
        %v852 = vpop.permute.xlu0 %851
        %vm861 = vcmask 195744
        %862 = vst.msk [vmem:[#allocation4] sm:$0xff] %vm861, %v838
        %863 = vst.msk [vmem:[#allocation4 + $0x8] sm:$0xff] %vm861, %v840
        %864 = vst.msk [vmem:[#allocation4 + $0x10] sm:$0xff] %vm861, %v842
        %865 = vst.msk [vmem:[#allocation4 + $0x18] sm:$0xff] %vm861, %v844
        %866 = vst.msk [vmem:[#allocation4 + $0x20] sm:$0xff] %vm861, %v846
        %867 = vst.msk [vmem:[#allocation4 + $0x28] sm:$0xff] %vm861, %v848
        %868 = vst.msk [vmem:[#allocation4 + $0x30] sm:$0xff] %vm861, %v850
        %869 = vst.msk [vmem:[#allocation4 + $0x38] sm:$0xff] %vm861, %v852
        %v870 = vld [vmem:[%s520 + $0x2] sm:$0xff]
        %v871 = vld [vmem:[%s520 + $0x12] sm:$0xff]
        %v872 = vld [vmem:[%s520 + $0x22] sm:$0xff]
        %v873 = vld [vmem:[%s520 + $0x32] sm:$0xff]
        %v874 = vld [vmem:[%s520 + $0x42] sm:$0xff]
        %v875 = vld [vmem:[%s520 + $0x52] sm:$0xff]
        %v876 = vld [vmem:[%s520 + $0x62] sm:$0xff]
        %v877 = vld [vmem:[%s520 + $0x72] sm:$0xff]
        %v878 = vadd.f32 %v813, %v870
        %v879 = vadd.f32 %v814, %v871
        %v880 = vadd.f32 %v815, %v872
        %v881 = vadd.f32 %v816, %v873
        %v882 = vadd.f32 %v817, %v874
        %v883 = vadd.f32 %v818, %v875
        %v884 = vadd.f32 %v819, %v876
        %v885 = vadd.f32 %v820, %v877
        %s886 = scalar_lea.vmem [#allocation2], 32
        %v887 = vld [vmem:[%s886] sm:$0xff]
        %v888 = vld [vmem:[%s886 + $0x10] sm:$0xff]
        %v889 = vld [vmem:[%s886 + $0x20] sm:$0xff]
        %v890 = vld [vmem:[%s886 + $0x30] sm:$0xff]
        %v891 = vld [vmem:[%s886 + $0x40] sm:$0xff]
        %v892 = vld [vmem:[%s886 + $0x50] sm:$0xff]
        %v893 = vld [vmem:[%s886 + $0x60] sm:$0xff]
        %v894 = vld [vmem:[%s886 + $0x70] sm:$0xff]
        %903 = vrot.lane.b32.xlu0 %v887, 24
        %v904 = vpop.permute.xlu0 %903
        %905 = vrot.lane.b32.xlu0 %v888, 24
        %v906 = vpop.permute.xlu0 %905
        %907 = vrot.lane.b32.xlu0 %v889, 24
        %v908 = vpop.permute.xlu0 %907
        %909 = vrot.lane.b32.xlu0 %v890, 24
        %v910 = vpop.permute.xlu0 %909
        %911 = vrot.lane.b32.xlu0 %v891, 24
        %v912 = vpop.permute.xlu0 %911
        %913 = vrot.lane.b32.xlu0 %v892, 24
        %v914 = vpop.permute.xlu0 %913
        %915 = vrot.lane.b32.xlu0 %v893, 24
        %v916 = vpop.permute.xlu0 %915
        %917 = vrot.lane.b32.xlu0 %v894, 24
        %v918 = vpop.permute.xlu0 %917
        %vm927 = vcmask 228544
        %928 = vst.msk [vmem:[#allocation4] sm:$0xff] %vm927, %v904
        %929 = vst.msk [vmem:[#allocation4 + $0x8] sm:$0xff] %vm927, %v906
        %930 = vst.msk [vmem:[#allocation4 + $0x10] sm:$0xff] %vm927, %v908
        %931 = vst.msk [vmem:[#allocation4 + $0x18] sm:$0xff] %vm927, %v910
        %932 = vst.msk [vmem:[#allocation4 + $0x20] sm:$0xff] %vm927, %v912
        %933 = vst.msk [vmem:[#allocation4 + $0x28] sm:$0xff] %vm927, %v914
        %934 = vst.msk [vmem:[#allocation4 + $0x30] sm:$0xff] %vm927, %v916
        %935 = vst.msk [vmem:[#allocation4 + $0x38] sm:$0xff] %vm927, %v918
        %s936 = scalar_lea.vmem [#allocation3], 32
        %v937 = vld [vmem:[%s936] sm:$0xff]
        %v938 = vld [vmem:[%s936 + $0x10] sm:$0xff]
        %v939 = vld [vmem:[%s936 + $0x20] sm:$0xff]
        %v940 = vld [vmem:[%s936 + $0x30] sm:$0xff]
        %v941 = vld [vmem:[%s936 + $0x40] sm:$0xff]
        %v942 = vld [vmem:[%s936 + $0x50] sm:$0xff]
        %v943 = vld [vmem:[%s936 + $0x60] sm:$0xff]
        %v944 = vld [vmem:[%s936 + $0x70] sm:$0xff]
        %v945 = vadd.f32 %v878, %v937
        %v946 = vadd.f32 %v879, %v938
        %v947 = vadd.f32 %v880, %v939
        %v948 = vadd.f32 %v881, %v940
        %v949 = vadd.f32 %v882, %v941
        %v950 = vadd.f32 %v883, %v942
        %v951 = vadd.f32 %v884, %v943
        %v952 = vadd.f32 %v885, %v944
        %v953 = vld [vmem:[%s886 + $0x1] sm:$0xff]
        %v954 = vld [vmem:[%s886 + $0x11] sm:$0xff]
        %v955 = vld [vmem:[%s886 + $0x21] sm:$0xff]
        %v956 = vld [vmem:[%s886 + $0x31] sm:$0xff]
        %v957 = vld [vmem:[%s886 + $0x41] sm:$0xff]
        %v958 = vld [vmem:[%s886 + $0x51] sm:$0xff]
        %v959 = vld [vmem:[%s886 + $0x61] sm:$0xff]
        %v960 = vld [vmem:[%s886 + $0x71] sm:$0xff]
        %969 = vrot.lane.b32.xlu0 %v953, 28
        %v970 = vpop.permute.xlu0 %969
        %971 = vrot.lane.b32.xlu0 %v954, 28
        %v972 = vpop.permute.xlu0 %971
        %973 = vrot.lane.b32.xlu0 %v955, 28
        %v974 = vpop.permute.xlu0 %973
        %975 = vrot.lane.b32.xlu0 %v956, 28
        %v976 = vpop.permute.xlu0 %975
        %977 = vrot.lane.b32.xlu0 %v957, 28
        %v978 = vpop.permute.xlu0 %977
        %979 = vrot.lane.b32.xlu0 %v958, 28
        %v980 = vpop.permute.xlu0 %979
        %981 = vrot.lane.b32.xlu0 %v959, 28
        %v982 = vpop.permute.xlu0 %981
        %983 = vrot.lane.b32.xlu0 %v960, 28
        %v984 = vpop.permute.xlu0 %983
        %vm993 = vcmask 261344
        %994 = vst.msk [vmem:[#allocation4] sm:$0xff] %vm993, %v970
        %995 = vst.msk [vmem:[#allocation4 + $0x8] sm:$0xff] %vm993, %v972
        %996 = vst.msk [vmem:[#allocation4 + $0x10] sm:$0xff] %vm993, %v974
        %997 = vst.msk [vmem:[#allocation4 + $0x18] sm:$0xff] %vm993, %v976
        %998 = vst.msk [vmem:[#allocation4 + $0x20] sm:$0xff] %vm993, %v978
        %999 = vst.msk [vmem:[#allocation4 + $0x28] sm:$0xff] %vm993, %v980
        %1000 = vst.msk [vmem:[#allocation4 + $0x30] sm:$0xff] %vm993, %v982
        %1001 = vst.msk [vmem:[#allocation4 + $0x38] sm:$0xff] %vm993, %v984
        %v1002 = vld [vmem:[%s936 + $0x1] sm:$0xff]
        %v1003 = vld [vmem:[%s936 + $0x11] sm:$0xff]
        %v1004 = vld [vmem:[%s936 + $0x21] sm:$0xff]
        %v1005 = vld [vmem:[%s936 + $0x31] sm:$0xff]
        %v1006 = vld [vmem:[%s936 + $0x41] sm:$0xff]
        %v1007 = vld [vmem:[%s936 + $0x51] sm:$0xff]
        %v1008 = vld [vmem:[%s936 + $0x61] sm:$0xff]
        %v1009 = vld [vmem:[%s936 + $0x71] sm:$0xff]
        %v1010 = vadd.f32 %v945, %v1002
        %v1011 = vadd.f32 %v946, %v1003
        %v1012 = vadd.f32 %v947, %v1004
        %v1013 = vadd.f32 %v948, %v1005
        %v1014 = vadd.f32 %v949, %v1006
        %v1015 = vadd.f32 %v950, %v1007
        %v1016 = vadd.f32 %v951, %v1008
        %v1017 = vadd.f32 %v952, %v1009
        %v1018 = vld [vmem:[%s886 + $0x2] sm:$0xff]
        %v1019 = vld [vmem:[%s886 + $0x12] sm:$0xff]
        %v1020 = vld [vmem:[%s886 + $0x22] sm:$0xff]
        %v1021 = vld [vmem:[%s886 + $0x32] sm:$0xff]
        %v1022 = vld [vmem:[%s886 + $0x42] sm:$0xff]
        %v1023 = vld [vmem:[%s886 + $0x52] sm:$0xff]
        %v1024 = vld [vmem:[%s886 + $0x62] sm:$0xff]
        %v1025 = vld [vmem:[%s886 + $0x72] sm:$0xff]
        %1034 = vrot.lane.b32.xlu0 %v1018, 32
        %v1035 = vpop.permute.xlu0 %1034
        %1036 = vrot.lane.b32.xlu0 %v1019, 32
        %v1037 = vpop.permute.xlu0 %1036
        %1038 = vrot.lane.b32.xlu0 %v1020, 32
        %v1039 = vpop.permute.xlu0 %1038
        %1040 = vrot.lane.b32.xlu0 %v1021, 32
        %v1041 = vpop.permute.xlu0 %1040
        %1042 = vrot.lane.b32.xlu0 %v1022, 32
        %v1043 = vpop.permute.xlu0 %1042
        %1044 = vrot.lane.b32.xlu0 %v1023, 32
        %v1045 = vpop.permute.xlu0 %1044
        %1046 = vrot.lane.b32.xlu0 %v1024, 32
        %v1047 = vpop.permute.xlu0 %1046
        %1048 = vrot.lane.b32.xlu0 %v1025, 32
        %v1049 = vpop.permute.xlu0 %1048
        %vm1058 = vcmask 294144
        %1059 = vst.msk [vmem:[#allocation4] sm:$0xff] %vm1058, %v1035
        %1060 = vst.msk [vmem:[#allocation4 + $0x8] sm:$0xff] %vm1058, %v1037
        %1061 = vst.msk [vmem:[#allocation4 + $0x10] sm:$0xff] %vm1058, %v1039
        %1062 = vst.msk [vmem:[#allocation4 + $0x18] sm:$0xff] %vm1058, %v1041
        %1063 = vst.msk [vmem:[#allocation4 + $0x20] sm:$0xff] %vm1058, %v1043
        %1064 = vst.msk [vmem:[#allocation4 + $0x28] sm:$0xff] %vm1058, %v1045
        %1065 = vst.msk [vmem:[#allocation4 + $0x30] sm:$0xff] %vm1058, %v1047
        %1066 = vst.msk [vmem:[#allocation4 + $0x38] sm:$0xff] %vm1058, %v1049
        %v1067 = vld [vmem:[%s936 + $0x2] sm:$0xff]
        %v1068 = vld [vmem:[%s936 + $0x12] sm:$0xff]
        %v1069 = vld [vmem:[%s936 + $0x22] sm:$0xff]
        %v1070 = vld [vmem:[%s936 + $0x32] sm:$0xff]
        %v1071 = vld [vmem:[%s936 + $0x42] sm:$0xff]
        %v1072 = vld [vmem:[%s936 + $0x52] sm:$0xff]
        %v1073 = vld [vmem:[%s936 + $0x62] sm:$0xff]
        %v1074 = vld [vmem:[%s936 + $0x72] sm:$0xff]
        %v1075 = vadd.f32 %v1010, %v1067
        %v1076 = vadd.f32 %v1011, %v1068
        %v1077 = vadd.f32 %v1012, %v1069
        %v1078 = vadd.f32 %v1013, %v1070
        %v1079 = vadd.f32 %v1014, %v1071
        %v1080 = vadd.f32 %v1015, %v1072
        %v1081 = vadd.f32 %v1016, %v1073
        %v1082 = vadd.f32 %v1017, %v1074
        %v1083 = vld [vmem:[#allocation4] sm:$0xff]
        %v1084 = vld [vmem:[#allocation4 + $0x8] sm:$0xff]
        %v1085 = vld [vmem:[#allocation4 + $0x10] sm:$0xff]
        %v1086 = vld [vmem:[#allocation4 + $0x18] sm:$0xff]
        %v1087 = vld [vmem:[#allocation4 + $0x20] sm:$0xff]
        %v1088 = vld [vmem:[#allocation4 + $0x28] sm:$0xff]
        %v1089 = vld [vmem:[#allocation4 + $0x30] sm:$0xff]
        %v1090 = vld [vmem:[#allocation4 + $0x38] sm:$0xff]
        %v1091 = vld [vmem:[%s4] sm:$0xff]
        %v1092 = vld [vmem:[%s4 + $0x8] sm:$0xff]
        %v1093 = vld [vmem:[%s4 + $0x10] sm:$0xff]
        %v1094 = vld [vmem:[%s4 + $0x18] sm:$0xff]
        %v1095 = vld [vmem:[%s4 + $0x20] sm:$0xf]
        %vm1096 = vcmask 293888
        %v1098 = vsel %vm1096, %v1083, 0
        %v1101 = vsel %vm1096, %v1084, 0
        %v1104 = vsel %vm1096, %v1085, 0
        %v1107 = vsel %vm1096, %v1086, 0
        %v1110 = vsel %vm1096, %v1087, 0
        %v1113 = vsel %vm1096, %v1088, 0
        %v1116 = vsel %vm1096, %v1089, 0
        %v1119 = vsel %vm1096, %v1090, 0
        %vm1121 = vcmask 1043456
        %v1123 = vsel %vm1121, %v1095, 0
        %1125 = vmatpush.msra.mxu0 0.0
        %1126 = vmatpush.msra.mxu0 0.0
        %1127 = vmatpush.msra.mxu0 0.0
        %1128 = vmatpush.msra.mxu0 0.0
        %1129 = vmatpush.msra.mxu0 0.0
        %1130 = vmatpush.msra.mxu0 0.0
        %1131 = vmatpush.msra.mxu0 0.0
        %1132 = vmatpush.msra.mxu0 0.0
        %1133 = vmatpush.msra.mxu0 0.0
        %1134 = vmatpush.msra.mxu0 0.0
        %1135 = vmatpush.msra.mxu0 0.0
        %1136 = vmatpush.msra.mxu0 %v1123
        %1137 = vmatpush.msra.mxu0 %v1094
        %1138 = vmatpush.msra.mxu0 %v1093
        %1139 = vmatpush.msra.mxu0 %v1092
        %1140 = vmatpush.msra.mxu0 %v1091
        %1141 = vmatmul.f32.gmra.mxu0 %v1098
        %v1142 = vpop.f32.mrf.mxu0
        %v1143 = vadd.f32 0.0, %v1142
        %1144 = vmatmul.f32.gmra.mxu0 %v1101
        %v1145 = vpop.f32.mrf.mxu0
        %v1146 = vadd.f32 0.0, %v1145
        %1147 = vmatmul.f32.gmra.mxu0 %v1104
        %v1148 = vpop.f32.mrf.mxu0
        %v1149 = vadd.f32 0.0, %v1148
        %1150 = vmatmul.f32.gmra.mxu0 %v1107
        %v1151 = vpop.f32.mrf.mxu0
        %v1152 = vadd.f32 0.0, %v1151
        %1153 = vmatmul.f32.gmra.mxu0 %v1110
        %v1154 = vpop.f32.mrf.mxu0
        %v1155 = vadd.f32 0.0, %v1154
        %1156 = vmatmul.f32.gmra.mxu0 %v1113
        %v1157 = vpop.f32.mrf.mxu0
        %v1158 = vadd.f32 0.0, %v1157
        %1159 = vmatmul.f32.gmra.mxu0 %v1116
        %v1160 = vpop.f32.mrf.mxu0
        %v1161 = vadd.f32 0.0, %v1160
        %1162 = vmatmul.f32.gmra.mxu0 %v1119
        %v1163 = vpop.f32.mrf.mxu0
        %v1164 = vadd.f32 0.0, %v1163
        %1165 = vdwg.mxu0
        %v1166 = vmax.f32 %v1075, 1e-05
        %v1167 = vmax.f32 %v1076, 1e-05
        %v1168 = vmax.f32 %v1077, 1e-05
        %v1169 = vmax.f32 %v1078, 1e-05
        %v1170 = vmax.f32 %v1079, 1e-05
        %v1171 = vmax.f32 %v1080, 1e-05
        %v1172 = vmax.f32 %v1081, 1e-05
        %v1173 = vmax.f32 %v1082, 1e-05
        %v1174 = vrcp.pop %v1166
        %v1175 = vrcp.pop %v1167
        %v1176 = vrcp.pop %v1168
        %v1177 = vrcp.pop %v1169
        %v1178 = vrcp.pop %v1170
        %v1179 = vrcp.pop %v1171
        %v1180 = vrcp.pop %v1172
        %v1181 = vrcp.pop %v1173
        %1183 = vset.pattern.permute.xlu0 0
        %1184 = vperm.xlu0 %1183, %v1174
        %v1185 = vpop.permute.xlu0 %1184
        %1188 = vset.pattern.permute.xlu0 0
        %1189 = vperm.xlu0 %1188, %v1175
        %v1190 = vpop.permute.xlu0 %1189
        %1193 = vset.pattern.permute.xlu0 0
        %1194 = vperm.xlu0 %1193, %v1176
        %v1195 = vpop.permute.xlu0 %1194
        %1198 = vset.pattern.permute.xlu0 0
        %1199 = vperm.xlu0 %1198, %v1177
        %v1200 = vpop.permute.xlu0 %1199
        %1203 = vset.pattern.permute.xlu0 0
        %1204 = vperm.xlu0 %1203, %v1178
        %v1205 = vpop.permute.xlu0 %1204
        %1208 = vset.pattern.permute.xlu0 0
        %1209 = vperm.xlu0 %1208, %v1179
        %v1210 = vpop.permute.xlu0 %1209
        %1213 = vset.pattern.permute.xlu0 0
        %1214 = vperm.xlu0 %1213, %v1180
        %v1215 = vpop.permute.xlu0 %1214
        %1218 = vset.pattern.permute.xlu0 0
        %1219 = vperm.xlu0 %1218, %v1181
        %v1220 = vpop.permute.xlu0 %1219
        %v1222 = vmul.f32 %v1143, %v1185
        %v1223 = vmul.f32 %v1146, %v1190
        %v1224 = vmul.f32 %v1149, %v1195
        %v1225 = vmul.f32 %v1152, %v1200
        %v1226 = vmul.f32 %v1155, %v1205
        %v1227 = vmul.f32 %v1158, %v1210
        %v1228 = vmul.f32 %v1161, %v1215
        %v1229 = vmul.f32 %v1164, %v1220
        %v1230 = vld [vmem:[%s5] sm:$0x1]
        %v1232 = vperm.slane %v1230, 0
        %v1234 = vadd.f32 %v1222, %v1232
        %v1235 = vadd.f32 %v1223, %v1232
        %v1236 = vadd.f32 %v1224, %v1232
        %v1237 = vadd.f32 %v1225, %v1232
        %v1238 = vadd.f32 %v1226, %v1232
        %v1239 = vadd.f32 %v1227, %v1232
        %v1240 = vadd.f32 %v1228, %v1232
        %v1241 = vadd.f32 %v1229, %v1232
        %v1242 = vmax.f32 %v1234, 0.0
        %v1243 = vmax.f32 %v1235, 0.0
        %v1244 = vmax.f32 %v1236, 0.0
        %v1245 = vmax.f32 %v1237, 0.0
        %v1246 = vmax.f32 %v1238, 0.0
        %v1247 = vmax.f32 %v1239, 0.0
        %v1248 = vmax.f32 %v1240, 0.0
        %v1249 = vmax.f32 %v1241, 0.0
        %v1250 = vld [vmem:[%s6] sm:$0xf]
        %v1251 = vld [vmem:[%s7] sm:$0x1]
        %v1253 = vperm.slane %v1251, 0
        %v1256 = vsel %vm419, %v1242, 0
        %v1259 = vsel %vm419, %v1243, 0
        %v1262 = vsel %vm419, %v1244, 0
        %v1265 = vsel %vm419, %v1245, 0
        %v1268 = vsel %vm419, %v1246, 0
        %v1271 = vsel %vm419, %v1247, 0
        %v1274 = vsel %vm419, %v1248, 0
        %v1277 = vsel %vm419, %v1249, 0
        %v1280 = vsel %vm1121, %v1250, 0
        %1282 = vmatpush.msra.mxu0 0.0
        %1283 = vmatpush.msra.mxu0 0.0
        %1284 = vmatpush.msra.mxu0 0.0
        %1285 = vmatpush.msra.mxu0 0.0
        %1286 = vmatpush.msra.mxu0 0.0
        %1287 = vmatpush.msra.mxu0 0.0
        %1288 = vmatpush.msra.mxu0 0.0
        %1289 = vmatpush.msra.mxu0 0.0
        %1290 = vmatpush.msra.mxu0 0.0
        %1291 = vmatpush.msra.mxu0 0.0
        %1292 = vmatpush.msra.mxu0 0.0
        %1293 = vmatpush.msra.mxu0 0.0
        %1294 = vmatpush.msra.mxu0 0.0
        %1295 = vmatpush.msra.mxu0 0.0
        %1296 = vmatpush.msra.mxu0 0.0
        %1297 = vmatpush.msra.mxu0 %v1280
        %1298 = vmatmul.f32.gmra.mxu0 %v1256
        %v1299 = vpop.f32.mrf.mxu0
        %v1300 = vadd.f32 %v1253, %v1299
        %1301 = vmatmul.f32.gmra.mxu0 %v1259
        %v1302 = vpop.f32.mrf.mxu0
        %v1303 = vadd.f32 %v1253, %v1302
        %1304 = vmatmul.f32.gmra.mxu0 %v1262
        %v1305 = vpop.f32.mrf.mxu0
        %v1306 = vadd.f32 %v1253, %v1305
        %1307 = vmatmul.f32.gmra.mxu0 %v1265
        %v1308 = vpop.f32.mrf.mxu0
        %v1309 = vadd.f32 %v1253, %v1308
        %1310 = vmatmul.f32.gmra.mxu0 %v1268
        %v1311 = vpop.f32.mrf.mxu0
        %v1312 = vadd.f32 %v1253, %v1311
        %1313 = vmatmul.f32.gmra.mxu0 %v1271
        %v1314 = vpop.f32.mrf.mxu0
        %v1315 = vadd.f32 %v1253, %v1314
        %1316 = vmatmul.f32.gmra.mxu0 %v1274
        %v1317 = vpop.f32.mrf.mxu0
        %v1318 = vadd.f32 %v1253, %v1317
        %1319 = vmatmul.f32.gmra.mxu0 %v1277
        %v1320 = vpop.f32.mrf.mxu0
        %v1321 = vadd.f32 %v1253, %v1320
        %1322 = vdwg.mxu0
        %v1323 = vadd.f32 %v1300, %v324
        %v1324 = vadd.f32 %v1303, %v325
        %v1325 = vadd.f32 %v1306, %v326
        %v1326 = vadd.f32 %v1309, %v327
        %v1327 = vadd.f32 %v1312, %v328
        %v1328 = vadd.f32 %v1315, %v329
        %v1329 = vadd.f32 %v1318, %v330
        %v1330 = vadd.f32 %v1321, %v331
        %v1331 = vmax.f32 %v1323, 0.0
        %v1332 = vmax.f32 %v1324, 0.0
        %v1333 = vmax.f32 %v1325, 0.0
        %v1334 = vmax.f32 %v1326, 0.0
        %v1335 = vmax.f32 %v1327, 0.0
        %v1336 = vmax.f32 %v1328, 0.0
        %v1337 = vmax.f32 %v1329, 0.0
        %v1338 = vmax.f32 %v1330, 0.0
        %1339 = vst.msk [vmem:[%s313] sm:$0xff] %vm345, %v1331
        %1340 = vst.msk [vmem:[%s313 + $0x8] sm:$0xff] %vm345, %v1332
        %1341 = vst.msk [vmem:[%s313 + $0x10] sm:$0xff] %vm345, %v1333
        %1342 = vst.msk [vmem:[%s313 + $0x18] sm:$0xff] %vm345, %v1334
        %1343 = vst.msk [vmem:[%s313 + $0x20] sm:$0xff] %vm345, %v1335
        %1344 = vst.msk [vmem:[%s313 + $0x28] sm:$0xff] %vm345, %v1336
        %1345 = vst.msk [vmem:[%s313 + $0x30] sm:$0xff] %vm345, %v1337
        %1346 = vst.msk [vmem:[%s313 + $0x38] sm:$0xff] %vm345, %v1338
        %s1347 = sand.u32 %s208, 1
        %s1348 = scalar_lea.sflag [#allocation6], %s1347
        %s1349 = sand.u32 %s208, 1
        %s1350 = smul.addr %s1349, 64
        %s1351 = scalar_lea.vmem [#allocation5], %s1350
        // Predicated region
        $region53: #{resmod_forward.7} parent=51 // pred_check
          %p1352 = pneg %p218
        $region54: #{resmod_forward.7} parent=51 // pred_check_branch
          %1354 = sbr.rel (%p1352) target = $region56
        $region55: #{resmod_forward.7} parent=51 // pred_region
          %1356 = vsyncadd %s1348, 0
          %s1357 = smul.addr %s22, 8
          %s1358 = smul.addr %s1357, 8
          %s1359 = scalar_lea.hbm %s8, %s1358
          %s1360 = sshll.u32 %s1351, 4
          %s1361 = int_to_ptr.vmem [resolvable:$true] %s1360
          %s1362 = sshll.u32 %s1359, 4
          %s1363 = int_to_ptr.hbm [resolvable:$true] %s1362
          %1368 = dma.vmem_to_hbm [thread:$0]  %s1361, 1024, %s1363, %s1348, 128, 128, 8
        $region56: #{resmod_forward.7} parent=51 // pred_fallthru
          _
      $region52: #{resmod_forward.7} parent=5 // pred_fallthru
        _
      %p1369 = scmp.le.s32.totalorder 2, %s17
      // Predicated region
      $region57: #{resmod_forward.7} parent=5 // pred_check
        %p1370 = pneg %p1369
      $region58: #{resmod_forward.7} parent=5 // pred_check_branch
        %1372 = sbr.rel (%p1370) target = $region60
      $region59: #{resmod_forward.7} parent=5 // pred_region
        %s1373 = ssub.s32 %s17, 2
        // Predicated region
        $region61: #{resmod_forward.7} parent=59 // pred_check
          %p1374 = pneg %p224
        $region62: #{resmod_forward.7} parent=59 // pred_check_branch
          %1376 = sbr.rel (%p1374) target = $region64
        $region63: #{resmod_forward.7} parent=59 // pred_region
          %s1377 = sand.u32 %s209, 1
          %s1378 = scalar_lea.sflag [#allocation6], %s1377
          %s1379 = sand.u32 %s209, 1
          %s1380 = smul.addr %s1379, 64
          %s1381 = scalar_lea.vmem [#allocation5], %s1380
          %1383 = dma.done %s1378, 1024
        $region64: #{resmod_forward.7} parent=59 // pred_fallthru
          _
      $region60: #{resmod_forward.7} parent=5 // pred_fallthru
        _
    $region6: #{resmod_forward.7} parent=1 // loop_footer
      %s21 = sadd.s32 1, %s17
    $region7: #{resmod_forward.7} parent=1 // loop_footer_branch
      %16 = sbr.rel target = $region3
    $region8: #{resmod_forward.7} parent=1 // loop_exit
      _
    %1384 = vsyncpa [#allocation6], 1
    %s1385 = scalar_lea.sflag [#allocation6], 1
    %1386 = vsyncpa %s1385, 1

// kernel: resmod_forward.4
$region0: #{resmod_forward.4}
  #allocation0 [shape = 'u32[]', space=smem, size = 0x4, offset = 0x4, fixed_abs, tag = 'smem constant byte address 0x4 - core index']
  #allocation1 [shape = 'u32[72,128]{1,0:T(1,128)}', space=vmem, size = 0x9000, scoped, tag = 'internal scratch']
  #allocation2 [shape = 'f32[18,18,4]{2,1,0:T(8,128)}', space=vmem, size = 0x36000, scoped, tag = 'scratch operand']
  #allocation3 [shape = 'f32[18,18,1]{2,1,0:T(8,128)}', space=vmem, size = 0x36000, scoped, tag = 'scratch operand']
  #allocation4 [shape = 'f32[256,36]{1,0:T(8,128)}', space=vmem, size = 0x20000, scoped, tag = 'scratch operand']
  %s0 = inlined_call_operand.vmem [shape: f32[2,16,16,4], index: 0, kind: input, shape index: {}]
  %s1 = inlined_call_operand.vmem [shape: f32[2,16,16,1], index: 1, kind: input, shape index: {}]
  %s2 = inlined_call_operand.vmem [shape: f32[4,4], index: 2, kind: input, shape index: {}]
  %s3 = inlined_call_operand.vmem [shape: f32[1,4], index: 3, kind: input, shape index: {}]
  %s4 = inlined_call_operand.vmem [shape: f32[36,4], index: 4, kind: input, shape index: {}]
  %s5 = inlined_call_operand.vmem [shape: f32[1,4], index: 5, kind: input, shape index: {}]
  %s6 = inlined_call_operand.vmem [shape: f32[4,8], index: 6, kind: input, shape index: {}]
  %s7 = inlined_call_operand.vmem [shape: f32[1,8], index: 7, kind: input, shape index: {}]
  %s8 = inlined_call_operand.vmem [shape: f32[4,8], index: 8, kind: input, shape index: {}]
  %s9 = inlined_call_operand.vmem [shape: f32[1,8], index: 9, kind: input, shape index: {}]
  %s10 = inlined_call_operand.vmem [shape: f32[2,16,16,8], index: 10, kind: output, shape index: {}]
  %s11 = sld [smem:[#allocation0]]
  $region73: #{resmod_forward.4} parent=0
    _
  %s13 = ssub.s32 1, %s11
  %s14 = scalar_select 0, %s13, %s11
  loop: start=0, step=1, limit=4
  $region2: #{resmod_forward.4} parent=0 // loop_pre_header
    _
  $region3: #{resmod_forward.4} parent=0 // loop_header
    %s16 = sphi 0, %s20
    %p17 = scmp.ge.s32.totalorder %s16, 4
    %s26 = sphi 0, %s28
    %s29 = sphi 0, %s26
    %s30 = sphi 0, %s29
    %s46 = sphi 0, %s30
    %s52 = sphi 0, %s54
    %s55 = sphi 0, %s52
    %s56 = sphi 0, %s55
    %s72 = sphi 0, %s56
    %s76 = sphi 0, %s76
    %s78 = sphi 0, %s76
    %s79 = sphi 0, %s78
    %s93 = sphi 0, %s79
    %s97 = sphi 0, %s97
    %s99 = sphi 0, %s97
    %s100 = sphi 0, %s99
    %s114 = sphi 0, %s100
    %s118 = sphi 0, %s118
    %s120 = sphi 0, %s118
    %s121 = sphi 0, %s120
    %s135 = sphi 0, %s121
    %s139 = sphi 0, %s139
    %s141 = sphi 0, %s139
    %s142 = sphi 0, %s141
    %s156 = sphi 0, %s142
    %s160 = sphi 0, %s160
    %s162 = sphi 0, %s160
    %s163 = sphi 0, %s162
    %s177 = sphi 0, %s163
    %s181 = sphi 0, %s181
    %s183 = sphi 0, %s181
    %s184 = sphi 0, %s183
    %s198 = sphi 0, %s184
    %s202 = sphi 0, %s202
    %s204 = sphi 0, %s202
    %s205 = sphi 0, %s204
    %s219 = sphi 0, %s205
    %s223 = sphi 0, %s223
    %s225 = sphi 0, %s223
    %s226 = sphi 0, %s225
    %s240 = sphi 0, %s226
    %s246 = sphi 0, %s248
    %s249 = sphi 0, %s246
    %s250 = sphi 0, %s249
    %s266 = sphi 0, %s250
  $region4: #{resmod_forward.4} parent=0 // loop_header_branch
    %19 = sbr.rel (%p17) target = $region8
  $region5: #{resmod_forward.4} parent=0 // loop_body
    %s21 = ssub.s32 %s16, 1
    %s22 = ssub.s32 %s16, 2
    %s23 = sadd.s32 %s16, 1
    %s24 = ssub.s32 %s16, %s23
    %p25 = scmp.eq.s32.totalorder %s24, 0
    %s27 = sadd.s32 %s26, 1
    %s28 = scalar_select %p25, %s26, %s27
    %p31 = pneg %p25
    %p32 = scmp.eq.s32.totalorder %s16, 1
    %p33 = por %p31, %p32
    %p34 = scmp.ne.s32.totalorder %s26, %s29
    %p35 = scmp.eq.s32.totalorder %s16, 0
    %p36 = por %p34, %p35
    %p37 = scmp.ne.s32.totalorder %s26, %s29
    %p38 = scmp.eq.s32.totalorder %s21, 1
    %p39 = por %p37, %p38
    %p40 = scmp.ne.s32.totalorder %s29, %s30
    %p41 = scmp.eq.s32.totalorder %s21, 0
    %p42 = por %p40, %p41
    %p43 = scmp.ne.s32.totalorder %s29, %s30
    %p44 = scmp.eq.s32.totalorder %s22, 1
    %p45 = por %p43, %p44
    %p47 = scmp.ne.s32.totalorder %s30, %s46
    %p48 = scmp.eq.s32.totalorder %s22, 0
    %p49 = por %p47, %p48
    %s50 = ssub.s32 %s16, %s23
    %p51 = scmp.eq.s32.totalorder %s50, 0
    %s53 = sadd.s32 %s52, 1
    %s54 = scalar_select %p51, %s52, %s53
    %p57 = pneg %p51
    %p58 = scmp.eq.s32.totalorder %s16, 1
    %p59 = por %p57, %p58
    %p60 = scmp.ne.s32.totalorder %s52, %s55
    %p61 = scmp.eq.s32.totalorder %s16, 0
    %p62 = por %p60, %p61
    %p63 = scmp.ne.s32.totalorder %s52, %s55
    %p64 = scmp.eq.s32.totalorder %s21, 1
    %p65 = por %p63, %p64
    %p66 = scmp.ne.s32.totalorder %s55, %s56
    %p67 = scmp.eq.s32.totalorder %s21, 0
    %p68 = por %p66, %p67
    %p69 = scmp.ne.s32.totalorder %s55, %s56
    %p70 = scmp.eq.s32.totalorder %s22, 1
    %p71 = por %p69, %p70
    %p73 = scmp.ne.s32.totalorder %s56, %s72
    %p74 = scmp.eq.s32.totalorder %s22, 0
    %p75 = por %p73, %p74
    %s77 = sadd.s32 %s76, 1
    %p80 = scmp.eq.s32.totalorder %s16, 1
    %p81 = scmp.ne.s32.totalorder %s76, %s78
    %p82 = scmp.eq.s32.totalorder %s16, 0
    %p83 = por %p81, %p82
    %p84 = scmp.ne.s32.totalorder %s76, %s78
    %p85 = scmp.eq.s32.totalorder %s21, 1
    %p86 = por %p84, %p85
    %p87 = scmp.ne.s32.totalorder %s78, %s79
    %p88 = scmp.eq.s32.totalorder %s21, 0
    %p89 = por %p87, %p88
    %p90 = scmp.ne.s32.totalorder %s78, %s79
    %p91 = scmp.eq.s32.totalorder %s22, 1
    %p92 = por %p90, %p91
    %p94 = scmp.ne.s32.totalorder %s79, %s93
    %p95 = scmp.eq.s32.totalorder %s22, 0
    %p96 = por %p94, %p95
    %s98 = sadd.s32 %s97, 1
    %p101 = scmp.eq.s32.totalorder %s16, 1
    %p102 = scmp.ne.s32.totalorder %s97, %s99
    %p103 = scmp.eq.s32.totalorder %s16, 0
    %p104 = por %p102, %p103
    %p105 = scmp.ne.s32.totalorder %s97, %s99
    %p106 = scmp.eq.s32.totalorder %s21, 1
    %p107 = por %p105, %p106
    %p108 = scmp.ne.s32.totalorder %s99, %s100
    %p109 = scmp.eq.s32.totalorder %s21, 0
    %p110 = por %p108, %p109
    %p111 = scmp.ne.s32.totalorder %s99, %s100
    %p112 = scmp.eq.s32.totalorder %s22, 1
    %p113 = por %p111, %p112
    %p115 = scmp.ne.s32.totalorder %s100, %s114
    %p116 = scmp.eq.s32.totalorder %s22, 0
    %p117 = por %p115, %p116
    %s119 = sadd.s32 %s118, 1
    %p122 = scmp.eq.s32.totalorder %s16, 1
    %p123 = scmp.ne.s32.totalorder %s118, %s120
    %p124 = scmp.eq.s32.totalorder %s16, 0
    %p125 = por %p123, %p124
    %p126 = scmp.ne.s32.totalorder %s118, %s120
    %p127 = scmp.eq.s32.totalorder %s21, 1
    %p128 = por %p126, %p127
    %p129 = scmp.ne.s32.totalorder %s120, %s121
    %p130 = scmp.eq.s32.totalorder %s21, 0
    %p131 = por %p129, %p130
    %p132 = scmp.ne.s32.totalorder %s120, %s121
    %p133 = scmp.eq.s32.totalorder %s22, 1
    %p134 = por %p132, %p133
    %p136 = scmp.ne.s32.totalorder %s121, %s135
    %p137 = scmp.eq.s32.totalorder %s22, 0
    %p138 = por %p136, %p137
    %s140 = sadd.s32 %s139, 1
    %p143 = scmp.eq.s32.totalorder %s16, 1
    %p144 = scmp.ne.s32.totalorder %s139, %s141
    %p145 = scmp.eq.s32.totalorder %s16, 0
    %p146 = por %p144, %p145
    %p147 = scmp.ne.s32.totalorder %s139, %s141
    %p148 = scmp.eq.s32.totalorder %s21, 1
    %p149 = por %p147, %p148
    %p150 = scmp.ne.s32.totalorder %s141, %s142
    %p151 = scmp.eq.s32.totalorder %s21, 0
    %p152 = por %p150, %p151
    %p153 = scmp.ne.s32.totalorder %s141, %s142
    %p154 = scmp.eq.s32.totalorder %s22, 1
    %p155 = por %p153, %p154
    %p157 = scmp.ne.s32.totalorder %s142, %s156
    %p158 = scmp.eq.s32.totalorder %s22, 0
    %p159 = por %p157, %p158
    %s161 = sadd.s32 %s160, 1
    %p164 = scmp.eq.s32.totalorder %s16, 1
    %p165 = scmp.ne.s32.totalorder %s160, %s162
    %p166 = scmp.eq.s32.totalorder %s16, 0
    %p167 = por %p165, %p166
    %p168 = scmp.ne.s32.totalorder %s160, %s162
    %p169 = scmp.eq.s32.totalorder %s21, 1
    %p170 = por %p168, %p169
    %p171 = scmp.ne.s32.totalorder %s162, %s163
    %p172 = scmp.eq.s32.totalorder %s21, 0
    %p173 = por %p171, %p172
    %p174 = scmp.ne.s32.totalorder %s162, %s163
    %p175 = scmp.eq.s32.totalorder %s22, 1
    %p176 = por %p174, %p175
    %p178 = scmp.ne.s32.totalorder %s163, %s177
    %p179 = scmp.eq.s32.totalorder %s22, 0
    %p180 = por %p178, %p179
    %s182 = sadd.s32 %s181, 1
    %p185 = scmp.eq.s32.totalorder %s16, 1
    %p186 = scmp.ne.s32.totalorder %s181, %s183
    %p187 = scmp.eq.s32.totalorder %s16, 0
    %p188 = por %p186, %p187
    %p189 = scmp.ne.s32.totalorder %s181, %s183
    %p190 = scmp.eq.s32.totalorder %s21, 1
    %p191 = por %p189, %p190
    %p192 = scmp.ne.s32.totalorder %s183, %s184
    %p193 = scmp.eq.s32.totalorder %s21, 0
    %p194 = por %p192, %p193
    %p195 = scmp.ne.s32.totalorder %s183, %s184
    %p196 = scmp.eq.s32.totalorder %s22, 1
    %p197 = por %p195, %p196
    %p199 = scmp.ne.s32.totalorder %s184, %s198
    %p200 = scmp.eq.s32.totalorder %s22, 0
    %p201 = por %p199, %p200
    %s203 = sadd.s32 %s202, 1
    %p206 = scmp.eq.s32.totalorder %s16, 1
    %p207 = scmp.ne.s32.totalorder %s202, %s204
    %p208 = scmp.eq.s32.totalorder %s16, 0
    %p209 = por %p207, %p208
    %p210 = scmp.ne.s32.totalorder %s202, %s204
    %p211 = scmp.eq.s32.totalorder %s21, 1
    %p212 = por %p210, %p211
    %p213 = scmp.ne.s32.totalorder %s204, %s205
    %p214 = scmp.eq.s32.totalorder %s21, 0
    %p215 = por %p213, %p214
    %p216 = scmp.ne.s32.totalorder %s204, %s205
    %p217 = scmp.eq.s32.totalorder %s22, 1
    %p218 = por %p216, %p217
    %p220 = scmp.ne.s32.totalorder %s205, %s219
    %p221 = scmp.eq.s32.totalorder %s22, 0
    %p222 = por %p220, %p221
    %s224 = sadd.s32 %s223, 1
    %p227 = scmp.eq.s32.totalorder %s16, 1
    %p228 = scmp.ne.s32.totalorder %s223, %s225
    %p229 = scmp.eq.s32.totalorder %s16, 0
    %p230 = por %p228, %p229
    %p231 = scmp.ne.s32.totalorder %s223, %s225
    %p232 = scmp.eq.s32.totalorder %s21, 1
    %p233 = por %p231, %p232
    %p234 = scmp.ne.s32.totalorder %s225, %s226
    %p235 = scmp.eq.s32.totalorder %s21, 0
    %p236 = por %p234, %p235
    %p237 = scmp.ne.s32.totalorder %s225, %s226
    %p238 = scmp.eq.s32.totalorder %s22, 1
    %p239 = por %p237, %p238
    %p241 = scmp.ne.s32.totalorder %s226, %s240
    %p242 = scmp.eq.s32.totalorder %s22, 0
    %p243 = por %p241, %p242
    %s244 = ssub.s32 %s16, %s23
    %p245 = scmp.eq.s32.totalorder %s244, 0
    %s247 = sadd.s32 %s246, 1
    %s248 = scalar_select %p245, %s246, %s247
    %p251 = pneg %p245
    %p252 = scmp.eq.s32.totalorder %s16, 1
    %p253 = por %p251, %p252
    %p254 = scmp.ne.s32.totalorder %s246, %s249
    %p255 = scmp.eq.s32.totalorder %s16, 0
    %p256 = por %p254, %p255
    %p257 = scmp.ne.s32.totalorder %s246, %s249
    %p258 = scmp.eq.s32.totalorder %s21, 1
    %p259 = por %p257, %p258
    %p260 = scmp.ne.s32.totalorder %s249, %s250
    %p261 = scmp.eq.s32.totalorder %s21, 0
    %p262 = por %p260, %p261
    %p263 = scmp.ne.s32.totalorder %s249, %s250
    %p264 = scmp.eq.s32.totalorder %s22, 1
    %p265 = por %p263, %p264
    %p267 = scmp.ne.s32.totalorder %s250, %s266
    %p268 = scmp.eq.s32.totalorder %s22, 0
    %p269 = por %p267, %p268
    %p270 = scmp.le.s32.totalorder 1, %s16
    %p271 = scmp.lt.s32.totalorder %s16, 3
    %p272 = pnand %p270, %p271
    %p273 = pneg %p272
    // Predicated region
    $region9: #{resmod_forward.4} parent=5 // pred_check
      _
    $region10: #{resmod_forward.4} parent=5 // pred_check_branch
      %275 = sbr.rel (%p272) target = $region12
    $region11: #{resmod_forward.4} parent=5 // pred_region
      %s276 = ssub.s32 %s16, 1
      // Predicated region
      $region13: #{resmod_forward.4} parent=11 // pred_check
        %p277 = pneg %p89
      $region14: #{resmod_forward.4} parent=11 // pred_check_branch
        %279 = sbr.rel (%p277) target = $region16
      $region15: #{resmod_forward.4} parent=11 // pred_region
        _
      $region16: #{resmod_forward.4} parent=11 // pred_fallthru
        _
      // Predicated region
      $region17: #{resmod_forward.4} parent=11 // pred_check
        %p280 = pneg %p110
      $region18: #{resmod_forward.4} parent=11 // pred_check_branch
        %282 = sbr.rel (%p280) target = $region20
      $region19: #{resmod_forward.4} parent=11 // pred_region
        _
      $region20: #{resmod_forward.4} parent=11 // pred_fallthru
        _
      // Predicated region
      $region21: #{resmod_forward.4} parent=11 // pred_check
        %p283 = pneg %p131
      $region22: #{resmod_forward.4} parent=11 // pred_check_branch
        %285 = sbr.rel (%p283) target = $region24
      $region23: #{resmod_forward.4} parent=11 // pred_region
        _
      $region24: #{resmod_forward.4} parent=11 // pred_fallthru
        _
      // Predicated region
      $region25: #{resmod_forward.4} parent=11 // pred_check
        %p286 = pneg %p152
      $region26: #{resmod_forward.4} parent=11 // pred_check_branch
        %288 = sbr.rel (%p286) target = $region28
      $region27: #{resmod_forward.4} parent=11 // pred_region
        _
      $region28: #{resmod_forward.4} parent=11 // pred_fallthru
        _
      // Predicated region
      $region29: #{resmod_forward.4} parent=11 // pred_check
        %p289 = pneg %p173
      $region30: #{resmod_forward.4} parent=11 // pred_check_branch
        %291 = sbr.rel (%p289) target = $region32
      $region31: #{resmod_forward.4} parent=11 // pred_region
        _
      $region32: #{resmod_forward.4} parent=11 // pred_fallthru
        _
      // Predicated region
      $region33: #{resmod_forward.4} parent=11 // pred_check
        %p292 = pneg %p194
      $region34: #{resmod_forward.4} parent=11 // pred_check_branch
        %294 = sbr.rel (%p292) target = $region36
      $region35: #{resmod_forward.4} parent=11 // pred_region
        _
      $region36: #{resmod_forward.4} parent=11 // pred_fallthru
        _
      // Predicated region
      $region37: #{resmod_forward.4} parent=11 // pred_check
        %p295 = pneg %p215
      $region38: #{resmod_forward.4} parent=11 // pred_check_branch
        %297 = sbr.rel (%p295) target = $region40
      $region39: #{resmod_forward.4} parent=11 // pred_region
        _
      $region40: #{resmod_forward.4} parent=11 // pred_fallthru
        _
      // Predicated region
      $region41: #{resmod_forward.4} parent=11 // pred_check
        %p298 = pneg %p236
      $region42: #{resmod_forward.4} parent=11 // pred_check_branch
        %300 = sbr.rel (%p298) target = $region44
      $region43: #{resmod_forward.4} parent=11 // pred_region
        _
      $region44: #{resmod_forward.4} parent=11 // pred_fallthru
        _
    $region12: #{resmod_forward.4} parent=5 // pred_fallthru
      _
    %p301 = scmp.lt.s32.totalorder %s16, 2
    // Predicated region
    $region45: #{resmod_forward.4} parent=5 // pred_check
      %p302 = pneg %p301
    $region46: #{resmod_forward.4} parent=5 // pred_check_branch
      %304 = sbr.rel (%p302) target = $region48
    $region47: #{resmod_forward.4} parent=5 // pred_region
      // Predicated region
      $region49: #{resmod_forward.4} parent=47 // pred_check
        %p305 = pneg %p36
      $region50: #{resmod_forward.4} parent=47 // pred_check_branch
        %307 = sbr.rel (%p305) target = $region52
      $region51: #{resmod_forward.4} parent=47 // pred_region
        %p308 = scmp.lt.s32.totalorder %s16, 1
        %s309 = scalar_select %p308, %s16, 1
        %s310 = smul.addr %s309, 32
        %s311 = smul.addr %s310, 8
        %s312 = scalar_lea.vmem %s0, %s311
      $region52: #{resmod_forward.4} parent=47 // pred_fallthru
        _
      // Predicated region
      $region53: #{resmod_forward.4} parent=47 // pred_check
        %p313 = pneg %p62
      $region54: #{resmod_forward.4} parent=47 // pred_check_branch
        %315 = sbr.rel (%p313) target = $region56
      $region55: #{resmod_forward.4} parent=47 // pred_region
        %p316 = scmp.lt.s32.totalorder %s16, 1
        %s317 = scalar_select %p316, %s16, 1
        %s318 = smul.addr %s317, 32
        %s319 = smul.addr %s318, 8
        %s320 = scalar_lea.vmem %s1, %s319
      $region56: #{resmod_forward.4} parent=47 // pred_fallthru
        _
    $region48: #{resmod_forward.4} parent=5 // pred_fallthru
      _
    %p321 = scmp.le.s32.totalorder 1, %s16
    %p322 = scmp.lt.s32.totalorder %s16, 3
    %p323 = pnand %p321, %p322
    %p324 = pneg %p323
    // Predicated region
    $region57: #{resmod_forward.4} parent=5 // pred_check
      _
    $region58: #{resmod_forward.4} parent=5 // pred_check_branch
      %326 = sbr.rel (%p323) target = $region60
    $region59: #{resmod_forward.4} parent=5 // pred_region
      %s327 = ssub.s32 %s16, 1
      %p328 = scmp.lt.s32.totalorder %s21, 1
      %s329 = scalar_select %p328, %s21, 1
      %s330 = smul.addr %s329, 32
      %s331 = smul.addr %s330, 8
      %s332 = scalar_lea.vmem %s0, %s331
      %p333 = pneg %p42
      %p334 = pneg %p39
      %p335 = scmp.lt.s32.totalorder %s21, 1
      %s336 = scalar_select %p335, %s21, 1
      %s337 = smul.addr %s336, 32
      %s338 = smul.addr %s337, 8
      %s339 = scalar_lea.vmem %s1, %s338
      %p340 = pneg %p68
      %p341 = pneg %p65
      %p342 = pneg %p89
      %p343 = pneg %p86
      %p344 = pneg %p110
      %p345 = pneg %p107
      %p346 = pneg %p131
      %p347 = pneg %p128
      %p348 = pneg %p152
      %p349 = pneg %p149
      %p350 = pneg %p173
      %p351 = pneg %p170
      %p352 = pneg %p194
      %p353 = pneg %p191
      %p354 = pneg %p215
      %p355 = pneg %p212
      %p356 = pneg %p236
      %p357 = pneg %p233
      %p358 = pneg %p262
      %p359 = pneg %p259
      %p360 = scmp.lt.s32.totalorder %s21, 1
      %s361 = scalar_select %p360, %s21, 1
      %s362 = smul.addr %s361, 32
      %s363 = smul.addr %s362, 8
      %s364 = scalar_lea.vmem %s10, %s363
      %p365 = scmp.lt.s32.totalorder %s21, 1
      %s366 = scalar_select %p365, %s21, 1
      %s367 = smul.addr %s366, 32
      %s368 = smul.addr %s367, 8
      %s369 = scalar_lea.vmem %s0, %s368
      %p370 = scmp.lt.s32.totalorder %s21, 1
      %s371 = scalar_select %p370, %s21, 1
      %s372 = smul.addr %s371, 32
      %s373 = smul.addr %s372, 8
      %s374 = scalar_lea.vmem %s1, %s373
      %p375 = scmp.lt.s32.totalorder %s21, 1
      %s376 = scalar_select %p375, %s21, 1
      %s377 = smul.addr %s376, 32
      %s378 = smul.addr %s377, 8
      %s379 = scalar_lea.vmem %s10, %s378
      %v380 = vld [vmem:[%s369] sm:$0xff]
      %v381 = vld [vmem:[%s369 + $0x8] sm:$0xff]
      %v382 = vld [vmem:[%s369 + $0x10] sm:$0xff]
      %v383 = vld [vmem:[%s369 + $0x18] sm:$0xff]
      %v384 = vld [vmem:[%s369 + $0x20] sm:$0xff]
      %v385 = vld [vmem:[%s369 + $0x28] sm:$0xff]
      %v386 = vld [vmem:[%s369 + $0x30] sm:$0xff]
      %v387 = vld [vmem:[%s369 + $0x38] sm:$0xff]
      %v388 = vld [vmem:[%s369 + $0x40] sm:$0xff]
      %v389 = vld [vmem:[%s369 + $0x48] sm:$0xff]
      %v390 = vld [vmem:[%s369 + $0x50] sm:$0xff]
      %v391 = vld [vmem:[%s369 + $0x58] sm:$0xff]
      %v392 = vld [vmem:[%s369 + $0x60] sm:$0xff]
      %v393 = vld [vmem:[%s369 + $0x68] sm:$0xff]
      %v394 = vld [vmem:[%s369 + $0x70] sm:$0xff]
      %v395 = vld [vmem:[%s369 + $0x78] sm:$0xff]
      %v396 = vld [vmem:[%s369 + $0x80] sm:$0xff]
      %v397 = vld [vmem:[%s369 + $0x88] sm:$0xff]
      %v398 = vld [vmem:[%s369 + $0x90] sm:$0xff]
      %v399 = vld [vmem:[%s369 + $0x98] sm:$0xff]
      %v400 = vld [vmem:[%s369 + $0xa0] sm:$0xff]
      %v401 = vld [vmem:[%s369 + $0xa8] sm:$0xff]
      %v402 = vld [vmem:[%s369 + $0xb0] sm:$0xff]
      %v403 = vld [vmem:[%s369 + $0xb8] sm:$0xff]
      %v404 = vld [vmem:[%s369 + $0xc0] sm:$0xff]
      %v405 = vld [vmem:[%s369 + $0xc8] sm:$0xff]
      %v406 = vld [vmem:[%s369 + $0xd0] sm:$0xff]
      %v407 = vld [vmem:[%s369 + $0xd8] sm:$0xff]
      %v408 = vld [vmem:[%s369 + $0xe0] sm:$0xff]
      %v409 = vld [vmem:[%s369 + $0xe8] sm:$0xff]
      %v410 = vld [vmem:[%s369 + $0xf0] sm:$0xff]
      %v411 = vld [vmem:[%s369 + $0xf8] sm:$0xff]
      %v412 = vld [vmem:[%s374] sm:$0xff]
      %v413 = vld [vmem:[%s374 + $0x8] sm:$0xff]
      %v414 = vld [vmem:[%s374 + $0x10] sm:$0xff]
      %v415 = vld [vmem:[%s374 + $0x18] sm:$0xff]
      %v416 = vld [vmem:[%s374 + $0x20] sm:$0xff]
      %v417 = vld [vmem:[%s374 + $0x28] sm:$0xff]
      %v418 = vld [vmem:[%s374 + $0x30] sm:$0xff]
      %v419 = vld [vmem:[%s374 + $0x38] sm:$0xff]
      %v420 = vld [vmem:[%s374 + $0x40] sm:$0xff]
      %v421 = vld [vmem:[%s374 + $0x48] sm:$0xff]
      %v422 = vld [vmem:[%s374 + $0x50] sm:$0xff]
      %v423 = vld [vmem:[%s374 + $0x58] sm:$0xff]
      %v424 = vld [vmem:[%s374 + $0x60] sm:$0xff]
      %v425 = vld [vmem:[%s374 + $0x68] sm:$0xff]
      %v426 = vld [vmem:[%s374 + $0x70] sm:$0xff]
      %v427 = vld [vmem:[%s374 + $0x78] sm:$0xff]
      %v428 = vld [vmem:[%s374 + $0x80] sm:$0xff]
      %v429 = vld [vmem:[%s374 + $0x88] sm:$0xff]
      %v430 = vld [vmem:[%s374 + $0x90] sm:$0xff]
      %v431 = vld [vmem:[%s374 + $0x98] sm:$0xff]
      %v432 = vld [vmem:[%s374 + $0xa0] sm:$0xff]
      %v433 = vld [vmem:[%s374 + $0xa8] sm:$0xff]
      %v434 = vld [vmem:[%s374 + $0xb0] sm:$0xff]
      %v435 = vld [vmem:[%s374 + $0xb8] sm:$0xff]
      %v436 = vld [vmem:[%s374 + $0xc0] sm:$0xff]
      %v437 = vld [vmem:[%s374 + $0xc8] sm:$0xff]
      %v438 = vld [vmem:[%s374 + $0xd0] sm:$0xff]
      %v439 = vld [vmem:[%s374 + $0xd8] sm:$0xff]
      %v440 = vld [vmem:[%s374 + $0xe0] sm:$0xff]
      %v441 = vld [vmem:[%s374 + $0xe8] sm:$0xff]
      %v442 = vld [vmem:[%s374 + $0xf0] sm:$0xff]
      %v443 = vld [vmem:[%s374 + $0xf8] sm:$0xff]
      %v444 = vld [vmem:[%s2] sm:$0xf]
      %v445 = vld [vmem:[%s3] sm:$0x1]
      %v447 = vperm.slane %v445, 0
      %vm449 = vcmask 31744
      %v451 = vsel %vm449, %v380, 0
      %v454 = vsel %vm449, %v381, 0
      %v457 = vsel %vm449, %v382, 0
      %v460 = vsel %vm449, %v383, 0
      %v463 = vsel %vm449, %v384, 0
      %v466 = vsel %vm449, %v385, 0
      %v469 = vsel %vm449, %v386, 0
      %v472 = vsel %vm449, %v387, 0
      %v475 = vsel %vm449, %v388, 0
      %v478 = vsel %vm449, %v389, 0
      %v481 = vsel %vm449, %v390, 0
      %v484 = vsel %vm449, %v391, 0
      %v487 = vsel %vm449, %v392, 0
      %v490 = vsel %vm449, %v393, 0
      %v493 = vsel %vm449, %v394, 0
      %v496 = vsel %vm449, %v395, 0
      %v499 = vsel %vm449, %v396, 0
      %v502 = vsel %vm449, %v397, 0
      %v505 = vsel %vm449, %v398, 0
      %v508 = vsel %vm449, %v399, 0
      %v511 = vsel %vm449, %v400, 0
      %v514 = vsel %vm449, %v401, 0
      %v517 = vsel %vm449, %v402, 0
      %v520 = vsel %vm449, %v403, 0
      %v523 = vsel %vm449, %v404, 0
      %v526 = vsel %vm449, %v405, 0
      %v529 = vsel %vm449, %v406, 0
      %v532 = vsel %vm449, %v407, 0
      %v535 = vsel %vm449, %v408, 0
      %v538 = vsel %vm449, %v409, 0
      %v541 = vsel %vm449, %v410, 0
      %v544 = vsel %vm449, %v411, 0
      %vm546 = vcmask 1043456
      %v548 = vsel %vm546, %v444, 0
      %550 = vmatpush.msra.mxu0 0.0
      %551 = vmatpush.msra.mxu0 0.0
      %552 = vmatpush.msra.mxu0 0.0
      %553 = vmatpush.msra.mxu0 0.0
      %554 = vmatpush.msra.mxu0 0.0
      %555 = vmatpush.msra.mxu0 0.0
      %556 = vmatpush.msra.mxu0 0.0
      %557 = vmatpush.msra.mxu0 0.0
      %558 = vmatpush.msra.mxu0 0.0
      %559 = vmatpush.msra.mxu0 0.0
      %560 = vmatpush.msra.mxu0 0.0
      %561 = vmatpush.msra.mxu0 0.0
      %562 = vmatpush.msra.mxu0 0.0
      %563 = vmatpush.msra.mxu0 0.0
      %564 = vmatpush.msra.mxu0 0.0
      %565 = vmatpush.msra.mxu0 %v548
      %566 = vmatmul.f32.gmra.mxu0 %v451
      %v567 = vpop.f32.mrf.mxu0
      %v568 = vadd.f32 %v447, %v567
      %569 = vmatmul.f32.gmra.mxu0 %v454
      %v570 = vpop.f32.mrf.mxu0
      %v571 = vadd.f32 %v447, %v570
      %572 = vmatmul.f32.gmra.mxu0 %v457
      %v573 = vpop.f32.mrf.mxu0
      %v574 = vadd.f32 %v447, %v573
      %575 = vmatmul.f32.gmra.mxu0 %v460
      %v576 = vpop.f32.mrf.mxu0
      %v577 = vadd.f32 %v447, %v576
      %578 = vmatmul.f32.gmra.mxu0 %v463
      %v579 = vpop.f32.mrf.mxu0
      %v580 = vadd.f32 %v447, %v579
      %581 = vmatmul.f32.gmra.mxu0 %v466
      %v582 = vpop.f32.mrf.mxu0
      %v583 = vadd.f32 %v447, %v582
      %584 = vmatmul.f32.gmra.mxu0 %v469
      %v585 = vpop.f32.mrf.mxu0
      %v586 = vadd.f32 %v447, %v585
      %587 = vmatmul.f32.gmra.mxu0 %v472
      %v588 = vpop.f32.mrf.mxu0
      %v589 = vadd.f32 %v447, %v588
      %590 = vmatmul.f32.gmra.mxu0 %v475
      %v591 = vpop.f32.mrf.mxu0
      %v592 = vadd.f32 %v447, %v591
      %593 = vmatmul.f32.gmra.mxu0 %v478
      %v594 = vpop.f32.mrf.mxu0
      %v595 = vadd.f32 %v447, %v594
      %596 = vmatmul.f32.gmra.mxu0 %v481
      %v597 = vpop.f32.mrf.mxu0
      %v598 = vadd.f32 %v447, %v597
      %599 = vmatmul.f32.gmra.mxu0 %v484
      %v600 = vpop.f32.mrf.mxu0
      %v601 = vadd.f32 %v447, %v600
      %602 = vmatmul.f32.gmra.mxu0 %v487
      %v603 = vpop.f32.mrf.mxu0
      %v604 = vadd.f32 %v447, %v603
      %605 = vmatmul.f32.gmra.mxu0 %v490
      %v606 = vpop.f32.mrf.mxu0
      %v607 = vadd.f32 %v447, %v606
      %608 = vmatmul.f32.gmra.mxu0 %v493
      %v609 = vpop.f32.mrf.mxu0
      %v610 = vadd.f32 %v447, %v609
      %611 = vmatmul.f32.gmra.mxu0 %v496
      %v612 = vpop.f32.mrf.mxu0
      %v613 = vadd.f32 %v447, %v612
      %614 = vmatmul.f32.gmra.mxu0 %v499
      %v615 = vpop.f32.mrf.mxu0
      %v616 = vadd.f32 %v447, %v615
      %617 = vmatmul.f32.gmra.mxu0 %v502
      %v618 = vpop.f32.mrf.mxu0
      %v619 = vadd.f32 %v447, %v618
      %620 = vmatmul.f32.gmra.mxu0 %v505
      %v621 = vpop.f32.mrf.mxu0
      %v622 = vadd.f32 %v447, %v621
      %623 = vmatmul.f32.gmra.mxu0 %v508
      %v624 = vpop.f32.mrf.mxu0
      %v625 = vadd.f32 %v447, %v624
      %626 = vmatmul.f32.gmra.mxu0 %v511
      %v627 = vpop.f32.mrf.mxu0
      %v628 = vadd.f32 %v447, %v627
      %629 = vmatmul.f32.gmra.mxu0 %v514
      %v630 = vpop.f32.mrf.mxu0
      %v631 = vadd.f32 %v447, %v630
      %632 = vmatmul.f32.gmra.mxu0 %v517
      %v633 = vpop.f32.mrf.mxu0
      %v634 = vadd.f32 %v447, %v633
      %635 = vmatmul.f32.gmra.mxu0 %v520
      %v636 = vpop.f32.mrf.mxu0
      %v637 = vadd.f32 %v447, %v636
      %638 = vmatmul.f32.gmra.mxu0 %v523
      %v639 = vpop.f32.mrf.mxu0
      %v640 = vadd.f32 %v447, %v639
      %641 = vmatmul.f32.gmra.mxu0 %v526
      %v642 = vpop.f32.mrf.mxu0
      %v643 = vadd.f32 %v447, %v642
      %644 = vmatmul.f32.gmra.mxu0 %v529
      %v645 = vpop.f32.mrf.mxu0
      %v646 = vadd.f32 %v447, %v645
      %647 = vmatmul.f32.gmra.mxu0 %v532
      %v648 = vpop.f32.mrf.mxu0
      %v649 = vadd.f32 %v447, %v648
      %650 = vmatmul.f32.gmra.mxu0 %v535
      %v651 = vpop.f32.mrf.mxu0
      %v652 = vadd.f32 %v447, %v651
      %653 = vmatmul.f32.gmra.mxu0 %v538
      %v654 = vpop.f32.mrf.mxu0
      %v655 = vadd.f32 %v447, %v654
      %656 = vmatmul.f32.gmra.mxu0 %v541
      %v657 = vpop.f32.mrf.mxu0
      %v658 = vadd.f32 %v447, %v657
      %659 = vmatmul.f32.gmra.mxu0 %v544
      %v660 = vpop.f32.mrf.mxu0
      %v661 = vadd.f32 %v447, %v660
      %662 = vdwg.mxu0
      %v663 = vmax.f32 %v568, 0.0
      %v664 = vmax.f32 %v571, 0.0
      %v665 = vmax.f32 %v574, 0.0
      %v666 = vmax.f32 %v577, 0.0
      %v667 = vmax.f32 %v580, 0.0
      %v668 = vmax.f32 %v583, 0.0
      %v669 = vmax.f32 %v586, 0.0
      %v670 = vmax.f32 %v589, 0.0
      %v671 = vmax.f32 %v592, 0.0
      %v672 = vmax.f32 %v595, 0.0
      %v673 = vmax.f32 %v598, 0.0
      %v674 = vmax.f32 %v601, 0.0
      %v675 = vmax.f32 %v604, 0.0
      %v676 = vmax.f32 %v607, 0.0
      %v677 = vmax.f32 %v610, 0.0
      %v678 = vmax.f32 %v613, 0.0
      %v679 = vmax.f32 %v616, 0.0
      %v680 = vmax.f32 %v619, 0.0
      %v681 = vmax.f32 %v622, 0.0
      %v682 = vmax.f32 %v625, 0.0
      %v683 = vmax.f32 %v628, 0.0
      %v684 = vmax.f32 %v631, 0.0
      %v685 = vmax.f32 %v634, 0.0
      %v686 = vmax.f32 %v637, 0.0
      %v687 = vmax.f32 %v640, 0.0
      %v688 = vmax.f32 %v643, 0.0
      %v689 = vmax.f32 %v646, 0.0
      %v690 = vmax.f32 %v649, 0.0
      %v691 = vmax.f32 %v652, 0.0
      %v692 = vmax.f32 %v655, 0.0
      %v693 = vmax.f32 %v658, 0.0
      %v694 = vmax.f32 %v661, 0.0
      %695 = vst.msk [vmem:[#allocation2] sm:$0xff] %vm449, 0.0
      %696 = vst.msk [vmem:[#allocation2 + $0x8] sm:$0xff] %vm449, 0.0
      %vm697 = vcmask 25600
      %698 = vst.msk [vmem:[#allocation2 + $0x10] sm:$0x3] %vm697, 0.0
      %699 = vst.msk [vmem:[#allocation2 + $0x18] sm:$0xff] %vm449, 0.0
      %700 = vst.msk [vmem:[#allocation2 + $0x20] sm:$0xff] %vm449, 0.0
      %701 = vst.msk [vmem:[#allocation2 + $0x28] sm:$0x3] %vm697, 0.0
      %702 = vst.msk [vmem:[#allocation2 + $0x30] sm:$0xff] %vm449, 0.0
      %703 = vst.msk [vmem:[#allocation2 + $0x38] sm:$0xff] %vm449, 0.0
      %704 = vst.msk [vmem:[#allocation2 + $0x40] sm:$0x3] %vm697, 0.0
      %705 = vst.msk [vmem:[#allocation2 + $0x48] sm:$0xff] %vm449, 0.0
      %706 = vst.msk [vmem:[#allocation2 + $0x50] sm:$0xff] %vm449, 0.0
      %707 = vst.msk [vmem:[#allocation2 + $0x58] sm:$0x3] %vm697, 0.0
      %708 = vst.msk [vmem:[#allocation2 + $0x60] sm:$0xff] %vm449, 0.0
      %709 = vst.msk [vmem:[#allocation2 + $0x68] sm:$0xff] %vm449, 0.0
      %710 = vst.msk [vmem:[#allocation2 + $0x70] sm:$0x3] %vm697, 0.0
      %711 = vst.msk [vmem:[#allocation2 + $0x78] sm:$0xff] %vm449, 0.0
      %712 = vst.msk [vmem:[#allocation2 + $0x80] sm:$0xff] %vm449, 0.0
      %713 = vst.msk [vmem:[#allocation2 + $0x88] sm:$0x3] %vm697, 0.0
      %714 = vst.msk [vmem:[#allocation2 + $0x90] sm:$0xff] %vm449, 0.0
      %715 = vst.msk [vmem:[#allocation2 + $0x98] sm:$0xff] %vm449, 0.0
      %716 = vst.msk [vmem:[#allocation2 + $0xa0] sm:$0x3] %vm697, 0.0
      %717 = vst.msk [vmem:[#allocation2 + $0xa8] sm:$0xff] %vm449, 0.0
      %718 = vst.msk [vmem:[#allocation2 + $0xb0] sm:$0xff] %vm449, 0.0
      %719 = vst.msk [vmem:[#allocation2 + $0xb8] sm:$0x3] %vm697, 0.0
      %720 = vst.msk [vmem:[#allocation2 + $0xc0] sm:$0xff] %vm449, 0.0
      %721 = vst.msk [vmem:[#allocation2 + $0xc8] sm:$0xff] %vm449, 0.0
      %722 = vst.msk [vmem:[#allocation2 + $0xd0] sm:$0x3] %vm697, 0.0
      %723 = vst.msk [vmem:[#allocation2 + $0xd8] sm:$0xff] %vm449, 0.0
      %724 = vst.msk [vmem:[#allocation2 + $0xe0] sm:$0xff] %vm449, 0.0
      %725 = vst.msk [vmem:[#allocation2 + $0xe8] sm:$0x3] %vm697, 0.0
      %726 = vst.msk [vmem:[#allocation2 + $0xf0] sm:$0xff] %vm449, 0.0
      %727 = vst.msk [vmem:[#allocation2 + $0xf8] sm:$0xff] %vm449, 0.0
      %728 = vst.msk [vmem:[#allocation2 + $0x100] sm:$0x3] %vm697, 0.0
      %729 = vst.msk [vmem:[#allocation2 + $0x108] sm:$0xff] %vm449, 0.0
      %730 = vst.msk [vmem:[#allocation2 + $0x110] sm:$0xff] %vm449, 0.0
      %731 = vst.msk [vmem:[#allocation2 + $0x118] sm:$0x3] %vm697, 0.0
      %732 = vst.msk [vmem:[#allocation2 + $0x120] sm:$0xff] %vm449, 0.0
      %733 = vst.msk [vmem:[#allocation2 + $0x128] sm:$0xff] %vm449, 0.0
      %734 = vst.msk [vmem:[#allocation2 + $0x130] sm:$0x3] %vm697, 0.0
      %735 = vst.msk [vmem:[#allocation2 + $0x138] sm:$0xff] %vm449, 0.0
      %736 = vst.msk [vmem:[#allocation2 + $0x140] sm:$0xff] %vm449, 0.0
      %737 = vst.msk [vmem:[#allocation2 + $0x148] sm:$0x3] %vm697, 0.0
      %738 = vst.msk [vmem:[#allocation2 + $0x150] sm:$0xff] %vm449, 0.0
      %739 = vst.msk [vmem:[#allocation2 + $0x158] sm:$0xff] %vm449, 0.0
      %740 = vst.msk [vmem:[#allocation2 + $0x160] sm:$0x3] %vm697, 0.0
      %741 = vst.msk [vmem:[#allocation2 + $0x168] sm:$0xff] %vm449, 0.0
      %742 = vst.msk [vmem:[#allocation2 + $0x170] sm:$0xff] %vm449, 0.0
      %743 = vst.msk [vmem:[#allocation2 + $0x178] sm:$0x3] %vm697, 0.0
      %744 = vst.msk [vmem:[#allocation2 + $0x180] sm:$0xff] %vm449, 0.0
      %745 = vst.msk [vmem:[#allocation2 + $0x188] sm:$0xff] %vm449, 0.0
      %746 = vst.msk [vmem:[#allocation2 + $0x190] sm:$0x3] %vm697, 0.0
      %747 = vst.msk [vmem:[#allocation2 + $0x198] sm:$0xff] %vm449, 0.0
      %748 = vst.msk [vmem:[#allocation2 + $0x1a0] sm:$0xff] %vm449, 0.0
      %749 = vst.msk [vmem:[#allocation2 + $0x1a8] sm:$0x3] %vm697, 0.0
      %vm750 = vcmask 7168
      %751 = vst.msk [vmem:[#allocation3] sm:$0xff] %vm750, 0.0
      %752 = vst.msk [vmem:[#allocation3 + $0x8] sm:$0xff] %vm750, 0.0
      %vm753 = vcmask 1024
      %754 = vst.msk [vmem:[#allocation3 + $0x10] sm:$0x3] %vm753, 0.0
      %755 = vst.msk [vmem:[#allocation3 + $0x18] sm:$0xff] %vm750, 0.0
      %756 = vst.msk [vmem:[#allocation3 + $0x20] sm:$0xff] %vm750, 0.0
      %757 = vst.msk [vmem:[#allocation3 + $0x28] sm:$0x3] %vm753, 0.0
      %758 = vst.msk [vmem:[#allocation3 + $0x30] sm:$0xff] %vm750, 0.0
      %759 = vst.msk [vmem:[#allocation3 + $0x38] sm:$0xff] %vm750, 0.0
      %760 = vst.msk [vmem:[#allocation3 + $0x40] sm:$0x3] %vm753, 0.0
      %761 = vst.msk [vmem:[#allocation3 + $0x48] sm:$0xff] %vm750, 0.0
      %762 = vst.msk [vmem:[#allocation3 + $0x50] sm:$0xff] %vm750, 0.0
      %763 = vst.msk [vmem:[#allocation3 + $0x58] sm:$0x3] %vm753, 0.0
      %764 = vst.msk [vmem:[#allocation3 + $0x60] sm:$0xff] %vm750, 0.0
      %765 = vst.msk [vmem:[#allocation3 + $0x68] sm:$0xff] %vm750, 0.0
      %766 = vst.msk [vmem:[#allocation3 + $0x70] sm:$0x3] %vm753, 0.0
      %767 = vst.msk [vmem:[#allocation3 + $0x78] sm:$0xff] %vm750, 0.0
      %768 = vst.msk [vmem:[#allocation3 + $0x80] sm:$0xff] %vm750, 0.0
      %769 = vst.msk [vmem:[#allocation3 + $0x88] sm:$0x3] %vm753, 0.0
      %770 = vst.msk [vmem:[#allocation3 + $0x90] sm:$0xff] %vm750, 0.0
      %771 = vst.msk [vmem:[#allocation3 + $0x98] sm:$0xff] %vm750, 0.0
      %772 = vst.msk [vmem:[#allocation3 + $0xa0] sm:$0x3] %vm753, 0.0
      %773 = vst.msk [vmem:[#allocation3 + $0xa8] sm:$0xff] %vm750, 0.0
      %774 = vst.msk [vmem:[#allocation3 + $0xb0] sm:$0xff] %vm750, 0.0
      %775 = vst.msk [vmem:[#allocation3 + $0xb8] sm:$0x3] %vm753, 0.0
      %776 = vst.msk [vmem:[#allocation3 + $0xc0] sm:$0xff] %vm750, 0.0
      %777 = vst.msk [vmem:[#allocation3 + $0xc8] sm:$0xff] %vm750, 0.0
      %778 = vst.msk [vmem:[#allocation3 + $0xd0] sm:$0x3] %vm753, 0.0
      %779 = vst.msk [vmem:[#allocation3 + $0xd8] sm:$0xff] %vm750, 0.0
      %780 = vst.msk [vmem:[#allocation3 + $0xe0] sm:$0xff] %vm750, 0.0
      %781 = vst.msk [vmem:[#allocation3 + $0xe8] sm:$0x3] %vm753, 0.0
      %782 = vst.msk [vmem:[#allocation3 + $0xf0] sm:$0xff] %vm750, 0.0
      %783 = vst.msk [vmem:[#allocation3 + $0xf8] sm:$0xff] %vm750, 0.0
      %784 = vst.msk [vmem:[#allocation3 + $0x100] sm:$0x3] %vm753, 0.0
      %785 = vst.msk [vmem:[#allocation3 + $0x108] sm:$0xff] %vm750, 0.0
      %786 = vst.msk [vmem:[#allocation3 + $0x110] sm:$0xff] %vm750, 0.0
      %787 = vst.msk [vmem:[#allocation3 + $0x118] sm:$0x3] %vm753, 0.0
      %788 = vst.msk [vmem:[#allocation3 + $0x120] sm:$0xff] %vm750, 0.0
      %789 = vst.msk [vmem:[#allocation3 + $0x128] sm:$0xff] %vm750, 0.0
      %790 = vst.msk [vmem:[#allocation3 + $0x130] sm:$0x3] %vm753, 0.0
      %791 = vst.msk [vmem:[#allocation3 + $0x138] sm:$0xff] %vm750, 0.0
      %792 = vst.msk [vmem:[#allocation3 + $0x140] sm:$0xff] %vm750, 0.0
      %793 = vst.msk [vmem:[#allocation3 + $0x148] sm:$0x3] %vm753, 0.0
      %794 = vst.msk [vmem:[#allocation3 + $0x150] sm:$0xff] %vm750, 0.0
      %795 = vst.msk [vmem:[#allocation3 + $0x158] sm:$0xff] %vm750, 0.0
      %796 = vst.msk [vmem:[#allocation3 + $0x160] sm:$0x3] %vm753, 0.0
      %797 = vst.msk [vmem:[#allocation3 + $0x168] sm:$0xff] %vm750, 0.0
      %798 = vst.msk [vmem:[#allocation3 + $0x170] sm:$0xff] %vm750, 0.0
      %799 = vst.msk [vmem:[#allocation3 + $0x178] sm:$0x3] %vm753, 0.0
      %800 = vst.msk [vmem:[#allocation3 + $0x180] sm:$0xff] %vm750, 0.0
      %801 = vst.msk [vmem:[#allocation3 + $0x188] sm:$0xff] %vm750, 0.0
      %802 = vst.msk [vmem:[#allocation3 + $0x190] sm:$0x3] %vm753, 0.0
      %803 = vst.msk [vmem:[#allocation3 + $0x198] sm:$0xff] %vm750, 0.0
      %804 = vst.msk [vmem:[#allocation3 + $0x1a0] sm:$0xff] %vm750, 0.0
      %805 = vst.msk [vmem:[#allocation3 + $0x1a8] sm:$0x3] %vm753, 0.0
      %807 = vset.pattern.permute.xlu0 0
      %808 = vperm.xlu0 %807, %v412
      %v809 = vpop.permute.xlu0 %808
      %812 = vset.pattern.permute.xlu0 0
      %813 = vperm.xlu0 %812, %v413
      %v814 = vpop.permute.xlu0 %813
      %817 = vset.pattern.permute.xlu0 0
      %818 = vperm.xlu0 %817, %v414
      %v819 = vpop.permute.xlu0 %818
      %822 = vset.pattern.permute.xlu0 0
      %823 = vperm.xlu0 %822, %v415
      %v824 = vpop.permute.xlu0 %823
      %827 = vset.pattern.permute.xlu0 0
      %828 = vperm.xlu0 %827, %v416
      %v829 = vpop.permute.xlu0 %828
      %832 = vset.pattern.permute.xlu0 0
      %833 = vperm.xlu0 %832, %v417
      %v834 = vpop.permute.xlu0 %833
      %837 = vset.pattern.permute.xlu0 0
      %838 = vperm.xlu0 %837, %v418
      %v839 = vpop.permute.xlu0 %838
      %842 = vset.pattern.permute.xlu0 0
      %843 = vperm.xlu0 %842, %v419
      %v844 = vpop.permute.xlu0 %843
      %847 = vset.pattern.permute.xlu0 0
      %848 = vperm.xlu0 %847, %v420
      %v849 = vpop.permute.xlu0 %848
      %852 = vset.pattern.permute.xlu0 0
      %853 = vperm.xlu0 %852, %v421
      %v854 = vpop.permute.xlu0 %853
      %857 = vset.pattern.permute.xlu0 0
      %858 = vperm.xlu0 %857, %v422
      %v859 = vpop.permute.xlu0 %858
      %862 = vset.pattern.permute.xlu0 0
      %863 = vperm.xlu0 %862, %v423
      %v864 = vpop.permute.xlu0 %863
      %867 = vset.pattern.permute.xlu0 0
      %868 = vperm.xlu0 %867, %v424
      %v869 = vpop.permute.xlu0 %868
      %872 = vset.pattern.permute.xlu0 0
      %873 = vperm.xlu0 %872, %v425
      %v874 = vpop.permute.xlu0 %873
      %877 = vset.pattern.permute.xlu0 0
      %878 = vperm.xlu0 %877, %v426
      %v879 = vpop.permute.xlu0 %878
      %882 = vset.pattern.permute.xlu0 0
      %883 = vperm.xlu0 %882, %v427
      %v884 = vpop.permute.xlu0 %883
      %887 = vset.pattern.permute.xlu0 0
      %888 = vperm.xlu0 %887, %v428
      %v889 = vpop.permute.xlu0 %888
      %892 = vset.pattern.permute.xlu0 0
      %893 = vperm.xlu0 %892, %v429
      %v894 = vpop.permute.xlu0 %893
      %897 = vset.pattern.permute.xlu0 0
      %898 = vperm.xlu0 %897, %v430
      %v899 = vpop.permute.xlu0 %898
      %902 = vset.pattern.permute.xlu0 0
      %903 = vperm.xlu0 %902, %v431
      %v904 = vpop.permute.xlu0 %903
      %907 = vset.pattern.permute.xlu0 0
      %908 = vperm.xlu0 %907, %v432
      %v909 = vpop.permute.xlu0 %908
      %912 = vset.pattern.permute.xlu0 0
      %913 = vperm.xlu0 %912, %v433
      %v914 = vpop.permute.xlu0 %913
      %917 = vset.pattern.permute.xlu0 0
      %918 = vperm.xlu0 %917, %v434
      %v919 = vpop.permute.xlu0 %918
      %922 = vset.pattern.permute.xlu0 0
      %923 = vperm.xlu0 %922, %v435
      %v924 = vpop.permute.xlu0 %923
      %927 = vset.pattern.permute.xlu0 0
      %928 = vperm.xlu0 %927, %v436
      %v929 = vpop.permute.xlu0 %928
      %932 = vset.pattern.permute.xlu0 0
      %933 = vperm.xlu0 %932, %v437
      %v934 = vpop.permute.xlu0 %933
      %937 = vset.pattern.permute.xlu0 0
      %938 = vperm.xlu0 %937, %v438
      %v939 = vpop.permute.xlu0 %938
      %942 = vset.pattern.permute.xlu0 0
      %943 = vperm.xlu0 %942, %v439
      %v944 = vpop.permute.xlu0 %943
      %947 = vset.pattern.permute.xlu0 0
      %948 = vperm.xlu0 %947, %v440
      %v949 = vpop.permute.xlu0 %948
      %952 = vset.pattern.permute.xlu0 0
      %953 = vperm.xlu0 %952, %v441
      %v954 = vpop.permute.xlu0 %953
      %957 = vset.pattern.permute.xlu0 0
      %958 = vperm.xlu0 %957, %v442
      %v959 = vpop.permute.xlu0 %958
      %962 = vset.pattern.permute.xlu0 0
      %963 = vperm.xlu0 %962, %v443
      %v964 = vpop.permute.xlu0 %963
      %v966 = vmul.f32 %v663, %v809
      %v967 = vmul.f32 %v664, %v814
      %v968 = vmul.f32 %v665, %v819
      %v969 = vmul.f32 %v666, %v824
      %v970 = vmul.f32 %v667, %v829
      %v971 = vmul.f32 %v668, %v834
      %v972 = vmul.f32 %v669, %v839
      %v973 = vmul.f32 %v670, %v844
      %v974 = vmul.f32 %v671, %v849
      %v975 = vmul.f32 %v672, %v854
      %v976 = vmul.f32 %v673, %v859
      %v977 = vmul.f32 %v674, %v864
      %v978 = vmul.f32 %v675, %v869
      %v979 = vmul.f32 %v676, %v874
      %v980 = vmul.f32 %v677, %v879
      %v981 = vmul.f32 %v678, %v884
      %v982 = vmul.f32 %v679, %v889
      %v983 = vmul.f32 %v680, %v894
      %v984 = vmul.f32 %v681, %v899
      %v985 = vmul.f32 %v682, %v904
      %v986 = vmul.f32 %v683, %v909
      %v987 = vmul.f32 %v684, %v914
      %v988 = vmul.f32 %v685, %v919
      %v989 = vmul.f32 %v686, %v924
      %v990 = vmul.f32 %v687, %v929
      %v991 = vmul.f32 %v688, %v934
      %v992 = vmul.f32 %v689, %v939
      %v993 = vmul.f32 %v690, %v944
      %v994 = vmul.f32 %v691, %v949
      %v995 = vmul.f32 %v692, %v954
      %v996 = vmul.f32 %v693, %v959
      %v997 = vmul.f32 %v694, %v964
      %s998 = scalar_lea.vmem [#allocation2], 24
      %999 = vst.msk [vmem:[%s998 + $0x1] sm:$0xff] %vm449, %v966
      %1000 = vst.msk [vmem:[%s998 + $0x9] sm:$0xff] %vm449, %v967
      %1001 = vst.msk [vmem:[%s998 + $0x19] sm:$0xff] %vm449, %v968
      %1002 = vst.msk [vmem:[%s998 + $0x21] sm:$0xff] %vm449, %v969
      %1003 = vst.msk [vmem:[%s998 + $0x31] sm:$0xff] %vm449, %v970
      %1004 = vst.msk [vmem:[%s998 + $0x39] sm:$0xff] %vm449, %v971
      %1005 = vst.msk [vmem:[%s998 + $0x49] sm:$0xff] %vm449, %v972
      %1006 = vst.msk [vmem:[%s998 + $0x51] sm:$0xff] %vm449, %v973
      %1007 = vst.msk [vmem:[%s998 + $0x61] sm:$0xff] %vm449, %v974
      %1008 = vst.msk [vmem:[%s998 + $0x69] sm:$0xff] %vm449, %v975
      %1009 = vst.msk [vmem:[%s998 + $0x79] sm:$0xff] %vm449, %v976
      %1010 = vst.msk [vmem:[%s998 + $0x81] sm:$0xff] %vm449, %v977
      %1011 = vst.msk [vmem:[%s998 + $0x91] sm:$0xff] %vm449, %v978
      %1012 = vst.msk [vmem:[%s998 + $0x99] sm:$0xff] %vm449, %v979
      %1013 = vst.msk [vmem:[%s998 + $0xa9] sm:$0xff] %vm449, %v980
      %1014 = vst.msk [vmem:[%s998 + $0xb1] sm:$0xff] %vm449, %v981
      %1015 = vst.msk [vmem:[%s998 + $0xc1] sm:$0xff] %vm449, %v982
      %1016 = vst.msk [vmem:[%s998 + $0xc9] sm:$0xff] %vm449, %v983
      %1017 = vst.msk [vmem:[%s998 + $0xd9] sm:$0xff] %vm449, %v984
      %1018 = vst.msk [vmem:[%s998 + $0xe1] sm:$0xff] %vm449, %v985
      %1019 = vst.msk [vmem:[%s998 + $0xf1] sm:$0xff] %vm449, %v986
      %1020 = vst.msk [vmem:[%s998 + $0xf9] sm:$0xff] %vm449, %v987
      %1021 = vst.msk [vmem:[%s998 + $0x109] sm:$0xff] %vm449, %v988
      %1022 = vst.msk [vmem:[%s998 + $0x111] sm:$0xff] %vm449, %v989
      %1023 = vst.msk [vmem:[%s998 + $0x121] sm:$0xff] %vm449, %v990
      %1024 = vst.msk [vmem:[%s998 + $0x129] sm:$0xff] %vm449, %v991
      %1025 = vst.msk [vmem:[%s998 + $0x139] sm:$0xff] %vm449, %v992
      %1026 = vst.msk [vmem:[%s998 + $0x141] sm:$0xff] %vm449, %v993
      %1027 = vst.msk [vmem:[%s998 + $0x151] sm:$0xff] %vm449, %v994
      %1028 = vst.msk [vmem:[%s998 + $0x159] sm:$0xff] %vm449, %v995
      %1029 = vst.msk [vmem:[%s998 + $0x169] sm:$0xff] %vm449, %v996
      %1030 = vst.msk [vmem:[%s998 + $0x171] sm:$0xff] %vm449, %v997
      %s1031 = scalar_lea.vmem [#allocation3], 24
      %1032 = vst.msk [vmem:[%s1031 + $0x1] sm:$0xff] %vm750, %v412
      %1033 = vst.msk [vmem:[%s1031 + $0x9] sm:$0xff] %vm750, %v413
      %1034 = vst.msk [vmem:[%s1031 + $0x19] sm:$0xff] %vm750, %v414
      %1035 = vst.msk [vmem:[%s1031 + $0x21] sm:$0xff] %vm750, %v415
      %1036 = vst.msk [vmem:[%s1031 + $0x31] sm:$0xff] %vm750, %v416
      %1037 = vst.msk [vmem:[%s1031 + $0x39] sm:$0xff] %vm750, %v417
      %1038 = vst.msk [vmem:[%s1031 + $0x49] sm:$0xff] %vm750, %v418
      %1039 = vst.msk [vmem:[%s1031 + $0x51] sm:$0xff] %vm750, %v419
      %1040 = vst.msk [vmem:[%s1031 + $0x61] sm:$0xff] %vm750, %v420
      %1041 = vst.msk [vmem:[%s1031 + $0x69] sm:$0xff] %vm750, %v421
      %1042 = vst.msk [vmem:[%s1031 + $0x79] sm:$0xff] %vm750, %v422
      %1043 = vst.msk [vmem:[%s1031 + $0x81] sm:$0xff] %vm750, %v423
      %1044 = vst.msk [vmem:[%s1031 + $0x91] sm:$0xff] %vm750, %v424
      %1045 = vst.msk [vmem:[%s1031 + $0x99] sm:$0xff] %vm750, %v425
      %1046 = vst.msk [vmem:[%s1031 + $0xa9] sm:$0xff] %vm750, %v426
      %1047 = vst.msk [vmem:[%s1031 + $0xb1] sm:$0xff] %vm750, %v427
      %1048 = vst.msk [vmem:[%s1031 + $0xc1] sm:$0xff] %vm750, %v428
      %1049 = vst.msk [vmem:[%s1031 + $0xc9] sm:$0xff] %vm750, %v429
      %1050 = vst.msk [vmem:[%s1031 + $0xd9] sm:$0xff] %vm750, %v430
      %1051 = vst.msk [vmem:[%s1031 + $0xe1] sm:$0xff] %vm750, %v431
      %1052 = vst.msk [vmem:[%s1031 + $0xf1] sm:$0xff] %vm750, %v432
      %1053 = vst.msk [vmem:[%s1031 + $0xf9] sm:$0xff] %vm750, %v433
      %1054 = vst.msk [vmem:[%s1031 + $0x109] sm:$0xff] %vm750, %v434
      %1055 = vst.msk [vmem:[%s1031 + $0x111] sm:$0xff] %vm750, %v435
      %1056 = vst.msk [vmem:[%s1031 + $0x121] sm:$0xff] %vm750, %v436
      %1057 = vst.msk [vmem:[%s1031 + $0x129] sm:$0xff] %vm750, %v437
      %1058 = vst.msk [vmem:[%s1031 + $0x139] sm:$0xff] %vm750, %v438
      %1059 = vst.msk [vmem:[%s1031 + $0x141] sm:$0xff] %vm750, %v439
      %1060 = vst.msk [vmem:[%s1031 + $0x151] sm:$0xff] %vm750, %v440
      %1061 = vst.msk [vmem:[%s1031 + $0x159] sm:$0xff] %vm750, %v441
      %1062 = vst.msk [vmem:[%s1031 + $0x169] sm:$0xff] %vm750, %v442
      %1063 = vst.msk [vmem:[%s1031 + $0x171] sm:$0xff] %vm750, %v443
      %v1064 = vld [vmem:[#allocation2] sm:$0xff]
      %v1065 = vld [vmem:[#allocation2 + $0x8] sm:$0xff]
      %v1066 = vld [vmem:[#allocation2 + $0x18] sm:$0xff]
      %v1067 = vld [vmem:[#allocation2 + $0x20] sm:$0xff]
      %v1068 = vld [vmem:[#allocation2 + $0x30] sm:$0xff]
      %v1069 = vld [vmem:[#allocation2 + $0x38] sm:$0xff]
      %v1070 = vld [vmem:[#allocation2 + $0x48] sm:$0xff]
      %v1071 = vld [vmem:[#allocation2 + $0x50] sm:$0xff]
      %v1072 = vld [vmem:[#allocation2 + $0x60] sm:$0xff]
      %v1073 = vld [vmem:[#allocation2 + $0x68] sm:$0xff]
      %v1074 = vld [vmem:[#allocation2 + $0x78] sm:$0xff]
      %v1075 = vld [vmem:[#allocation2 + $0x80] sm:$0xff]
      %v1076 = vld [vmem:[#allocation2 + $0x90] sm:$0xff]
      %v1077 = vld [vmem:[#allocation2 + $0x98] sm:$0xff]
      %v1078 = vld [vmem:[#allocation2 + $0xa8] sm:$0xff]
      %v1079 = vld [vmem:[#allocation2 + $0xb0] sm:$0xff]
      %v1080 = vld [vmem:[#allocation2 + $0xc0] sm:$0xff]
      %v1081 = vld [vmem:[#allocation2 + $0xc8] sm:$0xff]
      %v1082 = vld [vmem:[#allocation2 + $0xd8] sm:$0xff]
      %v1083 = vld [vmem:[#allocation2 + $0xe0] sm:$0xff]
      %v1084 = vld [vmem:[#allocation2 + $0xf0] sm:$0xff]
      %v1085 = vld [vmem:[#allocation2 + $0xf8] sm:$0xff]
      %v1086 = vld [vmem:[#allocation2 + $0x108] sm:$0xff]
      %v1087 = vld [vmem:[#allocation2 + $0x110] sm:$0xff]
      %v1088 = vld [vmem:[#allocation2 + $0x120] sm:$0xff]
      %v1089 = vld [vmem:[#allocation2 + $0x128] sm:$0xff]
      %v1090 = vld [vmem:[#allocation2 + $0x138] sm:$0xff]
      %v1091 = vld [vmem:[#allocation2 + $0x140] sm:$0xff]
      %v1092 = vld [vmem:[#allocation2 + $0x150] sm:$0xff]
      %v1093 = vld [vmem:[#allocation2 + $0x158] sm:$0xff]
      %v1094 = vld [vmem:[#allocation2 + $0x168] sm:$0xff]
      %v1095 = vld [vmem:[#allocation2 + $0x170] sm:$0xff]
      %1096 = vst.msk [vmem:[#allocation4] sm:$0xff] %vm449, %v1064
      %1097 = vst.msk [vmem:[#allocation4 + $0x8] sm:$0xff] %vm449, %v1065
      %1098 = vst.msk [vmem:[#allocation4 + $0x10] sm:$0xff] %vm449, %v1066
      %1099 = vst.msk [vmem:[#allocation4 + $0x18] sm:$0xff] %vm449, %v1067
      %1100 = vst.msk [vmem:[#allocation4 + $0x20] sm:$0xff] %vm449, %v1068
      %1101 = vst.msk [vmem:[#allocation4 + $0x28] sm:$0xff] %vm449, %v1069
      %1102 = vst.msk [vmem:[#allocation4 + $0x30] sm:$0xff] %vm449, %v1070
      %1103 = vst.msk [vmem:[#allocation4 + $0x38] sm:$0xff] %vm449, %v1071
      %1104 = vst.msk [vmem:[#allocation4 + $0x40] sm:$0xff] %vm449, %v1072
      %1105 = vst.msk [vmem:[#allocation4 + $0x48] sm:$0xff] %vm449, %v1073
      %1106 = vst.msk [vmem:[#allocation4 + $0x50] sm:$0xff] %vm449, %v1074
      %1107 = vst.msk [vmem:[#allocation4 + $0x58] sm:$0xff] %vm449, %v1075
      %1108 = vst.msk [vmem:[#allocation4 + $0x60] sm:$0xff] %vm449, %v1076
      %1109 = vst.msk [vmem:[#allocation4 + $0x68] sm:$0xff] %vm449, %v1077
      %1110 = vst.msk [vmem:[#allocation4 + $0x70] sm:$0xff] %vm449, %v1078
      %1111 = vst.msk [vmem:[#allocation4 + $0x78] sm:$0xff] %vm449, %v1079
      %1112 = vst.msk [vmem:[#allocation4 + $0x80] sm:$0xff] %vm449, %v1080
      %1113 = vst.msk [vmem:[#allocation4 + $0x88] sm:$0xff] %vm449, %v1081
      %1114 = vst.msk [vmem:[#allocation4 + $0x90] sm:$0xff] %vm449, %v1082
      %1115 = vst.msk [vmem:[#allocation4 + $0x98] sm:$0xff] %vm449, %v1083
      %1116 = vst.msk [vmem:[#allocation4 + $0xa0] sm:$0xff] %vm449, %v1084
      %1117 = vst.msk [vmem:[#allocation4 + $0xa8] sm:$0xff] %vm449, %v1085
      %1118 = vst.msk [vmem:[#allocation4 + $0xb0] sm:$0xff] %vm449, %v1086
      %1119 = vst.msk [vmem:[#allocation4 + $0xb8] sm:$0xff] %vm449, %v1087
      %1120 = vst.msk [vmem:[#allocation4 + $0xc0] sm:$0xff] %vm449, %v1088
      %1121 = vst.msk [vmem:[#allocation4 + $0xc8] sm:$0xff] %vm449, %v1089
      %1122 = vst.msk [vmem:[#allocation4 + $0xd0] sm:$0xff] %vm449, %v1090
      %1123 = vst.msk [vmem:[#allocation4 + $0xd8] sm:$0xff] %vm449, %v1091
      %1124 = vst.msk [vmem:[#allocation4 + $0xe0] sm:$0xff] %vm449, %v1092
      %1125 = vst.msk [vmem:[#allocation4 + $0xe8] sm:$0xff] %vm449, %v1093
      %1126 = vst.msk [vmem:[#allocation4 + $0xf0] sm:$0xff] %vm449, %v1094
      %1127 = vst.msk [vmem:[#allocation4 + $0xf8] sm:$0xff] %vm449, %v1095
      %v1128 = vld [vmem:[#allocation3] sm:$0xff]
      %v1129 = vld [vmem:[#allocation3 + $0x8] sm:$0xff]
      %v1130 = vld [vmem:[#allocation3 + $0x18] sm:$0xff]
      %v1131 = vld [vmem:[#allocation3 + $0x20] sm:$0xff]
      %v1132 = vld [vmem:[#allocation3 + $0x30] sm:$0xff]
      %v1133 = vld [vmem:[#allocation3 + $0x38] sm:$0xff]
      %v1134 = vld [vmem:[#allocation3 + $0x48] sm:$0xff]
      %v1135 = vld [vmem:[#allocation3 + $0x50] sm:$0xff]
      %v1136 = vld [vmem:[#allocation3 + $0x60] sm:$0xff]
      %v1137 = vld [vmem:[#allocation3 + $0x68] sm:$0xff]
      %v1138 = vld [vmem:[#allocation3 + $0x78] sm:$0xff]
      %v1139 = vld [vmem:[#allocation3 + $0x80] sm:$0xff]
      %v1140 = vld [vmem:[#allocation3 + $0x90] sm:$0xff]
      %v1141 = vld [vmem:[#allocation3 + $0x98] sm:$0xff]
      %v1142 = vld [vmem:[#allocation3 + $0xa8] sm:$0xff]
      %v1143 = vld [vmem:[#allocation3 + $0xb0] sm:$0xff]
      %v1144 = vld [vmem:[#allocation3 + $0xc0] sm:$0xff]
      %v1145 = vld [vmem:[#allocation3 + $0xc8] sm:$0xff]
      %v1146 = vld [vmem:[#allocation3 + $0xd8] sm:$0xff]
      %v1147 = vld [vmem:[#allocation3 + $0xe0] sm:$0xff]
      %v1148 = vld [vmem:[#allocation3 + $0xf0] sm:$0xff]
      %v1149 = vld [vmem:[#allocation3 + $0xf8] sm:$0xff]
      %v1150 = vld [vmem:[#allocation3 + $0x108] sm:$0xff]
      %v1151 = vld [vmem:[#allocation3 + $0x110] sm:$0xff]
      %v1152 = vld [vmem:[#allocation3 + $0x120] sm:$0xff]
      %v1153 = vld [vmem:[#allocation3 + $0x128] sm:$0xff]
      %v1154 = vld [vmem:[#allocation3 + $0x138] sm:$0xff]
      %v1155 = vld [vmem:[#allocation3 + $0x140] sm:$0xff]
      %v1156 = vld [vmem:[#allocation3 + $0x150] sm:$0xff]
      %v1157 = vld [vmem:[#allocation3 + $0x158] sm:$0xff]
      %v1158 = vld [vmem:[#allocation3 + $0x168] sm:$0xff]
      %v1159 = vld [vmem:[#allocation3 + $0x170] sm:$0xff]
      %v1160 = vadd.f32 %v1128, 0.0
      %v1161 = vadd.f32 %v1129, 0.0
      %v1162 = vadd.f32 %v1130, 0.0
      %v1163 = vadd.f32 %v1131, 0.0
      %v1164 = vadd.f32 %v1132, 0.0
      %v1165 = vadd.f32 %v1133, 0.0
      %v1166 = vadd.f32 %v1134, 0.0
      %v1167 = vadd.f32 %v1135, 0.0
      %v1168 = vadd.f32 %v1136, 0.0
      %v1169 = vadd.f32 %v1137, 0.0
      %v1170 = vadd.f32 %v1138, 0.0
      %v1171 = vadd.f32 %v1139, 0.0
      %v1172 = vadd.f32 %v1140, 0.0
      %v1173 = vadd.f32 %v1141, 0.0
      %v1174 = vadd.f32 %v1142, 0.0
      %v1175 = vadd.f32 %v1143, 0.0
      %v1176 = vadd.f32 %v1144, 0.0
      %v1177 = vadd.f32 %v1145, 0.0
      %v1178 = vadd.f32 %v1146, 0.0
      %v1179 = vadd.f32 %v1147, 0.0
      %v1180 = vadd.f32 %v1148, 0.0
      %v1181 = vadd.f32 %v1149, 0.0
      %v1182 = vadd.f32 %v1150, 0.0
      %v1183 = vadd.f32 %v1151, 0.0
      %v1184 = vadd.f32 %v1152, 0.0
      %v1185 = vadd.f32 %v1153, 0.0
      %v1186 = vadd.f32 %v1154, 0.0
      %v1187 = vadd.f32 %v1155, 0.0
      %v1188 = vadd.f32 %v1156, 0.0
      %v1189 = vadd.f32 %v1157, 0.0
      %v1190 = vadd.f32 %v1158, 0.0
      %v1191 = vadd.f32 %v1159, 0.0
      %v1192 = vld [vmem:[#allocation2 + $0x1] sm:$0xff]
      %v1193 = vld [vmem:[#allocation2 + $0x9] sm:$0xff]
      %v1194 = vld [vmem:[#allocation2 + $0x19] sm:$0xff]
      %v1195 = vld [vmem:[#allocation2 + $0x21] sm:$0xff]
      %v1196 = vld [vmem:[#allocation2 + $0x31] sm:$0xff]
      %v1197 = vld [vmem:[#allocation2 + $0x39] sm:$0xff]
      %v1198 = vld [vmem:[#allocation2 + $0x49] sm:$0xff]
      %v1199 = vld [vmem:[#allocation2 + $0x51] sm:$0xff]
      %v1200 = vld [vmem:[#allocation2 + $0x61] sm:$0xff]
      %v1201 = vld [vmem:[#allocation2 + $0x69] sm:$0xff]
      %v1202 = vld [vmem:[#allocation2 + $0x79] sm:$0xff]
      %v1203 = vld [vmem:[#allocation2 + $0x81] sm:$0xff]
      %v1204 = vld [vmem:[#allocation2 + $0x91] sm:$0xff]
      %v1205 = vld [vmem:[#allocation2 + $0x99] sm:$0xff]
      %v1206 = vld [vmem:[#allocation2 + $0xa9] sm:$0xff]
      %v1207 = vld [vmem:[#allocation2 + $0xb1] sm:$0xff]
      %v1208 = vld [vmem:[#allocation2 + $0xc1] sm:$0xff]
      %v1209 = vld [vmem:[#allocation2 + $0xc9] sm:$0xff]
      %v1210 = vld [vmem:[#allocation2 + $0xd9] sm:$0xff]
      %v1211 = vld [vmem:[#allocation2 + $0xe1] sm:$0xff]
      %v1212 = vld [vmem:[#allocation2 + $0xf1] sm:$0xff]
      %v1213 = vld [vmem:[#allocation2 + $0xf9] sm:$0xff]
      %v1214 = vld [vmem:[#allocation2 + $0x109] sm:$0xff]
      %v1215 = vld [vmem:[#allocation2 + $0x111] sm:$0xff]
      %v1216 = vld [vmem:[#allocation2 + $0x121] sm:$0xff]
      %v1217 = vld [vmem:[#allocation2 + $0x129] sm:$0xff]
      %v1218 = vld [vmem:[#allocation2 + $0x139] sm:$0xff]
      %v1219 = vld [vmem:[#allocation2 + $0x141] sm:$0xff]
      %v1220 = vld [vmem:[#allocation2 + $0x151] sm:$0xff]
      %v1221 = vld [vmem:[#allocation2 + $0x159] sm:$0xff]
      %v1222 = vld [vmem:[#allocation2 + $0x169] sm:$0xff]
      %v1223 = vld [vmem:[#allocation2 + $0x171] sm:$0xff]
      %1256 = vrot.lane.b32.xlu0 %v1192, 4
      %v1257 = vpop.permute.xlu0 %1256
      %1258 = vrot.lane.b32.xlu0 %v1193, 4
      %v1259 = vpop.permute.xlu0 %1258
      %1260 = vrot.lane.b32.xlu0 %v1194, 4
      %v1261 = vpop.permute.xlu0 %1260
      %1262 = vrot.lane.b32.xlu0 %v1195, 4
      %v1263 = vpop.permute.xlu0 %1262
      %1264 = vrot.lane.b32.xlu0 %v1196, 4
      %v1265 = vpop.permute.xlu0 %1264
      %1266 = vrot.lane.b32.xlu0 %v1197, 4
      %v1267 = vpop.permute.xlu0 %1266
      %1268 = vrot.lane.b32.xlu0 %v1198, 4
      %v1269 = vpop.permute.xlu0 %1268
      %1270 = vrot.lane.b32.xlu0 %v1199, 4
      %v1271 = vpop.permute.xlu0 %1270
      %1272 = vrot.lane.b32.xlu0 %v1200, 4
      %v1273 = vpop.permute.xlu0 %1272
      %1274 = vrot.lane.b32.xlu0 %v1201, 4
      %v1275 = vpop.permute.xlu0 %1274
      %1276 = vrot.lane.b32.xlu0 %v1202, 4
      %v1277 = vpop.permute.xlu0 %1276
      %1278 = vrot.lane.b32.xlu0 %v1203, 4
      %v1279 = vpop.permute.xlu0 %1278
      %1280 = vrot.lane.b32.xlu0 %v1204, 4
      %v1281 = vpop.permute.xlu0 %1280
      %1282 = vrot.lane.b32.xlu0 %v1205, 4
      %v1283 = vpop.permute.xlu0 %1282
      %1284 = vrot.lane.b32.xlu0 %v1206, 4
      %v1285 = vpop.permute.xlu0 %1284
      %1286 = vrot.lane.b32.xlu0 %v1207, 4
      %v1287 = vpop.permute.xlu0 %1286
      %1288 = vrot.lane.b32.xlu0 %v1208, 4
      %v1289 = vpop.permute.xlu0 %1288
      %1290 = vrot.lane.b32.xlu0 %v1209, 4
      %v1291 = vpop.permute.xlu0 %1290
      %1292 = vrot.lane.b32.xlu0 %v1210, 4
      %v1293 = vpop.permute.xlu0 %1292
      %1294 = vrot.lane.b32.xlu0 %v1211, 4
      %v1295 = vpop.permute.xlu0 %1294
      %1296 = vrot.lane.b32.xlu0 %v1212, 4
      %v1297 = vpop.permute.xlu0 %1296
      %1298 = vrot.lane.b32.xlu0 %v1213, 4
      %v1299 = vpop.permute.xlu0 %1298
      %1300 = vrot.lane.b32.xlu0 %v1214, 4
      %v1301 = vpop.permute.xlu0 %1300
      %1302 = vrot.lane.b32.xlu0 %v1215, 4
      %v1303 = vpop.permute.xlu0 %1302
      %1304 = vrot.lane.b32.xlu0 %v1216, 4
      %v1305 = vpop.permute.xlu0 %1304
      %1306 = vrot.lane.b32.xlu0 %v1217, 4
      %v1307 = vpop.permute.xlu0 %1306
      %1308 = vrot.lane.b32.xlu0 %v1218, 4
      %v1309 = vpop.permute.xlu0 %1308
      %1310 = vrot.lane.b32.xlu0 %v1219, 4
      %v1311 = vpop.permute.xlu0 %1310
      %1312 = vrot.lane.b32.xlu0 %v1220, 4
      %v1313 = vpop.permute.xlu0 %1312
      %1314 = vrot.lane.b32.xlu0 %v1221, 4
      %v1315 = vpop.permute.xlu0 %1314
      %1316 = vrot.lane.b32.xlu0 %v1222, 4
      %v1317 = vpop.permute.xlu0 %1316
      %1318 = vrot.lane.b32.xlu0 %v1223, 4
      %v1319 = vpop.permute.xlu0 %1318
      %vm1352 = vcmask 64544
      %1353 = vst.msk [vmem:[#allocation4] sm:$0xff] %vm1352, %v1257
      %1354 = vst.msk [vmem:[#allocation4 + $0x8] sm:$0xff] %vm1352, %v1259
      %1355 = vst.msk [vmem:[#allocation4 + $0x10] sm:$0xff] %vm1352, %v1261
      %1356 = vst.msk [vmem:[#allocation4 + $0x18] sm:$0xff] %vm1352, %v1263
      %1357 = vst.msk [vmem:[#allocation4 + $0x20] sm:$0xff] %vm1352, %v1265
      %1358 = vst.msk [vmem:[#allocation4 + $0x28] sm:$0xff] %vm1352, %v1267
      %1359 = vst.msk [vmem:[#allocation4 + $0x30] sm:$0xff] %vm1352, %v1269
      %1360 = vst.msk [vmem:[#allocation4 + $0x38] sm:$0xff] %vm1352, %v1271
      %1361 = vst.msk [vmem:[#allocation4 + $0x40] sm:$0xff] %vm1352, %v1273
      %1362 = vst.msk [vmem:[#allocation4 + $0x48] sm:$0xff] %vm1352, %v1275
      %1363 = vst.msk [vmem:[#allocation4 + $0x50] sm:$0xff] %vm1352, %v1277
      %1364 = vst.msk [vmem:[#allocation4 + $0x58] sm:$0xff] %vm1352, %v1279
      %1365 = vst.msk [vmem:[#allocation4 + $0x60] sm:$0xff] %vm1352, %v1281
      %1366 = vst.msk [vmem:[#allocation4 + $0x68] sm:$0xff] %vm1352, %v1283
      %1367 = vst.msk [vmem:[#allocation4 + $0x70] sm:$0xff] %vm1352, %v1285
      %1368 = vst.msk [vmem:[#allocation4 + $0x78] sm:$0xff] %vm1352, %v1287
      %1369 = vst.msk [vmem:[#allocation4 + $0x80] sm:$0xff] %vm1352, %v1289
      %1370 = vst.msk [vmem:[#allocation4 + $0x88] sm:$0xff] %vm1352, %v1291
      %1371 = vst.msk [vmem:[#allocation4 + $0x90] sm:$0xff] %vm1352, %v1293
      %1372 = vst.msk [vmem:[#allocation4 + $0x98] sm:$0xff] %vm1352, %v1295
      %1373 = vst.msk [vmem:[#allocation4 + $0xa0] sm:$0xff] %vm1352, %v1297
      %1374 = vst.msk [vmem:[#allocation4 + $0xa8] sm:$0xff] %vm1352, %v1299
      %1375 = vst.msk [vmem:[#allocation4 + $0xb0] sm:$0xff] %vm1352, %v1301
      %1376 = vst.msk [vmem:[#allocation4 + $0xb8] sm:$0xff] %vm1352, %v1303
      %1377 = vst.msk [vmem:[#allocation4 + $0xc0] sm:$0xff] %vm1352, %v1305
      %1378 = vst.msk [vmem:[#allocation4 + $0xc8] sm:$0xff] %vm1352, %v1307
      %1379 = vst.msk [vmem:[#allocation4 + $0xd0] sm:$0xff] %vm1352, %v1309
      %1380 = vst.msk [vmem:[#allocation4 + $0xd8] sm:$0xff] %vm1352, %v1311
      %1381 = vst.msk [vmem:[#allocation4 + $0xe0] sm:$0xff] %vm1352, %v1313
      %1382 = vst.msk [vmem:[#allocation4 + $0xe8] sm:$0xff] %vm1352, %v1315
      %1383 = vst.msk [vmem:[#allocation4 + $0xf0] sm:$0xff] %vm1352, %v1317
      %1384 = vst.msk [vmem:[#allocation4 + $0xf8] sm:$0xff] %vm1352, %v1319
      %v1385 = vld [vmem:[#allocation3 + $0x1] sm:$0xff]
      %v1386 = vld [vmem:[#allocation3 + $0x9] sm:$0xff]
      %v1387 = vld [vmem:[#allocation3 + $0x19] sm:$0xff]
      %v1388 = vld [vmem:[#allocation3 + $0x21] sm:$0xff]
      %v1389 = vld [vmem:[#allocation3 + $0x31] sm:$0xff]
      %v1390 = vld [vmem:[#allocation3 + $0x39] sm:$0xff]
      %v1391 = vld [vmem:[#allocation3 + $0x49] sm:$0xff]
      %v1392 = vld [vmem:[#allocation3 + $0x51] sm:$0xff]
      %v1393 = vld [vmem:[#allocation3 + $0x61] sm:$0xff]
      %v1394 = vld [vmem:[#allocation3 + $0x69] sm:$0xff]
      %v1395 = vld [vmem:[#allocation3 + $0x79] sm:$0xff]
      %v1396 = vld [vmem:[#allocation3 + $0x81] sm:$0xff]
      %v1397 = vld [vmem:[#allocation3 + $0x91] sm:$0xff]
      %v1398 = vld [vmem:[#allocation3 + $0x99] sm:$0xff]
      %v1399 = vld [vmem:[#allocation3 + $0xa9] sm:$0xff]
      %v1400 = vld [vmem:[#allocation3 + $0xb1] sm:$0xff]
      %v1401 = vld [vmem:[#allocation3 + $0xc1] sm:$0xff]
      %v1402 = vld [vmem:[#allocation3 + $0xc9] sm:$0xff]
      %v1403 = vld [vmem:[#allocation3 + $0xd9] sm:$0xff]
      %v1404 = vld [vmem:[#allocation3 + $0xe1] sm:$0xff]
      %v1405 = vld [vmem:[#allocation3 + $0xf1] sm:$0xff]
      %v1406 = vld [vmem:[#allocation3 + $0xf9] sm:$0xff]
      %v1407 = vld [vmem:[#allocation3 + $0x109] sm:$0xff]
      %v1408 = vld [vmem:[#allocation3 + $0x111] sm:$0xff]
      %v1409 = vld [vmem:[#allocation3 + $0x121] sm:$0xff]
      %v1410 = vld [vmem:[#allocation3 + $0x129] sm:$0xff]
      %v1411 = vld [vmem:[#allocation3 + $0x139] sm:$0xff]
      %v1412 = vld [vmem:[#allocation3 + $0x141] sm:$0xff]
      %v1413 = vld [vmem:[#allocation3 + $0x151] sm:$0xff]
      %v1414 = vld [vmem:[#allocation3 + $0x159] sm:$0xff]
      %v1415 = vld [vmem:[#allocation3 + $0x169] sm:$0xff]
      %v1416 = vld [vmem:[#allocation3 + $0x171] sm:$0xff]
      %v1417 = vadd.f32 %v1160, %v1385
      %v1418 = vadd.f32 %v1161, %v1386
      %v1419 = vadd.f32 %v1162, %v1387
      %v1420 = vadd.f32 %v1163, %v1388
      %v1421 = vadd.f32 %v1164, %v1389
      %v1422 = vadd.f32 %v1165, %v1390
      %v1423 = vadd.f32 %v1166, %v1391
      %v1424 = vadd.f32 %v1167, %v1392
      %v1425 = vadd.f32 %v1168, %v1393
      %v1426 = vadd.f32 %v1169, %v1394
      %v1427 = vadd.f32 %v1170, %v1395
      %v1428 = vadd.f32 %v1171, %v1396
      %v1429 = vadd.f32 %v1172, %v1397
      %v1430 = vadd.f32 %v1173, %v1398
      %v1431 = vadd.f32 %v1174, %v1399
      %v1432 = vadd.f32 %v1175, %v1400
      %v1433 = vadd.f32 %v1176, %v1401
      %v1434 = vadd.f32 %v1177, %v1402
      %v1435 = vadd.f32 %v1178, %v1403
      %v1436 = vadd.f32 %v1179, %v1404
      %v1437 = vadd.f32 %v1180, %v1405
      %v1438 = vadd.f32 %v1181, %v1406
      %v1439 = vadd.f32 %v1182, %v1407
      %v1440 = vadd.f32 %v1183, %v1408
      %v1441 = vadd.f32 %v1184, %v1409
      %v1442 = vadd.f32 %v1185, %v1410
      %v1443 = vadd.f32 %v1186, %v1411
      %v1444 = vadd.f32 %v1187, %v1412
      %v1445 = vadd.f32 %v1188, %v1413
      %v1446 = vadd.f32 %v1189, %v1414
      %v1447 = vadd.f32 %v1190, %v1415
      %v1448 = vadd.f32 %v1191, %v1416
      %v1449 = vld [vmem:[#allocation2 + $0x2] sm:$0xff]
      %v1450 = vld [vmem:[#allocation2 + $0xa] sm:$0xff]
      %v1451 = vld [vmem:[#allocation2 + $0x1a] sm:$0xff]
      %v1452 = vld [vmem:[#allocation2 + $0x22] sm:$0xff]
      %v1453 = vld [vmem:[#allocation2 + $0x32] sm:$0xff]
      %v1454 = vld [vmem:[#allocation2 + $0x3a] sm:$0xff]
      %v1455 = vld [vmem:[#allocation2 + $0x4a] sm:$0xff]
      %v1456 = vld [vmem:[#allocation2 + $0x52] sm:$0xff]
      %v1457 = vld [vmem:[#allocation2 + $0x62] sm:$0xff]
      %v1458 = vld [vmem:[#allocation2 + $0x6a] sm:$0xff]
      %v1459 = vld [vmem:[#allocation2 + $0x7a] sm:$0xff]
      %v1460 = vld [vmem:[#allocation2 + $0x82] sm:$0xff]
      %v1461 = vld [vmem:[#allocation2 + $0x92] sm:$0xff]
      %v1462 = vld [vmem:[#allocation2 + $0x9a] sm:$0xff]
      %v1463 = vld [vmem:[#allocation2 + $0xaa] sm:$0xff]
      %v1464 = vld [vmem:[#allocation2 + $0xb2] sm:$0xff]
      %v1465 = vld [vmem:[#allocation2 + $0xc2] sm:$0xff]
      %v1466 = vld [vmem:[#allocation2 + $0xca] sm:$0xff]
      %v1467 = vld [vmem:[#allocation2 + $0xda] sm:$0xff]
      %v1468 = vld [vmem:[#allocation2 + $0xe2] sm:$0xff]
      %v1469 = vld [vmem:[#allocation2 + $0xf2] sm:$0xff]
      %v1470 = vld [vmem:[#allocation2 + $0xfa] sm:$0xff]
      %v1471 = vld [vmem:[#allocation2 + $0x10a] sm:$0xff]
      %v1472 = vld [vmem:[#allocation2 + $0x112] sm:$0xff]
      %v1473 = vld [vmem:[#allocation2 + $0x122] sm:$0xff]
      %v1474 = vld [vmem:[#allocation2 + $0x12a] sm:$0xff]
      %v1475 = vld [vmem:[#allocation2 + $0x13a] sm:$0xff]
      %v1476 = vld [vmem:[#allocation2 + $0x142] sm:$0xff]
      %v1477 = vld [vmem:[#allocation2 + $0x152] sm:$0xff]
      %v1478 = vld [vmem:[#allocation2 + $0x15a] sm:$0xff]
      %v1479 = vld [vmem:[#allocation2 + $0x16a] sm:$0xff]
      %v1480 = vld [vmem:[#allocation2 + $0x172] sm:$0xff]
      %1513 = vrot.lane.b32.xlu0 %v1449, 8
      %v1514 = vpop.permute.xlu0 %1513
      %1515 = vrot.lane.b32.xlu0 %v1450, 8
      %v1516 = vpop.permute.xlu0 %1515
      %1517 = vrot.lane.b32.xlu0 %v1451, 8
      %v1518 = vpop.permute.xlu0 %1517
      %1519 = vrot.lane.b32.xlu0 %v1452, 8
      %v1520 = vpop.permute.xlu0 %1519
      %1521 = vrot.lane.b32.xlu0 %v1453, 8
      %v1522 = vpop.permute.xlu0 %1521
      %1523 = vrot.lane.b32.xlu0 %v1454, 8
      %v1524 = vpop.permute.xlu0 %1523
      %1525 = vrot.lane.b32.xlu0 %v1455, 8
      %v1526 = vpop.permute.xlu0 %1525
      %1527 = vrot.lane.b32.xlu0 %v1456, 8
      %v1528 = vpop.permute.xlu0 %1527
      %1529 = vrot.lane.b32.xlu0 %v1457, 8
      %v1530 = vpop.permute.xlu0 %1529
      %1531 = vrot.lane.b32.xlu0 %v1458, 8
      %v1532 = vpop.permute.xlu0 %1531
      %1533 = vrot.lane.b32.xlu0 %v1459, 8
      %v1534 = vpop.permute.xlu0 %1533
      %1535 = vrot.lane.b32.xlu0 %v1460, 8
      %v1536 = vpop.permute.xlu0 %1535
      %1537 = vrot.lane.b32.xlu0 %v1461, 8
      %v1538 = vpop.permute.xlu0 %1537
      %1539 = vrot.lane.b32.xlu0 %v1462, 8
      %v1540 = vpop.permute.xlu0 %1539
      %1541 = vrot.lane.b32.xlu0 %v1463, 8
      %v1542 = vpop.permute.xlu0 %1541
      %1543 = vrot.lane.b32.xlu0 %v1464, 8
      %v1544 = vpop.permute.xlu0 %1543
      %1545 = vrot.lane.b32.xlu0 %v1465, 8
      %v1546 = vpop.permute.xlu0 %1545
      %1547 = vrot.lane.b32.xlu0 %v1466, 8
      %v1548 = vpop.permute.xlu0 %1547
      %1549 = vrot.lane.b32.xlu0 %v1467, 8
      %v1550 = vpop.permute.xlu0 %1549
      %1551 = vrot.lane.b32.xlu0 %v1468, 8
      %v1552 = vpop.permute.xlu0 %1551
      %1553 = vrot.lane.b32.xlu0 %v1469, 8
      %v1554 = vpop.permute.xlu0 %1553
      %1555 = vrot.lane.b32.xlu0 %v1470, 8
      %v1556 = vpop.permute.xlu0 %1555
      %1557 = vrot.lane.b32.xlu0 %v1471, 8
      %v1558 = vpop.permute.xlu0 %1557
      %1559 = vrot.lane.b32.xlu0 %v1472, 8
      %v1560 = vpop.permute.xlu0 %1559
      %1561 = vrot.lane.b32.xlu0 %v1473, 8
      %v1562 = vpop.permute.xlu0 %1561
      %1563 = vrot.lane.b32.xlu0 %v1474, 8
      %v1564 = vpop.permute.xlu0 %1563
      %1565 = vrot.lane.b32.xlu0 %v1475, 8
      %v1566 = vpop.permute.xlu0 %1565
      %1567 = vrot.lane.b32.xlu0 %v1476, 8
      %v1568 = vpop.permute.xlu0 %1567
      %1569 = vrot.lane.b32.xlu0 %v1477, 8
      %v1570 = vpop.permute.xlu0 %1569
      %1571 = vrot.lane.b32.xlu0 %v1478, 8
      %v1572 = vpop.permute.xlu0 %1571
      %1573 = vrot.lane.b32.xlu0 %v1479, 8
      %v1574 = vpop.permute.xlu0 %1573
      %1575 = vrot.lane.b32.xlu0 %v1480, 8
      %v1576 = vpop.permute.xlu0 %1575
      %vm1609 = vcmask 97344
      %1610 = vst.msk [vmem:[#allocation4] sm:$0xff] %vm1609, %v1514
      %1611 = vst.msk [vmem:[#allocation4 + $0x8] sm:$0xff] %vm1609, %v1516
      %1612 = vst.msk [vmem:[#allocation4 + $0x10] sm:$0xff] %vm1609, %v1518
      %1613 = vst.msk [vmem:[#allocation4 + $0x18] sm:$0xff] %vm1609, %v1520
      %1614 = vst.msk [vmem:[#allocation4 + $0x20] sm:$0xff] %vm1609, %v1522
      %1615 = vst.msk [vmem:[#allocation4 + $0x28] sm:$0xff] %vm1609, %v1524
      %1616 = vst.msk [vmem:[#allocation4 + $0x30] sm:$0xff] %vm1609, %v1526
      %1617 = vst.msk [vmem:[#allocation4 + $0x38] sm:$0xff] %vm1609, %v1528
      %1618 = vst.msk [vmem:[#allocation4 + $0x40] sm:$0xff] %vm1609, %v1530
      %1619 = vst.msk [vmem:[#allocation4 + $0x48] sm:$0xff] %vm1609, %v1532
      %1620 = vst.msk [vmem:[#allocation4 + $0x50] sm:$0xff] %vm1609, %v1534
      %1621 = vst.msk [vmem:[#allocation4 + $0x58] sm:$0xff] %vm1609, %v1536
      %1622 = vst.msk [vmem:[#allocation4 + $0x60] sm:$0xff] %vm1609, %v1538
      %1623 = vst.msk [vmem:[#allocation4 + $0x68] sm:$0xff] %vm1609, %v1540
      %1624 = vst.msk [vmem:[#allocation4 + $0x70] sm:$0xff] %vm1609, %v1542
      %1625 = vst.msk [vmem:[#allocation4 + $0x78] sm:$0xff] %vm1609, %v1544
      %1626 = vst.msk [vmem:[#allocation4 + $0x80] sm:$0xff] %vm1609, %v1546
      %1627 = vst.msk [vmem:[#allocation4 + $0x88] sm:$0xff] %vm1609, %v1548
      %1628 = vst.msk [vmem:[#allocation4 + $0x90] sm:$0xff] %vm1609, %v1550
      %1629 = vst.msk [vmem:[#allocation4 + $0x98] sm:$0xff] %vm1609, %v1552
      %1630 = vst.msk [vmem:[#allocation4 + $0xa0] sm:$0xff] %vm1609, %v1554
      %1631 = vst.msk [vmem:[#allocation4 + $0xa8] sm:$0xff] %vm1609, %v1556
      %1632 = vst.msk [vmem:[#allocation4 + $0xb0] sm:$0xff] %vm1609, %v1558
      %1633 = vst.msk [vmem:[#allocation4 + $0xb8] sm:$0xff] %vm1609, %v1560
      %1634 = vst.msk [vmem:[#allocation4 + $0xc0] sm:$0xff] %vm1609, %v1562
      %1635 = vst.msk [vmem:[#allocation4 + $0xc8] sm:$0xff] %vm1609, %v1564
      %1636 = vst.msk [vmem:[#allocation4 + $0xd0] sm:$0xff] %vm1609, %v1566
      %1637 = vst.msk [vmem:[#allocation4 + $0xd8] sm:$0xff] %vm1609, %v1568
      %1638 = vst.msk [vmem:[#allocation4 + $0xe0] sm:$0xff] %vm1609, %v1570
      %1639 = vst.msk [vmem:[#allocation4 + $0xe8] sm:$0xff] %vm1609, %v1572
      %1640 = vst.msk [vmem:[#allocation4 + $0xf0] sm:$0xff] %vm1609, %v1574
      %1641 = vst.msk [vmem:[#allocation4 + $0xf8] sm:$0xff] %vm1609, %v1576
      %v1642 = vld [vmem:[#allocation3 + $0x2] sm:$0xff]
      %v1643 = vld [vmem:[#allocation3 + $0xa] sm:$0xff]
      %v1644 = vld [vmem:[#allocation3 + $0x1a] sm:$0xff]
      %v1645 = vld [vmem:[#allocation3 + $0x22] sm:$0xff]
      %v1646 = vld [vmem:[#allocation3 + $0x32] sm:$0xff]
      %v1647 = vld [vmem:[#allocation3 + $0x3a] sm:$0xff]
      %v1648 = vld [vmem:[#allocation3 + $0x4a] sm:$0xff]
      %v1649 = vld [vmem:[#allocation3 + $0x52] sm:$0xff]
      %v1650 = vld [vmem:[#allocation3 + $0x62] sm:$0xff]
      %v1651 = vld [vmem:[#allocation3 + $0x6a] sm:$0xff]
      %v1652 = vld [vmem:[#allocation3 + $0x7a] sm:$0xff]
      %v1653 = vld [vmem:[#allocation3 + $0x82] sm:$0xff]
      %v1654 = vld [vmem:[#allocation3 + $0x92] sm:$0xff]
      %v1655 = vld [vmem:[#allocation3 + $0x9a] sm:$0xff]
      %v1656 = vld [vmem:[#allocation3 + $0xaa] sm:$0xff]
      %v1657 = vld [vmem:[#allocation3 + $0xb2] sm:$0xff]
      %v1658 = vld [vmem:[#allocation3 + $0xc2] sm:$0xff]
      %v1659 = vld [vmem:[#allocation3 + $0xca] sm:$0xff]
      %v1660 = vld [vmem:[#allocation3 + $0xda] sm:$0xff]
      %v1661 = vld [vmem:[#allocation3 + $0xe2] sm:$0xff]
      %v1662 = vld [vmem:[#allocation3 + $0xf2] sm:$0xff]
      %v1663 = vld [vmem:[#allocation3 + $0xfa] sm:$0xff]
      %v1664 = vld [vmem:[#allocation3 + $0x10a] sm:$0xff]
      %v1665 = vld [vmem:[#allocation3 + $0x112] sm:$0xff]
      %v1666 = vld [vmem:[#allocation3 + $0x122] sm:$0xff]
      %v1667 = vld [vmem:[#allocation3 + $0x12a] sm:$0xff]
      %v1668 = vld [vmem:[#allocation3 + $0x13a] sm:$0xff]
      %v1669 = vld [vmem:[#allocation3 + $0x142] sm:$0xff]
      %v1670 = vld [vmem:[#allocation3 + $0x152] sm:$0xff]
      %v1671 = vld [vmem:[#allocation3 + $0x15a] sm:$0xff]
      %v1672 = vld [vmem:[#allocation3 + $0x16a] sm:$0xff]
      %v1673 = vld [vmem:[#allocation3 + $0x172] sm:$0xff]
      %v1674 = vadd.f32 %v1417, %v1642
      %v1675 = vadd.f32 %v1418, %v1643
      %v1676 = vadd.f32 %v1419, %v1644
      %v1677 = vadd.f32 %v1420, %v1645
      %v1678 = vadd.f32 %v1421, %v1646
      %v1679 = vadd.f32 %v1422, %v1647
      %v1680 = vadd.f32 %v1423, %v1648
      %v1681 = vadd.f32 %v1424, %v1649
      %v1682 = vadd.f32 %v1425, %v1650
      %v1683 = vadd.f32 %v1426, %v1651
      %v1684 = vadd.f32 %v1427, %v1652
      %v1685 = vadd.f32 %v1428, %v1653
      %v1686 = vadd.f32 %v1429, %v1654
      %v1687 = vadd.f32 %v1430, %v1655
      %v1688 = vadd.f32 %v1431, %v1656
      %v1689 = vadd.f32 %v1432, %v1657
      %v1690 = vadd.f32 %v1433, %v1658
      %v1691 = vadd.f32 %v1434, %v1659
      %v1692 = vadd.f32 %v1435, %v1660
      %v1693 = vadd.f32 %v1436, %v1661
      %v1694 = vadd.f32 %v1437, %v1662
      %v1695 = vadd.f32 %v1438, %v1663
      %v1696 = vadd.f32 %v1439, %v1664
      %v1697 = vadd.f32 %v1440, %v1665
      %v1698 = vadd.f32 %v1441, %v1666
      %v1699 = vadd.f32 %v1442, %v1667
      %v1700 = vadd.f32 %v1443, %v1668
      %v1701 = vadd.f32 %v1444, %v1669
      %v1702 = vadd.f32 %v1445, %v1670
      %v1703 = vadd.f32 %v1446, %v1671
      %v1704 = vadd.f32 %v1447, %v1672
      %v1705 = vadd.f32 %v1448, %v1673
      %v1706 = vld [vmem:[%s998] sm:$0xff]
      %v1707 = vld [vmem:[%s998 + $0x8] sm:$0xff]
      %v1708 = vld [vmem:[%s998 + $0x18] sm:$0xff]
      %v1709 = vld [vmem:[%s998 + $0x20] sm:$0xff]
      %v1710 = vld [vmem:[%s998 + $0x30] sm:$0xff]
      %v1711 = vld [vmem:[%s998 + $0x38] sm:$0xff]
      %v1712 = vld [vmem:[%s998 + $0x48] sm:$0xff]
      %v1713 = vld [vmem:[%s998 + $0x50] sm:$0xff]
      %v1714 = vld [vmem:[%s998 + $0x60] sm:$0xff]
      %v1715 = vld [vmem:[%s998 + $0x68] sm:$0xff]
      %v1716 = vld [vmem:[%s998 + $0x78] sm:$0xff]
      %v1717 = vld [vmem:[%s998 + $0x80] sm:$0xff]
      %v1718 = vld [vmem:[%s998 + $0x90] sm:$0xff]
      %v1719 = vld [vmem:[%s998 + $0x98] sm:$0xff]
      %v1720 = vld [vmem:[%s998 + $0xa8] sm:$0xff]
      %v1721 = vld [vmem:[%s998 + $0xb0] sm:$0xff]
      %v1722 = vld [vmem:[%s998 + $0xc0] sm:$0xff]
      %v1723 = vld [vmem:[%s998 + $0xc8] sm:$0xff]
      %v1724 = vld [vmem:[%s998 + $0xd8] sm:$0xff]
      %v1725 = vld [vmem:[%s998 + $0xe0] sm:$0xff]
      %v1726 = vld [vmem:[%s998 + $0xf0] sm:$0xff]
      %v1727 = vld [vmem:[%s998 + $0xf8] sm:$0xff]
      %v1728 = vld [vmem:[%s998 + $0x108] sm:$0xff]
      %v1729 = vld [vmem:[%s998 + $0x110] sm:$0xff]
      %v1730 = vld [vmem:[%s998 + $0x120] sm:$0xff]
      %v1731 = vld [vmem:[%s998 + $0x128] sm:$0xff]
      %v1732 = vld [vmem:[%s998 + $0x138] sm:$0xff]
      %v1733 = vld [vmem:[%s998 + $0x140] sm:$0xff]
      %v1734 = vld [vmem:[%s998 + $0x150] sm:$0xff]
      %v1735 = vld [vmem:[%s998 + $0x158] sm:$0xff]
      %v1736 = vld [vmem:[%s998 + $0x168] sm:$0xff]
      %v1737 = vld [vmem:[%s998 + $0x170] sm:$0xff]
      %1770 = vrot.lane.b32.xlu0 %v1706, 12
      %v1771 = vpop.permute.xlu0 %1770
      %1772 = vrot.lane.b32.xlu0 %v1707, 12
      %v1773 = vpop.permute.xlu0 %1772
      %1774 = vrot.lane.b32.xlu0 %v1708, 12
      %v1775 = vpop.permute.xlu0 %1774
      %1776 = vrot.lane.b32.xlu0 %v1709, 12
      %v1777 = vpop.permute.xlu0 %1776
      %1778 = vrot.lane.b32.xlu0 %v1710, 12
      %v1779 = vpop.permute.xlu0 %1778
      %1780 = vrot.lane.b32.xlu0 %v1711, 12
      %v1781 = vpop.permute.xlu0 %1780
      %1782 = vrot.lane.b32.xlu0 %v1712, 12
      %v1783 = vpop.permute.xlu0 %1782
      %1784 = vrot.lane.b32.xlu0 %v1713, 12
      %v1785 = vpop.permute.xlu0 %1784
      %1786 = vrot.lane.b32.xlu0 %v1714, 12
      %v1787 = vpop.permute.xlu0 %1786
      %1788 = vrot.lane.b32.xlu0 %v1715, 12
      %v1789 = vpop.permute.xlu0 %1788
      %1790 = vrot.lane.b32.xlu0 %v1716, 12
      %v1791 = vpop.permute.xlu0 %1790
      %1792 = vrot.lane.b32.xlu0 %v1717, 12
      %v1793 = vpop.permute.xlu0 %1792
      %1794 = vrot.lane.b32.xlu0 %v1718, 12
      %v1795 = vpop.permute.xlu0 %1794
      %1796 = vrot.lane.b32.xlu0 %v1719, 12
      %v1797 = vpop.permute.xlu0 %1796
      %1798 = vrot.lane.b32.xlu0 %v1720, 12
      %v1799 = vpop.permute.xlu0 %1798
      %1800 = vrot.lane.b32.xlu0 %v1721, 12
      %v1801 = vpop.permute.xlu0 %1800
      %1802 = vrot.lane.b32.xlu0 %v1722, 12
      %v1803 = vpop.permute.xlu0 %1802
      %1804 = vrot.lane.b32.xlu0 %v1723, 12
      %v1805 = vpop.permute.xlu0 %1804
      %1806 = vrot.lane.b32.xlu0 %v1724, 12
      %v1807 = vpop.permute.xlu0 %1806
      %1808 = vrot.lane.b32.xlu0 %v1725, 12
      %v1809 = vpop.permute.xlu0 %1808
      %1810 = vrot.lane.b32.xlu0 %v1726, 12
      %v1811 = vpop.permute.xlu0 %1810
      %1812 = vrot.lane.b32.xlu0 %v1727, 12
      %v1813 = vpop.permute.xlu0 %1812
      %1814 = vrot.lane.b32.xlu0 %v1728, 12
      %v1815 = vpop.permute.xlu0 %1814
      %1816 = vrot.lane.b32.xlu0 %v1729, 12
      %v1817 = vpop.permute.xlu0 %1816
      %1818 = vrot.lane.b32.xlu0 %v1730, 12
      %v1819 = vpop.permute.xlu0 %1818
      %1820 = vrot.lane.b32.xlu0 %v1731, 12
      %v1821 = vpop.permute.xlu0 %1820
      %1822 = vrot.lane.b32.xlu0 %v1732, 12
      %v1823 = vpop.permute.xlu0 %1822
      %1824 = vrot.lane.b32.xlu0 %v1733, 12
      %v1825 = vpop.permute.xlu0 %1824
      %1826 = vrot.lane.b32.xlu0 %v1734, 12
      %v1827 = vpop.permute.xlu0 %1826
      %1828 = vrot.lane.b32.xlu0 %v1735, 12
      %v1829 = vpop.permute.xlu0 %1828
      %1830 = vrot.lane.b32.xlu0 %v1736, 12
      %v1831 = vpop.permute.xlu0 %1830
      %1832 = vrot.lane.b32.xlu0 %v1737, 12
      %v1833 = vpop.permute.xlu0 %1832
      %vm1866 = vcmask 130144
      %1867 = vst.msk [vmem:[#allocation4] sm:$0xff] %vm1866, %v1771
      %1868 = vst.msk [vmem:[#allocation4 + $0x8] sm:$0xff] %vm1866, %v1773
      %1869 = vst.msk [vmem:[#allocation4 + $0x10] sm:$0xff] %vm1866, %v1775
      %1870 = vst.msk [vmem:[#allocation4 + $0x18] sm:$0xff] %vm1866, %v1777
      %1871 = vst.msk [vmem:[#allocation4 + $0x20] sm:$0xff] %vm1866, %v1779
      %1872 = vst.msk [vmem:[#allocation4 + $0x28] sm:$0xff] %vm1866, %v1781
      %1873 = vst.msk [vmem:[#allocation4 + $0x30] sm:$0xff] %vm1866, %v1783
      %1874 = vst.msk [vmem:[#allocation4 + $0x38] sm:$0xff] %vm1866, %v1785
      %1875 = vst.msk [vmem:[#allocation4 + $0x40] sm:$0xff] %vm1866, %v1787
      %1876 = vst.msk [vmem:[#allocation4 + $0x48] sm:$0xff] %vm1866, %v1789
      %1877 = vst.msk [vmem:[#allocation4 + $0x50] sm:$0xff] %vm1866, %v1791
      %1878 = vst.msk [vmem:[#allocation4 + $0x58] sm:$0xff] %vm1866, %v1793
      %1879 = vst.msk [vmem:[#allocation4 + $0x60] sm:$0xff] %vm1866, %v1795
      %1880 = vst.msk [vmem:[#allocation4 + $0x68] sm:$0xff] %vm1866, %v1797
      %1881 = vst.msk [vmem:[#allocation4 + $0x70] sm:$0xff] %vm1866, %v1799
      %1882 = vst.msk [vmem:[#allocation4 + $0x78] sm:$0xff] %vm1866, %v1801
      %1883 = vst.msk [vmem:[#allocation4 + $0x80] sm:$0xff] %vm1866, %v1803
      %1884 = vst.msk [vmem:[#allocation4 + $0x88] sm:$0xff] %vm1866, %v1805
      %1885 = vst.msk [vmem:[#allocation4 + $0x90] sm:$0xff] %vm1866, %v1807
      %1886 = vst.msk [vmem:[#allocation4 + $0x98] sm:$0xff] %vm1866, %v1809
      %1887 = vst.msk [vmem:[#allocation4 + $0xa0] sm:$0xff] %vm1866, %v1811
      %1888 = vst.msk [vmem:[#allocation4 + $0xa8] sm:$0xff] %vm1866, %v1813
      %1889 = vst.msk [vmem:[#allocation4 + $0xb0] sm:$0xff] %vm1866, %v1815
      %1890 = vst.msk [vmem:[#allocation4 + $0xb8] sm:$0xff] %vm1866, %v1817
      %1891 = vst.msk [vmem:[#allocation4 + $0xc0] sm:$0xff] %vm1866, %v1819
      %1892 = vst.msk [vmem:[#allocation4 + $0xc8] sm:$0xff] %vm1866, %v1821
      %1893 = vst.msk [vmem:[#allocation4 + $0xd0] sm:$0xff] %vm1866, %v1823
      %1894 = vst.msk [vmem:[#allocation4 + $0xd8] sm:$0xff] %vm1866, %v1825
      %1895 = vst.msk [vmem:[#allocation4 + $0xe0] sm:$0xff] %vm1866, %v1827
      %1896 = vst.msk [vmem:[#allocation4 + $0xe8] sm:$0xff] %vm1866, %v1829
      %1897 = vst.msk [vmem:[#allocation4 + $0xf0] sm:$0xff] %vm1866, %v1831
      %1898 = vst.msk [vmem:[#allocation4 + $0xf8] sm:$0xff] %vm1866, %v1833
      %v1899 = vld [vmem:[%s1031] sm:$0xff]
      %v1900 = vld [vmem:[%s1031 + $0x8] sm:$0xff]
      %v1901 = vld [vmem:[%s1031 + $0x18] sm:$0xff]
      %v1902 = vld [vmem:[%s1031 + $0x20] sm:$0xff]
      %v1903 = vld [vmem:[%s1031 + $0x30] sm:$0xff]
      %v1904 = vld [vmem:[%s1031 + $0x38] sm:$0xff]
      %v1905 = vld [vmem:[%s1031 + $0x48] sm:$0xff]
      %v1906 = vld [vmem:[%s1031 + $0x50] sm:$0xff]
      %v1907 = vld [vmem:[%s1031 + $0x60] sm:$0xff]
      %v1908 = vld [vmem:[%s1031 + $0x68] sm:$0xff]
      %v1909 = vld [vmem:[%s1031 + $0x78] sm:$0xff]
      %v1910 = vld [vmem:[%s1031 + $0x80] sm:$0xff]
      %v1911 = vld [vmem:[%s1031 + $0x90] sm:$0xff]
      %v1912 = vld [vmem:[%s1031 + $0x98] sm:$0xff]
      %v1913 = vld [vmem:[%s1031 + $0xa8] sm:$0xff]
      %v1914 = vld [vmem:[%s1031 + $0xb0] sm:$0xff]
      %v1915 = vld [vmem:[%s1031 + $0xc0] sm:$0xff]
      %v1916 = vld [vmem:[%s1031 + $0xc8] sm:$0xff]
      %v1917 = vld [vmem:[%s1031 + $0xd8] sm:$0xff]
      %v1918 = vld [vmem:[%s1031 + $0xe0] sm:$0xff]
      %v1919 = vld [vmem:[%s1031 + $0xf0] sm:$0xff]
      %v1920 = vld [vmem:[%s1031 + $0xf8] sm:$0xff]
      %v1921 = vld [vmem:[%s1031 + $0x108] sm:$0xff]
      %v1922 = vld [vmem:[%s1031 + $0x110] sm:$0xff]
      %v1923 = vld [vmem:[%s1031 + $0x120] sm:$0xff]
      %v1924 = vld [vmem:[%s1031 + $0x128] sm:$0xff]
      %v1925 = vld [vmem:[%s1031 + $0x138] sm:$0xff]
      %v1926 = vld [vmem:[%s1031 + $0x140] sm:$0xff]
      %v1927 = vld [vmem:[%s1031 + $0x150] sm:$0xff]
      %v1928 = vld [vmem:[%s1031 + $0x158] sm:$0xff]
      %v1929 = vld [vmem:[%s1031 + $0x168] sm:$0xff]
      %v1930 = vld [vmem:[%s1031 + $0x170] sm:$0xff]
      %v1931 = vadd.f32 %v1674, %v1899
      %v1932 = vadd.f32 %v1675, %v1900
      %v1933 = vadd.f32 %v1676, %v1901
      %v1934 = vadd.f32 %v1677, %v1902
      %v1935 = vadd.f32 %v1678, %v1903
      %v1936 = vadd.f32 %v1679, %v1904
      %v1937 = vadd.f32 %v1680, %v1905
      %v1938 = vadd.f32 %v1681, %v1906
      %v1939 = vadd.f32 %v1682, %v1907
      %v1940 = vadd.f32 %v1683, %v1908
      %v1941 = vadd.f32 %v1684, %v1909
      %v1942 = vadd.f32 %v1685, %v1910
      %v1943 = vadd.f32 %v1686, %v1911
      %v1944 = vadd.f32 %v1687, %v1912
      %v1945 = vadd.f32 %v1688, %v1913
      %v1946 = vadd.f32 %v1689, %v1914
      %v1947 = vadd.f32 %v1690, %v1915
      %v1948 = vadd.f32 %v1691, %v1916
      %v1949 = vadd.f32 %v1692, %v1917
      %v1950 = vadd.f32 %v1693, %v1918
      %v1951 = vadd.f32 %v1694, %v1919
      %v1952 = vadd.f32 %v1695, %v1920
      %v1953 = vadd.f32 %v1696, %v1921
      %v1954 = vadd.f32 %v1697, %v1922
      %v1955 = vadd.f32 %v1698, %v1923
      %v1956 = vadd.f32 %v1699, %v1924
      %v1957 = vadd.f32 %v1700, %v1925
      %v1958 = vadd.f32 %v1701, %v1926
      %v1959 = vadd.f32 %v1702, %v1927
      %v1960 = vadd.f32 %v1703, %v1928
      %v1961 = vadd.f32 %v1704, %v1929
      %v1962 = vadd.f32 %v1705, %v1930
      %v1963 = vld [vmem:[%s998 + $0x1] sm:$0xff]
      %v1964 = vld [vmem:[%s998 + $0x9] sm:$0xff]
      %v1965 = vld [vmem:[%s998 + $0x19] sm:$0xff]
      %v1966 = vld [vmem:[%s998 + $0x21] sm:$0xff]
      %v1967 = vld [vmem:[%s998 + $0x31] sm:$0xff]
      %v1968 = vld [vmem:[%s998 + $0x39] sm:$0xff]
      %v1969 = vld [vmem:[%s998 + $0x49] sm:$0xff]
      %v1970 = vld [vmem:[%s998 + $0x51] sm:$0xff]
      %v1971 = vld [vmem:[%s998 + $0x61] sm:$0xff]
      %v1972 = vld [vmem:[%s998 + $0x69] sm:$0xff]
      %v1973 = vld [vmem:[%s998 + $0x79] sm:$0xff]
      %v1974 = vld [vmem:[%s998 + $0x81] sm:$0xff]
      %v1975 = vld [vmem:[%s998 + $0x91] sm:$0xff]
      %v1976 = vld [vmem:[%s998 + $0x99] sm:$0xff]
      %v1977 = vld [vmem:[%s998 + $0xa9] sm:$0xff]
      %v1978 = vld [vmem:[%s998 + $0xb1] sm:$0xff]
      %v1979 = vld [vmem:[%s998 + $0xc1] sm:$0xff]
      %v1980 = vld [vmem:[%s998 + $0xc9] sm:$0xff]
      %v1981 = vld [vmem:[%s998 + $0xd9] sm:$0xff]
      %v1982 = vld [vmem:[%s998 + $0xe1] sm:$0xff]
      %v1983 = vld [vmem:[%s998 + $0xf1] sm:$0xff]
      %v1984 = vld [vmem:[%s998 + $0xf9] sm:$0xff]
      %v1985 = vld [vmem:[%s998 + $0x109] sm:$0xff]
      %v1986 = vld [vmem:[%s998 + $0x111] sm:$0xff]
      %v1987 = vld [vmem:[%s998 + $0x121] sm:$0xff]
      %v1988 = vld [vmem:[%s998 + $0x129] sm:$0xff]
      %v1989 = vld [vmem:[%s998 + $0x139] sm:$0xff]
      %v1990 = vld [vmem:[%s998 + $0x141] sm:$0xff]
      %v1991 = vld [vmem:[%s998 + $0x151] sm:$0xff]
      %v1992 = vld [vmem:[%s998 + $0x159] sm:$0xff]
      %v1993 = vld [vmem:[%s998 + $0x169] sm:$0xff]
      %v1994 = vld [vmem:[%s998 + $0x171] sm:$0xff]
      %2027 = vrot.lane.b32.xlu0 %v1963, 16
      %v2028 = vpop.permute.xlu0 %2027
      %2029 = vrot.lane.b32.xlu0 %v1964, 16
      %v2030 = vpop.permute.xlu0 %2029
      %2031 = vrot.lane.b32.xlu0 %v1965, 16
      %v2032 = vpop.permute.xlu0 %2031
      %2033 = vrot.lane.b32.xlu0 %v1966, 16
      %v2034 = vpop.permute.xlu0 %2033
      %2035 = vrot.lane.b32.xlu0 %v1967, 16
      %v2036 = vpop.permute.xlu0 %2035
      %2037 = vrot.lane.b32.xlu0 %v1968, 16
      %v2038 = vpop.permute.xlu0 %2037
      %2039 = vrot.lane.b32.xlu0 %v1969, 16
      %v2040 = vpop.permute.xlu0 %2039
      %2041 = vrot.lane.b32.xlu0 %v1970, 16
      %v2042 = vpop.permute.xlu0 %2041
      %2043 = vrot.lane.b32.xlu0 %v1971, 16
      %v2044 = vpop.permute.xlu0 %2043
      %2045 = vrot.lane.b32.xlu0 %v1972, 16
      %v2046 = vpop.permute.xlu0 %2045
      %2047 = vrot.lane.b32.xlu0 %v1973, 16
      %v2048 = vpop.permute.xlu0 %2047
      %2049 = vrot.lane.b32.xlu0 %v1974, 16
      %v2050 = vpop.permute.xlu0 %2049
      %2051 = vrot.lane.b32.xlu0 %v1975, 16
      %v2052 = vpop.permute.xlu0 %2051
      %2053 = vrot.lane.b32.xlu0 %v1976, 16
      %v2054 = vpop.permute.xlu0 %2053
      %2055 = vrot.lane.b32.xlu0 %v1977, 16
      %v2056 = vpop.permute.xlu0 %2055
      %2057 = vrot.lane.b32.xlu0 %v1978, 16
      %v2058 = vpop.permute.xlu0 %2057
      %2059 = vrot.lane.b32.xlu0 %v1979, 16
      %v2060 = vpop.permute.xlu0 %2059
      %2061 = vrot.lane.b32.xlu0 %v1980, 16
      %v2062 = vpop.permute.xlu0 %2061
      %2063 = vrot.lane.b32.xlu0 %v1981, 16
      %v2064 = vpop.permute.xlu0 %2063
      %2065 = vrot.lane.b32.xlu0 %v1982, 16
      %v2066 = vpop.permute.xlu0 %2065
      %2067 = vrot.lane.b32.xlu0 %v1983, 16
      %v2068 = vpop.permute.xlu0 %2067
      %2069 = vrot.lane.b32.xlu0 %v1984, 16
      %v2070 = vpop.permute.xlu0 %2069
      %2071 = vrot.lane.b32.xlu0 %v1985, 16
      %v2072 = vpop.permute.xlu0 %2071
      %2073 = vrot.lane.b32.xlu0 %v1986, 16
      %v2074 = vpop.permute.xlu0 %2073
      %2075 = vrot.lane.b32.xlu0 %v1987, 16
      %v2076 = vpop.permute.xlu0 %2075
      %2077 = vrot.lane.b32.xlu0 %v1988, 16
      %v2078 = vpop.permute.xlu0 %2077
      %2079 = vrot.lane.b32.xlu0 %v1989, 16
      %v2080 = vpop.permute.xlu0 %2079
      %2081 = vrot.lane.b32.xlu0 %v1990, 16
      %v2082 = vpop.permute.xlu0 %2081
      %2083 = vrot.lane.b32.xlu0 %v1991, 16
      %v2084 = vpop.permute.xlu0 %2083
      %2085 = vrot.lane.b32.xlu0 %v1992, 16
      %v2086 = vpop.permute.xlu0 %2085
      %2087 = vrot.lane.b32.xlu0 %v1993, 16
      %v2088 = vpop.permute.xlu0 %2087
      %2089 = vrot.lane.b32.xlu0 %v1994, 16
      %v2090 = vpop.permute.xlu0 %2089
      %vm2123 = vcmask 162944
      %2124 = vst.msk [vmem:[#allocation4] sm:$0xff] %vm2123, %v2028
      %2125 = vst.msk [vmem:[#allocation4 + $0x8] sm:$0xff] %vm2123, %v2030
      %2126 = vst.msk [vmem:[#allocation4 + $0x10] sm:$0xff] %vm2123, %v2032
      %2127 = vst.msk [vmem:[#allocation4 + $0x18] sm:$0xff] %vm2123, %v2034
      %2128 = vst.msk [vmem:[#allocation4 + $0x20] sm:$0xff] %vm2123, %v2036
      %2129 = vst.msk [vmem:[#allocation4 + $0x28] sm:$0xff] %vm2123, %v2038
      %2130 = vst.msk [vmem:[#allocation4 + $0x30] sm:$0xff] %vm2123, %v2040
      %2131 = vst.msk [vmem:[#allocation4 + $0x38] sm:$0xff] %vm2123, %v2042
      %2132 = vst.msk [vmem:[#allocation4 + $0x40] sm:$0xff] %vm2123, %v2044
      %2133 = vst.msk [vmem:[#allocation4 + $0x48] sm:$0xff] %vm2123, %v2046
      %2134 = vst.msk [vmem:[#allocation4 + $0x50] sm:$0xff] %vm2123, %v2048
      %2135 = vst.msk [vmem:[#allocation4 + $0x58] sm:$0xff] %vm2123, %v2050
      %2136 = vst.msk [vmem:[#allocation4 + $0x60] sm:$0xff] %vm2123, %v2052
      %2137 = vst.msk [vmem:[#allocation4 + $0x68] sm:$0xff] %vm2123, %v2054
      %2138 = vst.msk [vmem:[#allocation4 + $0x70] sm:$0xff] %vm2123, %v2056
      %2139 = vst.msk [vmem:[#allocation4 + $0x78] sm:$0xff] %vm2123, %v2058
      %2140 = vst.msk [vmem:[#allocation4 + $0x80] sm:$0xff] %vm2123, %v2060
      %2141 = vst.msk [vmem:[#allocation4 + $0x88] sm:$0xff] %vm2123, %v2062
      %2142 = vst.msk [vmem:[#allocation4 + $0x90] sm:$0xff] %vm2123, %v2064
      %2143 = vst.msk [vmem:[#allocation4 + $0x98] sm:$0xff] %vm2123, %v2066
      %2144 = vst.msk [vmem:[#allocation4 + $0xa0] sm:$0xff] %vm2123, %v2068
      %2145 = vst.msk [vmem:[#allocation4 + $0xa8] sm:$0xff] %vm2123, %v2070
      %2146 = vst.msk [vmem:[#allocation4 + $0xb0] sm:$0xff] %vm2123, %v2072
      %2147 = vst.msk [vmem:[#allocation4 + $0xb8] sm:$0xff] %vm2123, %v2074
      %2148 = vst.msk [vmem:[#allocation4 + $0xc0] sm:$0xff] %vm2123, %v2076
      %2149 = vst.msk [vmem:[#allocation4 + $0xc8] sm:$0xff] %vm2123, %v2078
      %2150 = vst.msk [vmem:[#allocation4 + $0xd0] sm:$0xff] %vm2123, %v2080
      %2151 = vst.msk [vmem:[#allocation4 + $0xd8] sm:$0xff] %vm2123, %v2082
      %2152 = vst.msk [vmem:[#allocation4 + $0xe0] sm:$0xff] %vm2123, %v2084
      %2153 = vst.msk [vmem:[#allocation4 + $0xe8] sm:$0xff] %vm2123, %v2086
      %2154 = vst.msk [vmem:[#allocation4 + $0xf0] sm:$0xff] %vm2123, %v2088
      %2155 = vst.msk [vmem:[#allocation4 + $0xf8] sm:$0xff] %vm2123, %v2090
      %v2156 = vld [vmem:[%s1031 + $0x1] sm:$0xff]
      %v2157 = vld [vmem:[%s1031 + $0x9] sm:$0xff]
      %v2158 = vld [vmem:[%s1031 + $0x19] sm:$0xff]
      %v2159 = vld [vmem:[%s1031 + $0x21] sm:$0xff]
      %v2160 = vld [vmem:[%s1031 + $0x31] sm:$0xff]
      %v2161 = vld [vmem:[%s1031 + $0x39] sm:$0xff]
      %v2162 = vld [vmem:[%s1031 + $0x49] sm:$0xff]
      %v2163 = vld [vmem:[%s1031 + $0x51] sm:$0xff]
      %v2164 = vld [vmem:[%s1031 + $0x61] sm:$0xff]
      %v2165 = vld [vmem:[%s1031 + $0x69] sm:$0xff]
      %v2166 = vld [vmem:[%s1031 + $0x79] sm:$0xff]
      %v2167 = vld [vmem:[%s1031 + $0x81] sm:$0xff]
      %v2168 = vld [vmem:[%s1031 + $0x91] sm:$0xff]
      %v2169 = vld [vmem:[%s1031 + $0x99] sm:$0xff]
      %v2170 = vld [vmem:[%s1031 + $0xa9] sm:$0xff]
      %v2171 = vld [vmem:[%s1031 + $0xb1] sm:$0xff]
      %v2172 = vld [vmem:[%s1031 + $0xc1] sm:$0xff]
      %v2173 = vld [vmem:[%s1031 + $0xc9] sm:$0xff]
      %v2174 = vld [vmem:[%s1031 + $0xd9] sm:$0xff]
      %v2175 = vld [vmem:[%s1031 + $0xe1] sm:$0xff]
      %v2176 = vld [vmem:[%s1031 + $0xf1] sm:$0xff]
      %v2177 = vld [vmem:[%s1031 + $0xf9] sm:$0xff]
      %v2178 = vld [vmem:[%s1031 + $0x109] sm:$0xff]
      %v2179 = vld [vmem:[%s1031 + $0x111] sm:$0xff]
      %v2180 = vld [vmem:[%s1031 + $0x121] sm:$0xff]
      %v2181 = vld [vmem:[%s1031 + $0x129] sm:$0xff]
      %v2182 = vld [vmem:[%s1031 + $0x139] sm:$0xff]
      %v2183 = vld [vmem:[%s1031 + $0x141] sm:$0xff]
      %v2184 = vld [vmem:[%s1031 + $0x151] sm:$0xff]
      %v2185 = vld [vmem:[%s1031 + $0x159] sm:$0xff]
      %v2186 = vld [vmem:[%s1031 + $0x169] sm:$0xff]
      %v2187 = vld [vmem:[%s1031 + $0x171] sm:$0xff]
      %v2188 = vadd.f32 %v1931, %v2156
      %v2189 = vadd.f32 %v1932, %v2157
      %v2190 = vadd.f32 %v1933, %v2158
      %v2191 = vadd.f32 %v1934, %v2159
      %v2192 = vadd.f32 %v1935, %v2160
      %v2193 = vadd.f32 %v1936, %v2161
      %v2194 = vadd.f32 %v1937, %v2162
      %v2195 = vadd.f32 %v1938, %v2163
      %v2196 = vadd.f32 %v1939, %v2164
      %v2197 = vadd.f32 %v1940, %v2165
      %v2198 = vadd.f32 %v1941, %v2166
      %v2199 = vadd.f32 %v1942, %v2167
      %v2200 = vadd.f32 %v1943, %v2168
      %v2201 = vadd.f32 %v1944, %v2169
      %v2202 = vadd.f32 %v1945, %v2170
      %v2203 = vadd.f32 %v1946, %v2171
      %v2204 = vadd.f32 %v1947, %v2172
      %v2205 = vadd.f32 %v1948, %v2173
      %v2206 = vadd.f32 %v1949, %v2174
      %v2207 = vadd.f32 %v1950, %v2175
      %v2208 = vadd.f32 %v1951, %v2176
      %v2209 = vadd.f32 %v1952, %v2177
      %v2210 = vadd.f32 %v1953, %v2178
      %v2211 = vadd.f32 %v1954, %v2179
      %v2212 = vadd.f32 %v1955, %v2180
      %v2213 = vadd.f32 %v1956, %v2181
      %v2214 = vadd.f32 %v1957, %v2182
      %v2215 = vadd.f32 %v1958, %v2183
      %v2216 = vadd.f32 %v1959, %v2184
      %v2217 = vadd.f32 %v1960, %v2185
      %v2218 = vadd.f32 %v1961, %v2186
      %v2219 = vadd.f32 %v1962, %v2187
      %v2220 = vld [vmem:[%s998 + $0x2] sm:$0xff]
      %v2221 = vld [vmem:[%s998 + $0xa] sm:$0xff]
      %v2222 = vld [vmem:[%s998 + $0x1a] sm:$0xff]
      %v2223 = vld [vmem:[%s998 + $0x22] sm:$0xff]
      %v2224 = vld [vmem:[%s998 + $0x32] sm:$0xff]
      %v2225 = vld [vmem:[%s998 + $0x3a] sm:$0xff]
      %v2226 = vld [vmem:[%s998 + $0x4a] sm:$0xff]
      %v2227 = vld [vmem:[%s998 + $0x52] sm:$0xff]
      %v2228 = vld [vmem:[%s998 + $0x62] sm:$0xff]
      %v2229 = vld [vmem:[%s998 + $0x6a] sm:$0xff]
      %v2230 = vld [vmem:[%s998 + $0x7a] sm:$0xff]
      %v2231 = vld [vmem:[%s998 + $0x82] sm:$0xff]
      %v2232 = vld [vmem:[%s998 + $0x92] sm:$0xff]
      %v2233 = vld [vmem:[%s998 + $0x9a] sm:$0xff]
      %v2234 = vld [vmem:[%s998 + $0xaa] sm:$0xff]
      %v2235 = vld [vmem:[%s998 + $0xb2] sm:$0xff]
      %v2236 = vld [vmem:[%s998 + $0xc2] sm:$0xff]
      %v2237 = vld [vmem:[%s998 + $0xca] sm:$0xff]
      %v2238 = vld [vmem:[%s998 + $0xda] sm:$0xff]
      %v2239 = vld [vmem:[%s998 + $0xe2] sm:$0xff]
      %v2240 = vld [vmem:[%s998 + $0xf2] sm:$0xff]
      %v2241 = vld [vmem:[%s998 + $0xfa] sm:$0xff]
      %v2242 = vld [vmem:[%s998 + $0x10a] sm:$0xff]
      %v2243 = vld [vmem:[%s998 + $0x112] sm:$0xff]
      %v2244 = vld [vmem:[%s998 + $0x122] sm:$0xff]
      %v2245 = vld [vmem:[%s998 + $0x12a] sm:$0xff]
      %v2246 = vld [vmem:[%s998 + $0x13a] sm:$0xff]
      %v2247 = vld [vmem:[%s998 + $0x142] sm:$0xff]
      %v2248 = vld [vmem:[%s998 + $0x152] sm:$0xff]
      %v2249 = vld [vmem:[%s998 + $0x15a] sm:$0xff]
      %v2250 = vld [vmem:[%s998 + $0x16a] sm:$0xff]
      %v2251 = vld [vmem:[%s998 + $0x172] sm:$0xff]
      %2284 = vrot.lane.b32.xlu0 %v2220, 20
      %v2285 = vpop.permute.xlu0 %2284
      %2286 = vrot.lane.b32.xlu0 %v2221, 20
      %v2287 = vpop.permute.xlu0 %2286
      %2288 = vrot.lane.b32.xlu0 %v2222, 20
      %v2289 = vpop.permute.xlu0 %2288
      %2290 = vrot.lane.b32.xlu0 %v2223, 20
      %v2291 = vpop.permute.xlu0 %2290
      %2292 = vrot.lane.b32.xlu0 %v2224, 20
      %v2293 = vpop.permute.xlu0 %2292
      %2294 = vrot.lane.b32.xlu0 %v2225, 20
      %v2295 = vpop.permute.xlu0 %2294
      %2296 = vrot.lane.b32.xlu0 %v2226, 20
      %v2297 = vpop.permute.xlu0 %2296
      %2298 = vrot.lane.b32.xlu0 %v2227, 20
      %v2299 = vpop.permute.xlu0 %2298
      %2300 = vrot.lane.b32.xlu0 %v2228, 20
      %v2301 = vpop.permute.xlu0 %2300
      %2302 = vrot.lane.b32.xlu0 %v2229, 20
      %v2303 = vpop.permute.xlu0 %2302
      %2304 = vrot.lane.b32.xlu0 %v2230, 20
      %v2305 = vpop.permute.xlu0 %2304
      %2306 = vrot.lane.b32.xlu0 %v2231, 20
      %v2307 = vpop.permute.xlu0 %2306
      %2308 = vrot.lane.b32.xlu0 %v2232, 20
      %v2309 = vpop.permute.xlu0 %2308
      %2310 = vrot.lane.b32.xlu0 %v2233, 20
      %v2311 = vpop.permute.xlu0 %2310
      %2312 = vrot.lane.b32.xlu0 %v2234, 20
      %v2313 = vpop.permute.xlu0 %2312
      %2314 = vrot.lane.b32.xlu0 %v2235, 20
      %v2315 = vpop.permute.xlu0 %2314
      %2316 = vrot.lane.b32.xlu0 %v2236, 20
      %v2317 = vpop.permute.xlu0 %2316
      %2318 = vrot.lane.b32.xlu0 %v2237, 20
      %v2319 = vpop.permute.xlu0 %2318
      %2320 = vrot.lane.b32.xlu0 %v2238, 20
      %v2321 = vpop.permute.xlu0 %2320
      %2322 = vrot.lane.b32.xlu0 %v2239, 20
      %v2323 = vpop.permute.xlu0 %2322
      %2324 = vrot.lane.b32.xlu0 %v2240, 20
      %v2325 = vpop.permute.xlu0 %2324
      %2326 = vrot.lane.b32.xlu0 %v2241, 20
      %v2327 = vpop.permute.xlu0 %2326
      %2328 = vrot.lane.b32.xlu0 %v2242, 20
      %v2329 = vpop.permute.xlu0 %2328
      %2330 = vrot.lane.b32.xlu0 %v2243, 20
      %v2331 = vpop.permute.xlu0 %2330
      %2332 = vrot.lane.b32.xlu0 %v2244, 20
      %v2333 = vpop.permute.xlu0 %2332
      %2334 = vrot.lane.b32.xlu0 %v2245, 20
      %v2335 = vpop.permute.xlu0 %2334
      %2336 = vrot.lane.b32.xlu0 %v2246, 20
      %v2337 = vpop.permute.xlu0 %2336
      %2338 = vrot.lane.b32.xlu0 %v2247, 20
      %v2339 = vpop.permute.xlu0 %2338
      %2340 = vrot.lane.b32.xlu0 %v2248, 20
      %v2341 = vpop.permute.xlu0 %2340
      %2342 = vrot.lane.b32.xlu0 %v2249, 20
      %v2343 = vpop.permute.xlu0 %2342
      %2344 = vrot.lane.b32.xlu0 %v2250, 20
      %v2345 = vpop.permute.xlu0 %2344
      %2346 = vrot.lane.b32.xlu0 %v2251, 20
      %v2347 = vpop.permute.xlu0 %2346
      %vm2380 = vcmask 195744
      %2381 = vst.msk [vmem:[#allocation4] sm:$0xff] %vm2380, %v2285
      %2382 = vst.msk [vmem:[#allocation4 + $0x8] sm:$0xff] %vm2380, %v2287
      %2383 = vst.msk [vmem:[#allocation4 + $0x10] sm:$0xff] %vm2380, %v2289
      %2384 = vst.msk [vmem:[#allocation4 + $0x18] sm:$0xff] %vm2380, %v2291
      %2385 = vst.msk [vmem:[#allocation4 + $0x20] sm:$0xff] %vm2380, %v2293
      %2386 = vst.msk [vmem:[#allocation4 + $0x28] sm:$0xff] %vm2380, %v2295
      %2387 = vst.msk [vmem:[#allocation4 + $0x30] sm:$0xff] %vm2380, %v2297
      %2388 = vst.msk [vmem:[#allocation4 + $0x38] sm:$0xff] %vm2380, %v2299
      %2389 = vst.msk [vmem:[#allocation4 + $0x40] sm:$0xff] %vm2380, %v2301
      %2390 = vst.msk [vmem:[#allocation4 + $0x48] sm:$0xff] %vm2380, %v2303
      %2391 = vst.msk [vmem:[#allocation4 + $0x50] sm:$0xff] %vm2380, %v2305
      %2392 = vst.msk [vmem:[#allocation4 + $0x58] sm:$0xff] %vm2380, %v2307
      %2393 = vst.msk [vmem:[#allocation4 + $0x60] sm:$0xff] %vm2380, %v2309
      %2394 = vst.msk [vmem:[#allocation4 + $0x68] sm:$0xff] %vm2380, %v2311
      %2395 = vst.msk [vmem:[#allocation4 + $0x70] sm:$0xff] %vm2380, %v2313
      %2396 = vst.msk [vmem:[#allocation4 + $0x78] sm:$0xff] %vm2380, %v2315
      %2397 = vst.msk [vmem:[#allocation4 + $0x80] sm:$0xff] %vm2380, %v2317
      %2398 = vst.msk [vmem:[#allocation4 + $0x88] sm:$0xff] %vm2380, %v2319
      %2399 = vst.msk [vmem:[#allocation4 + $0x90] sm:$0xff] %vm2380, %v2321
      %2400 = vst.msk [vmem:[#allocation4 + $0x98] sm:$0xff] %vm2380, %v2323
      %2401 = vst.msk [vmem:[#allocation4 + $0xa0] sm:$0xff] %vm2380, %v2325
      %2402 = vst.msk [vmem:[#allocation4 + $0xa8] sm:$0xff] %vm2380, %v2327
      %2403 = vst.msk [vmem:[#allocation4 + $0xb0] sm:$0xff] %vm2380, %v2329
      %2404 = vst.msk [vmem:[#allocation4 + $0xb8] sm:$0xff] %vm2380, %v2331
      %2405 = vst.msk [vmem:[#allocation4 + $0xc0] sm:$0xff] %vm2380, %v2333
      %2406 = vst.msk [vmem:[#allocation4 + $0xc8] sm:$0xff] %vm2380, %v2335
      %2407 = vst.msk [vmem:[#allocation4 + $0xd0] sm:$0xff] %vm2380, %v2337
      %2408 = vst.msk [vmem:[#allocation4 + $0xd8] sm:$0xff] %vm2380, %v2339
      %2409 = vst.msk [vmem:[#allocation4 + $0xe0] sm:$0xff] %vm2380, %v2341
      %2410 = vst.msk [vmem:[#allocation4 + $0xe8] sm:$0xff] %vm2380, %v2343
      %2411 = vst.msk [vmem:[#allocation4 + $0xf0] sm:$0xff] %vm2380, %v2345
      %2412 = vst.msk [vmem:[#allocation4 + $0xf8] sm:$0xff] %vm2380, %v2347
      %v2413 = vld [vmem:[%s1031 + $0x2] sm:$0xff]
      %v2414 = vld [vmem:[%s1031 + $0xa] sm:$0xff]
      %v2415 = vld [vmem:[%s1031 + $0x1a] sm:$0xff]
      %v2416 = vld [vmem:[%s1031 + $0x22] sm:$0xff]
      %v2417 = vld [vmem:[%s1031 + $0x32] sm:$0xff]
      %v2418 = vld [vmem:[%s1031 + $0x3a] sm:$0xff]
      %v2419 = vld [vmem:[%s1031 + $0x4a] sm:$0xff]
      %v2420 = vld [vmem:[%s1031 + $0x52] sm:$0xff]
      %v2421 = vld [vmem:[%s1031 + $0x62] sm:$0xff]
      %v2422 = vld [vmem:[%s1031 + $0x6a] sm:$0xff]
      %v2423 = vld [vmem:[%s1031 + $0x7a] sm:$0xff]
      %v2424 = vld [vmem:[%s1031 + $0x82] sm:$0xff]
      %v2425 = vld [vmem:[%s1031 + $0x92] sm:$0xff]
      %v2426 = vld [vmem:[%s1031 + $0x9a] sm:$0xff]
      %v2427 = vld [vmem:[%s1031 + $0xaa] sm:$0xff]
      %v2428 = vld [vmem:[%s1031 + $0xb2] sm:$0xff]
      %v2429 = vld [vmem:[%s1031 + $0xc2] sm:$0xff]
      %v2430 = vld [vmem:[%s1031 + $0xca] sm:$0xff]
      %v2431 = vld [vmem:[%s1031 + $0xda] sm:$0xff]
      %v2432 = vld [vmem:[%s1031 + $0xe2] sm:$0xff]
      %v2433 = vld [vmem:[%s1031 + $0xf2] sm:$0xff]
      %v2434 = vld [vmem:[%s1031 + $0xfa] sm:$0xff]
      %v2435 = vld [vmem:[%s1031 + $0x10a] sm:$0xff]
      %v2436 = vld [vmem:[%s1031 + $0x112] sm:$0xff]
      %v2437 = vld [vmem:[%s1031 + $0x122] sm:$0xff]
      %v2438 = vld [vmem:[%s1031 + $0x12a] sm:$0xff]
      %v2439 = vld [vmem:[%s1031 + $0x13a] sm:$0xff]
      %v2440 = vld [vmem:[%s1031 + $0x142] sm:$0xff]
      %v2441 = vld [vmem:[%s1031 + $0x152] sm:$0xff]
      %v2442 = vld [vmem:[%s1031 + $0x15a] sm:$0xff]
      %v2443 = vld [vmem:[%s1031 + $0x16a] sm:$0xff]
      %v2444 = vld [vmem:[%s1031 + $0x172] sm:$0xff]
      %v2445 = vadd.f32 %v2188, %v2413
      %v2446 = vadd.f32 %v2189, %v2414
      %v2447 = vadd.f32 %v2190, %v2415
      %v2448 = vadd.f32 %v2191, %v2416
      %v2449 = vadd.f32 %v2192, %v2417
      %v2450 = vadd.f32 %v2193, %v2418
      %v2451 = vadd.f32 %v2194, %v2419
      %v2452 = vadd.f32 %v2195, %v2420
      %v2453 = vadd.f32 %v2196, %v2421
      %v2454 = vadd.f32 %v2197, %v2422
      %v2455 = vadd.f32 %v2198, %v2423
      %v2456 = vadd.f32 %v2199, %v2424
      %v2457 = vadd.f32 %v2200, %v2425
      %v2458 = vadd.f32 %v2201, %v2426
      %v2459 = vadd.f32 %v2202, %v2427
      %v2460 = vadd.f32 %v2203, %v2428
      %v2461 = vadd.f32 %v2204, %v2429
      %v2462 = vadd.f32 %v2205, %v2430
      %v2463 = vadd.f32 %v2206, %v2431
      %v2464 = vadd.f32 %v2207, %v2432
      %v2465 = vadd.f32 %v2208, %v2433
      %v2466 = vadd.f32 %v2209, %v2434
      %v2467 = vadd.f32 %v2210, %v2435
      %v2468 = vadd.f32 %v2211, %v2436
      %v2469 = vadd.f32 %v2212, %v2437
      %v2470 = vadd.f32 %v2213, %v2438
      %v2471 = vadd.f32 %v2214, %v2439
      %v2472 = vadd.f32 %v2215, %v2440
      %v2473 = vadd.f32 %v2216, %v2441
      %v2474 = vadd.f32 %v2217, %v2442
      %v2475 = vadd.f32 %v2218, %v2443
      %v2476 = vadd.f32 %v2219, %v2444
      %s2477 = scalar_lea.vmem [#allocation2], 48
      %v2478 = vld [vmem:[%s2477] sm:$0xff]
      %v2479 = vld [vmem:[%s2477 + $0x8] sm:$0xff]
      %v2480 = vld [vmem:[%s2477 + $0x18] sm:$0xff]
      %v2481 = vld [vmem:[%s2477 + $0x20] sm:$0xff]
      %v2482 = vld [vmem:[%s2477 + $0x30] sm:$0xff]
      %v2483 = vld [vmem:[%s2477 + $0x38] sm:$0xff]
      %v2484 = vld [vmem:[%s2477 + $0x48] sm:$0xff]
      %v2485 = vld [vmem:[%s2477 + $0x50] sm:$0xff]
      %v2486 = vld [vmem:[%s2477 + $0x60] sm:$0xff]
      %v2487 = vld [vmem:[%s2477 + $0x68] sm:$0xff]
      %v2488 = vld [vmem:[%s2477 + $0x78] sm:$0xff]
      %v2489 = vld [vmem:[%s2477 + $0x80] sm:$0xff]
      %v2490 = vld [vmem:[%s2477 + $0x90] sm:$0xff]
      %v2491 = vld [vmem:[%s2477 + $0x98] sm:$0xff]
      %v2492 = vld [vmem:[%s2477 + $0xa8] sm:$0xff]
      %v2493 = vld [vmem:[%s2477 + $0xb0] sm:$0xff]
      %v2494 = vld [vmem:[%s2477 + $0xc0] sm:$0xff]
      %v2495 = vld [vmem:[%s2477 + $0xc8] sm:$0xff]
      %v2496 = vld [vmem:[%s2477 + $0xd8] sm:$0xff]
      %v2497 = vld [vmem:[%s2477 + $0xe0] sm:$0xff]
      %v2498 = vld [vmem:[%s2477 + $0xf0] sm:$0xff]
      %v2499 = vld [vmem:[%s2477 + $0xf8] sm:$0xff]
      %v2500 = vld [vmem:[%s2477 + $0x108] sm:$0xff]
      %v2501 = vld [vmem:[%s2477 + $0x110] sm:$0xff]
      %v2502 = vld [vmem:[%s2477 + $0x120] sm:$0xff]
      %v2503 = vld [vmem:[%s2477 + $0x128] sm:$0xff]
      %v2504 = vld [vmem:[%s2477 + $0x138] sm:$0xff]
      %v2505 = vld [vmem:[%s2477 + $0x140] sm:$0xff]
      %v2506 = vld [vmem:[%s2477 + $0x150] sm:$0xff]
      %v2507 = vld [vmem:[%s2477 + $0x158] sm:$0xff]
      %v2508 = vld [vmem:[%s2477 + $0x168] sm:$0xff]
      %v2509 = vld [vmem:[%s2477 + $0x170] sm:$0xff]
      %2542 = vrot.lane.b32.xlu0 %v2478, 24
      %v2543 = vpop.permute.xlu0 %2542
      %2544 = vrot.lane.b32.xlu0 %v2479, 24
      %v2545 = vpop.permute.xlu0 %2544
      %2546 = vrot.lane.b32.xlu0 %v2480, 24
      %v2547 = vpop.permute.xlu0 %2546
      %2548 = vrot.lane.b32.xlu0 %v2481, 24
      %v2549 = vpop.permute.xlu0 %2548
      %2550 = vrot.lane.b32.xlu0 %v2482, 24
      %v2551 = vpop.permute.xlu0 %2550
      %2552 = vrot.lane.b32.xlu0 %v2483, 24
      %v2553 = vpop.permute.xlu0 %2552
      %2554 = vrot.lane.b32.xlu0 %v2484, 24
      %v2555 = vpop.permute.xlu0 %2554
      %2556 = vrot.lane.b32.xlu0 %v2485, 24
      %v2557 = vpop.permute.xlu0 %2556
      %2558 = vrot.lane.b32.xlu0 %v2486, 24
      %v2559 = vpop.permute.xlu0 %2558
      %2560 = vrot.lane.b32.xlu0 %v2487, 24
      %v2561 = vpop.permute.xlu0 %2560
      %2562 = vrot.lane.b32.xlu0 %v2488, 24
      %v2563 = vpop.permute.xlu0 %2562
      %2564 = vrot.lane.b32.xlu0 %v2489, 24
      %v2565 = vpop.permute.xlu0 %2564
      %2566 = vrot.lane.b32.xlu0 %v2490, 24
      %v2567 = vpop.permute.xlu0 %2566
      %2568 = vrot.lane.b32.xlu0 %v2491, 24
      %v2569 = vpop.permute.xlu0 %2568
      %2570 = vrot.lane.b32.xlu0 %v2492, 24
      %v2571 = vpop.permute.xlu0 %2570
      %2572 = vrot.lane.b32.xlu0 %v2493, 24
      %v2573 = vpop.permute.xlu0 %2572
      %2574 = vrot.lane.b32.xlu0 %v2494, 24
      %v2575 = vpop.permute.xlu0 %2574
      %2576 = vrot.lane.b32.xlu0 %v2495, 24
      %v2577 = vpop.permute.xlu0 %2576
      %2578 = vrot.lane.b32.xlu0 %v2496, 24
      %v2579 = vpop.permute.xlu0 %2578
      %2580 = vrot.lane.b32.xlu0 %v2497, 24
      %v2581 = vpop.permute.xlu0 %2580
      %2582 = vrot.lane.b32.xlu0 %v2498, 24
      %v2583 = vpop.permute.xlu0 %2582
      %2584 = vrot.lane.b32.xlu0 %v2499, 24
      %v2585 = vpop.permute.xlu0 %2584
      %2586 = vrot.lane.b32.xlu0 %v2500, 24
      %v2587 = vpop.permute.xlu0 %2586
      %2588 = vrot.lane.b32.xlu0 %v2501, 24
      %v2589 = vpop.permute.xlu0 %2588
      %2590 = vrot.lane.b32.xlu0 %v2502, 24
      %v2591 = vpop.permute.xlu0 %2590
      %2592 = vrot.lane.b32.xlu0 %v2503, 24
      %v2593 = vpop.permute.xlu0 %2592
      %2594 = vrot.lane.b32.xlu0 %v2504, 24
      %v2595 = vpop.permute.xlu0 %2594
      %2596 = vrot.lane.b32.xlu0 %v2505, 24
      %v2597 = vpop.permute.xlu0 %2596
      %2598 = vrot.lane.b32.xlu0 %v2506, 24
      %v2599 = vpop.permute.xlu0 %2598
      %2600 = vrot.lane.b32.xlu0 %v2507, 24
      %v2601 = vpop.permute.xlu0 %2600
      %2602 = vrot.lane.b32.xlu0 %v2508, 24
      %v2603 = vpop.permute.xlu0 %2602
      %2604 = vrot.lane.b32.xlu0 %v2509, 24
      %v2605 = vpop.permute.xlu0 %2604
      %vm2638 = vcmask 228544
      %2639 = vst.msk [vmem:[#allocation4] sm:$0xff] %vm2638, %v2543
      %2640 = vst.msk [vmem:[#allocation4 + $0x8] sm:$0xff] %vm2638, %v2545
      %2641 = vst.msk [vmem:[#allocation4 + $0x10] sm:$0xff] %vm2638, %v2547
      %2642 = vst.msk [vmem:[#allocation4 + $0x18] sm:$0xff] %vm2638, %v2549
      %2643 = vst.msk [vmem:[#allocation4 + $0x20] sm:$0xff] %vm2638, %v2551
      %2644 = vst.msk [vmem:[#allocation4 + $0x28] sm:$0xff] %vm2638, %v2553
      %2645 = vst.msk [vmem:[#allocation4 + $0x30] sm:$0xff] %vm2638, %v2555
      %2646 = vst.msk [vmem:[#allocation4 + $0x38] sm:$0xff] %vm2638, %v2557
      %2647 = vst.msk [vmem:[#allocation4 + $0x40] sm:$0xff] %vm2638, %v2559
      %2648 = vst.msk [vmem:[#allocation4 + $0x48] sm:$0xff] %vm2638, %v2561
      %2649 = vst.msk [vmem:[#allocation4 + $0x50] sm:$0xff] %vm2638, %v2563
      %2650 = vst.msk [vmem:[#allocation4 + $0x58] sm:$0xff] %vm2638, %v2565
      %2651 = vst.msk [vmem:[#allocation4 + $0x60] sm:$0xff] %vm2638, %v2567
      %2652 = vst.msk [vmem:[#allocation4 + $0x68] sm:$0xff] %vm2638, %v2569
      %2653 = vst.msk [vmem:[#allocation4 + $0x70] sm:$0xff] %vm2638, %v2571
      %2654 = vst.msk [vmem:[#allocation4 + $0x78] sm:$0xff] %vm2638, %v2573
      %2655 = vst.msk [vmem:[#allocation4 + $0x80] sm:$0xff] %vm2638, %v2575
      %2656 = vst.msk [vmem:[#allocation4 + $0x88] sm:$0xff] %vm2638, %v2577
      %2657 = vst.msk [vmem:[#allocation4 + $0x90] sm:$0xff] %vm2638, %v2579
      %2658 = vst.msk [vmem:[#allocation4 + $0x98] sm:$0xff] %vm2638, %v2581
      %2659 = vst.msk [vmem:[#allocation4 + $0xa0] sm:$0xff] %vm2638, %v2583
      %2660 = vst.msk [vmem:[#allocation4 + $0xa8] sm:$0xff] %vm2638, %v2585
      %2661 = vst.msk [vmem:[#allocation4 + $0xb0] sm:$0xff] %vm2638, %v2587
      %2662 = vst.msk [vmem:[#allocation4 + $0xb8] sm:$0xff] %vm2638, %v2589
      %2663 = vst.msk [vmem:[#allocation4 + $0xc0] sm:$0xff] %vm2638, %v2591
      %2664 = vst.msk [vmem:[#allocation4 + $0xc8] sm:$0xff] %vm2638, %v2593
      %2665 = vst.msk [vmem:[#allocation4 + $0xd0] sm:$0xff] %vm2638, %v2595
      %2666 = vst.msk [vmem:[#allocation4 + $0xd8] sm:$0xff] %vm2638, %v2597
      %2667 = vst.msk [vmem:[#allocation4 + $0xe0] sm:$0xff] %vm2638, %v2599
      %2668 = vst.msk [vmem:[#allocation4 + $0xe8] sm:$0xff] %vm2638, %v2601
      %2669 = vst.msk [vmem:[#allocation4 + $0xf0] sm:$0xff] %vm2638, %v2603
      %2670 = vst.msk [vmem:[#allocation4 + $0xf8] sm:$0xff] %vm2638, %v2605
      %s2671 = scalar_lea.vmem [#allocation3], 48
      %v2672 = vld [vmem:[%s2671] sm:$0xff]
      %v2673 = vld [vmem:[%s2671 + $0x8] sm:$0xff]
      %v2674 = vld [vmem:[%s2671 + $0x18] sm:$0xff]
      %v2675 = vld [vmem:[%s2671 + $0x20] sm:$0xff]
      %v2676 = vld [vmem:[%s2671 + $0x30] sm:$0xff]
      %v2677 = vld [vmem:[%s2671 + $0x38] sm:$0xff]
      %v2678 = vld [vmem:[%s2671 + $0x48] sm:$0xff]
      %v2679 = vld [vmem:[%s2671 + $0x50] sm:$0xff]
      %v2680 = vld [vmem:[%s2671 + $0x60] sm:$0xff]
      %v2681 = vld [vmem:[%s2671 + $0x68] sm:$0xff]
      %v2682 = vld [vmem:[%s2671 + $0x78] sm:$0xff]
      %v2683 = vld [vmem:[%s2671 + $0x80] sm:$0xff]
      %v2684 = vld [vmem:[%s2671 + $0x90] sm:$0xff]
      %v2685 = vld [vmem:[%s2671 + $0x98] sm:$0xff]
      %v2686 = vld [vmem:[%s2671 + $0xa8] sm:$0xff]
      %v2687 = vld [vmem:[%s2671 + $0xb0] sm:$0xff]
      %v2688 = vld [vmem:[%s2671 + $0xc0] sm:$0xff]
      %v2689 = vld [vmem:[%s2671 + $0xc8] sm:$0xff]
      %v2690 = vld [vmem:[%s2671 + $0xd8] sm:$0xff]
      %v2691 = vld [vmem:[%s2671 + $0xe0] sm:$0xff]
      %v2692 = vld [vmem:[%s2671 + $0xf0] sm:$0xff]
      %v2693 = vld [vmem:[%s2671 + $0xf8] sm:$0xff]
      %v2694 = vld [vmem:[%s2671 + $0x108] sm:$0xff]
      %v2695 = vld [vmem:[%s2671 + $0x110] sm:$0xff]
      %v2696 = vld [vmem:[%s2671 + $0x120] sm:$0xff]
      %v2697 = vld [vmem:[%s2671 + $0x128] sm:$0xff]
      %v2698 = vld [vmem:[%s2671 + $0x138] sm:$0xff]
      %v2699 = vld [vmem:[%s2671 + $0x140] sm:$0xff]
      %v2700 = vld [vmem:[%s2671 + $0x150] sm:$0xff]
      %v2701 = vld [vmem:[%s2671 + $0x158] sm:$0xff]
      %v2702 = vld [vmem:[%s2671 + $0x168] sm:$0xff]
      %v2703 = vld [vmem:[%s2671 + $0x170] sm:$0xff]
      %v2704 = vadd.f32 %v2445, %v2672
      %v2705 = vadd.f32 %v2446, %v2673
      %v2706 = vadd.f32 %v2447, %v2674
      %v2707 = vadd.f32 %v2448, %v2675
      %v2708 = vadd.f32 %v2449, %v2676
      %v2709 = vadd.f32 %v2450, %v2677
      %v2710 = vadd.f32 %v2451, %v2678
      %v2711 = vadd.f32 %v2452, %v2679
      %v2712 = vadd.f32 %v2453, %v2680
      %v2713 = vadd.f32 %v2454, %v2681
      %v2714 = vadd.f32 %v2455, %v2682
      %v2715 = vadd.f32 %v2456, %v2683
      %v2716 = vadd.f32 %v2457, %v2684
      %v2717 = vadd.f32 %v2458, %v2685
      %v2718 = vadd.f32 %v2459, %v2686
      %v2719 = vadd.f32 %v2460, %v2687
      %v2720 = vadd.f32 %v2461, %v2688
      %v2721 = vadd.f32 %v2462, %v2689
      %v2722 = vadd.f32 %v2463, %v2690
      %v2723 = vadd.f32 %v2464, %v2691
      %v2724 = vadd.f32 %v2465, %v2692
      %v2725 = vadd.f32 %v2466, %v2693
      %v2726 = vadd.f32 %v2467, %v2694
      %v2727 = vadd.f32 %v2468, %v2695
      %v2728 = vadd.f32 %v2469, %v2696
      %v2729 = vadd.f32 %v2470, %v2697
      %v2730 = vadd.f32 %v2471, %v2698
      %v2731 = vadd.f32 %v2472, %v2699
      %v2732 = vadd.f32 %v2473, %v2700
      %v2733 = vadd.f32 %v2474, %v2701
      %v2734 = vadd.f32 %v2475, %v2702
      %v2735 = vadd.f32 %v2476, %v2703
      %v2736 = vld [vmem:[%s2477 + $0x1] sm:$0xff]
      %v2737 = vld [vmem:[%s2477 + $0x9] sm:$0xff]
      %v2738 = vld [vmem:[%s2477 + $0x19] sm:$0xff]
      %v2739 = vld [vmem:[%s2477 + $0x21] sm:$0xff]
      %v2740 = vld [vmem:[%s2477 + $0x31] sm:$0xff]
      %v2741 = vld [vmem:[%s2477 + $0x39] sm:$0xff]
      %v2742 = vld [vmem:[%s2477 + $0x49] sm:$0xff]
      %v2743 = vld [vmem:[%s2477 + $0x51] sm:$0xff]
      %v2744 = vld [vmem:[%s2477 + $0x61] sm:$0xff]
      %v2745 = vld [vmem:[%s2477 + $0x69] sm:$0xff]
      %v2746 = vld [vmem:[%s2477 + $0x79] sm:$0xff]
      %v2747 = vld [vmem:[%s2477 + $0x81] sm:$0xff]
      %v2748 = vld [vmem:[%s2477 + $0x91] sm:$0xff]
      %v2749 = vld [vmem:[%s2477 + $0x99] sm:$0xff]
      %v2750 = vld [vmem:[%s2477 + $0xa9] sm:$0xff]
      %v2751 = vld [vmem:[%s2477 + $0xb1] sm:$0xff]
      %v2752 = vld [vmem:[%s2477 + $0xc1] sm:$0xff]
      %v2753 = vld [vmem:[%s2477 + $0xc9] sm:$0xff]
      %v2754 = vld [vmem:[%s2477 + $0xd9] sm:$0xff]
      %v2755 = vld [vmem:[%s2477 + $0xe1] sm:$0xff]
      %v2756 = vld [vmem:[%s2477 + $0xf1] sm:$0xff]
      %v2757 = vld [vmem:[%s2477 + $0xf9] sm:$0xff]
      %v2758 = vld [vmem:[%s2477 + $0x109] sm:$0xff]
      %v2759 = vld [vmem:[%s2477 + $0x111] sm:$0xff]
      %v2760 = vld [vmem:[%s2477 + $0x121] sm:$0xff]
      %v2761 = vld [vmem:[%s2477 + $0x129] sm:$0xff]
      %v2762 = vld [vmem:[%s2477 + $0x139] sm:$0xff]
      %v2763 = vld [vmem:[%s2477 + $0x141] sm:$0xff]
      %v2764 = vld [vmem:[%s2477 + $0x151] sm:$0xff]
      %v2765 = vld [vmem:[%s2477 + $0x159] sm:$0xff]
      %v2766 = vld [vmem:[%s2477 + $0x169] sm:$0xff]
      %v2767 = vld [vmem:[%s2477 + $0x171] sm:$0xff]
      %2800 = vrot.lane.b32.xlu0 %v2736, 28
      %v2801 = vpop.permute.xlu0 %2800
      %2802 = vrot.lane.b32.xlu0 %v2737, 28
      %v2803 = vpop.permute.xlu0 %2802
      %2804 = vrot.lane.b32.xlu0 %v2738, 28
      %v2805 = vpop.permute.xlu0 %2804
      %2806 = vrot.lane.b32.xlu0 %v2739, 28
      %v2807 = vpop.permute.xlu0 %2806
      %2808 = vrot.lane.b32.xlu0 %v2740, 28
      %v2809 = vpop.permute.xlu0 %2808
      %2810 = vrot.lane.b32.xlu0 %v2741, 28
      %v2811 = vpop.permute.xlu0 %2810
      %2812 = vrot.lane.b32.xlu0 %v2742, 28
      %v2813 = vpop.permute.xlu0 %2812
      %2814 = vrot.lane.b32.xlu0 %v2743, 28
      %v2815 = vpop.permute.xlu0 %2814
      %2816 = vrot.lane.b32.xlu0 %v2744, 28
      %v2817 = vpop.permute.xlu0 %2816
      %2818 = vrot.lane.b32.xlu0 %v2745, 28
      %v2819 = vpop.permute.xlu0 %2818
      %2820 = vrot.lane.b32.xlu0 %v2746, 28
      %v2821 = vpop.permute.xlu0 %2820
      %2822 = vrot.lane.b32.xlu0 %v2747, 28
      %v2823 = vpop.permute.xlu0 %2822
      %2824 = vrot.lane.b32.xlu0 %v2748, 28
      %v2825 = vpop.permute.xlu0 %2824
      %2826 = vrot.lane.b32.xlu0 %v2749, 28
      %v2827 = vpop.permute.xlu0 %2826
      %2828 = vrot.lane.b32.xlu0 %v2750, 28
      %v2829 = vpop.permute.xlu0 %2828
      %2830 = vrot.lane.b32.xlu0 %v2751, 28
      %v2831 = vpop.permute.xlu0 %2830
      %2832 = vrot.lane.b32.xlu0 %v2752, 28
      %v2833 = vpop.permute.xlu0 %2832
      %2834 = vrot.lane.b32.xlu0 %v2753, 28
      %v2835 = vpop.permute.xlu0 %2834
      %2836 = vrot.lane.b32.xlu0 %v2754, 28
      %v2837 = vpop.permute.xlu0 %2836
      %2838 = vrot.lane.b32.xlu0 %v2755, 28
      %v2839 = vpop.permute.xlu0 %2838
      %2840 = vrot.lane.b32.xlu0 %v2756, 28
      %v2841 = vpop.permute.xlu0 %2840
      %2842 = vrot.lane.b32.xlu0 %v2757, 28
      %v2843 = vpop.permute.xlu0 %2842
      %2844 = vrot.lane.b32.xlu0 %v2758, 28
      %v2845 = vpop.permute.xlu0 %2844
      %2846 = vrot.lane.b32.xlu0 %v2759, 28
      %v2847 = vpop.permute.xlu0 %2846
      %2848 = vrot.lane.b32.xlu0 %v2760, 28
      %v2849 = vpop.permute.xlu0 %2848
      %2850 = vrot.lane.b32.xlu0 %v2761, 28
      %v2851 = vpop.permute.xlu0 %2850
      %2852 = vrot.lane.b32.xlu0 %v2762, 28
      %v2853 = vpop.permute.xlu0 %2852
      %2854 = vrot.lane.b32.xlu0 %v2763, 28
      %v2855 = vpop.permute.xlu0 %2854
      %2856 = vrot.lane.b32.xlu0 %v2764, 28
      %v2857 = vpop.permute.xlu0 %2856
      %2858 = vrot.lane.b32.xlu0 %v2765, 28
      %v2859 = vpop.permute.xlu0 %2858
      %2860 = vrot.lane.b32.xlu0 %v2766, 28
      %v2861 = vpop.permute.xlu0 %2860
      %2862 = vrot.lane.b32.xlu0 %v2767, 28
      %v2863 = vpop.permute.xlu0 %2862
      %vm2896 = vcmask 261344
      %2897 = vst.msk [vmem:[#allocation4] sm:$0xff] %vm2896, %v2801
      %2898 = vst.msk [vmem:[#allocation4 + $0x8] sm:$0xff] %vm2896, %v2803
      %2899 = vst.msk [vmem:[#allocation4 + $0x10] sm:$0xff] %vm2896, %v2805
      %2900 = vst.msk [vmem:[#allocation4 + $0x18] sm:$0xff] %vm2896, %v2807
      %2901 = vst.msk [vmem:[#allocation4 + $0x20] sm:$0xff] %vm2896, %v2809
      %2902 = vst.msk [vmem:[#allocation4 + $0x28] sm:$0xff] %vm2896, %v2811
      %2903 = vst.msk [vmem:[#allocation4 + $0x30] sm:$0xff] %vm2896, %v2813
      %2904 = vst.msk [vmem:[#allocation4 + $0x38] sm:$0xff] %vm2896, %v2815
      %2905 = vst.msk [vmem:[#allocation4 + $0x40] sm:$0xff] %vm2896, %v2817
      %2906 = vst.msk [vmem:[#allocation4 + $0x48] sm:$0xff] %vm2896, %v2819
      %2907 = vst.msk [vmem:[#allocation4 + $0x50] sm:$0xff] %vm2896, %v2821
      %2908 = vst.msk [vmem:[#allocation4 + $0x58] sm:$0xff] %vm2896, %v2823
      %2909 = vst.msk [vmem:[#allocation4 + $0x60] sm:$0xff] %vm2896, %v2825
      %2910 = vst.msk [vmem:[#allocation4 + $0x68] sm:$0xff] %vm2896, %v2827
      %2911 = vst.msk [vmem:[#allocation4 + $0x70] sm:$0xff] %vm2896, %v2829
      %2912 = vst.msk [vmem:[#allocation4 + $0x78] sm:$0xff] %vm2896, %v2831
      %2913 = vst.msk [vmem:[#allocation4 + $0x80] sm:$0xff] %vm2896, %v2833
      %2914 = vst.msk [vmem:[#allocation4 + $0x88] sm:$0xff] %vm2896, %v2835
      %2915 = vst.msk [vmem:[#allocation4 + $0x90] sm:$0xff] %vm2896, %v2837
      %2916 = vst.msk [vmem:[#allocation4 + $0x98] sm:$0xff] %vm2896, %v2839
      %2917 = vst.msk [vmem:[#allocation4 + $0xa0] sm:$0xff] %vm2896, %v2841
      %2918 = vst.msk [vmem:[#allocation4 + $0xa8] sm:$0xff] %vm2896, %v2843
      %2919 = vst.msk [vmem:[#allocation4 + $0xb0] sm:$0xff] %vm2896, %v2845
      %2920 = vst.msk [vmem:[#allocation4 + $0xb8] sm:$0xff] %vm2896, %v2847
      %2921 = vst.msk [vmem:[#allocation4 + $0xc0] sm:$0xff] %vm2896, %v2849
      %2922 = vst.msk [vmem:[#allocation4 + $0xc8] sm:$0xff] %vm2896, %v2851
      %2923 = vst.msk [vmem:[#allocation4 + $0xd0] sm:$0xff] %vm2896, %v2853
      %2924 = vst.msk [vmem:[#allocation4 + $0xd8] sm:$0xff] %vm2896, %v2855
      %2925 = vst.msk [vmem:[#allocation4 + $0xe0] sm:$0xff] %vm2896, %v2857
      %2926 = vst.msk [vmem:[#allocation4 + $0xe8] sm:$0xff] %vm2896, %v2859
      %2927 = vst.msk [vmem:[#allocation4 + $0xf0] sm:$0xff] %vm2896, %v2861
      %2928 = vst.msk [vmem:[#allocation4 + $0xf8] sm:$0xff] %vm2896, %v2863
      %v2929 = vld [vmem:[%s2671 + $0x1] sm:$0xff]
      %v2930 = vld [vmem:[%s2671 + $0x9] sm:$0xff]
      %v2931 = vld [vmem:[%s2671 + $0x19] sm:$0xff]
      %v2932 = vld [vmem:[%s2671 + $0x21] sm:$0xff]
      %v2933 = vld [vmem:[%s2671 + $0x31] sm:$0xff]
      %v2934 = vld [vmem:[%s2671 + $0x39] sm:$0xff]
      %v2935 = vld [vmem:[%s2671 + $0x49] sm:$0xff]
      %v2936 = vld [vmem:[%s2671 + $0x51] sm:$0xff]
      %v2937 = vld [vmem:[%s2671 + $0x61] sm:$0xff]
      %v2938 = vld [vmem:[%s2671 + $0x69] sm:$0xff]
      %v2939 = vld [vmem:[%s2671 + $0x79] sm:$0xff]
      %v2940 = vld [vmem:[%s2671 + $0x81] sm:$0xff]
      %v2941 = vld [vmem:[%s2671 + $0x91] sm:$0xff]
      %v2942 = vld [vmem:[%s2671 + $0x99] sm:$0xff]
      %v2943 = vld [vmem:[%s2671 + $0xa9] sm:$0xff]
      %v2944 = vld [vmem:[%s2671 + $0xb1] sm:$0xff]
      %v2945 = vld [vmem:[%s2671 + $0xc1] sm:$0xff]
      %v2946 = vld [vmem:[%s2671 + $0xc9] sm:$0xff]
      %v2947 = vld [vmem:[%s2671 + $0xd9] sm:$0xff]
      %v2948 = vld [vmem:[%s2671 + $0xe1] sm:$0xff]
      %v2949 = vld [vmem:[%s2671 + $0xf1] sm:$0xff]
      %v2950 = vld [vmem:[%s2671 + $0xf9] sm:$0xff]
      %v2951 = vld [vmem:[%s2671 + $0x109] sm:$0xff]
      %v2952 = vld [vmem:[%s2671 + $0x111] sm:$0xff]
      %v2953 = vld [vmem:[%s2671 + $0x121] sm:$0xff]
      %v2954 = vld [vmem:[%s2671 + $0x129] sm:$0xff]
      %v2955 = vld [vmem:[%s2671 + $0x139] sm:$0xff]
      %v2956 = vld [vmem:[%s2671 + $0x141] sm:$0xff]
      %v2957 = vld [vmem:[%s2671 + $0x151] sm:$0xff]
      %v2958 = vld [vmem:[%s2671 + $0x159] sm:$0xff]
      %v2959 = vld [vmem:[%s2671 + $0x169] sm:$0xff]
      %v2960 = vld [vmem:[%s2671 + $0x171] sm:$0xff]
      %v2961 = vadd.f32 %v2704, %v2929
      %v2962 = vadd.f32 %v2705, %v2930
      %v2963 = vadd.f32 %v2706, %v2931
      %v2964 = vadd.f32 %v2707, %v2932
      %v2965 = vadd.f32 %v2708, %v2933
      %v2966 = vadd.f32 %v2709, %v2934
      %v2967 = vadd.f32 %v2710, %v2935
      %v2968 = vadd.f32 %v2711, %v2936
      %v2969 = vadd.f32 %v2712, %v2937
      %v2970 = vadd.f32 %v2713, %v2938
      %v2971 = vadd.f32 %v2714, %v2939
      %v2972 = vadd.f32 %v2715, %v2940
      %v2973 = vadd.f32 %v2716, %v2941
      %v2974 = vadd.f32 %v2717, %v2942
      %v2975 = vadd.f32 %v2718, %v2943
      %v2976 = vadd.f32 %v2719, %v2944
      %v2977 = vadd.f32 %v2720, %v2945
      %v2978 = vadd.f32 %v2721, %v2946
      %v2979 = vadd.f32 %v2722, %v2947
      %v2980 = vadd.f32 %v2723, %v2948
      %v2981 = vadd.f32 %v2724, %v2949
      %v2982 = vadd.f32 %v2725, %v2950
      %v2983 = vadd.f32 %v2726, %v2951
      %v2984 = vadd.f32 %v2727, %v2952
      %v2985 = vadd.f32 %v2728, %v2953
      %v2986 = vadd.f32 %v2729, %v2954
      %v2987 = vadd.f32 %v2730, %v2955
      %v2988 = vadd.f32 %v2731, %v2956
      %v2989 = vadd.f32 %v2732, %v2957
      %v2990 = vadd.f32 %v2733, %v2958
      %v2991 = vadd.f32 %v2734, %v2959
      %v2992 = vadd.f32 %v2735, %v2960
      %v2993 = vld [vmem:[%s2477 + $0x2] sm:$0xff]
      %v2994 = vld [vmem:[%s2477 + $0xa] sm:$0xff]
      %v2995 = vld [vmem:[%s2477 + $0x1a] sm:$0xff]
      %v2996 = vld [vmem:[%s2477 + $0x22] sm:$0xff]
      %v2997 = vld [vmem:[%s2477 + $0x32] sm:$0xff]
      %v2998 = vld [vmem:[%s2477 + $0x3a] sm:$0xff]
      %v2999 = vld [vmem:[%s2477 + $0x4a] sm:$0xff]
      %v3000 = vld [vmem:[%s2477 + $0x52] sm:$0xff]
      %v3001 = vld [vmem:[%s2477 + $0x62] sm:$0xff]
      %v3002 = vld [vmem:[%s2477 + $0x6a] sm:$0xff]
      %v3003 = vld [vmem:[%s2477 + $0x7a] sm:$0xff]
      %v3004 = vld [vmem:[%s2477 + $0x82] sm:$0xff]
      %v3005 = vld [vmem:[%s2477 + $0x92] sm:$0xff]
      %v3006 = vld [vmem:[%s2477 + $0x9a] sm:$0xff]
      %v3007 = vld [vmem:[%s2477 + $0xaa] sm:$0xff]
      %v3008 = vld [vmem:[%s2477 + $0xb2] sm:$0xff]
      %v3009 = vld [vmem:[%s2477 + $0xc2] sm:$0xff]
      %v3010 = vld [vmem:[%s2477 + $0xca] sm:$0xff]
      %v3011 = vld [vmem:[%s2477 + $0xda] sm:$0xff]
      %v3012 = vld [vmem:[%s2477 + $0xe2] sm:$0xff]
      %v3013 = vld [vmem:[%s2477 + $0xf2] sm:$0xff]
      %v3014 = vld [vmem:[%s2477 + $0xfa] sm:$0xff]
      %v3015 = vld [vmem:[%s2477 + $0x10a] sm:$0xff]
      %v3016 = vld [vmem:[%s2477 + $0x112] sm:$0xff]
      %v3017 = vld [vmem:[%s2477 + $0x122] sm:$0xff]
      %v3018 = vld [vmem:[%s2477 + $0x12a] sm:$0xff]
      %v3019 = vld [vmem:[%s2477 + $0x13a] sm:$0xff]
      %v3020 = vld [vmem:[%s2477 + $0x142] sm:$0xff]
      %v3021 = vld [vmem:[%s2477 + $0x152] sm:$0xff]
      %v3022 = vld [vmem:[%s2477 + $0x15a] sm:$0xff]
      %v3023 = vld [vmem:[%s2477 + $0x16a] sm:$0xff]
      %v3024 = vld [vmem:[%s2477 + $0x172] sm:$0xff]
      %3057 = vrot.lane.b32.xlu0 %v2993, 32
      %v3058 = vpop.permute.xlu0 %3057
      %3059 = vrot.lane.b32.xlu0 %v2994, 32
      %v3060 = vpop.permute.xlu0 %3059
      %3061 = vrot.lane.b32.xlu0 %v2995, 32
      %v3062 = vpop.permute.xlu0 %3061
      %3063 = vrot.lane.b32.xlu0 %v2996, 32
      %v3064 = vpop.permute.xlu0 %3063
      %3065 = vrot.lane.b32.xlu0 %v2997, 32
      %v3066 = vpop.permute.xlu0 %3065
      %3067 = vrot.lane.b32.xlu0 %v2998, 32
      %v3068 = vpop.permute.xlu0 %3067
      %3069 = vrot.lane.b32.xlu0 %v2999, 32
      %v3070 = vpop.permute.xlu0 %3069
      %3071 = vrot.lane.b32.xlu0 %v3000, 32
      %v3072 = vpop.permute.xlu0 %3071
      %3073 = vrot.lane.b32.xlu0 %v3001, 32
      %v3074 = vpop.permute.xlu0 %3073
      %3075 = vrot.lane.b32.xlu0 %v3002, 32
      %v3076 = vpop.permute.xlu0 %3075
      %3077 = vrot.lane.b32.xlu0 %v3003, 32
      %v3078 = vpop.permute.xlu0 %3077
      %3079 = vrot.lane.b32.xlu0 %v3004, 32
      %v3080 = vpop.permute.xlu0 %3079
      %3081 = vrot.lane.b32.xlu0 %v3005, 32
      %v3082 = vpop.permute.xlu0 %3081
      %3083 = vrot.lane.b32.xlu0 %v3006, 32
      %v3084 = vpop.permute.xlu0 %3083
      %3085 = vrot.lane.b32.xlu0 %v3007, 32
      %v3086 = vpop.permute.xlu0 %3085
      %3087 = vrot.lane.b32.xlu0 %v3008, 32
      %v3088 = vpop.permute.xlu0 %3087
      %3089 = vrot.lane.b32.xlu0 %v3009, 32
      %v3090 = vpop.permute.xlu0 %3089
      %3091 = vrot.lane.b32.xlu0 %v3010, 32
      %v3092 = vpop.permute.xlu0 %3091
      %3093 = vrot.lane.b32.xlu0 %v3011, 32
      %v3094 = vpop.permute.xlu0 %3093
      %3095 = vrot.lane.b32.xlu0 %v3012, 32
      %v3096 = vpop.permute.xlu0 %3095
      %3097 = vrot.lane.b32.xlu0 %v3013, 32
      %v3098 = vpop.permute.xlu0 %3097
      %3099 = vrot.lane.b32.xlu0 %v3014, 32
      %v3100 = vpop.permute.xlu0 %3099
      %3101 = vrot.lane.b32.xlu0 %v3015, 32
      %v3102 = vpop.permute.xlu0 %3101
      %3103 = vrot.lane.b32.xlu0 %v3016, 32
      %v3104 = vpop.permute.xlu0 %3103
      %3105 = vrot.lane.b32.xlu0 %v3017, 32
      %v3106 = vpop.permute.xlu0 %3105
      %3107 = vrot.lane.b32.xlu0 %v3018, 32
      %v3108 = vpop.permute.xlu0 %3107
      %3109 = vrot.lane.b32.xlu0 %v3019, 32
      %v3110 = vpop.permute.xlu0 %3109
      %3111 = vrot.lane.b32.xlu0 %v3020, 32
      %v3112 = vpop.permute.xlu0 %3111
      %3113 = vrot.lane.b32.xlu0 %v3021, 32
      %v3114 = vpop.permute.xlu0 %3113
      %3115 = vrot.lane.b32.xlu0 %v3022, 32
      %v3116 = vpop.permute.xlu0 %3115
      %3117 = vrot.lane.b32.xlu0 %v3023, 32
      %v3118 = vpop.permute.xlu0 %3117
      %3119 = vrot.lane.b32.xlu0 %v3024, 32
      %v3120 = vpop.permute.xlu0 %3119
      %vm3153 = vcmask 294144
      %3154 = vst.msk [vmem:[#allocation4] sm:$0xff] %vm3153, %v3058
      %3155 = vst.msk [vmem:[#allocation4 + $0x8] sm:$0xff] %vm3153, %v3060
      %3156 = vst.msk [vmem:[#allocation4 + $0x10] sm:$0xff] %vm3153, %v3062
      %3157 = vst.msk [vmem:[#allocation4 + $0x18] sm:$0xff] %vm3153, %v3064
      %3158 = vst.msk [vmem:[#allocation4 + $0x20] sm:$0xff] %vm3153, %v3066
      %3159 = vst.msk [vmem:[#allocation4 + $0x28] sm:$0xff] %vm3153, %v3068
      %3160 = vst.msk [vmem:[#allocation4 + $0x30] sm:$0xff] %vm3153, %v3070
      %3161 = vst.msk [vmem:[#allocation4 + $0x38] sm:$0xff] %vm3153, %v3072
      %3162 = vst.msk [vmem:[#allocation4 + $0x40] sm:$0xff] %vm3153, %v3074
      %3163 = vst.msk [vmem:[#allocation4 + $0x48] sm:$0xff] %vm3153, %v3076
      %3164 = vst.msk [vmem:[#allocation4 + $0x50] sm:$0xff] %vm3153, %v3078
      %3165 = vst.msk [vmem:[#allocation4 + $0x58] sm:$0xff] %vm3153, %v3080
      %3166 = vst.msk [vmem:[#allocation4 + $0x60] sm:$0xff] %vm3153, %v3082
      %3167 = vst.msk [vmem:[#allocation4 + $0x68] sm:$0xff] %vm3153, %v3084
      %3168 = vst.msk [vmem:[#allocation4 + $0x70] sm:$0xff] %vm3153, %v3086
      %3169 = vst.msk [vmem:[#allocation4 + $0x78] sm:$0xff] %vm3153, %v3088
      %3170 = vst.msk [vmem:[#allocation4 + $0x80] sm:$0xff] %vm3153, %v3090
      %3171 = vst.msk [vmem:[#allocation4 + $0x88] sm:$0xff] %vm3153, %v3092
      %3172 = vst.msk [vmem:[#allocation4 + $0x90] sm:$0xff] %vm3153, %v3094
      %3173 = vst.msk [vmem:[#allocation4 + $0x98] sm:$0xff] %vm3153, %v3096
      %3174 = vst.msk [vmem:[#allocation4 + $0xa0] sm:$0xff] %vm3153, %v3098
      %3175 = vst.msk [vmem:[#allocation4 + $0xa8] sm:$0xff] %vm3153, %v3100
      %3176 = vst.msk [vmem:[#allocation4 + $0xb0] sm:$0xff] %vm3153, %v3102
      %3177 = vst.msk [vmem:[#allocation4 + $0xb8] sm:$0xff] %vm3153, %v3104
      %3178 = vst.msk [vmem:[#allocation4 + $0xc0] sm:$0xff] %vm3153, %v3106
      %3179 = vst.msk [vmem:[#allocation4 + $0xc8] sm:$0xff] %vm3153, %v3108
      %3180 = vst.msk [vmem:[#allocation4 + $0xd0] sm:$0xff] %vm3153, %v3110
      %3181 = vst.msk [vmem:[#allocation4 + $0xd8] sm:$0xff] %vm3153, %v3112
      %3182 = vst.msk [vmem:[#allocation4 + $0xe0] sm:$0xff] %vm3153, %v3114
      %3183 = vst.msk [vmem:[#allocation4 + $0xe8] sm:$0xff] %vm3153, %v3116
      %3184 = vst.msk [vmem:[#allocation4 + $0xf0] sm:$0xff] %vm3153, %v3118
      %3185 = vst.msk [vmem:[#allocation4 + $0xf8] sm:$0xff] %vm3153, %v3120
      %v3186 = vld [vmem:[%s2671 + $0x2] sm:$0xff]
      %v3187 = vld [vmem:[%s2671 + $0xa] sm:$0xff]
      %v3188 = vld [vmem:[%s2671 + $0x1a] sm:$0xff]
      %v3189 = vld [vmem:[%s2671 + $0x22] sm:$0xff]
      %v3190 = vld [vmem:[%s2671 + $0x32] sm:$0xff]
      %v3191 = vld [vmem:[%s2671 + $0x3a] sm:$0xff]
      %v3192 = vld [vmem:[%s2671 + $0x4a] sm:$0xff]
      %v3193 = vld [vmem:[%s2671 + $0x52] sm:$0xff]
      %v3194 = vld [vmem:[%s2671 + $0x62] sm:$0xff]
      %v3195 = vld [vmem:[%s2671 + $0x6a] sm:$0xff]
      %v3196 = vld [vmem:[%s2671 + $0x7a] sm:$0xff]
      %v3197 = vld [vmem:[%s2671 + $0x82] sm:$0xff]
      %v3198 = vld [vmem:[%s2671 + $0x92] sm:$0xff]
      %v3199 = vld [vmem:[%s2671 + $0x9a] sm:$0xff]
      %v3200 = vld [vmem:[%s2671 + $0xaa] sm:$0xff]
      %v3201 = vld [vmem:[%s2671 + $0xb2] sm:$0xff]
      %v3202 = vld [vmem:[%s2671 + $0xc2] sm:$0xff]
      %v3203 = vld [vmem:[%s2671 + $0xca] sm:$0xff]
      %v3204 = vld [vmem:[%s2671 + $0xda] sm:$0xff]
      %v3205 = vld [vmem:[%s2671 + $0xe2] sm:$0xff]
      %v3206 = vld [vmem:[%s2671 + $0xf2] sm:$0xff]
      %v3207 = vld [vmem:[%s2671 + $0xfa] sm:$0xff]
      %v3208 = vld [vmem:[%s2671 + $0x10a] sm:$0xff]
      %v3209 = vld [vmem:[%s2671 + $0x112] sm:$0xff]
      %v3210 = vld [vmem:[%s2671 + $0x122] sm:$0xff]
      %v3211 = vld [vmem:[%s2671 + $0x12a] sm:$0xff]
      %v3212 = vld [vmem:[%s2671 + $0x13a] sm:$0xff]
      %v3213 = vld [vmem:[%s2671 + $0x142] sm:$0xff]
      %v3214 = vld [vmem:[%s2671 + $0x152] sm:$0xff]
      %v3215 = vld [vmem:[%s2671 + $0x15a] sm:$0xff]
      %v3216 = vld [vmem:[%s2671 + $0x16a] sm:$0xff]
      %v3217 = vld [vmem:[%s2671 + $0x172] sm:$0xff]
      %v3218 = vadd.f32 %v2961, %v3186
      %v3219 = vadd.f32 %v2962, %v3187
      %v3220 = vadd.f32 %v2963, %v3188
      %v3221 = vadd.f32 %v2964, %v3189
      %v3222 = vadd.f32 %v2965, %v3190
      %v3223 = vadd.f32 %v2966, %v3191
      %v3224 = vadd.f32 %v2967, %v3192
      %v3225 = vadd.f32 %v2968, %v3193
      %v3226 = vadd.f32 %v2969, %v3194
      %v3227 = vadd.f32 %v2970, %v3195
      %v3228 = vadd.f32 %v2971, %v3196
      %v3229 = vadd.f32 %v2972, %v3197
      %v3230 = vadd.f32 %v2973, %v3198
      %v3231 = vadd.f32 %v2974, %v3199
      %v3232 = vadd.f32 %v2975, %v3200
      %v3233 = vadd.f32 %v2976, %v3201
      %v3234 = vadd.f32 %v2977, %v3202
      %v3235 = vadd.f32 %v2978, %v3203
      %v3236 = vadd.f32 %v2979, %v3204
      %v3237 = vadd.f32 %v2980, %v3205
      %v3238 = vadd.f32 %v2981, %v3206
      %v3239 = vadd.f32 %v2982, %v3207
      %v3240 = vadd.f32 %v2983, %v3208
      %v3241 = vadd.f32 %v2984, %v3209
      %v3242 = vadd.f32 %v2985, %v3210
      %v3243 = vadd.f32 %v2986, %v3211
      %v3244 = vadd.f32 %v2987, %v3212
      %v3245 = vadd.f32 %v2988, %v3213
      %v3246 = vadd.f32 %v2989, %v3214
      %v3247 = vadd.f32 %v2990, %v3215
      %v3248 = vadd.f32 %v2991, %v3216
      %v3249 = vadd.f32 %v2992, %v3217
      %v3250 = vld [vmem:[#allocation4] sm:$0xff]
      %v3251 = vld [vmem:[#allocation4 + $0x8] sm:$0xff]
      %v3252 = vld [vmem:[#allocation4 + $0x10] sm:$0xff]
      %v3253 = vld [vmem:[#allocation4 + $0x18] sm:$0xff]
      %v3254 = vld [vmem:[#allocation4 + $0x20] sm:$0xff]
      %v3255 = vld [vmem:[#allocation4 + $0x28] sm:$0xff]
      %v3256 = vld [vmem:[#allocation4 + $0x30] sm:$0xff]
      %v3257 = vld [vmem:[#allocation4 + $0x38] sm:$0xff]
      %v3258 = vld [vmem:[#allocation4 + $0x40] sm:$0xff]
      %v3259 = vld [vmem:[#allocation4 + $0x48] sm:$0xff]
      %v3260 = vld [vmem:[#allocation4 + $0x50] sm:$0xff]
      %v3261 = vld [vmem:[#allocation4 + $0x58] sm:$0xff]
      %v3262 = vld [vmem:[#allocation4 + $0x60] sm:$0xff]
      %v3263 = vld [vmem:[#allocation4 + $0x68] sm:$0xff]
      %v3264 = vld [vmem:[#allocation4 + $0x70] sm:$0xff]
      %v3265 = vld [vmem:[#allocation4 + $0x78] sm:$0xff]
      %v3266 = vld [vmem:[#allocation4 + $0x80] sm:$0xff]
      %v3267 = vld [vmem:[#allocation4 + $0x88] sm:$0xff]
      %v3268 = vld [vmem:[#allocation4 + $0x90] sm:$0xff]
      %v3269 = vld [vmem:[#allocation4 + $0x98] sm:$0xff]
      %v3270 = vld [vmem:[#allocation4 + $0xa0] sm:$0xff]
      %v3271 = vld [vmem:[#allocation4 + $0xa8] sm:$0xff]
      %v3272 = vld [vmem:[#allocation4 + $0xb0] sm:$0xff]
      %v3273 = vld [vmem:[#allocation4 + $0xb8] sm:$0xff]
      %v3274 = vld [vmem:[#allocation4 + $0xc0] sm:$0xff]
      %v3275 = vld [vmem:[#allocation4 + $0xc8] sm:$0xff]
      %v3276 = vld [vmem:[#allocation4 + $0xd0] sm:$0xff]
      %v3277 = vld [vmem:[#allocation4 + $0xd8] sm:$0xff]
      %v3278 = vld [vmem:[#allocation4 + $0xe0] sm:$0xff]
      %v3279 = vld [vmem:[#allocation4 + $0xe8] sm:$0xff]
      %v3280 = vld [vmem:[#allocation4 + $0xf0] sm:$0xff]
      %v3281 = vld [vmem:[#allocation4 + $0xf8] sm:$0xff]
      %v3282 = vld [vmem:[%s4] sm:$0xff]
      %v3283 = vld [vmem:[%s4 + $0x8] sm:$0xff]
      %v3284 = vld [vmem:[%s4 + $0x10] sm:$0xff]
      %v3285 = vld [vmem:[%s4 + $0x18] sm:$0xff]
      %v3286 = vld [vmem:[%s4 + $0x20] sm:$0xf]
      %vm3287 = vcmask 293888
      %v3289 = vsel %vm3287, %v3250, 0
      %v3292 = vsel %vm3287, %v3251, 0
      %v3295 = vsel %vm3287, %v3252, 0
      %v3298 = vsel %vm3287, %v3253, 0
      %v3301 = vsel %vm3287, %v3254, 0
      %v3304 = vsel %vm3287, %v3255, 0
      %v3307 = vsel %vm3287, %v3256, 0
      %v3310 = vsel %vm3287, %v3257, 0
      %v3313 = vsel %vm3287, %v3258, 0
      %v3316 = vsel %vm3287, %v3259, 0
      %v3319 = vsel %vm3287, %v3260, 0
      %v3322 = vsel %vm3287, %v3261, 0
      %v3325 = vsel %vm3287, %v3262, 0
      %v3328 = vsel %vm3287, %v3263, 0
      %v3331 = vsel %vm3287, %v3264, 0
      %v3334 = vsel %vm3287, %v3265, 0
      %v3337 = vsel %vm3287, %v3266, 0
      %v3340 = vsel %vm3287, %v3267, 0
      %v3343 = vsel %vm3287, %v3268, 0
      %v3346 = vsel %vm3287, %v3269, 0
      %v3349 = vsel %vm3287, %v3270, 0
      %v3352 = vsel %vm3287, %v3271, 0
      %v3355 = vsel %vm3287, %v3272, 0
      %v3358 = vsel %vm3287, %v3273, 0
      %v3361 = vsel %vm3287, %v3274, 0
      %v3364 = vsel %vm3287, %v3275, 0
      %v3367 = vsel %vm3287, %v3276, 0
      %v3370 = vsel %vm3287, %v3277, 0
      %v3373 = vsel %vm3287, %v3278, 0
      %v3376 = vsel %vm3287, %v3279, 0
      %v3379 = vsel %vm3287, %v3280, 0
      %v3382 = vsel %vm3287, %v3281, 0
      %v3385 = vsel %vm546, %v3286, 0
      %3387 = vmatpush.msra.mxu0 0.0
      %3388 = vmatpush.msra.mxu0 0.0
      %3389 = vmatpush.msra.mxu0 0.0
      %3390 = vmatpush.msra.mxu0 0.0
      %3391 = vmatpush.msra.mxu0 0.0
      %3392 = vmatpush.msra.mxu0 0.0
      %3393 = vmatpush.msra.mxu0 0.0
      %3394 = vmatpush.msra.mxu0 0.0
      %3395 = vmatpush.msra.mxu0 0.0
      %3396 = vmatpush.msra.mxu0 0.0
      %3397 = vmatpush.msra.mxu0 0.0
      %3398 = vmatpush.msra.mxu0 %v3385
      %3399 = vmatpush.msra.mxu0 %v3285
      %3400 = vmatpush.msra.mxu0 %v3284
      %3401 = vmatpush.msra.mxu0 %v3283
      %3402 = vmatpush.msra.mxu0 %v3282
      %3403 = vmatmul.f32.gmra.mxu0 %v3289
      %v3404 = vpop.f32.mrf.mxu0
      %v3405 = vadd.f32 0.0, %v3404
      %3406 = vmatmul.f32.gmra.mxu0 %v3292
      %v3407 = vpop.f32.mrf.mxu0
      %v3408 = vadd.f32 0.0, %v3407
      %3409 = vmatmul.f32.gmra.mxu0 %v3295
      %v3410 = vpop.f32.mrf.mxu0
      %v3411 = vadd.f32 0.0, %v3410
      %3412 = vmatmul.f32.gmra.mxu0 %v3298
      %v3413 = vpop.f32.mrf.mxu0
      %v3414 = vadd.f32 0.0, %v3413
      %3415 = vmatmul.f32.gmra.mxu0 %v3301
      %v3416 = vpop.f32.mrf.mxu0
      %v3417 = vadd.f32 0.0, %v3416
      %3418 = vmatmul.f32.gmra.mxu0 %v3304
      %v3419 = vpop.f32.mrf.mxu0
      %v3420 = vadd.f32 0.0, %v3419
      %3421 = vmatmul.f32.gmra.mxu0 %v3307
      %v3422 = vpop.f32.mrf.mxu0
      %v3423 = vadd.f32 0.0, %v3422
      %3424 = vmatmul.f32.gmra.mxu0 %v3310
      %v3425 = vpop.f32.mrf.mxu0
      %v3426 = vadd.f32 0.0, %v3425
      %3427 = vmatmul.f32.gmra.mxu0 %v3313
      %v3428 = vpop.f32.mrf.mxu0
      %v3429 = vadd.f32 0.0, %v3428
      %3430 = vmatmul.f32.gmra.mxu0 %v3316
      %v3431 = vpop.f32.mrf.mxu0
      %v3432 = vadd.f32 0.0, %v3431
      %3433 = vmatmul.f32.gmra.mxu0 %v3319
      %v3434 = vpop.f32.mrf.mxu0
      %v3435 = vadd.f32 0.0, %v3434
      %3436 = vmatmul.f32.gmra.mxu0 %v3322
      %v3437 = vpop.f32.mrf.mxu0
      %v3438 = vadd.f32 0.0, %v3437
      %3439 = vmatmul.f32.gmra.mxu0 %v3325
      %v3440 = vpop.f32.mrf.mxu0
      %v3441 = vadd.f32 0.0, %v3440
      %3442 = vmatmul.f32.gmra.mxu0 %v3328
      %v3443 = vpop.f32.mrf.mxu0
      %v3444 = vadd.f32 0.0, %v3443
      %3445 = vmatmul.f32.gmra.mxu0 %v3331
      %v3446 = vpop.f32.mrf.mxu0
      %v3447 = vadd.f32 0.0, %v3446
      %3448 = vmatmul.f32.gmra.mxu0 %v3334
      %v3449 = vpop.f32.mrf.mxu0
      %v3450 = vadd.f32 0.0, %v3449
      %3451 = vmatmul.f32.gmra.mxu0 %v3337
      %v3452 = vpop.f32.mrf.mxu0
      %v3453 = vadd.f32 0.0, %v3452
      %3454 = vmatmul.f32.gmra.mxu0 %v3340
      %v3455 = vpop.f32.mrf.mxu0
      %v3456 = vadd.f32 0.0, %v3455
      %3457 = vmatmul.f32.gmra.mxu0 %v3343
      %v3458 = vpop.f32.mrf.mxu0
      %v3459 = vadd.f32 0.0, %v3458
      %3460 = vmatmul.f32.gmra.mxu0 %v3346
      %v3461 = vpop.f32.mrf.mxu0
      %v3462 = vadd.f32 0.0, %v3461
      %3463 = vmatmul.f32.gmra.mxu0 %v3349
      %v3464 = vpop.f32.mrf.mxu0
      %v3465 = vadd.f32 0.0, %v3464
      %3466 = vmatmul.f32.gmra.mxu0 %v3352
      %v3467 = vpop.f32.mrf.mxu0
      %v3468 = vadd.f32 0.0, %v3467
      %3469 = vmatmul.f32.gmra.mxu0 %v3355
      %v3470 = vpop.f32.mrf.mxu0
      %v3471 = vadd.f32 0.0, %v3470
      %3472 = vmatmul.f32.gmra.mxu0 %v3358
      %v3473 = vpop.f32.mrf.mxu0
      %v3474 = vadd.f32 0.0, %v3473
      %3475 = vmatmul.f32.gmra.mxu0 %v3361
      %v3476 = vpop.f32.mrf.mxu0
      %v3477 = vadd.f32 0.0, %v3476
      %3478 = vmatmul.f32.gmra.mxu0 %v3364
      %v3479 = vpop.f32.mrf.mxu0
      %v3480 = vadd.f32 0.0, %v3479
      %3481 = vmatmul.f32.gmra.mxu0 %v3367
      %v3482 = vpop.f32.mrf.mxu0
      %v3483 = vadd.f32 0.0, %v3482
      %3484 = vmatmul.f32.gmra.mxu0 %v3370
      %v3485 = vpop.f32.mrf.mxu0
      %v3486 = vadd.f32 0.0, %v3485
      %3487 = vmatmul.f32.gmra.mxu0 %v3373
      %v3488 = vpop.f32.mrf.mxu0
      %v3489 = vadd.f32 0.0, %v3488
      %3490 = vmatmul.f32.gmra.mxu0 %v3376
      %v3491 = vpop.f32.mrf.mxu0
      %v3492 = vadd.f32 0.0, %v3491
      %3493 = vmatmul.f32.gmra.mxu0 %v3379
      %v3494 = vpop.f32.mrf.mxu0
      %v3495 = vadd.f32 0.0, %v3494
      %3496 = vmatmul.f32.gmra.mxu0 %v3382
      %v3497 = vpop.f32.mrf.mxu0
      %v3498 = vadd.f32 0.0, %v3497
      %3499 = vdwg.mxu0
      %v3500 = vmax.f32 %v3218, 1e-05
      %v3501 = vmax.f32 %v3219, 1e-05
      %v3502 = vmax.f32 %v3220, 1e-05
      %v3503 = vmax.f32 %v3221, 1e-05
      %v3504 = vmax.f32 %v3222, 1e-05
      %v3505 = vmax.f32 %v3223, 1e-05
      %v3506 = vmax.f32 %v3224, 1e-05
      %v3507 = vmax.f32 %v3225, 1e-05
      %v3508 = vmax.f32 %v3226, 1e-05
      %v3509 = vmax.f32 %v3227, 1e-05
      %v3510 = vmax.f32 %v3228, 1e-05
      %v3511 = vmax.f32 %v3229, 1e-05
      %v3512 = vmax.f32 %v3230, 1e-05
      %v3513 = vmax.f32 %v3231, 1e-05
      %v3514 = vmax.f32 %v3232, 1e-05
      %v3515 = vmax.f32 %v3233, 1e-05
      %v3516 = vmax.f32 %v3234, 1e-05
      %v3517 = vmax.f32 %v3235, 1e-05
      %v3518 = vmax.f32 %v3236, 1e-05
      %v3519 = vmax.f32 %v3237, 1e-05
      %v3520 = vmax.f32 %v3238, 1e-05
      %v3521 = vmax.f32 %v3239, 1e-05
      %v3522 = vmax.f32 %v3240, 1e-05
      %v3523 = vmax.f32 %v3241, 1e-05
      %v3524 = vmax.f32 %v3242, 1e-05
      %v3525 = vmax.f32 %v3243, 1e-05
      %v3526 = vmax.f32 %v3244, 1e-05
      %v3527 = vmax.f32 %v3245, 1e-05
      %v3528 = vmax.f32 %v3246, 1e-05
      %v3529 = vmax.f32 %v3247, 1e-05
      %v3530 = vmax.f32 %v3248, 1e-05
      %v3531 = vmax.f32 %v3249, 1e-05
      %v3532 = vrcp.pop %v3500
      %v3533 = vrcp.pop %v3501
      %v3534 = vrcp.pop %v3502
      %v3535 = vrcp.pop %v3503
      %v3536 = vrcp.pop %v3504
      %v3537 = vrcp.pop %v3505
      %v3538 = vrcp.pop %v3506
      %v3539 = vrcp.pop %v3507
      %v3540 = vrcp.pop %v3508
      %v3541 = vrcp.pop %v3509
      %v3542 = vrcp.pop %v3510
      %v3543 = vrcp.pop %v3511
      %v3544 = vrcp.pop %v3512
      %v3545 = vrcp.pop %v3513
      %v3546 = vrcp.pop %v3514
      %v3547 = vrcp.pop %v3515
      %v3548 = vrcp.pop %v3516
      %v3549 = vrcp.pop %v3517
      %v3550 = vrcp.pop %v3518
      %v3551 = vrcp.pop %v3519
      %v3552 = vrcp.pop %v3520
      %v3553 = vrcp.pop %v3521
      %v3554 = vrcp.pop %v3522
      %v3555 = vrcp.pop %v3523
      %v3556 = vrcp.pop %v3524
      %v3557 = vrcp.pop %v3525
      %v3558 = vrcp.pop %v3526
      %v3559 = vrcp.pop %v3527
      %v3560 = vrcp.pop %v3528
      %v3561 = vrcp.pop %v3529
      %v3562 = vrcp.pop %v3530
      %v3563 = vrcp.pop %v3531
      %3565 = vset.pattern.permute.xlu0 0
      %3566 = vperm.xlu0 %3565, %v3532
      %v3567 = vpop.permute.xlu0 %3566
      %3570 = vset.pattern.permute.xlu0 0
      %3571 = vperm.xlu0 %3570, %v3533
      %v3572 = vpop.permute.xlu0 %3571
      %3575 = vset.pattern.permute.xlu0 0
      %3576 = vperm.xlu0 %3575, %v3534
      %v3577 = vpop.permute.xlu0 %3576
      %3580 = vset.pattern.permute.xlu0 0
      %3581 = vperm.xlu0 %3580, %v3535
      %v3582 = vpop.permute.xlu0 %3581
      %3585 = vset.pattern.permute.xlu0 0
      %3586 = vperm.xlu0 %3585, %v3536
      %v3587 = vpop.permute.xlu0 %3586
      %3590 = vset.pattern.permute.xlu0 0
      %3591 = vperm.xlu0 %3590, %v3537
      %v3592 = vpop.permute.xlu0 %3591
      %3595 = vset.pattern.permute.xlu0 0
      %3596 = vperm.xlu0 %3595, %v3538
      %v3597 = vpop.permute.xlu0 %3596
      %3600 = vset.pattern.permute.xlu0 0
      %3601 = vperm.xlu0 %3600, %v3539
      %v3602 = vpop.permute.xlu0 %3601
      %3605 = vset.pattern.permute.xlu0 0
      %3606 = vperm.xlu0 %3605, %v3540
      %v3607 = vpop.permute.xlu0 %3606
      %3610 = vset.pattern.permute.xlu0 0
      %3611 = vperm.xlu0 %3610, %v3541
      %v3612 = vpop.permute.xlu0 %3611
      %3615 = vset.pattern.permute.xlu0 0
      %3616 = vperm.xlu0 %3615, %v3542
      %v3617 = vpop.permute.xlu0 %3616
      %3620 = vset.pattern.permute.xlu0 0
      %3621 = vperm.xlu0 %3620, %v3543
      %v3622 = vpop.permute.xlu0 %3621
      %3625 = vset.pattern.permute.xlu0 0
      %3626 = vperm.xlu0 %3625, %v3544
      %v3627 = vpop.permute.xlu0 %3626
      %3630 = vset.pattern.permute.xlu0 0
      %3631 = vperm.xlu0 %3630, %v3545
      %v3632 = vpop.permute.xlu0 %3631
      %3635 = vset.pattern.permute.xlu0 0
      %3636 = vperm.xlu0 %3635, %v3546
      %v3637 = vpop.permute.xlu0 %3636
      %3640 = vset.pattern.permute.xlu0 0
      %3641 = vperm.xlu0 %3640, %v3547
      %v3642 = vpop.permute.xlu0 %3641
      %3645 = vset.pattern.permute.xlu0 0
      %3646 = vperm.xlu0 %3645, %v3548
      %v3647 = vpop.permute.xlu0 %3646
      %3650 = vset.pattern.permute.xlu0 0
      %3651 = vperm.xlu0 %3650, %v3549
      %v3652 = vpop.permute.xlu0 %3651
      %3655 = vset.pattern.permute.xlu0 0
      %3656 = vperm.xlu0 %3655, %v3550
      %v3657 = vpop.permute.xlu0 %3656
      %3660 = vset.pattern.permute.xlu0 0
      %3661 = vperm.xlu0 %3660, %v3551
      %v3662 = vpop.permute.xlu0 %3661
      %3665 = vset.pattern.permute.xlu0 0
      %3666 = vperm.xlu0 %3665, %v3552
      %v3667 = vpop.permute.xlu0 %3666
      %3670 = vset.pattern.permute.xlu0 0
      %3671 = vperm.xlu0 %3670, %v3553
      %v3672 = vpop.permute.xlu0 %3671
      %3675 = vset.pattern.permute.xlu0 0
      %3676 = vperm.xlu0 %3675, %v3554
      %v3677 = vpop.permute.xlu0 %3676
      %3680 = vset.pattern.permute.xlu0 0
      %3681 = vperm.xlu0 %3680, %v3555
      %v3682 = vpop.permute.xlu0 %3681
      %3685 = vset.pattern.permute.xlu0 0
      %3686 = vperm.xlu0 %3685, %v3556
      %v3687 = vpop.permute.xlu0 %3686
      %3690 = vset.pattern.permute.xlu0 0
      %3691 = vperm.xlu0 %3690, %v3557
      %v3692 = vpop.permute.xlu0 %3691
      %3695 = vset.pattern.permute.xlu0 0
      %3696 = vperm.xlu0 %3695, %v3558
      %v3697 = vpop.permute.xlu0 %3696
      %3700 = vset.pattern.permute.xlu0 0
      %3701 = vperm.xlu0 %3700, %v3559
      %v3702 = vpop.permute.xlu0 %3701
      %3705 = vset.pattern.permute.xlu0 0
      %3706 = vperm.xlu0 %3705, %v3560
      %v3707 = vpop.permute.xlu0 %3706
      %3710 = vset.pattern.permute.xlu0 0
      %3711 = vperm.xlu0 %3710, %v3561
      %v3712 = vpop.permute.xlu0 %3711
      %3715 = vset.pattern.permute.xlu0 0
      %3716 = vperm.xlu0 %3715, %v3562
      %v3717 = vpop.permute.xlu0 %3716
      %3720 = vset.pattern.permute.xlu0 0
      %3721 = vperm.xlu0 %3720, %v3563
      %v3722 = vpop.permute.xlu0 %3721
      %v3724 = vmul.f32 %v3405, %v3567
      %v3725 = vmul.f32 %v3408, %v3572
      %v3726 = vmul.f32 %v3411, %v3577
      %v3727 = vmul.f32 %v3414, %v3582
      %v3728 = vmul.f32 %v3417, %v3587
      %v3729 = vmul.f32 %v3420, %v3592
      %v3730 = vmul.f32 %v3423, %v3597
      %v3731 = vmul.f32 %v3426, %v3602
      %v3732 = vmul.f32 %v3429, %v3607
      %v3733 = vmul.f32 %v3432, %v3612
      %v3734 = vmul.f32 %v3435, %v3617
      %v3735 = vmul.f32 %v3438, %v3622
      %v3736 = vmul.f32 %v3441, %v3627
      %v3737 = vmul.f32 %v3444, %v3632
      %v3738 = vmul.f32 %v3447, %v3637
      %v3739 = vmul.f32 %v3450, %v3642
      %v3740 = vmul.f32 %v3453, %v3647
      %v3741 = vmul.f32 %v3456, %v3652
      %v3742 = vmul.f32 %v3459, %v3657
      %v3743 = vmul.f32 %v3462, %v3662
      %v3744 = vmul.f32 %v3465, %v3667
      %v3745 = vmul.f32 %v3468, %v3672
      %v3746 = vmul.f32 %v3471, %v3677
      %v3747 = vmul.f32 %v3474, %v3682
      %v3748 = vmul.f32 %v3477, %v3687
      %v3749 = vmul.f32 %v3480, %v3692
      %v3750 = vmul.f32 %v3483, %v3697
      %v3751 = vmul.f32 %v3486, %v3702
      %v3752 = vmul.f32 %v3489, %v3707
      %v3753 = vmul.f32 %v3492, %v3712
      %v3754 = vmul.f32 %v3495, %v3717
      %v3755 = vmul.f32 %v3498, %v3722
      %v3756 = vld [vmem:[%s5] sm:$0x1]
      %v3758 = vperm.slane %v3756, 0
      %v3760 = vadd.f32 %v3724, %v3758
      %v3761 = vadd.f32 %v3725, %v3758
      %v3762 = vadd.f32 %v3726, %v3758
      %v3763 = vadd.f32 %v3727, %v3758
      %v3764 = vadd.f32 %v3728, %v3758
      %v3765 = vadd.f32 %v3729, %v3758
      %v3766 = vadd.f32 %v3730, %v3758
      %v3767 = vadd.f32 %v3731, %v3758
      %v3768 = vadd.f32 %v3732, %v3758
      %v3769 = vadd.f32 %v3733, %v3758
      %v3770 = vadd.f32 %v3734, %v3758
      %v3771 = vadd.f32 %v3735, %v3758
      %v3772 = vadd.f32 %v3736, %v3758
      %v3773 = vadd.f32 %v3737, %v3758
      %v3774 = vadd.f32 %v3738, %v3758
      %v3775 = vadd.f32 %v3739, %v3758
      %v3776 = vadd.f32 %v3740, %v3758
      %v3777 = vadd.f32 %v3741, %v3758
      %v3778 = vadd.f32 %v3742, %v3758
      %v3779 = vadd.f32 %v3743, %v3758
      %v3780 = vadd.f32 %v3744, %v3758
      %v3781 = vadd.f32 %v3745, %v3758
      %v3782 = vadd.f32 %v3746, %v3758
      %v3783 = vadd.f32 %v3747, %v3758
      %v3784 = vadd.f32 %v3748, %v3758
      %v3785 = vadd.f32 %v3749, %v3758
      %v3786 = vadd.f32 %v3750, %v3758
      %v3787 = vadd.f32 %v3751, %v3758
      %v3788 = vadd.f32 %v3752, %v3758
      %v3789 = vadd.f32 %v3753, %v3758
      %v3790 = vadd.f32 %v3754, %v3758
      %v3791 = vadd.f32 %v3755, %v3758
      %v3792 = vmax.f32 %v3760, 0.0
      %v3793 = vmax.f32 %v3761, 0.0
      %v3794 = vmax.f32 %v3762, 0.0
      %v3795 = vmax.f32 %v3763, 0.0
      %v3796 = vmax.f32 %v3764, 0.0
      %v3797 = vmax.f32 %v3765, 0.0
      %v3798 = vmax.f32 %v3766, 0.0
      %v3799 = vmax.f32 %v3767, 0.0
      %v3800 = vmax.f32 %v3768, 0.0
      %v3801 = vmax.f32 %v3769, 0.0
      %v3802 = vmax.f32 %v3770, 0.0
      %v3803 = vmax.f32 %v3771, 0.0
      %v3804 = vmax.f32 %v3772, 0.0
      %v3805 = vmax.f32 %v3773, 0.0
      %v3806 = vmax.f32 %v3774, 0.0
      %v3807 = vmax.f32 %v3775, 0.0
      %v3808 = vmax.f32 %v3776, 0.0
      %v3809 = vmax.f32 %v3777, 0.0
      %v3810 = vmax.f32 %v3778, 0.0
      %v3811 = vmax.f32 %v3779, 0.0
      %v3812 = vmax.f32 %v3780, 0.0
      %v3813 = vmax.f32 %v3781, 0.0
      %v3814 = vmax.f32 %v3782, 0.0
      %v3815 = vmax.f32 %v3783, 0.0
      %v3816 = vmax.f32 %v3784, 0.0
      %v3817 = vmax.f32 %v3785, 0.0
      %v3818 = vmax.f32 %v3786, 0.0
      %v3819 = vmax.f32 %v3787, 0.0
      %v3820 = vmax.f32 %v3788, 0.0
      %v3821 = vmax.f32 %v3789, 0.0
      %v3822 = vmax.f32 %v3790, 0.0
      %v3823 = vmax.f32 %v3791, 0.0
      %v3824 = vld [vmem:[%s6] sm:$0xf]
      %v3825 = vld [vmem:[%s7] sm:$0x1]
      %v3827 = vperm.slane %v3825, 0
      %v3830 = vsel %vm449, %v3792, 0
      %v3833 = vsel %vm449, %v3793, 0
      %v3836 = vsel %vm449, %v3794, 0
      %v3839 = vsel %vm449, %v3795, 0
      %v3842 = vsel %vm449, %v3796, 0
      %v3845 = vsel %vm449, %v3797, 0
      %v3848 = vsel %vm449, %v3798, 0
      %v3851 = vsel %vm449, %v3799, 0
      %v3854 = vsel %vm449, %v3800, 0
      %v3857 = vsel %vm449, %v3801, 0
      %v3860 = vsel %vm449, %v3802, 0
      %v3863 = vsel %vm449, %v3803, 0
      %v3866 = vsel %vm449, %v3804, 0
      %v3869 = vsel %vm449, %v3805, 0
      %v3872 = vsel %vm449, %v3806, 0
      %v3875 = vsel %vm449, %v3807, 0
      %v3878 = vsel %vm449, %v3808, 0
      %v3881 = vsel %vm449, %v3809, 0
      %v3884 = vsel %vm449, %v3810, 0
      %v3887 = vsel %vm449, %v3811, 0
      %v3890 = vsel %vm449, %v3812, 0
      %v3893 = vsel %vm449, %v3813, 0
      %v3896 = vsel %vm449, %v3814, 0
      %v3899 = vsel %vm449, %v3815, 0
      %v3902 = vsel %vm449, %v3816, 0
      %v3905 = vsel %vm449, %v3817, 0
      %v3908 = vsel %vm449, %v3818, 0
      %v3911 = vsel %vm449, %v3819, 0
      %v3914 = vsel %vm449, %v3820, 0
      %v3917 = vsel %vm449, %v3821, 0
      %v3920 = vsel %vm449, %v3822, 0
      %v3923 = vsel %vm449, %v3823, 0
      %v3926 = vsel %vm546, %v3824, 0
      %3928 = vmatpush.msra.mxu0 0.0
      %3929 = vmatpush.msra.mxu0 0.0
      %3930 = vmatpush.msra.mxu0 0.0
      %3931 = vmatpush.msra.mxu0 0.0
      %3932 = vmatpush.msra.mxu0 0.0
      %3933 = vmatpush.msra.mxu0 0.0
      %3934 = vmatpush.msra.mxu0 0.0
      %3935 = vmatpush.msra.mxu0 0.0
      %3936 = vmatpush.msra.mxu0 0.0
      %3937 = vmatpush.msra.mxu0 0.0
      %3938 = vmatpush.msra.mxu0 0.0
      %3939 = vmatpush.msra.mxu0 0.0
      %3940 = vmatpush.msra.mxu0 0.0
      %3941 = vmatpush.msra.mxu0 0.0
      %3942 = vmatpush.msra.mxu0 0.0
      %3943 = vmatpush.msra.mxu0 %v3926
      %3944 = vmatmul.f32.gmra.mxu0 %v3830
      %v3945 = vpop.f32.mrf.mxu0
      %v3946 = vadd.f32 %v3827, %v3945
      %3947 = vmatmul.f32.gmra.mxu0 %v3833
      %v3948 = vpop.f32.mrf.mxu0
      %v3949 = vadd.f32 %v3827, %v3948
      %3950 = vmatmul.f32.gmra.mxu0 %v3836
      %v3951 = vpop.f32.mrf.mxu0
      %v3952 = vadd.f32 %v3827, %v3951
      %3953 = vmatmul.f32.gmra.mxu0 %v3839
      %v3954 = vpop.f32.mrf.mxu0
      %v3955 = vadd.f32 %v3827, %v3954
      %3956 = vmatmul.f32.gmra.mxu0 %v3842
      %v3957 = vpop.f32.mrf.mxu0
      %v3958 = vadd.f32 %v3827, %v3957
      %3959 = vmatmul.f32.gmra.mxu0 %v3845
      %v3960 = vpop.f32.mrf.mxu0
      %v3961 = vadd.f32 %v3827, %v3960
      %3962 = vmatmul.f32.gmra.mxu0 %v3848
      %v3963 = vpop.f32.mrf.mxu0
      %v3964 = vadd.f32 %v3827, %v3963
      %3965 = vmatmul.f32.gmra.mxu0 %v3851
      %v3966 = vpop.f32.mrf.mxu0
      %v3967 = vadd.f32 %v3827, %v3966
      %3968 = vmatmul.f32.gmra.mxu0 %v3854
      %v3969 = vpop.f32.mrf.mxu0
      %v3970 = vadd.f32 %v3827, %v3969
      %3971 = vmatmul.f32.gmra.mxu0 %v3857
      %v3972 = vpop.f32.mrf.mxu0
      %v3973 = vadd.f32 %v3827, %v3972
      %3974 = vmatmul.f32.gmra.mxu0 %v3860
      %v3975 = vpop.f32.mrf.mxu0
      %v3976 = vadd.f32 %v3827, %v3975
      %3977 = vmatmul.f32.gmra.mxu0 %v3863
      %v3978 = vpop.f32.mrf.mxu0
      %v3979 = vadd.f32 %v3827, %v3978
      %3980 = vmatmul.f32.gmra.mxu0 %v3866
      %v3981 = vpop.f32.mrf.mxu0
      %v3982 = vadd.f32 %v3827, %v3981
      %3983 = vmatmul.f32.gmra.mxu0 %v3869
      %v3984 = vpop.f32.mrf.mxu0
      %v3985 = vadd.f32 %v3827, %v3984
      %3986 = vmatmul.f32.gmra.mxu0 %v3872
      %v3987 = vpop.f32.mrf.mxu0
      %v3988 = vadd.f32 %v3827, %v3987
      %3989 = vmatmul.f32.gmra.mxu0 %v3875
      %v3990 = vpop.f32.mrf.mxu0
      %v3991 = vadd.f32 %v3827, %v3990
      %3992 = vmatmul.f32.gmra.mxu0 %v3878
      %v3993 = vpop.f32.mrf.mxu0
      %v3994 = vadd.f32 %v3827, %v3993
      %3995 = vmatmul.f32.gmra.mxu0 %v3881
      %v3996 = vpop.f32.mrf.mxu0
      %v3997 = vadd.f32 %v3827, %v3996
      %3998 = vmatmul.f32.gmra.mxu0 %v3884
      %v3999 = vpop.f32.mrf.mxu0
      %v4000 = vadd.f32 %v3827, %v3999
      %4001 = vmatmul.f32.gmra.mxu0 %v3887
      %v4002 = vpop.f32.mrf.mxu0
      %v4003 = vadd.f32 %v3827, %v4002
      %4004 = vmatmul.f32.gmra.mxu0 %v3890
      %v4005 = vpop.f32.mrf.mxu0
      %v4006 = vadd.f32 %v3827, %v4005
      %4007 = vmatmul.f32.gmra.mxu0 %v3893
      %v4008 = vpop.f32.mrf.mxu0
      %v4009 = vadd.f32 %v3827, %v4008
      %4010 = vmatmul.f32.gmra.mxu0 %v3896
      %v4011 = vpop.f32.mrf.mxu0
      %v4012 = vadd.f32 %v3827, %v4011
      %4013 = vmatmul.f32.gmra.mxu0 %v3899
      %v4014 = vpop.f32.mrf.mxu0
      %v4015 = vadd.f32 %v3827, %v4014
      %4016 = vmatmul.f32.gmra.mxu0 %v3902
      %v4017 = vpop.f32.mrf.mxu0
      %v4018 = vadd.f32 %v3827, %v4017
      %4019 = vmatmul.f32.gmra.mxu0 %v3905
      %v4020 = vpop.f32.mrf.mxu0
      %v4021 = vadd.f32 %v3827, %v4020
      %4022 = vmatmul.f32.gmra.mxu0 %v3908
      %v4023 = vpop.f32.mrf.mxu0
      %v4024 = vadd.f32 %v3827, %v4023
      %4025 = vmatmul.f32.gmra.mxu0 %v3911
      %v4026 = vpop.f32.mrf.mxu0
      %v4027 = vadd.f32 %v3827, %v4026
      %4028 = vmatmul.f32.gmra.mxu0 %v3914
      %v4029 = vpop.f32.mrf.mxu0
      %v4030 = vadd.f32 %v3827, %v4029
      %4031 = vmatmul.f32.gmra.mxu0 %v3917
      %v4032 = vpop.f32.mrf.mxu0
      %v4033 = vadd.f32 %v3827, %v4032
      %4034 = vmatmul.f32.gmra.mxu0 %v3920
      %v4035 = vpop.f32.mrf.mxu0
      %v4036 = vadd.f32 %v3827, %v4035
      %4037 = vmatmul.f32.gmra.mxu0 %v3923
      %v4038 = vpop.f32.mrf.mxu0
      %v4039 = vadd.f32 %v3827, %v4038
      %4040 = vdwg.mxu0
      %v4041 = vld [vmem:[%s8] sm:$0xf]
      %v4042 = vld [vmem:[%s9] sm:$0x1]
      %v4044 = vperm.slane %v4042, 0
      %v4047 = vsel %vm546, %v4041, 0
      %4049 = vmatpush.msra.mxu0 0.0
      %4050 = vmatpush.msra.mxu0 0.0
      %4051 = vmatpush.msra.mxu0 0.0
      %4052 = vmatpush.msra.mxu0 0.0
      %4053 = vmatpush.msra.mxu0 0.0
      %4054 = vmatpush.msra.mxu0 0.0
      %4055 = vmatpush.msra.mxu0 0.0
      %4056 = vmatpush.msra.mxu0 0.0
      %4057 = vmatpush.msra.mxu0 0.0
      %4058 = vmatpush.msra.mxu0 0.0
      %4059 = vmatpush.msra.mxu0 0.0
      %4060 = vmatpush.msra.mxu0 0.0
      %4061 = vmatpush.msra.mxu0 0.0
      %4062 = vmatpush.msra.mxu0 0.0
      %4063 = vmatpush.msra.mxu0 0.0
      %4064 = vmatpush.msra.mxu0 %v4047
      %4065 = vmatmul.f32.gmra.mxu0 %v451
      %v4066 = vpop.f32.mrf.mxu0
      %v4067 = vadd.f32 %v4044, %v4066
      %4068 = vmatmul.f32.gmra.mxu0 %v454
      %v4069 = vpop.f32.mrf.mxu0
      %v4070 = vadd.f32 %v4044, %v4069
      %4071 = vmatmul.f32.gmra.mxu0 %v457
      %v4072 = vpop.f32.mrf.mxu0
      %v4073 = vadd.f32 %v4044, %v4072
      %4074 = vmatmul.f32.gmra.mxu0 %v460
      %v4075 = vpop.f32.mrf.mxu0
      %v4076 = vadd.f32 %v4044, %v4075
      %4077 = vmatmul.f32.gmra.mxu0 %v463
      %v4078 = vpop.f32.mrf.mxu0
      %v4079 = vadd.f32 %v4044, %v4078
      %4080 = vmatmul.f32.gmra.mxu0 %v466
      %v4081 = vpop.f32.mrf.mxu0
      %v4082 = vadd.f32 %v4044, %v4081
      %4083 = vmatmul.f32.gmra.mxu0 %v469
      %v4084 = vpop.f32.mrf.mxu0
      %v4085 = vadd.f32 %v4044, %v4084
      %4086 = vmatmul.f32.gmra.mxu0 %v472
      %v4087 = vpop.f32.mrf.mxu0
      %v4088 = vadd.f32 %v4044, %v4087
      %4089 = vmatmul.f32.gmra.mxu0 %v475
      %v4090 = vpop.f32.mrf.mxu0
      %v4091 = vadd.f32 %v4044, %v4090
      %4092 = vmatmul.f32.gmra.mxu0 %v478
      %v4093 = vpop.f32.mrf.mxu0
      %v4094 = vadd.f32 %v4044, %v4093
      %4095 = vmatmul.f32.gmra.mxu0 %v481
      %v4096 = vpop.f32.mrf.mxu0
      %v4097 = vadd.f32 %v4044, %v4096
      %4098 = vmatmul.f32.gmra.mxu0 %v484
      %v4099 = vpop.f32.mrf.mxu0
      %v4100 = vadd.f32 %v4044, %v4099
      %4101 = vmatmul.f32.gmra.mxu0 %v487
      %v4102 = vpop.f32.mrf.mxu0
      %v4103 = vadd.f32 %v4044, %v4102
      %4104 = vmatmul.f32.gmra.mxu0 %v490
      %v4105 = vpop.f32.mrf.mxu0
      %v4106 = vadd.f32 %v4044, %v4105
      %4107 = vmatmul.f32.gmra.mxu0 %v493
      %v4108 = vpop.f32.mrf.mxu0
      %v4109 = vadd.f32 %v4044, %v4108
      %4110 = vmatmul.f32.gmra.mxu0 %v496
      %v4111 = vpop.f32.mrf.mxu0
      %v4112 = vadd.f32 %v4044, %v4111
      %4113 = vmatmul.f32.gmra.mxu0 %v499
      %v4114 = vpop.f32.mrf.mxu0
      %v4115 = vadd.f32 %v4044, %v4114
      %4116 = vmatmul.f32.gmra.mxu0 %v502
      %v4117 = vpop.f32.mrf.mxu0
      %v4118 = vadd.f32 %v4044, %v4117
      %4119 = vmatmul.f32.gmra.mxu0 %v505
      %v4120 = vpop.f32.mrf.mxu0
      %v4121 = vadd.f32 %v4044, %v4120
      %4122 = vmatmul.f32.gmra.mxu0 %v508
      %v4123 = vpop.f32.mrf.mxu0
      %v4124 = vadd.f32 %v4044, %v4123
      %4125 = vmatmul.f32.gmra.mxu0 %v511
      %v4126 = vpop.f32.mrf.mxu0
      %v4127 = vadd.f32 %v4044, %v4126
      %4128 = vmatmul.f32.gmra.mxu0 %v514
      %v4129 = vpop.f32.mrf.mxu0
      %v4130 = vadd.f32 %v4044, %v4129
      %4131 = vmatmul.f32.gmra.mxu0 %v517
      %v4132 = vpop.f32.mrf.mxu0
      %v4133 = vadd.f32 %v4044, %v4132
      %4134 = vmatmul.f32.gmra.mxu0 %v520
      %v4135 = vpop.f32.mrf.mxu0
      %v4136 = vadd.f32 %v4044, %v4135
      %4137 = vmatmul.f32.gmra.mxu0 %v523
      %v4138 = vpop.f32.mrf.mxu0
      %v4139 = vadd.f32 %v4044, %v4138
      %4140 = vmatmul.f32.gmra.mxu0 %v526
      %v4141 = vpop.f32.mrf.mxu0
      %v4142 = vadd.f32 %v4044, %v4141
      %4143 = vmatmul.f32.gmra.mxu0 %v529
      %v4144 = vpop.f32.mrf.mxu0
      %v4145 = vadd.f32 %v4044, %v4144
      %4146 = vmatmul.f32.gmra.mxu0 %v532
      %v4147 = vpop.f32.mrf.mxu0
      %v4148 = vadd.f32 %v4044, %v4147
      %4149 = vmatmul.f32.gmra.mxu0 %v535
      %v4150 = vpop.f32.mrf.mxu0
      %v4151 = vadd.f32 %v4044, %v4150
      %4152 = vmatmul.f32.gmra.mxu0 %v538
      %v4153 = vpop.f32.mrf.mxu0
      %v4154 = vadd.f32 %v4044, %v4153
      %4155 = vmatmul.f32.gmra.mxu0 %v541
      %v4156 = vpop.f32.mrf.mxu0
      %v4157 = vadd.f32 %v4044, %v4156
      %4158 = vmatmul.f32.gmra.mxu0 %v544
      %v4159 = vpop.f32.mrf.mxu0
      %v4160 = vadd.f32 %v4044, %v4159
      %4161 = vdwg.mxu0
      %v4162 = vadd.f32 %v3946, %v4067
      %v4163 = vadd.f32 %v3949, %v4070
      %v4164 = vadd.f32 %v3952, %v4073
      %v4165 = vadd.f32 %v3955, %v4076
      %v4166 = vadd.f32 %v3958, %v4079
      %v4167 = vadd.f32 %v3961, %v4082
      %v4168 = vadd.f32 %v3964, %v4085
      %v4169 = vadd.f32 %v3967, %v4088
      %v4170 = vadd.f32 %v3970, %v4091
      %v4171 = vadd.f32 %v3973, %v4094
      %v4172 = vadd.f32 %v3976, %v4097
      %v4173 = vadd.f32 %v3979, %v4100
      %v4174 = vadd.f32 %v3982, %v4103
      %v4175 = vadd.f32 %v3985, %v4106
      %v4176 = vadd.f32 %v3988, %v4109
      %v4177 = vadd.f32 %v3991, %v4112
      %v4178 = vadd.f32 %v3994, %v4115
      %v4179 = vadd.f32 %v3997, %v4118
      %v4180 = vadd.f32 %v4000, %v4121
      %v4181 = vadd.f32 %v4003, %v4124
      %v4182 = vadd.f32 %v4006, %v4127
      %v4183 = vadd.f32 %v4009, %v4130
      %v4184 = vadd.f32 %v4012, %v4133
      %v4185 = vadd.f32 %v4015, %v4136
      %v4186 = vadd.f32 %v4018, %v4139
      %v4187 = vadd.f32 %v4021, %v4142
      %v4188 = vadd.f32 %v4024, %v4145
      %v4189 = vadd.f32 %v4027, %v4148
      %v4190 = vadd.f32 %v4030, %v4151
      %v4191 = vadd.f32 %v4033, %v4154
      %v4192 = vadd.f32 %v4036, %v4157
      %v4193 = vadd.f32 %v4039, %v4160
      %v4194 = vmax.f32 %v4162, 0.0
      %v4195 = vmax.f32 %v4163, 0.0
      %v4196 = vmax.f32 %v4164, 0.0
      %v4197 = vmax.f32 %v4165, 0.0
      %v4198 = vmax.f32 %v4166, 0.0
      %v4199 = vmax.f32 %v4167, 0.0
      %v4200 = vmax.f32 %v4168, 0.0
      %v4201 = vmax.f32 %v4169, 0.0
      %v4202 = vmax.f32 %v4170, 0.0
      %v4203 = vmax.f32 %v4171, 0.0
      %v4204 = vmax.f32 %v4172, 0.0
      %v4205 = vmax.f32 %v4173, 0.0
      %v4206 = vmax.f32 %v4174, 0.0
      %v4207 = vmax.f32 %v4175, 0.0
      %v4208 = vmax.f32 %v4176, 0.0
      %v4209 = vmax.f32 %v4177, 0.0
      %v4210 = vmax.f32 %v4178, 0.0
      %v4211 = vmax.f32 %v4179, 0.0
      %v4212 = vmax.f32 %v4180, 0.0
      %v4213 = vmax.f32 %v4181, 0.0
      %v4214 = vmax.f32 %v4182, 0.0
      %v4215 = vmax.f32 %v4183, 0.0
      %v4216 = vmax.f32 %v4184, 0.0
      %v4217 = vmax.f32 %v4185, 0.0
      %v4218 = vmax.f32 %v4186, 0.0
      %v4219 = vmax.f32 %v4187, 0.0
      %v4220 = vmax.f32 %v4188, 0.0
      %v4221 = vmax.f32 %v4189, 0.0
      %v4222 = vmax.f32 %v4190, 0.0
      %v4223 = vmax.f32 %v4191, 0.0
      %v4224 = vmax.f32 %v4192, 0.0
      %v4225 = vmax.f32 %v4193, 0.0
      %vm4226 = vcmask 64512
      %4227 = vst.msk [vmem:[%s379] sm:$0xff] %vm4226, %v4194
      %4228 = vst.msk [vmem:[%s379 + $0x8] sm:$0xff] %vm4226, %v4195
      %4229 = vst.msk [vmem:[%s379 + $0x10] sm:$0xff] %vm4226, %v4196
      %4230 = vst.msk [vmem:[%s379 + $0x18] sm:$0xff] %vm4226, %v4197
      %4231 = vst.msk [vmem:[%s379 + $0x20] sm:$0xff] %vm4226, %v4198
      %4232 = vst.msk [vmem:[%s379 + $0x28] sm:$0xff] %vm4226, %v4199
      %4233 = vst.msk [vmem:[%s379 + $0x30] sm:$0xff] %vm4226, %v4200
      %4234 = vst.msk [vmem:[%s379 + $0x38] sm:$0xff] %vm4226, %v4201
      %4235 = vst.msk [vmem:[%s379 + $0x40] sm:$0xff] %vm4226, %v4202
      %4236 = vst.msk [vmem:[%s379 + $0x48] sm:$0xff] %vm4226, %v4203
      %4237 = vst.msk [vmem:[%s379 + $0x50] sm:$0xff] %vm4226, %v4204
      %4238 = vst.msk [vmem:[%s379 + $0x58] sm:$0xff] %vm4226, %v4205
      %4239 = vst.msk [vmem:[%s379 + $0x60] sm:$0xff] %vm4226, %v4206
      %4240 = vst.msk [vmem:[%s379 + $0x68] sm:$0xff] %vm4226, %v4207
      %4241 = vst.msk [vmem:[%s379 + $0x70] sm:$0xff] %vm4226, %v4208
      %4242 = vst.msk [vmem:[%s379 + $0x78] sm:$0xff] %vm4226, %v4209
      %4243 = vst.msk [vmem:[%s379 + $0x80] sm:$0xff] %vm4226, %v4210
      %4244 = vst.msk [vmem:[%s379 + $0x88] sm:$0xff] %vm4226, %v4211
      %4245 = vst.msk [vmem:[%s379 + $0x90] sm:$0xff] %vm4226, %v4212
      %4246 = vst.msk [vmem:[%s379 + $0x98] sm:$0xff] %vm4226, %v4213
      %4247 = vst.msk [vmem:[%s379 + $0xa0] sm:$0xff] %vm4226, %v4214
      %4248 = vst.msk [vmem:[%s379 + $0xa8] sm:$0xff] %vm4226, %v4215
      %4249 = vst.msk [vmem:[%s379 + $0xb0] sm:$0xff] %vm4226, %v4216
      %4250 = vst.msk [vmem:[%s379 + $0xb8] sm:$0xff] %vm4226, %v4217
      %4251 = vst.msk [vmem:[%s379 + $0xc0] sm:$0xff] %vm4226, %v4218
      %4252 = vst.msk [vmem:[%s379 + $0xc8] sm:$0xff] %vm4226, %v4219
      %4253 = vst.msk [vmem:[%s379 + $0xd0] sm:$0xff] %vm4226, %v4220
      %4254 = vst.msk [vmem:[%s379 + $0xd8] sm:$0xff] %vm4226, %v4221
      %4255 = vst.msk [vmem:[%s379 + $0xe0] sm:$0xff] %vm4226, %v4222
      %4256 = vst.msk [vmem:[%s379 + $0xe8] sm:$0xff] %vm4226, %v4223
      %4257 = vst.msk [vmem:[%s379 + $0xf0] sm:$0xff] %vm4226, %v4224
      %4258 = vst.msk [vmem:[%s379 + $0xf8] sm:$0xff] %vm4226, %v4225
      %p4259 = scmp.lt.s32.totalorder %s21, 1
      %s4260 = scalar_select %p4259, %s21, 1
      %s4261 = smul.addr %s4260, 32
      %s4262 = smul.addr %s4261, 8
      %s4263 = scalar_lea.vmem %s10, %s4262
      // Predicated region
      $region61: #{resmod_forward.4} parent=59 // pred_check
        %p4264 = pneg %p259
      $region62: #{resmod_forward.4} parent=59 // pred_check_branch
        %4266 = sbr.rel (%p4264) target = $region64
      $region63: #{resmod_forward.4} parent=59 // pred_region
        _
      $region64: #{resmod_forward.4} parent=59 // pred_fallthru
        _
    $region60: #{resmod_forward.4} parent=5 // pred_fallthru
      _
    %p4267 = scmp.le.s32.totalorder 2, %s16
    // Predicated region
    $region65: #{resmod_forward.4} parent=5 // pred_check
      %p4268 = pneg %p4267
    $region66: #{resmod_forward.4} parent=5 // pred_check_branch
      %4270 = sbr.rel (%p4268) target = $region68
    $region67: #{resmod_forward.4} parent=5 // pred_region
      %s4271 = ssub.s32 %s16, 2
      // Predicated region
      $region69: #{resmod_forward.4} parent=67 // pred_check
        %p4272 = pneg %p265
      $region70: #{resmod_forward.4} parent=67 // pred_check_branch
        %4274 = sbr.rel (%p4272) target = $region72
      $region71: #{resmod_forward.4} parent=67 // pred_region
        %p4275 = scmp.lt.s32.totalorder %s22, 1
        %s4276 = scalar_select %p4275, %s22, 1
        %s4277 = smul.addr %s4276, 32
        %s4278 = smul.addr %s4277, 8
        %s4279 = scalar_lea.vmem %s10, %s4278
      $region72: #{resmod_forward.4} parent=67 // pred_fallthru
        _
    $region68: #{resmod_forward.4} parent=5 // pred_fallthru
      _
  $region6: #{resmod_forward.4} parent=0 // loop_footer
    %s20 = sadd.s32 1, %s16
  $region7: #{resmod_forward.4} parent=0 // loop_footer_branch
    %15 = sbr.rel target = $region3
  $region8: #{resmod_forward.4} parent=0 // loop_exit
    _

</llo_original>
